<compile_context>
chip_gen: v7x
topology: tpu7x:2x2x1
jax: 0.10.0
libtpu: 0.0.40
codegen_flags: <defaults>
</compile_context>

<pallas_src>
import jax
import jax.numpy as jnp
from jax import lax
from jax.experimental import pallas as pl
from jax.experimental.pallas import tpu as pltpu

VMEM_LIMIT = 64 * 1024 * 1024


# ----------------------------------------------------------------------------
# Helpers
# ----------------------------------------------------------------------------
def _largest_divisor_leq(n, target):
    t = max(1, min(n, target))
    while n % t != 0:
        t -= 1
    return t


def _zero_halo(xp_ref):
    """Zero only the 1-pixel halo strips of a padded (Hp, Wp, C) scratch."""
    hp, wp, c = xp_ref.shape
    xp_ref[0:1, :, :] = jnp.zeros((1, wp, c), xp_ref.dtype)
    xp_ref[hp - 1:hp, :, :] = jnp.zeros((1, wp, c), xp_ref.dtype)
    xp_ref[:, 0:1, :] = jnp.zeros((hp, 1, c), xp_ref.dtype)
    xp_ref[:, wp - 1:wp, :] = jnp.zeros((hp, 1, c), xp_ref.dtype)


def _conv3x3(xp_ref, w_ref, hh, ww, cin):
    """3x3 conv as 9 accumulating MXU dots on shifted views of the padded
    scratch (no im2col buffer).  w_ref rows are tap-major (ky, kx, cin)."""
    acc = None
    for ky in range(3):
        for kx in range(3):
            lhs = xp_ref[ky:ky + hh, kx:kx + ww, :].reshape(hh * ww, cin)
            wt = w_ref[(ky * 3 + kx) * cin:(ky * 3 + kx + 1) * cin, :]
            d = jnp.dot(lhs, wt, preferred_element_type=jnp.float32)
            acc = d if acc is None else acc + d
    return acc


# ----------------------------------------------------------------------------
# Kernel 1: ConvTranspose2d(kernel=2, stride=2) as a tiled matmul.
#   out[n, 2i+a, 2j+b, co] = sum_ci x[n,i,j,ci] * W[ci,co,a,b] + bias[co]
# Weight columns are packed (a, b, co); the kernel splits the 'a' halves into
# a dedicated output axis so the final reshape to (N, 2H, 2W, Cout) is a
# contiguous (free) XLA reshape -- no depth-to-space transpose pass.
# ----------------------------------------------------------------------------
def conv_transpose_kernel(x_ref, w_ref, b_ref, o_ref):
    # x_ref: (TB, W, Cin); w_ref: (Cin, 4*Cout); b_ref: (1, 4*Cout)
    # o_ref: (TB, 2, W, 2*Cout)  -- axis 1 = output-row parity 'a',
    #                               last axis packs (col-parity b, channel).
    tb, w, cin = x_ref.shape
    c2 = o_ref.shape[3]
    x2d = x_ref[...].reshape(tb * w, cin)
    y = jnp.dot(x2d, w_ref[...], preferred_element_type=jnp.float32) + b_ref[...]
    o_ref[:, 0:1, :, :] = y[:, 0:c2].reshape(tb, 1, w, c2)
    o_ref[:, 1:2, :, :] = y[:, c2:2 * c2].reshape(tb, 1, w, c2)


def conv_transpose_2x2_s2(x_nhwc, w_flat, b_flat, target_rows=2048):
    """x_nhwc: (N,H,W,Cin); w_flat: (Cin, 4*Cout) cols (a,b,co); b_flat: (1,4*Cout)."""
    N, H, W, Cin = x_nhwc.shape
    Cout4 = w_flat.shape[1]
    Cout = Cout4 // 4
    R = N * H
    x_rows = x_nhwc.reshape(R, W, Cin)                       # free reshape
    tb = _largest_divisor_leq(R, max(1, target_rows // W))

    out = pl.pallas_call(
        conv_transpose_kernel,
        out_shape=jax.ShapeDtypeStruct((R, 2, W, 2 * Cout), jnp.float32),
        grid=(R // tb,),
        in_specs=[
            pl.BlockSpec((tb, W, Cin), lambda i: (i, 0, 0)),
            pl.BlockSpec((Cin, Cout4), lambda i: (0, 0)),
            pl.BlockSpec((1, Cout4), lambda i: (0, 0)),
        ],
        out_specs=pl.BlockSpec((tb, 2, W, 2 * Cout), lambda i: (i, 0, 0, 0)),
        compiler_params=pltpu.CompilerParams(
            dimension_semantics=("parallel",),
            vmem_limit_bytes=VMEM_LIMIT),
    )(x_rows, w_flat, b_flat)

    # (R, 2, W, 2*Cout) -> (N, 2H, 2W, Cout): bit-contiguous, free reshape.
    return out.reshape(N, 2 * H, 2 * W, Cout)


# ----------------------------------------------------------------------------
# Kernel 2: fused [channel concat] + pad + Conv3x3+BN+ReLU + Conv3x3+BN+ReLU.
# conv1's output never touches HBM: it lives in a second padded VMEM scratch.
# ----------------------------------------------------------------------------
def fused_concat_double_conv_kernel(xa_ref, xb_ref, w1_ref, s1_ref, b1_ref,
                                    w2_ref, s2_ref, b2_ref,
                                    o_ref, xp1_ref, xp2_ref):
    hh, ww, cout = o_ref.shape[1], o_ref.shape[2], o_ref.shape[3]
    ca = xa_ref.shape[3]
    cb = xb_ref.shape[3]
    cin = ca + cb

    _zero_halo(xp1_ref)
    _zero_halo(xp2_ref)

    # fused channel concat (order = [upsampled, skip], like torch.cat dim=1)
    xp1_ref[1:hh + 1, 1:ww + 1, 0:ca] = xa_ref[0]
    xp1_ref[1:hh + 1, 1:ww + 1, ca:cin] = xb_ref[0]

    h1 = _conv3x3(xp1_ref, w1_ref, hh, ww, cin)              # (hh*ww, cout)
    h1 = jnp.maximum(h1 * s1_ref[...] + b1_ref[...], 0.0)    # folded bias+BN+ReLU
    xp2_ref[1:hh + 1, 1:ww + 1, :] = h1.reshape(hh, ww, cout)

    h2 = _conv3x3(xp2_ref, w2_ref, hh, ww, cout)
    h2 = jnp.maximum(h2 * s2_ref[...] + b2_ref[...], 0.0)
    o_ref[...] = h2.reshape(1, hh, ww, cout).astype(o_ref.dtype)


def fused_double_conv_kernel(x_ref, w1_ref, s1_ref, b1_ref,
                             w2_ref, s2_ref, b2_ref,
                             o_ref, xp1_ref, xp2_ref):
    hh, ww, cout = o_ref.shape[1], o_ref.shape[2], o_ref.shape[3]
    cin = x_ref.shape[3]

    _zero_halo(xp1_ref)
    _zero_halo(xp2_ref)

    xp1_ref[1:hh + 1, 1:ww + 1, :] = x_ref[0]

    h1 = _conv3x3(xp1_ref, w1_ref, hh, ww, cin)
    h1 = jnp.maximum(h1 * s1_ref[...] + b1_ref[...], 0.0)
    xp2_ref[1:hh + 1, 1:ww + 1, :] = h1.reshape(hh, ww, cout)

    h2 = _conv3x3(xp2_ref, w2_ref, hh, ww, cout)
    h2 = jnp.maximum(h2 * s2_ref[...] + b2_ref[...], 0.0)
    o_ref[...] = h2.reshape(1, hh, ww, cout).astype(o_ref.dtype)


def fused_double_conv_concat(xa, xb, prep):
    N, HH, WW, Ca = xa.shape
    Cb = xb.shape[3]
    Cin = Ca + Cb
    Cout = prep["c1_w"].shape[1]
    return pl.pallas_call(
        fused_concat_double_conv_kernel,
        out_shape=jax.ShapeDtypeStruct((N, HH, WW, Cout), jnp.float32),
        grid=(N,),
        in_specs=[
            pl.BlockSpec((1, HH, WW, Ca), lambda n: (n, 0, 0, 0)),
            pl.BlockSpec((1, HH, WW, Cb), lambda n: (n, 0, 0, 0)),
            pl.BlockSpec((9 * Cin, Cout), lambda n: (0, 0)),
            pl.BlockSpec((1, Cout), lambda n: (0, 0)),
            pl.BlockSpec((1, Cout), lambda n: (0, 0)),
            pl.BlockSpec((9 * Cout, Cout), lambda n: (0, 0)),
            pl.BlockSpec((1, Cout), lambda n: (0, 0)),
            pl.BlockSpec((1, Cout), lambda n: (0, 0)),
        ],
        out_specs=pl.BlockSpec((1, HH, WW, Cout), lambda n: (n, 0, 0, 0)),
        scratch_shapes=[
            pltpu.VMEM((HH + 2, WW + 2, Cin), jnp.float32),
            pltpu.VMEM((HH + 2, WW + 2, Cout), jnp.float32),
        ],
        compiler_params=pltpu.CompilerParams(
            dimension_semantics=("parallel",),
            vmem_limit_bytes=VMEM_LIMIT),
    )(xa, xb, prep["c1_w"], prep["c1_scale"], prep["c1_bias"],
      prep["c2_w"], prep["c2_scale"], prep["c2_bias"])


def fused_double_conv(x, prep):
    N, HH, WW, Cin = x.shape
    Cout = prep["c1_w"].shape[1]
    return pl.pallas_call(
        fused_double_conv_kernel,
        out_shape=jax.ShapeDtypeStruct((N, HH, WW, Cout), jnp.float32),
        grid=(N,),
        in_specs=[
            pl.BlockSpec((1, HH, WW, Cin), lambda n: (n, 0, 0, 0)),
            pl.BlockSpec((9 * Cin, Cout), lambda n: (0, 0)),
            pl.BlockSpec((1, Cout), lambda n: (0, 0)),
            pl.BlockSpec((1, Cout), lambda n: (0, 0)),
            pl.BlockSpec((9 * Cout, Cout), lambda n: (0, 0)),
            pl.BlockSpec((1, Cout), lambda n: (0, 0)),
            pl.BlockSpec((1, Cout), lambda n: (0, 0)),
        ],
        out_specs=pl.BlockSpec((1, HH, WW, Cout), lambda n: (n, 0, 0, 0)),
        scratch_shapes=[
            pltpu.VMEM((HH + 2, WW + 2, Cin), jnp.float32),
            pltpu.VMEM((HH + 2, WW + 2, Cout), jnp.float32),
        ],
        compiler_params=pltpu.CompilerParams(
            dimension_semantics=("parallel",),
            vmem_limit_bytes=VMEM_LIMIT),
    )(x, prep["c1_w"], prep["c1_scale"], prep["c1_bias"],
      prep["c2_w"], prep["c2_scale"], prep["c2_bias"])


# ----------------------------------------------------------------------------
# Parameter preparation (done once):
#   * ConvTranspose weight (Cin,Cout,2,2) -> (Cin, 4*Cout), cols (a, b, co);
#     bias tiled x4 with the same packing.
#   * Conv weight (Cout,Cin,3,3) -> (9*Cin, Cout), rows tap-major (ky,kx,ci).
#   * BN folded: scale = gamma / sqrt(var+eps); bias = (conv_b - mean)*scale + beta
# ----------------------------------------------------------------------------
def prepare_params(params, eps=1e-5):
    cin_up, cout_up = params["up_w"].shape[0], params["up_w"].shape[1]
    up_w = jnp.transpose(params["up_w"], (0, 2, 3, 1)).reshape(cin_up, 4 * cout_up)
    up_b = jnp.tile(params["up_b"], 4).reshape(1, 4 * cout_up)

    def fold(w, b, g, be, m, v):
        cout, cin = w.shape[0], w.shape[1]
        w_flat = jnp.transpose(w, (2, 3, 1, 0)).reshape(9 * cin, cout)
        scale = g / jnp.sqrt(v + eps)
        bias = (b - m) * scale + be
        return w_flat, scale.reshape(1, cout), bias.reshape(1, cout)

    c1_w, c1_s, c1_b = fold(params["c1_w"], params["c1_b"], params["c1_gamma"],
                            params["c1_beta"], params["c1_mean"], params["c1_var"])
    c2_w, c2_s, c2_b = fold(params["c2_w"], params["c2_b"], params["c2_gamma"],
                            params["c2_beta"], params["c2_mean"], params["c2_var"])
    return {"up_w": up_w, "up_b": up_b,
            "c1_w": c1_w, "c1_scale": c1_s, "c1_bias": c1_b,
            "c2_w": c2_w, "c2_scale": c2_s, "c2_bias": c2_b}


# ----------------------------------------------------------------------------
# Module forward (PyTorch NCHW interface)
# ----------------------------------------------------------------------------
def up_block_forward(prep, up_x_nchw, down_x_nchw):
    up_nhwc = jnp.transpose(up_x_nchw, (0, 2, 3, 1))
    x_up = conv_transpose_2x2_s2(up_nhwc, prep["up_w"], prep["up_b"])
    if down_x_nchw is not None:
        down_nhwc = jnp.transpose(down_x_nchw, (0, 2, 3, 1))
        x = fused_double_conv_concat(x_up, down_nhwc, prep)
    else:
        x = fused_double_conv(x_up, prep)
    return jnp.transpose(x, (0, 3, 1, 2))  # back to NCHW


# ----------------------------------------------------------------------------
# Pure-JAX reference (correctness check)
# ----------------------------------------------------------------------------
def reference_forward(params, up_x, down_x, eps=1e-5):
    N, _, H, W = up_x.shape
    cout_up = params["up_w"].shape[1]
    y = jnp.einsum("ncij,cdab->ndiajb", up_x, params["up_w"],
                   precision=lax.Precision.HIGHEST)
    y = y.reshape(N, cout_up, 2 * H, 2 * W) + params["up_b"][None, :, None, None]
    x = jnp.concatenate([y, down_x], axis=1)

    def block(x, w, b, g, be, m, v):
        y = lax.conv_general_dilated(
            x, w, window_strides=(1, 1), padding=((1, 1), (1, 1)),
            dimension_numbers=("NCHW", "OIHW", "NCHW"),
            precision=lax.Precision.HIGHEST)
        y = y + b[None, :, None, None]
        y = (y - m[None, :, None, None]) / jnp.sqrt(v[None, :, None, None] + eps)
        y = y * g[None, :, None, None] + be[None, :, None, None]
        return jnp.maximum(y, 0.0)

    x = block(x, params["c1_w"], params["c1_b"], params["c1_gamma"],
              params["c1_beta"], params["c1_mean"], params["c1_var"])
    x = block(x, params["c2_w"], params["c2_b"], params["c2_gamma"],
              params["c2_beta"], params["c2_mean"], params["c2_var"])
    return x


# ----------------------------------------------------------------------------
if __name__ == "__main__":
    # Config: in_channels=256, out_channels=128,
    # up_conv_in_channels=128, up_conv_out_channels=128 (down_x has 128 ch).
    UP_IN, UP_OUT = 128, 128
    IN_CH, OUT_CH = 256, 128
    N, H, W = 2, 8, 8          # up_x spatial; down_x is (2H, 2W)

    key = jax.random.PRNGKey(0)
    ks = jax.random.split(key, 16)

    params = {
        # ConvTranspose2d weight: (in_channels, out_channels, 2, 2)
        "up_w": 0.05 * jax.random.normal(ks[0], (UP_IN, UP_OUT, 2, 2), jnp.float32),
        "up_b": 0.05 * jax.random.normal(ks[1], (UP_OUT,), jnp.float32),
        # ConvBlock 1: Conv2d(IN_CH, OUT_CH, 3, pad=1) + BN(OUT_CH)
        "c1_w": 0.05 * jax.random.normal(ks[2], (OUT_CH, IN_CH, 3, 3), jnp.float32),
        "c1_b": 0.05 * jax.random.normal(ks[3], (OUT_CH,), jnp.float32),
        "c1_gamma": 1.0 + 0.1 * jax.random.normal(ks[4], (OUT_CH,), jnp.float32),
        "c1_beta": 0.1 * jax.random.normal(ks[5], (OUT_CH,), jnp.float32),
        "c1_mean": 0.1 * jax.random.normal(ks[6], (OUT_CH,), jnp.float32),
        "c1_var": 0.5 + jax.random.uniform(ks[7], (OUT_CH,), jnp.float32),
        # ConvBlock 2: Conv2d(OUT_CH, OUT_CH, 3, pad=1) + BN(OUT_CH)
        "c2_w": 0.05 * jax.random.normal(ks[8], (OUT_CH, OUT_CH, 3, 3), jnp.float32),
        "c2_b": 0.05 * jax.random.normal(ks[9], (OUT_CH,), jnp.float32),
        "c2_gamma": 1.0 + 0.1 * jax.random.normal(ks[10], (OUT_CH,), jnp.float32),
        "c2_beta": 0.1 * jax.random.normal(ks[11], (OUT_CH,), jnp.float32),
        "c2_mean": 0.1 * jax.random.normal(ks[12], (OUT_CH,), jnp.float32),
        "c2_var": 0.5 + jax.random.uniform(ks[13], (OUT_CH,), jnp.float32),
    }

    up_x = jax.random.normal(ks[14], (N, UP_IN, H, W), jnp.float32)            # NCHW
    down_x = jax.random.normal(ks[15], (N, IN_CH - UP_OUT, 2 * H, 2 * W),
                               jnp.float32)                                    # NCHW

    prep = prepare_params(params)
    fwd = jax.jit(up_block_forward)
    out = jax.block_until_ready(fwd(prep, up_x, down_x))

    ref = jax.block_until_ready(reference_forward(params, up_x, down_x))
    assert out.shape == (N, OUT_CH, 2 * H, 2 * W), out.shape
    max_err = float(jnp.max(jnp.abs(out - ref)))
    assert jnp.allclose(out, ref, atol=1e-2, rtol=1e-2), max_err

    print("KERNEL_OK")
</pallas_src>

<mosaic_0001>
module attributes {stable_mosaic.version = 11 : i64} {
  func.func @fused_concat_double_conv_kernel(%arg0: i32, %arg1: memref<1x16x16x128xf32, #tpu.memory_space<vmem>>, %arg2: memref<1x16x16x128xf32, #tpu.memory_space<vmem>>, %arg3: memref<2304x128xf32, #tpu.memory_space<vmem>>, %arg4: memref<1x128xf32, #tpu.memory_space<vmem>>, %arg5: memref<1x128xf32, #tpu.memory_space<vmem>>, %arg6: memref<1152x128xf32, #tpu.memory_space<vmem>>, %arg7: memref<1x128xf32, #tpu.memory_space<vmem>>, %arg8: memref<1x128xf32, #tpu.memory_space<vmem>>, %arg9: memref<1x16x16x128xf32, #tpu.memory_space<vmem>>, %arg10: memref<18x18x256xf32, #tpu.memory_space<vmem>>, %arg11: memref<18x18x128xf32, #tpu.memory_space<vmem>>) attributes {dimension_semantics = [#tpu.dimension_semantics<parallel>], iteration_bounds = array<i64: 2>, scalar_prefetch = 0 : i64, scratch_operands = 2 : i64, tpu.core_type = #tpu.core_type<tc>, window_params = [{transform_indices = @transform_0, window_bounds = array<i64: 1, 16, 16, 128>}, {transform_indices = @transform_1, window_bounds = array<i64: 1, 16, 16, 128>}, {pipeline_mode = #tpu.pipeline_mode<synchronous>, transform_indices = @transform_2, window_bounds = array<i64: 2304, 128>}, {pipeline_mode = #tpu.pipeline_mode<synchronous>, transform_indices = @transform_3, window_bounds = array<i64: 1, 128>}, {pipeline_mode = #tpu.pipeline_mode<synchronous>, transform_indices = @transform_4, window_bounds = array<i64: 1, 128>}, {pipeline_mode = #tpu.pipeline_mode<synchronous>, transform_indices = @transform_5, window_bounds = array<i64: 1152, 128>}, {pipeline_mode = #tpu.pipeline_mode<synchronous>, transform_indices = @transform_6, window_bounds = array<i64: 1, 128>}, {pipeline_mode = #tpu.pipeline_mode<synchronous>, transform_indices = @transform_7, window_bounds = array<i64: 1, 128>}, {transform_indices = @transform_8, window_bounds = array<i64: 1, 16, 16, 128>}]} {
    %cst = arith.constant 0.000000e+00 : f32
    %0 = vector.broadcast %cst : f32 to vector<1x18x256xf32>
    %c0 = arith.constant 0 : index
    %c0_0 = arith.constant 0 : index
    %c0_1 = arith.constant 0 : index
    %1 = vector.load %arg10[%c0, %c0_0, %c0_1] : memref<18x18x256xf32, #tpu.memory_space<vmem>>, vector<1x18x256xf32>
    tpu.vector_store %arg10[%c0, %c0_0, %c0_1], %0 {strides = array<i32>} : memref<18x18x256xf32, #tpu.memory_space<vmem>>, vector<1x18x256xf32>,
    %cst_2 = arith.constant 0.000000e+00 : f32
    %2 = vector.broadcast %cst_2 : f32 to vector<1x18x256xf32>
    %c17 = arith.constant 17 : index
    %c0_3 = arith.constant 0 : index
    %c0_4 = arith.constant 0 : index
    %3 = vector.load %arg10[%c17, %c0_3, %c0_4] : memref<18x18x256xf32, #tpu.memory_space<vmem>>, vector<1x18x256xf32>
    tpu.vector_store %arg10[%c17, %c0_3, %c0_4], %2 {strides = array<i32>} : memref<18x18x256xf32, #tpu.memory_space<vmem>>, vector<1x18x256xf32>,
    %cst_5 = arith.constant 0.000000e+00 : f32
    %4 = vector.broadcast %cst_5 : f32 to vector<18x1x256xf32>
    %c0_6 = arith.constant 0 : index
    %c0_7 = arith.constant 0 : index
    %c0_8 = arith.constant 0 : index
    %5 = vector.load %arg10[%c0_6, %c0_7, %c0_8] : memref<18x18x256xf32, #tpu.memory_space<vmem>>, vector<18x1x256xf32>
    tpu.vector_store %arg10[%c0_6, %c0_7, %c0_8], %4 {strides = array<i32>} : memref<18x18x256xf32, #tpu.memory_space<vmem>>, vector<18x1x256xf32>,
    %cst_9 = arith.constant 0.000000e+00 : f32
    %6 = vector.broadcast %cst_9 : f32 to vector<18x1x256xf32>
    %c0_10 = arith.constant 0 : index
    %c17_11 = arith.constant 17 : index
    %c0_12 = arith.constant 0 : index
    %7 = vector.load %arg10[%c0_10, %c17_11, %c0_12] : memref<18x18x256xf32, #tpu.memory_space<vmem>>, vector<18x1x256xf32>
    tpu.vector_store %arg10[%c0_10, %c17_11, %c0_12], %6 {strides = array<i32>} : memref<18x18x256xf32, #tpu.memory_space<vmem>>, vector<18x1x256xf32>,
    %cst_13 = arith.constant 0.000000e+00 : f32
    %8 = vector.broadcast %cst_13 : f32 to vector<1x18x128xf32>
    %c0_14 = arith.constant 0 : index
    %c0_15 = arith.constant 0 : index
    %c0_16 = arith.constant 0 : index
    %9 = vector.load %arg11[%c0_14, %c0_15, %c0_16] : memref<18x18x128xf32, #tpu.memory_space<vmem>>, vector<1x18x128xf32>
    tpu.vector_store %arg11[%c0_14, %c0_15, %c0_16], %8 {strides = array<i32>} : memref<18x18x128xf32, #tpu.memory_space<vmem>>, vector<1x18x128xf32>,
    %cst_17 = arith.constant 0.000000e+00 : f32
    %10 = vector.broadcast %cst_17 : f32 to vector<1x18x128xf32>
    %c17_18 = arith.constant 17 : index
    %c0_19 = arith.constant 0 : index
    %c0_20 = arith.constant 0 : index
    %11 = vector.load %arg11[%c17_18, %c0_19, %c0_20] : memref<18x18x128xf32, #tpu.memory_space<vmem>>, vector<1x18x128xf32>
    tpu.vector_store %arg11[%c17_18, %c0_19, %c0_20], %10 {strides = array<i32>} : memref<18x18x128xf32, #tpu.memory_space<vmem>>, vector<1x18x128xf32>,
    %cst_21 = arith.constant 0.000000e+00 : f32
    %12 = vector.broadcast %cst_21 : f32 to vector<18x1x128xf32>
    %c0_22 = arith.constant 0 : index
    %c0_23 = arith.constant 0 : index
    %c0_24 = arith.constant 0 : index
    %13 = vector.load %arg11[%c0_22, %c0_23, %c0_24] : memref<18x18x128xf32, #tpu.memory_space<vmem>>, vector<18x1x128xf32>
    tpu.vector_store %arg11[%c0_22, %c0_23, %c0_24], %12 {strides = array<i32>} : memref<18x18x128xf32, #tpu.memory_space<vmem>>, vector<18x1x128xf32>,
    %cst_25 = arith.constant 0.000000e+00 : f32
    %14 = vector.broadcast %cst_25 : f32 to vector<18x1x128xf32>
    %c0_26 = arith.constant 0 : index
    %c17_27 = arith.constant 17 : index
    %c0_28 = arith.constant 0 : index
    %15 = vector.load %arg11[%c0_26, %c17_27, %c0_28] : memref<18x18x128xf32, #tpu.memory_space<vmem>>, vector<18x1x128xf32>
    tpu.vector_store %arg11[%c0_26, %c17_27, %c0_28], %14 {strides = array<i32>} : memref<18x18x128xf32, #tpu.memory_space<vmem>>, vector<18x1x128xf32>,
    %c0_29 = arith.constant 0 : index
    %c0_30 = arith.constant 0 : index
    %c0_31 = arith.constant 0 : index
    %c0_32 = arith.constant 0 : index
    %16 = vector.load %arg1[%c0_29, %c0_30, %c0_31, %c0_32] : memref<1x16x16x128xf32, #tpu.memory_space<vmem>>, vector<1x16x16x128xf32>
    %17 = vector.shape_cast %16 : vector<1x16x16x128xf32> to vector<16x16x128xf32>
    %c1 = arith.constant 1 : index
    %c1_33 = arith.constant 1 : index
    %c0_34 = arith.constant 0 : index
    %18 = vector.load %arg10[%c1, %c1_33, %c0_34] : memref<18x18x256xf32, #tpu.memory_space<vmem>>, vector<16x16x128xf32>
    tpu.vector_store %arg10[%c1, %c1_33, %c0_34], %17 {strides = array<i32>} : memref<18x18x256xf32, #tpu.memory_space<vmem>>, vector<16x16x128xf32>,
    %c0_35 = arith.constant 0 : index
    %c0_36 = arith.constant 0 : index
    %c0_37 = arith.constant 0 : index
    %c0_38 = arith.constant 0 : index
    %19 = vector.load %arg2[%c0_35, %c0_36, %c0_37, %c0_38] : memref<1x16x16x128xf32, #tpu.memory_space<vmem>>, vector<1x16x16x128xf32>
    %20 = vector.shape_cast %19 : vector<1x16x16x128xf32> to vector<16x16x128xf32>
    %c1_39 = arith.constant 1 : index
    %c1_40 = arith.constant 1 : index
    %c128 = arith.constant 128 : index
    %21 = vector.load %arg10[%c1_39, %c1_40, %c128] : memref<18x18x256xf32, #tpu.memory_space<vmem>>, vector<16x16x128xf32>
    tpu.vector_store %arg10[%c1_39, %c1_40, %c128], %20 {strides = array<i32>} : memref<18x18x256xf32, #tpu.memory_space<vmem>>, vector<16x16x128xf32>,
    %c0_41 = arith.constant 0 : index
    %c0_42 = arith.constant 0 : index
    %c0_43 = arith.constant 0 : index
    %22 = vector.load %arg10[%c0_41, %c0_42, %c0_43] : memref<18x18x256xf32, #tpu.memory_space<vmem>>, vector<16x16x256xf32>
    %23 = vector.shape_cast %22 : vector<16x16x256xf32> to vector<256x256xf32>
    %c0_44 = arith.constant 0 : index
    %c0_45 = arith.constant 0 : index
    %24 = vector.load %arg3[%c0_44, %c0_45] : memref<2304x128xf32, #tpu.memory_space<vmem>>, vector<256x128xf32>
    %cst_46 = arith.constant dense<0.000000e+00> : vector<256x128xf32>
    %25 = tpu.matmul %23, %24, %cst_46 {dimension_numbers = #tpu.dot_dimension_numbers<[1], [0], [0], [1], [0, 0, 1, 1], [], []>} : vector<256x256xf32>, vector<256x128xf32>, vector<256x128xf32> -> vector<256x128xf32>
    %c0_47 = arith.constant 0 : index
    %c1_48 = arith.constant 1 : index
    %c0_49 = arith.constant 0 : index
    %26 = vector.load %arg10[%c0_47, %c1_48, %c0_49] : memref<18x18x256xf32, #tpu.memory_space<vmem>>, vector<16x16x256xf32>
    %27 = vector.shape_cast %26 : vector<16x16x256xf32> to vector<256x256xf32>
    %c256 = arith.constant 256 : index
    %c0_50 = arith.constant 0 : index
    %28 = vector.load %arg3[%c256, %c0_50] : memref<2304x128xf32, #tpu.memory_space<vmem>>, vector<256x128xf32>
    %cst_51 = arith.constant dense<0.000000e+00> : vector<256x128xf32>
    %29 = tpu.matmul %27, %28, %cst_51 {dimension_numbers = #tpu.dot_dimension_numbers<[1], [0], [0], [1], [0, 0, 1, 1], [], []>} : vector<256x256xf32>, vector<256x128xf32>, vector<256x128xf32> -> vector<256x128xf32>
    %30 = arith.addf %25, %29 : vector<256x128xf32>
    %c0_52 = arith.constant 0 : index
    %c2 = arith.constant 2 : index
    %c0_53 = arith.constant 0 : index
    %31 = vector.load %arg10[%c0_52, %c2, %c0_53] : memref<18x18x256xf32, #tpu.memory_space<vmem>>, vector<16x16x256xf32>
    %32 = vector.shape_cast %31 : vector<16x16x256xf32> to vector<256x256xf32>
    %c512 = arith.constant 512 : index
    %c0_54 = arith.constant 0 : index
    %33 = vector.load %arg3[%c512, %c0_54] : memref<2304x128xf32, #tpu.memory_space<vmem>>, vector<256x128xf32>
    %cst_55 = arith.constant dense<0.000000e+00> : vector<256x128xf32>
    %34 = tpu.matmul %32, %33, %cst_55 {dimension_numbers = #tpu.dot_dimension_numbers<[1], [0], [0], [1], [0, 0, 1, 1], [], []>} : vector<256x256xf32>, vector<256x128xf32>, vector<256x128xf32> -> vector<256x128xf32>
    %35 = arith.addf %30, %34 : vector<256x128xf32>
    %c1_56 = arith.constant 1 : index
    %c0_57 = arith.constant 0 : index
    %c0_58 = arith.constant 0 : index
    %36 = vector.load %arg10[%c1_56, %c0_57, %c0_58] : memref<18x18x256xf32, #tpu.memory_space<vmem>>, vector<16x16x256xf32>
    %37 = vector.shape_cast %36 : vector<16x16x256xf32> to vector<256x256xf32>
    %c768 = arith.constant 768 : index
    %c0_59 = arith.constant 0 : index
    %38 = vector.load %arg3[%c768, %c0_59] : memref<2304x128xf32, #tpu.memory_space<vmem>>, vector<256x128xf32>
    %cst_60 = arith.constant dense<0.000000e+00> : vector<256x128xf32>
    %39 = tpu.matmul %37, %38, %cst_60 {dimension_numbers = #tpu.dot_dimension_numbers<[1], [0], [0], [1], [0, 0, 1, 1], [], []>} : vector<256x256xf32>, vector<256x128xf32>, vector<256x128xf32> -> vector<256x128xf32>
    %40 = arith.addf %35, %39 : vector<256x128xf32>
    %c1_61 = arith.constant 1 : index
    %c1_62 = arith.constant 1 : index
    %c0_63 = arith.constant 0 : index
    %41 = vector.load %arg10[%c1_61, %c1_62, %c0_63] : memref<18x18x256xf32, #tpu.memory_space<vmem>>, vector<16x16x256xf32>
    %42 = vector.shape_cast %41 : vector<16x16x256xf32> to vector<256x256xf32>
    %c1024 = arith.constant 1024 : index
    %c0_64 = arith.constant 0 : index
    %43 = vector.load %arg3[%c1024, %c0_64] : memref<2304x128xf32, #tpu.memory_space<vmem>>, vector<256x128xf32>
    %cst_65 = arith.constant dense<0.000000e+00> : vector<256x128xf32>
    %44 = tpu.matmul %42, %43, %cst_65 {dimension_numbers = #tpu.dot_dimension_numbers<[1], [0], [0], [1], [0, 0, 1, 1], [], []>} : vector<256x256xf32>, vector<256x128xf32>, vector<256x128xf32> -> vector<256x128xf32>
    %45 = arith.addf %40, %44 : vector<256x128xf32>
    %c1_66 = arith.constant 1 : index
    %c2_67 = arith.constant 2 : index
    %c0_68 = arith.constant 0 : index
    %46 = vector.load %arg10[%c1_66, %c2_67, %c0_68] : memref<18x18x256xf32, #tpu.memory_space<vmem>>, vector<16x16x256xf32>
    %47 = vector.shape_cast %46 : vector<16x16x256xf32> to vector<256x256xf32>
    %c1280 = arith.constant 1280 : index
    %c0_69 = arith.constant 0 : index
    %48 = vector.load %arg3[%c1280, %c0_69] : memref<2304x128xf32, #tpu.memory_space<vmem>>, vector<256x128xf32>
    %cst_70 = arith.constant dense<0.000000e+00> : vector<256x128xf32>
    %49 = tpu.matmul %47, %48, %cst_70 {dimension_numbers = #tpu.dot_dimension_numbers<[1], [0], [0], [1], [0, 0, 1, 1], [], []>} : vector<256x256xf32>, vector<256x128xf32>, vector<256x128xf32> -> vector<256x128xf32>
    %50 = arith.addf %45, %49 : vector<256x128xf32>
    %c2_71 = arith.constant 2 : index
    %c0_72 = arith.constant 0 : index
    %c0_73 = arith.constant 0 : index
    %51 = vector.load %arg10[%c2_71, %c0_72, %c0_73] : memref<18x18x256xf32, #tpu.memory_space<vmem>>, vector<16x16x256xf32>
    %52 = vector.shape_cast %51 : vector<16x16x256xf32> to vector<256x256xf32>
    %c1536 = arith.constant 1536 : index
    %c0_74 = arith.constant 0 : index
    %53 = vector.load %arg3[%c1536, %c0_74] : memref<2304x128xf32, #tpu.memory_space<vmem>>, vector<256x128xf32>
    %cst_75 = arith.constant dense<0.000000e+00> : vector<256x128xf32>
    %54 = tpu.matmul %52, %53, %cst_75 {dimension_numbers = #tpu.dot_dimension_numbers<[1], [0], [0], [1], [0, 0, 1, 1], [], []>} : vector<256x256xf32>, vector<256x128xf32>, vector<256x128xf32> -> vector<256x128xf32>
    %55 = arith.addf %50, %54 : vector<256x128xf32>
    %c2_76 = arith.constant 2 : index
    %c1_77 = arith.constant 1 : index
    %c0_78 = arith.constant 0 : index
    %56 = vector.load %arg10[%c2_76, %c1_77, %c0_78] : memref<18x18x256xf32, #tpu.memory_space<vmem>>, vector<16x16x256xf32>
    %57 = vector.shape_cast %56 : vector<16x16x256xf32> to vector<256x256xf32>
    %c1792 = arith.constant 1792 : index
    %c0_79 = arith.constant 0 : index
    %58 = vector.load %arg3[%c1792, %c0_79] : memref<2304x128xf32, #tpu.memory_space<vmem>>, vector<256x128xf32>
    %cst_80 = arith.constant dense<0.000000e+00> : vector<256x128xf32>
    %59 = tpu.matmul %57, %58, %cst_80 {dimension_numbers = #tpu.dot_dimension_numbers<[1], [0], [0], [1], [0, 0, 1, 1], [], []>} : vector<256x256xf32>, vector<256x128xf32>, vector<256x128xf32> -> vector<256x128xf32>
    %60 = arith.addf %55, %59 : vector<256x128xf32>
    %c2_81 = arith.constant 2 : index
    %c2_82 = arith.constant 2 : index
    %c0_83 = arith.constant 0 : index
    %61 = vector.load %arg10[%c2_81, %c2_82, %c0_83] : memref<18x18x256xf32, #tpu.memory_space<vmem>>, vector<16x16x256xf32>
    %62 = vector.shape_cast %61 : vector<16x16x256xf32> to vector<256x256xf32>
    %c2048 = arith.constant 2048 : index
    %c0_84 = arith.constant 0 : index
    %63 = vector.load %arg3[%c2048, %c0_84] : memref<2304x128xf32, #tpu.memory_space<vmem>>, vector<256x128xf32>
    %cst_85 = arith.constant dense<0.000000e+00> : vector<256x128xf32>
    %64 = tpu.matmul %62, %63, %cst_85 {dimension_numbers = #tpu.dot_dimension_numbers<[1], [0], [0], [1], [0, 0, 1, 1], [], []>} : vector<256x256xf32>, vector<256x128xf32>, vector<256x128xf32> -> vector<256x128xf32>
    %65 = arith.addf %60, %64 : vector<256x128xf32>
    %c0_86 = arith.constant 0 : index
    %c0_87 = arith.constant 0 : index
    %66 = vector.load %arg4[%c0_86, %c0_87] : memref<1x128xf32, #tpu.memory_space<vmem>>, vector<1x128xf32>
    %67 = vector.broadcast %66 : vector<1x128xf32> to vector<256x128xf32>
    %68 = arith.mulf %65, %67 : vector<256x128xf32>
    %c0_88 = arith.constant 0 : index
    %c0_89 = arith.constant 0 : index
    %69 = vector.load %arg5[%c0_88, %c0_89] : memref<1x128xf32, #tpu.memory_space<vmem>>, vector<1x128xf32>
    %70 = vector.broadcast %69 : vector<1x128xf32> to vector<256x128xf32>
    %71 = arith.addf %68, %70 : vector<256x128xf32>
    %cst_90 = arith.constant 0.000000e+00 : f32
    %72 = vector.broadcast %cst_90 : f32 to vector<256x128xf32>
    %73 = arith.maximumf %71, %72 : vector<256x128xf32>
    %74 = vector.shape_cast %73 : vector<256x128xf32> to vector<16x16x128xf32>
    %c1_91 = arith.constant 1 : index
    %c1_92 = arith.constant 1 : index
    %c0_93 = arith.constant 0 : index
    %75 = vector.load %arg11[%c1_91, %c1_92, %c0_93] : memref<18x18x128xf32, #tpu.memory_space<vmem>>, vector<16x16x128xf32>
    tpu.vector_store %arg11[%c1_91, %c1_92, %c0_93], %74 {strides = array<i32>} : memref<18x18x128xf32, #tpu.memory_space<vmem>>, vector<16x16x128xf32>,
    %c0_94 = arith.constant 0 : index
    %c0_95 = arith.constant 0 : index
    %c0_96 = arith.constant 0 : index
    %76 = vector.load %arg11[%c0_94, %c0_95, %c0_96] : memref<18x18x128xf32, #tpu.memory_space<vmem>>, vector<16x16x128xf32>
    %77 = vector.shape_cast %76 : vector<16x16x128xf32> to vector<256x128xf32>
    %c0_97 = arith.constant 0 : index
    %c0_98 = arith.constant 0 : index
    %78 = vector.load %arg6[%c0_97, %c0_98] : memref<1152x128xf32, #tpu.memory_space<vmem>>, vector<128x128xf32>
    %cst_99 = arith.constant dense<0.000000e+00> : vector<256x128xf32>
    %79 = tpu.matmul %77, %78, %cst_99 {dimension_numbers = #tpu.dot_dimension_numbers<[1], [0], [0], [1], [0, 0, 1, 1], [], []>} : vector<256x128xf32>, vector<128x128xf32>, vector<256x128xf32> -> vector<256x128xf32>
    %c0_100 = arith.constant 0 : index
    %c1_101 = arith.constant 1 : index
    %c0_102 = arith.constant 0 : index
    %80 = vector.load %arg11[%c0_100, %c1_101, %c0_102] : memref<18x18x128xf32, #tpu.memory_space<vmem>>, vector<16x16x128xf32>
    %81 = vector.shape_cast %80 : vector<16x16x128xf32> to vector<256x128xf32>
    %c128_103 = arith.constant 128 : index
    %c0_104 = arith.constant 0 : index
    %82 = vector.load %arg6[%c128_103, %c0_104] : memref<1152x128xf32, #tpu.memory_space<vmem>>, vector<128x128xf32>
    %cst_105 = arith.constant dense<0.000000e+00> : vector<256x128xf32>
    %83 = tpu.matmul %81, %82, %cst_105 {dimension_numbers = #tpu.dot_dimension_numbers<[1], [0], [0], [1], [0, 0, 1, 1], [], []>} : vector<256x128xf32>, vector<128x128xf32>, vector<256x128xf32> -> vector<256x128xf32>
    %84 = arith.addf %79, %83 : vector<256x128xf32>
    %c0_106 = arith.constant 0 : index
    %c2_107 = arith.constant 2 : index
    %c0_108 = arith.constant 0 : index
    %85 = vector.load %arg11[%c0_106, %c2_107, %c0_108] : memref<18x18x128xf32, #tpu.memory_space<vmem>>, vector<16x16x128xf32>
    %86 = vector.shape_cast %85 : vector<16x16x128xf32> to vector<256x128xf32>
    %c256_109 = arith.constant 256 : index
    %c0_110 = arith.constant 0 : index
    %87 = vector.load %arg6[%c256_109, %c0_110] : memref<1152x128xf32, #tpu.memory_space<vmem>>, vector<128x128xf32>
    %cst_111 = arith.constant dense<0.000000e+00> : vector<256x128xf32>
    %88 = tpu.matmul %86, %87, %cst_111 {dimension_numbers = #tpu.dot_dimension_numbers<[1], [0], [0], [1], [0, 0, 1, 1], [], []>} : vector<256x128xf32>, vector<128x128xf32>, vector<256x128xf32> -> vector<256x128xf32>
    %89 = arith.addf %84, %88 : vector<256x128xf32>
    %c1_112 = arith.constant 1 : index
    %c0_113 = arith.constant 0 : index
    %c0_114 = arith.constant 0 : index
    %90 = vector.load %arg11[%c1_112, %c0_113, %c0_114] : memref<18x18x128xf32, #tpu.memory_space<vmem>>, vector<16x16x128xf32>
    %91 = vector.shape_cast %90 : vector<16x16x128xf32> to vector<256x128xf32>
    %c384 = arith.constant 384 : index
    %c0_115 = arith.constant 0 : index
    %92 = vector.load %arg6[%c384, %c0_115] : memref<1152x128xf32, #tpu.memory_space<vmem>>, vector<128x128xf32>
    %cst_116 = arith.constant dense<0.000000e+00> : vector<256x128xf32>
    %93 = tpu.matmul %91, %92, %cst_116 {dimension_numbers = #tpu.dot_dimension_numbers<[1], [0], [0], [1], [0, 0, 1, 1], [], []>} : vector<256x128xf32>, vector<128x128xf32>, vector<256x128xf32> -> vector<256x128xf32>
    %94 = arith.addf %89, %93 : vector<256x128xf32>
    %c1_117 = arith.constant 1 : index
    %c1_118 = arith.constant 1 : index
    %c0_119 = arith.constant 0 : index
    %95 = vector.load %arg11[%c1_117, %c1_118, %c0_119] : memref<18x18x128xf32, #tpu.memory_space<vmem>>, vector<16x16x128xf32>
    %96 = vector.shape_cast %95 : vector<16x16x128xf32> to vector<256x128xf32>
    %c512_120 = arith.constant 512 : index
    %c0_121 = arith.constant 0 : index
    %97 = vector.load %arg6[%c512_120, %c0_121] : memref<1152x128xf32, #tpu.memory_space<vmem>>, vector<128x128xf32>
    %cst_122 = arith.constant dense<0.000000e+00> : vector<256x128xf32>
    %98 = tpu.matmul %96, %97, %cst_122 {dimension_numbers = #tpu.dot_dimension_numbers<[1], [0], [0], [1], [0, 0, 1, 1], [], []>} : vector<256x128xf32>, vector<128x128xf32>, vector<256x128xf32> -> vector<256x128xf32>
    %99 = arith.addf %94, %98 : vector<256x128xf32>
    %c1_123 = arith.constant 1 : index
    %c2_124 = arith.constant 2 : index
    %c0_125 = arith.constant 0 : index
    %100 = vector.load %arg11[%c1_123, %c2_124, %c0_125] : memref<18x18x128xf32, #tpu.memory_space<vmem>>, vector<16x16x128xf32>
    %101 = vector.shape_cast %100 : vector<16x16x128xf32> to vector<256x128xf32>
    %c640 = arith.constant 640 : index
    %c0_126 = arith.constant 0 : index
    %102 = vector.load %arg6[%c640, %c0_126] : memref<1152x128xf32, #tpu.memory_space<vmem>>, vector<128x128xf32>
    %cst_127 = arith.constant dense<0.000000e+00> : vector<256x128xf32>
    %103 = tpu.matmul %101, %102, %cst_127 {dimension_numbers = #tpu.dot_dimension_numbers<[1], [0], [0], [1], [0, 0, 1, 1], [], []>} : vector<256x128xf32>, vector<128x128xf32>, vector<256x128xf32> -> vector<256x128xf32>
    %104 = arith.addf %99, %103 : vector<256x128xf32>
    %c2_128 = arith.constant 2 : index
    %c0_129 = arith.constant 0 : index
    %c0_130 = arith.constant 0 : index
    %105 = vector.load %arg11[%c2_128, %c0_129, %c0_130] : memref<18x18x128xf32, #tpu.memory_space<vmem>>, vector<16x16x128xf32>
    %106 = vector.shape_cast %105 : vector<16x16x128xf32> to vector<256x128xf32>
    %c768_131 = arith.constant 768 : index
    %c0_132 = arith.constant 0 : index
    %107 = vector.load %arg6[%c768_131, %c0_132] : memref<1152x128xf32, #tpu.memory_space<vmem>>, vector<128x128xf32>
    %cst_133 = arith.constant dense<0.000000e+00> : vector<256x128xf32>
    %108 = tpu.matmul %106, %107, %cst_133 {dimension_numbers = #tpu.dot_dimension_numbers<[1], [0], [0], [1], [0, 0, 1, 1], [], []>} : vector<256x128xf32>, vector<128x128xf32>, vector<256x128xf32> -> vector<256x128xf32>
    %109 = arith.addf %104, %108 : vector<256x128xf32>
    %c2_134 = arith.constant 2 : index
    %c1_135 = arith.constant 1 : index
    %c0_136 = arith.constant 0 : index
    %110 = vector.load %arg11[%c2_134, %c1_135, %c0_136] : memref<18x18x128xf32, #tpu.memory_space<vmem>>, vector<16x16x128xf32>
    %111 = vector.shape_cast %110 : vector<16x16x128xf32> to vector<256x128xf32>
    %c896 = arith.constant 896 : index
    %c0_137 = arith.constant 0 : index
    %112 = vector.load %arg6[%c896, %c0_137] : memref<1152x128xf32, #tpu.memory_space<vmem>>, vector<128x128xf32>
    %cst_138 = arith.constant dense<0.000000e+00> : vector<256x128xf32>
    %113 = tpu.matmul %111, %112, %cst_138 {dimension_numbers = #tpu.dot_dimension_numbers<[1], [0], [0], [1], [0, 0, 1, 1], [], []>} : vector<256x128xf32>, vector<128x128xf32>, vector<256x128xf32> -> vector<256x128xf32>
    %114 = arith.addf %109, %113 : vector<256x128xf32>
    %c2_139 = arith.constant 2 : index
    %c2_140 = arith.constant 2 : index
    %c0_141 = arith.constant 0 : index
    %115 = vector.load %arg11[%c2_139, %c2_140, %c0_141] : memref<18x18x128xf32, #tpu.memory_space<vmem>>, vector<16x16x128xf32>
    %116 = vector.shape_cast %115 : vector<16x16x128xf32> to vector<256x128xf32>
    %c1024_142 = arith.constant 1024 : index
    %c0_143 = arith.constant 0 : index
    %117 = vector.load %arg6[%c1024_142, %c0_143] : memref<1152x128xf32, #tpu.memory_space<vmem>>, vector<128x128xf32>
    %cst_144 = arith.constant dense<0.000000e+00> : vector<256x128xf32>
    %118 = tpu.matmul %116, %117, %cst_144 {dimension_numbers = #tpu.dot_dimension_numbers<[1], [0], [0], [1], [0, 0, 1, 1], [], []>} : vector<256x128xf32>, vector<128x128xf32>, vector<256x128xf32> -> vector<256x128xf32>
    %119 = arith.addf %114, %118 : vector<256x128xf32>
    %c0_145 = arith.constant 0 : index
    %c0_146 = arith.constant 0 : index
    %120 = vector.load %arg7[%c0_145, %c0_146] : memref<1x128xf32, #tpu.memory_space<vmem>>, vector<1x128xf32>
    %121 = vector.broadcast %120 : vector<1x128xf32> to vector<256x128xf32>
    %122 = arith.mulf %119, %121 : vector<256x128xf32>
    %c0_147 = arith.constant 0 : index
    %c0_148 = arith.constant 0 : index
    %123 = vector.load %arg8[%c0_147, %c0_148] : memref<1x128xf32, #tpu.memory_space<vmem>>, vector<1x128xf32>
    %124 = vector.broadcast %123 : vector<1x128xf32> to vector<256x128xf32>
    %125 = arith.addf %122, %124 : vector<256x128xf32>
    %cst_149 = arith.constant 0.000000e+00 : f32
    %126 = vector.broadcast %cst_149 : f32 to vector<256x128xf32>
    %127 = arith.maximumf %125, %126 : vector<256x128xf32>
    %128 = vector.shape_cast %127 : vector<256x128xf32> to vector<1x16x16x128xf32>
    %c0_150 = arith.constant 0 : index
    %c0_151 = arith.constant 0 : index
    %c0_152 = arith.constant 0 : index
    %c0_153 = arith.constant 0 : index
    %129 = vector.load %arg9[%c0_150, %c0_151, %c0_152, %c0_153] : memref<1x16x16x128xf32, #tpu.memory_space<vmem>>, vector<1x16x16x128xf32>
    tpu.vector_store %arg9[%c0_150, %c0_151, %c0_152, %c0_153], %128 {strides = array<i32>} : memref<1x16x16x128xf32, #tpu.memory_space<vmem>>, vector<1x16x16x128xf32>,
    return
  }
  func.func @transform_0(%arg0: i32) -> (i32, i32, i32, i32) {
    %c0_i32 = arith.constant 0 : i32
    %c0_i32_0 = arith.constant 0 : i32
    %c0_i32_1 = arith.constant 0 : i32
    %c0_i32_2 = arith.constant 0 : i32
    return %arg0, %c0_i32, %c0_i32_0, %c0_i32_1 : i32, i32, i32, i32
  }
  func.func @transform_1(%arg0: i32) -> (i32, i32, i32, i32) {
    %c0_i32 = arith.constant 0 : i32
    %c0_i32_0 = arith.constant 0 : i32
    %c0_i32_1 = arith.constant 0 : i32
    %c0_i32_2 = arith.constant 0 : i32
    return %arg0, %c0_i32, %c0_i32_0, %c0_i32_1 : i32, i32, i32, i32
  }
  func.func @transform_2(%arg0: i32) -> (i32, i32) {
    %c0_i32 = arith.constant 0 : i32
    %c0_i32_0 = arith.constant 0 : i32
    %c0_i32_1 = arith.constant 0 : i32
    return %c0_i32, %c0_i32_0 : i32, i32
  }
  func.func @transform_3(%arg0: i32) -> (i32, i32) {
    %c0_i32 = arith.constant 0 : i32
    %c0_i32_0 = arith.constant 0 : i32
    %c0_i32_1 = arith.constant 0 : i32
    return %c0_i32, %c0_i32_0 : i32, i32
  }
  func.func @transform_4(%arg0: i32) -> (i32, i32) {
    %c0_i32 = arith.constant 0 : i32
    %c0_i32_0 = arith.constant 0 : i32
    %c0_i32_1 = arith.constant 0 : i32
    return %c0_i32, %c0_i32_0 : i32, i32
  }
  func.func @transform_5(%arg0: i32) -> (i32, i32) {
    %c0_i32 = arith.constant 0 : i32
    %c0_i32_0 = arith.constant 0 : i32
    %c0_i32_1 = arith.constant 0 : i32
    return %c0_i32, %c0_i32_0 : i32, i32
  }
  func.func @transform_6(%arg0: i32) -> (i32, i32) {
    %c0_i32 = arith.constant 0 : i32
    %c0_i32_0 = arith.constant 0 : i32
    %c0_i32_1 = arith.constant 0 : i32
    return %c0_i32, %c0_i32_0 : i32, i32
  }
  func.func @transform_7(%arg0: i32) -> (i32, i32) {
    %c0_i32 = arith.constant 0 : i32
    %c0_i32_0 = arith.constant 0 : i32
    %c0_i32_1 = arith.constant 0 : i32
    return %c0_i32, %c0_i32_0 : i32, i32
  }
  func.func @transform_8(%arg0: i32) -> (i32, i32, i32, i32) {
    %c0_i32 = arith.constant 0 : i32
    %c0_i32_0 = arith.constant 0 : i32
    %c0_i32_1 = arith.constant 0 : i32
    %c0_i32_2 = arith.constant 0 : i32
    return %arg0, %c0_i32, %c0_i32_0, %c0_i32_1 : i32, i32, i32, i32
  }
}

module attributes {stable_mosaic.version = 11 : i64} {
  func.func @conv_transpose_kernel(%arg0: i32, %arg1: memref<16x8x128xf32, #tpu.memory_space<vmem>>, %arg2: memref<128x512xf32, #tpu.memory_space<vmem>>, %arg3: memref<1x512xf32, #tpu.memory_space<vmem>>, %arg4: memref<16x2x8x256xf32, #tpu.memory_space<vmem>>) attributes {dimension_semantics = [#tpu.dimension_semantics<parallel>], iteration_bounds = array<i64: 1>, scalar_prefetch = 0 : i64, scratch_operands = 0 : i64, tpu.core_type = #tpu.core_type<tc>, window_params = [{transform_indices = @transform_0, window_bounds = array<i64: 16, 8, 128>}, {pipeline_mode = #tpu.pipeline_mode<synchronous>, transform_indices = @transform_1, window_bounds = array<i64: 128, 512>}, {pipeline_mode = #tpu.pipeline_mode<synchronous>, transform_indices = @transform_2, window_bounds = array<i64: 1, 512>}, {transform_indices = @transform_3, window_bounds = array<i64: 16, 2, 8, 256>}]} {
    %c0 = arith.constant 0 : index
    %c0_0 = arith.constant 0 : index
    %c0_1 = arith.constant 0 : index
    %0 = vector.load %arg1[%c0, %c0_0, %c0_1] : memref<16x8x128xf32, #tpu.memory_space<vmem>>, vector<16x8x128xf32>
    %1 = vector.shape_cast %0 : vector<16x8x128xf32> to vector<128x128xf32>
    %c0_2 = arith.constant 0 : index
    %c0_3 = arith.constant 0 : index
    %2 = vector.load %arg2[%c0_2, %c0_3] : memref<128x512xf32, #tpu.memory_space<vmem>>, vector<128x512xf32>
    %cst = arith.constant dense<0.000000e+00> : vector<128x512xf32>
    %3 = tpu.matmul %1, %2, %cst {dimension_numbers = #tpu.dot_dimension_numbers<[1], [0], [0], [1], [0, 0, 1, 1], [], []>} : vector<128x128xf32>, vector<128x512xf32>, vector<128x512xf32> -> vector<128x512xf32>
    %c0_4 = arith.constant 0 : index
    %c0_5 = arith.constant 0 : index
    %4 = vector.load %arg3[%c0_4, %c0_5] : memref<1x512xf32, #tpu.memory_space<vmem>>, vector<1x512xf32>
    %5 = vector.broadcast %4 : vector<1x512xf32> to vector<128x512xf32>
    %6 = arith.addf %3, %5 : vector<128x512xf32>
    %7 = vector.extract_strided_slice %6 {offsets = [0, 0], sizes = [128, 256], strides = [1, 1]} : vector<128x512xf32> to vector<128x256xf32>
    %8 = vector.shape_cast %7 : vector<128x256xf32> to vector<16x1x8x256xf32>
    %c0_6 = arith.constant 0 : index
    %c0_7 = arith.constant 0 : index
    %c0_8 = arith.constant 0 : index
    %c0_9 = arith.constant 0 : index
    %9 = vector.load %arg4[%c0_6, %c0_7, %c0_8, %c0_9] : memref<16x2x8x256xf32, #tpu.memory_space<vmem>>, vector<16x1x8x256xf32>
    tpu.vector_store %arg4[%c0_6, %c0_7, %c0_8, %c0_9], %8 {strides = array<i32>} : memref<16x2x8x256xf32, #tpu.memory_space<vmem>>, vector<16x1x8x256xf32>,
    %10 = vector.extract_strided_slice %6 {offsets = [0, 256], sizes = [128, 256], strides = [1, 1]} : vector<128x512xf32> to vector<128x256xf32>
    %11 = vector.shape_cast %10 : vector<128x256xf32> to vector<16x1x8x256xf32>
    %c0_10 = arith.constant 0 : index
    %c1 = arith.constant 1 : index
    %c0_11 = arith.constant 0 : index
    %c0_12 = arith.constant 0 : index
    %12 = vector.load %arg4[%c0_10, %c1, %c0_11, %c0_12] : memref<16x2x8x256xf32, #tpu.memory_space<vmem>>, vector<16x1x8x256xf32>
    tpu.vector_store %arg4[%c0_10, %c1, %c0_11, %c0_12], %11 {strides = array<i32>} : memref<16x2x8x256xf32, #tpu.memory_space<vmem>>, vector<16x1x8x256xf32>,
    return
  }
  func.func @transform_0(%arg0: i32) -> (i32, i32, i32) {
    %c0_i32 = arith.constant 0 : i32
    %c0_i32_0 = arith.constant 0 : i32
    %c0_i32_1 = arith.constant 0 : i32
    return %arg0, %c0_i32, %c0_i32_0 : i32, i32, i32
  }
  func.func @transform_1(%arg0: i32) -> (i32, i32) {
    %c0_i32 = arith.constant 0 : i32
    %c0_i32_0 = arith.constant 0 : i32
    %c0_i32_1 = arith.constant 0 : i32
    return %c0_i32, %c0_i32_0 : i32, i32
  }
  func.func @transform_2(%arg0: i32) -> (i32, i32) {
    %c0_i32 = arith.constant 0 : i32
    %c0_i32_0 = arith.constant 0 : i32
    %c0_i32_1 = arith.constant 0 : i32
    return %c0_i32, %c0_i32_0 : i32, i32
  }
  func.func @transform_3(%arg0: i32) -> (i32, i32, i32, i32) {
    %c0_i32 = arith.constant 0 : i32
    %c0_i32_0 = arith.constant 0 : i32
    %c0_i32_1 = arith.constant 0 : i32
    %c0_i32_2 = arith.constant 0 : i32
    return %arg0, %c0_i32, %c0_i32_0, %c0_i32_1 : i32, i32, i32, i32
  }
}

</mosaic_0001>

<llo_original>
// kernel: up_block_forward.2
$region0: #{up_block_forward.2}
  #allocation0 [shape = 'u32[]', space=smem, size = 0x4, offset = 0x4, fixed_abs, tag = 'smem constant byte address 0x4 - core index']
  #allocation1 [shape = 'u32[144,128]{1,0:T(1,128)}', space=vmem, size = 0x12000, scoped, tag = 'internal scratch']
  %s0 = inlined_call_operand.hbm [shape: f32[16,8,128], index: 0, kind: input, shape index: {}]
  %s1 = inlined_call_operand.hbm [shape: f32[128,512], index: 1, kind: input, shape index: {}]
  %s2 = inlined_call_operand.hbm [shape: f32[1,512], index: 2, kind: input, shape index: {}]
  %s3 = inlined_call_operand.hbm [shape: f32[16,2,8,256], index: 3, kind: output, shape index: {}]
  %s4 = sld [smem:[#allocation0]]
  $region34: #{up_block_forward.2} parent=0
    _
  %s6 = ssub.s32 1, %s4
  %s7 = scalar_select 0, %s6, %s4
  $region1: #{up_block_forward.2} parent=0
    #allocation2 [shape = 'u8[65536]{0}', space=vmem, size = 0x10000, scoped, tag = 'input window, operand 0, single buffered']
    #allocation3 [shape = 's32[1]{0}', space=sflag, size = 0x4, scoped, tag = 'scoped memory for up_block_forward.2']
    #allocation4 [shape = 's32[1]{0}', space=sflag, size = 0x4, scoped, tag = 'scoped memory for up_block_forward.2']
    #allocation5 [shape = 'u8[262144]{0}', space=vmem, size = 0x40000, scoped, tag = 'input window, operand 1, single buffered']
    #allocation6 [shape = 's32[1]{0}', space=sflag, size = 0x4, scoped, tag = 'scoped memory for up_block_forward.2']
    #allocation7 [shape = 'u8[2048]{0}', space=vmem, size = 0x800, scoped, tag = 'input window, operand 2, single buffered']
    #allocation8 [shape = 'u8[262144]{0}', space=vmem, size = 0x40000, scoped, tag = 'output window, operand 0, single buffered']
    %8 = vsyncpa [#allocation3], 0
    %9 = vsyncpa [#allocation6], 0
    %10 = vsyncpa [#allocation4], 0
    // Predicated region
    $region2: #{up_block_forward.2} parent=1 // pred_check
      _
    $region3: #{up_block_forward.2} parent=1 // pred_check_branch
      %12 = sbr.rel (0) target = $region5
    $region4: #{up_block_forward.2} parent=1 // pred_region
      %s14 = ssub.s32 2048, 2048
      %15 = vsyncadd [#allocation3], %s14
      %s16 = sshll.u32 [#allocation2], 4
      %s17 = int_to_ptr.vmem [resolvable:$true] %s16
      %22 = dma.hbm_to_vmem [thread:$0]  %s0, 2048, %s17, [#allocation3], 128, 128, 8
    $region5: #{up_block_forward.2} parent=1 // pred_fallthru
      _
    // Predicated region
    $region6: #{up_block_forward.2} parent=1 // pred_check
      _
    $region7: #{up_block_forward.2} parent=1 // pred_check_branch
      %24 = sbr.rel (0) target = $region9
    $region8: #{up_block_forward.2} parent=1 // pred_region
      %s26 = ssub.s32 8192, 8192
      %27 = vsyncadd [#allocation6], %s26
      %s28 = sshll.u32 [#allocation5], 4
      %s29 = int_to_ptr.vmem [resolvable:$true] %s28
      %34 = dma.hbm_to_vmem [thread:$0]  %s1, 8192, %s29, [#allocation6], 512, 512, 32
    $region9: #{up_block_forward.2} parent=1 // pred_fallthru
      _
    // Predicated region
    $region10: #{up_block_forward.2} parent=1 // pred_check
      _
    $region11: #{up_block_forward.2} parent=1 // pred_check_branch
      %36 = sbr.rel (0) target = $region13
    $region12: #{up_block_forward.2} parent=1 // pred_region
      %s38 = ssub.s32 64, 64
      %39 = vsyncadd [#allocation6], %s38
      %s41 = sshll.u32 [#allocation7], 4
      %s42 = int_to_ptr.vmem [resolvable:$true] %s41
      %44 = dma.hbm_to_vmem [thread:$0]  %s2, 64, %s42, [#allocation6]
    $region13: #{up_block_forward.2} parent=1 // pred_fallthru
      _
    // Predicated region
    $region14: #{up_block_forward.2} parent=1 // pred_check
      _
    $region15: #{up_block_forward.2} parent=1 // pred_check_branch
      %46 = sbr.rel (0) target = $region17
    $region16: #{up_block_forward.2} parent=1 // pred_region
      %47 = dma.done [#allocation3], 2048
    $region17: #{up_block_forward.2} parent=1 // pred_fallthru
      _
    // Predicated region
    $region18: #{up_block_forward.2} parent=1 // pred_check
      _
    $region19: #{up_block_forward.2} parent=1 // pred_check_branch
      %49 = sbr.rel (0) target = $region21
    $region20: #{up_block_forward.2} parent=1 // pred_region
      %50 = dma.done [#allocation6], 8192
    $region21: #{up_block_forward.2} parent=1 // pred_fallthru
      _
    // Predicated region
    $region22: #{up_block_forward.2} parent=1 // pred_check
      _
    $region23: #{up_block_forward.2} parent=1 // pred_check_branch
      %52 = sbr.rel (0) target = $region25
    $region24: #{up_block_forward.2} parent=1 // pred_region
      %53 = dma.done [#allocation6], 64
    $region25: #{up_block_forward.2} parent=1 // pred_fallthru
      _
    %v54 = vld [vmem:[#allocation2] sm:$0xff]
    %v55 = vld [vmem:[#allocation2 + $0x8] sm:$0xff]
    %v56 = vld [vmem:[#allocation2 + $0x10] sm:$0xff]
    %v57 = vld [vmem:[#allocation2 + $0x18] sm:$0xff]
    %v58 = vld [vmem:[#allocation2 + $0x20] sm:$0xff]
    %v59 = vld [vmem:[#allocation2 + $0x28] sm:$0xff]
    %v60 = vld [vmem:[#allocation2 + $0x30] sm:$0xff]
    %v61 = vld [vmem:[#allocation2 + $0x38] sm:$0xff]
    %v62 = vld [vmem:[#allocation2 + $0x40] sm:$0xff]
    %v63 = vld [vmem:[#allocation2 + $0x48] sm:$0xff]
    %v64 = vld [vmem:[#allocation2 + $0x50] sm:$0xff]
    %v65 = vld [vmem:[#allocation2 + $0x58] sm:$0xff]
    %v66 = vld [vmem:[#allocation2 + $0x60] sm:$0xff]
    %v67 = vld [vmem:[#allocation2 + $0x68] sm:$0xff]
    %v68 = vld [vmem:[#allocation2 + $0x70] sm:$0xff]
    %v69 = vld [vmem:[#allocation2 + $0x78] sm:$0xff]
    %v70 = vld [vmem:[#allocation5] sm:$0xff]
    %v71 = vld [vmem:[#allocation5 + $0x8] sm:$0xff]
    %v72 = vld [vmem:[#allocation5 + $0x10] sm:$0xff]
    %v73 = vld [vmem:[#allocation5 + $0x18] sm:$0xff]
    %v74 = vld [vmem:[#allocation5 + $0x20] sm:$0xff]
    %v75 = vld [vmem:[#allocation5 + $0x28] sm:$0xff]
    %v76 = vld [vmem:[#allocation5 + $0x30] sm:$0xff]
    %v77 = vld [vmem:[#allocation5 + $0x38] sm:$0xff]
    %v78 = vld [vmem:[#allocation5 + $0x40] sm:$0xff]
    %v79 = vld [vmem:[#allocation5 + $0x48] sm:$0xff]
    %v80 = vld [vmem:[#allocation5 + $0x50] sm:$0xff]
    %v81 = vld [vmem:[#allocation5 + $0x58] sm:$0xff]
    %v82 = vld [vmem:[#allocation5 + $0x60] sm:$0xff]
    %v83 = vld [vmem:[#allocation5 + $0x68] sm:$0xff]
    %v84 = vld [vmem:[#allocation5 + $0x70] sm:$0xff]
    %v85 = vld [vmem:[#allocation5 + $0x78] sm:$0xff]
    %v86 = vld [vmem:[#allocation5 + $0x80] sm:$0xff]
    %v87 = vld [vmem:[#allocation5 + $0x88] sm:$0xff]
    %v88 = vld [vmem:[#allocation5 + $0x90] sm:$0xff]
    %v89 = vld [vmem:[#allocation5 + $0x98] sm:$0xff]
    %v90 = vld [vmem:[#allocation5 + $0xa0] sm:$0xff]
    %v91 = vld [vmem:[#allocation5 + $0xa8] sm:$0xff]
    %v92 = vld [vmem:[#allocation5 + $0xb0] sm:$0xff]
    %v93 = vld [vmem:[#allocation5 + $0xb8] sm:$0xff]
    %v94 = vld [vmem:[#allocation5 + $0xc0] sm:$0xff]
    %v95 = vld [vmem:[#allocation5 + $0xc8] sm:$0xff]
    %v96 = vld [vmem:[#allocation5 + $0xd0] sm:$0xff]
    %v97 = vld [vmem:[#allocation5 + $0xd8] sm:$0xff]
    %v98 = vld [vmem:[#allocation5 + $0xe0] sm:$0xff]
    %v99 = vld [vmem:[#allocation5 + $0xe8] sm:$0xff]
    %v100 = vld [vmem:[#allocation5 + $0xf0] sm:$0xff]
    %v101 = vld [vmem:[#allocation5 + $0xf8] sm:$0xff]
    %v102 = vld [vmem:[#allocation5 + $0x100] sm:$0xff]
    %v103 = vld [vmem:[#allocation5 + $0x108] sm:$0xff]
    %v104 = vld [vmem:[#allocation5 + $0x110] sm:$0xff]
    %v105 = vld [vmem:[#allocation5 + $0x118] sm:$0xff]
    %v106 = vld [vmem:[#allocation5 + $0x120] sm:$0xff]
    %v107 = vld [vmem:[#allocation5 + $0x128] sm:$0xff]
    %v108 = vld [vmem:[#allocation5 + $0x130] sm:$0xff]
    %v109 = vld [vmem:[#allocation5 + $0x138] sm:$0xff]
    %v110 = vld [vmem:[#allocation5 + $0x140] sm:$0xff]
    %v111 = vld [vmem:[#allocation5 + $0x148] sm:$0xff]
    %v112 = vld [vmem:[#allocation5 + $0x150] sm:$0xff]
    %v113 = vld [vmem:[#allocation5 + $0x158] sm:$0xff]
    %v114 = vld [vmem:[#allocation5 + $0x160] sm:$0xff]
    %v115 = vld [vmem:[#allocation5 + $0x168] sm:$0xff]
    %v116 = vld [vmem:[#allocation5 + $0x170] sm:$0xff]
    %v117 = vld [vmem:[#allocation5 + $0x178] sm:$0xff]
    %v118 = vld [vmem:[#allocation5 + $0x180] sm:$0xff]
    %v119 = vld [vmem:[#allocation5 + $0x188] sm:$0xff]
    %v120 = vld [vmem:[#allocation5 + $0x190] sm:$0xff]
    %v121 = vld [vmem:[#allocation5 + $0x198] sm:$0xff]
    %v122 = vld [vmem:[#allocation5 + $0x1a0] sm:$0xff]
    %v123 = vld [vmem:[#allocation5 + $0x1a8] sm:$0xff]
    %v124 = vld [vmem:[#allocation5 + $0x1b0] sm:$0xff]
    %v125 = vld [vmem:[#allocation5 + $0x1b8] sm:$0xff]
    %v126 = vld [vmem:[#allocation5 + $0x1c0] sm:$0xff]
    %v127 = vld [vmem:[#allocation5 + $0x1c8] sm:$0xff]
    %v128 = vld [vmem:[#allocation5 + $0x1d0] sm:$0xff]
    %v129 = vld [vmem:[#allocation5 + $0x1d8] sm:$0xff]
    %v130 = vld [vmem:[#allocation5 + $0x1e0] sm:$0xff]
    %v131 = vld [vmem:[#allocation5 + $0x1e8] sm:$0xff]
    %v132 = vld [vmem:[#allocation5 + $0x1f0] sm:$0xff]
    %v133 = vld [vmem:[#allocation5 + $0x1f8] sm:$0xff]
    %v134 = vld [vmem:[#allocation7] sm:$0xf]
    %v136 = vlaneseq
    %v137 = vshrl.u32 %v136, 7
    %v138 = vsub.s32 0, %v137
    %v139 = vrot.slane %v134, %v138
    %v140 = vlaneseq
    %v141 = vshrl.u32 %v140, 7
    %v142 = vsub.s32 1, %v141
    %v143 = vrot.slane %v134, %v142
    %v144 = vlaneseq
    %v145 = vshrl.u32 %v144, 7
    %v146 = vsub.s32 2, %v145
    %v147 = vrot.slane %v134, %v146
    %v148 = vlaneseq
    %v149 = vshrl.u32 %v148, 7
    %v150 = vsub.s32 3, %v149
    %v151 = vrot.slane %v134, %v150
    %156 = vmatprep.subr.mxu0 %v71
    %157 = vmatpush1.msra.mxu0 %v70
    %158 = vmatprep.subr.mxu0 %v75
    %159 = vmatpush1.msra.mxu0 %v74
    %160 = vmatprep.subr.mxu0 %v79
    %161 = vmatpush1.msra.mxu0 %v78
    %162 = vmatprep.subr.mxu0 %v83
    %163 = vmatpush1.msra.mxu0 %v82
    %164 = vmatprep.subr.mxu0 %v87
    %165 = vmatpush1.msra.mxu0 %v86
    %166 = vmatprep.subr.mxu0 %v91
    %167 = vmatpush1.msra.mxu0 %v90
    %168 = vmatprep.subr.mxu0 %v95
    %169 = vmatpush1.msra.mxu0 %v94
    %170 = vmatprep.subr.mxu0 %v99
    %171 = vmatpush1.msra.mxu0 %v98
    %172 = vmatprep.subr.mxu0 %v103
    %173 = vmatpush1.msra.mxu0 %v102
    %174 = vmatprep.subr.mxu0 %v107
    %175 = vmatpush1.msra.mxu0 %v106
    %176 = vmatprep.subr.mxu0 %v111
    %177 = vmatpush1.msra.mxu0 %v110
    %178 = vmatprep.subr.mxu0 %v115
    %179 = vmatpush1.msra.mxu0 %v114
    %180 = vmatprep.subr.mxu0 %v119
    %181 = vmatpush1.msra.mxu0 %v118
    %182 = vmatprep.subr.mxu0 %v123
    %183 = vmatpush1.msra.mxu0 %v122
    %184 = vmatprep.subr.mxu0 %v127
    %185 = vmatpush1.msra.mxu0 %v126
    %186 = vmatprep.subr.mxu0 %v131
    %187 = vmatpush1.msra.mxu0 %v130
    %188 = vmatprep.subr.mxu0 0.0
    %189 = vmatpush1.msra.mxu0 0.0
    %190 = vmatprep.subr.mxu0 0.0
    %191 = vmatpush1.msra.mxu0 0.0
    %192 = vmatprep.subr.mxu0 0.0
    %193 = vmatpush1.msra.mxu0 0.0
    %194 = vmatprep.subr.mxu0 0.0
    %195 = vmatpush1.msra.mxu0 0.0
    %196 = vmatprep.subr.mxu0 0.0
    %197 = vmatpush1.msra.mxu0 0.0
    %198 = vmatprep.subr.mxu0 0.0
    %199 = vmatpush1.msra.mxu0 0.0
    %200 = vmatprep.subr.mxu0 0.0
    %201 = vmatpush1.msra.mxu0 0.0
    %202 = vmatprep.subr.mxu0 0.0
    %203 = vmatpush1.msra.mxu0 0.0
    %204 = vmatprep.subr.mxu0 0.0
    %205 = vmatpush1.msra.mxu0 0.0
    %206 = vmatprep.subr.mxu0 0.0
    %207 = vmatpush1.msra.mxu0 0.0
    %208 = vmatprep.subr.mxu0 0.0
    %209 = vmatpush1.msra.mxu0 0.0
    %210 = vmatprep.subr.mxu0 0.0
    %211 = vmatpush1.msra.mxu0 0.0
    %212 = vmatprep.subr.mxu0 0.0
    %213 = vmatpush1.msra.mxu0 0.0
    %214 = vmatprep.subr.mxu0 0.0
    %215 = vmatpush1.msra.mxu0 0.0
    %216 = vmatprep.subr.mxu0 0.0
    %217 = vmatpush1.msra.mxu0 0.0
    %218 = vmatprep.subr.mxu0 0.0
    %219 = vmatpush1.msra.mxu0 0.0
    %220 = vmatprep.mubr.f32.mxu0 0.0
    %221 = vmatmul.mubr.f32.gmra.mrb[0].mxu0 %v54
    %v222 = vpop.f32.mrb[0].mxu0
    %v223 = vadd.f32 %v139, %v222
    %v224 = vpop.f32.mrb[0].mxu0
    %v225 = vadd.f32 %v143, %v224
    %226 = vmatprep.mubr.f32.mxu0 0.0
    %227 = vmatmul.mubr.f32.gmra.mrb[0].mxu0 %v55
    %v228 = vpop.f32.mrb[0].mxu0
    %v229 = vadd.f32 %v139, %v228
    %v230 = vpop.f32.mrb[0].mxu0
    %v231 = vadd.f32 %v143, %v230
    %232 = vmatprep.mubr.f32.mxu0 0.0
    %233 = vmatmul.mubr.f32.gmra.mrb[0].mxu0 %v56
    %v234 = vpop.f32.mrb[0].mxu0
    %v235 = vadd.f32 %v139, %v234
    %v236 = vpop.f32.mrb[0].mxu0
    %v237 = vadd.f32 %v143, %v236
    %238 = vmatprep.mubr.f32.mxu0 0.0
    %239 = vmatmul.mubr.f32.gmra.mrb[0].mxu0 %v57
    %v240 = vpop.f32.mrb[0].mxu0
    %v241 = vadd.f32 %v139, %v240
    %v242 = vpop.f32.mrb[0].mxu0
    %v243 = vadd.f32 %v143, %v242
    %244 = vmatprep.mubr.f32.mxu0 0.0
    %245 = vmatmul.mubr.f32.gmra.mrb[0].mxu0 %v58
    %v246 = vpop.f32.mrb[0].mxu0
    %v247 = vadd.f32 %v139, %v246
    %v248 = vpop.f32.mrb[0].mxu0
    %v249 = vadd.f32 %v143, %v248
    %250 = vmatprep.mubr.f32.mxu0 0.0
    %251 = vmatmul.mubr.f32.gmra.mrb[0].mxu0 %v59
    %v252 = vpop.f32.mrb[0].mxu0
    %v253 = vadd.f32 %v139, %v252
    %v254 = vpop.f32.mrb[0].mxu0
    %v255 = vadd.f32 %v143, %v254
    %256 = vmatprep.mubr.f32.mxu0 0.0
    %257 = vmatmul.mubr.f32.gmra.mrb[0].mxu0 %v60
    %v258 = vpop.f32.mrb[0].mxu0
    %v259 = vadd.f32 %v139, %v258
    %v260 = vpop.f32.mrb[0].mxu0
    %v261 = vadd.f32 %v143, %v260
    %262 = vmatprep.mubr.f32.mxu0 0.0
    %263 = vmatmul.mubr.f32.gmra.mrb[0].mxu0 %v61
    %v264 = vpop.f32.mrb[0].mxu0
    %v265 = vadd.f32 %v139, %v264
    %v266 = vpop.f32.mrb[0].mxu0
    %v267 = vadd.f32 %v143, %v266
    %268 = vmatprep.mubr.f32.mxu0 0.0
    %269 = vmatmul.mubr.f32.gmra.mrb[0].mxu0 %v62
    %v270 = vpop.f32.mrb[0].mxu0
    %v271 = vadd.f32 %v139, %v270
    %v272 = vpop.f32.mrb[0].mxu0
    %v273 = vadd.f32 %v143, %v272
    %274 = vmatprep.mubr.f32.mxu0 0.0
    %275 = vmatmul.mubr.f32.gmra.mrb[0].mxu0 %v63
    %v276 = vpop.f32.mrb[0].mxu0
    %v277 = vadd.f32 %v139, %v276
    %v278 = vpop.f32.mrb[0].mxu0
    %v279 = vadd.f32 %v143, %v278
    %280 = vmatprep.mubr.f32.mxu0 0.0
    %281 = vmatmul.mubr.f32.gmra.mrb[0].mxu0 %v64
    %v282 = vpop.f32.mrb[0].mxu0
    %v283 = vadd.f32 %v139, %v282
    %v284 = vpop.f32.mrb[0].mxu0
    %v285 = vadd.f32 %v143, %v284
    %286 = vmatprep.mubr.f32.mxu0 0.0
    %287 = vmatmul.mubr.f32.gmra.mrb[0].mxu0 %v65
    %v288 = vpop.f32.mrb[0].mxu0
    %v289 = vadd.f32 %v139, %v288
    %v290 = vpop.f32.mrb[0].mxu0
    %v291 = vadd.f32 %v143, %v290
    %292 = vmatprep.mubr.f32.mxu0 0.0
    %293 = vmatmul.mubr.f32.gmra.mrb[0].mxu0 %v66
    %v294 = vpop.f32.mrb[0].mxu0
    %v295 = vadd.f32 %v139, %v294
    %v296 = vpop.f32.mrb[0].mxu0
    %v297 = vadd.f32 %v143, %v296
    %298 = vmatprep.mubr.f32.mxu0 0.0
    %299 = vmatmul.mubr.f32.gmra.mrb[0].mxu0 %v67
    %v300 = vpop.f32.mrb[0].mxu0
    %v301 = vadd.f32 %v139, %v300
    %v302 = vpop.f32.mrb[0].mxu0
    %v303 = vadd.f32 %v143, %v302
    %304 = vmatprep.mubr.f32.mxu0 0.0
    %305 = vmatmul.mubr.f32.gmra.mrb[0].mxu0 %v68
    %v306 = vpop.f32.mrb[0].mxu0
    %v307 = vadd.f32 %v139, %v306
    %v308 = vpop.f32.mrb[0].mxu0
    %v309 = vadd.f32 %v143, %v308
    %310 = vmatprep.mubr.f32.mxu0 0.0
    %311 = vmatmul.mubr.f32.gmra.mrb[0].mxu0 %v69
    %v312 = vpop.f32.mrb[0].mxu0
    %v313 = vadd.f32 %v139, %v312
    %v314 = vpop.f32.mrb[0].mxu0
    %v315 = vadd.f32 %v143, %v314
    %316 = vdwg.mxu0
    %317 = vmatprep.subr.mxu0 %v73
    %318 = vmatpush1.msra.mxu0 %v72
    %319 = vmatprep.subr.mxu0 %v77
    %320 = vmatpush1.msra.mxu0 %v76
    %321 = vmatprep.subr.mxu0 %v81
    %322 = vmatpush1.msra.mxu0 %v80
    %323 = vmatprep.subr.mxu0 %v85
    %324 = vmatpush1.msra.mxu0 %v84
    %325 = vmatprep.subr.mxu0 %v89
    %326 = vmatpush1.msra.mxu0 %v88
    %327 = vmatprep.subr.mxu0 %v93
    %328 = vmatpush1.msra.mxu0 %v92
    %329 = vmatprep.subr.mxu0 %v97
    %330 = vmatpush1.msra.mxu0 %v96
    %331 = vmatprep.subr.mxu0 %v101
    %332 = vmatpush1.msra.mxu0 %v100
    %333 = vmatprep.subr.mxu0 %v105
    %334 = vmatpush1.msra.mxu0 %v104
    %335 = vmatprep.subr.mxu0 %v109
    %336 = vmatpush1.msra.mxu0 %v108
    %337 = vmatprep.subr.mxu0 %v113
    %338 = vmatpush1.msra.mxu0 %v112
    %339 = vmatprep.subr.mxu0 %v117
    %340 = vmatpush1.msra.mxu0 %v116
    %341 = vmatprep.subr.mxu0 %v121
    %342 = vmatpush1.msra.mxu0 %v120
    %343 = vmatprep.subr.mxu0 %v125
    %344 = vmatpush1.msra.mxu0 %v124
    %345 = vmatprep.subr.mxu0 %v129
    %346 = vmatpush1.msra.mxu0 %v128
    %347 = vmatprep.subr.mxu0 %v133
    %348 = vmatpush1.msra.mxu0 %v132
    %349 = vmatprep.subr.mxu0 0.0
    %350 = vmatpush1.msra.mxu0 0.0
    %351 = vmatprep.subr.mxu0 0.0
    %352 = vmatpush1.msra.mxu0 0.0
    %353 = vmatprep.subr.mxu0 0.0
    %354 = vmatpush1.msra.mxu0 0.0
    %355 = vmatprep.subr.mxu0 0.0
    %356 = vmatpush1.msra.mxu0 0.0
    %357 = vmatprep.subr.mxu0 0.0
    %358 = vmatpush1.msra.mxu0 0.0
    %359 = vmatprep.subr.mxu0 0.0
    %360 = vmatpush1.msra.mxu0 0.0
    %361 = vmatprep.subr.mxu0 0.0
    %362 = vmatpush1.msra.mxu0 0.0
    %363 = vmatprep.subr.mxu0 0.0
    %364 = vmatpush1.msra.mxu0 0.0
    %365 = vmatprep.subr.mxu0 0.0
    %366 = vmatpush1.msra.mxu0 0.0
    %367 = vmatprep.subr.mxu0 0.0
    %368 = vmatpush1.msra.mxu0 0.0
    %369 = vmatprep.subr.mxu0 0.0
    %370 = vmatpush1.msra.mxu0 0.0
    %371 = vmatprep.subr.mxu0 0.0
    %372 = vmatpush1.msra.mxu0 0.0
    %373 = vmatprep.subr.mxu0 0.0
    %374 = vmatpush1.msra.mxu0 0.0
    %375 = vmatprep.subr.mxu0 0.0
    %376 = vmatpush1.msra.mxu0 0.0
    %377 = vmatprep.subr.mxu0 0.0
    %378 = vmatpush1.msra.mxu0 0.0
    %379 = vmatprep.subr.mxu0 0.0
    %380 = vmatpush1.msra.mxu0 0.0
    %381 = vmatprep.mubr.f32.mxu0 0.0
    %382 = vmatmul.mubr.f32.gmra.mrb[0].mxu0 %v54
    %v383 = vpop.f32.mrb[0].mxu0
    %v384 = vadd.f32 %v147, %v383
    %v385 = vpop.f32.mrb[0].mxu0
    %v386 = vadd.f32 %v151, %v385
    %387 = vmatprep.mubr.f32.mxu0 0.0
    %388 = vmatmul.mubr.f32.gmra.mrb[0].mxu0 %v55
    %v389 = vpop.f32.mrb[0].mxu0
    %v390 = vadd.f32 %v147, %v389
    %v391 = vpop.f32.mrb[0].mxu0
    %v392 = vadd.f32 %v151, %v391
    %393 = vmatprep.mubr.f32.mxu0 0.0
    %394 = vmatmul.mubr.f32.gmra.mrb[0].mxu0 %v56
    %v395 = vpop.f32.mrb[0].mxu0
    %v396 = vadd.f32 %v147, %v395
    %v397 = vpop.f32.mrb[0].mxu0
    %v398 = vadd.f32 %v151, %v397
    %399 = vmatprep.mubr.f32.mxu0 0.0
    %400 = vmatmul.mubr.f32.gmra.mrb[0].mxu0 %v57
    %v401 = vpop.f32.mrb[0].mxu0
    %v402 = vadd.f32 %v147, %v401
    %v403 = vpop.f32.mrb[0].mxu0
    %v404 = vadd.f32 %v151, %v403
    %405 = vmatprep.mubr.f32.mxu0 0.0
    %406 = vmatmul.mubr.f32.gmra.mrb[0].mxu0 %v58
    %v407 = vpop.f32.mrb[0].mxu0
    %v408 = vadd.f32 %v147, %v407
    %v409 = vpop.f32.mrb[0].mxu0
    %v410 = vadd.f32 %v151, %v409
    %411 = vmatprep.mubr.f32.mxu0 0.0
    %412 = vmatmul.mubr.f32.gmra.mrb[0].mxu0 %v59
    %v413 = vpop.f32.mrb[0].mxu0
    %v414 = vadd.f32 %v147, %v413
    %v415 = vpop.f32.mrb[0].mxu0
    %v416 = vadd.f32 %v151, %v415
    %417 = vmatprep.mubr.f32.mxu0 0.0
    %418 = vmatmul.mubr.f32.gmra.mrb[0].mxu0 %v60
    %v419 = vpop.f32.mrb[0].mxu0
    %v420 = vadd.f32 %v147, %v419
    %v421 = vpop.f32.mrb[0].mxu0
    %v422 = vadd.f32 %v151, %v421
    %423 = vmatprep.mubr.f32.mxu0 0.0
    %424 = vmatmul.mubr.f32.gmra.mrb[0].mxu0 %v61
    %v425 = vpop.f32.mrb[0].mxu0
    %v426 = vadd.f32 %v147, %v425
    %v427 = vpop.f32.mrb[0].mxu0
    %v428 = vadd.f32 %v151, %v427
    %429 = vmatprep.mubr.f32.mxu0 0.0
    %430 = vmatmul.mubr.f32.gmra.mrb[0].mxu0 %v62
    %v431 = vpop.f32.mrb[0].mxu0
    %v432 = vadd.f32 %v147, %v431
    %v433 = vpop.f32.mrb[0].mxu0
    %v434 = vadd.f32 %v151, %v433
    %435 = vmatprep.mubr.f32.mxu0 0.0
    %436 = vmatmul.mubr.f32.gmra.mrb[0].mxu0 %v63
    %v437 = vpop.f32.mrb[0].mxu0
    %v438 = vadd.f32 %v147, %v437
    %v439 = vpop.f32.mrb[0].mxu0
    %v440 = vadd.f32 %v151, %v439
    %441 = vmatprep.mubr.f32.mxu0 0.0
    %442 = vmatmul.mubr.f32.gmra.mrb[0].mxu0 %v64
    %v443 = vpop.f32.mrb[0].mxu0
    %v444 = vadd.f32 %v147, %v443
    %v445 = vpop.f32.mrb[0].mxu0
    %v446 = vadd.f32 %v151, %v445
    %447 = vmatprep.mubr.f32.mxu0 0.0
    %448 = vmatmul.mubr.f32.gmra.mrb[0].mxu0 %v65
    %v449 = vpop.f32.mrb[0].mxu0
    %v450 = vadd.f32 %v147, %v449
    %v451 = vpop.f32.mrb[0].mxu0
    %v452 = vadd.f32 %v151, %v451
    %453 = vmatprep.mubr.f32.mxu0 0.0
    %454 = vmatmul.mubr.f32.gmra.mrb[0].mxu0 %v66
    %v455 = vpop.f32.mrb[0].mxu0
    %v456 = vadd.f32 %v147, %v455
    %v457 = vpop.f32.mrb[0].mxu0
    %v458 = vadd.f32 %v151, %v457
    %459 = vmatprep.mubr.f32.mxu0 0.0
    %460 = vmatmul.mubr.f32.gmra.mrb[0].mxu0 %v67
    %v461 = vpop.f32.mrb[0].mxu0
    %v462 = vadd.f32 %v147, %v461
    %v463 = vpop.f32.mrb[0].mxu0
    %v464 = vadd.f32 %v151, %v463
    %465 = vmatprep.mubr.f32.mxu0 0.0
    %466 = vmatmul.mubr.f32.gmra.mrb[0].mxu0 %v68
    %v467 = vpop.f32.mrb[0].mxu0
    %v468 = vadd.f32 %v147, %v467
    %v469 = vpop.f32.mrb[0].mxu0
    %v470 = vadd.f32 %v151, %v469
    %471 = vmatprep.mubr.f32.mxu0 0.0
    %472 = vmatmul.mubr.f32.gmra.mrb[0].mxu0 %v69
    %v473 = vpop.f32.mrb[0].mxu0
    %v474 = vadd.f32 %v147, %v473
    %v475 = vpop.f32.mrb[0].mxu0
    %v476 = vadd.f32 %v151, %v475
    %477 = vdwg.mxu0
    %478 = vst [vmem:[#allocation8] sm:$0xff] %v223
    %479 = vst [vmem:[#allocation8 + $0x8] sm:$0xff] %v225
    %480 = vst [vmem:[#allocation8 + $0x20] sm:$0xff] %v229
    %481 = vst [vmem:[#allocation8 + $0x28] sm:$0xff] %v231
    %482 = vst [vmem:[#allocation8 + $0x40] sm:$0xff] %v235
    %483 = vst [vmem:[#allocation8 + $0x48] sm:$0xff] %v237
    %484 = vst [vmem:[#allocation8 + $0x60] sm:$0xff] %v241
    %485 = vst [vmem:[#allocation8 + $0x68] sm:$0xff] %v243
    %486 = vst [vmem:[#allocation8 + $0x80] sm:$0xff] %v247
    %487 = vst [vmem:[#allocation8 + $0x88] sm:$0xff] %v249
    %488 = vst [vmem:[#allocation8 + $0xa0] sm:$0xff] %v253
    %489 = vst [vmem:[#allocation8 + $0xa8] sm:$0xff] %v255
    %490 = vst [vmem:[#allocation8 + $0xc0] sm:$0xff] %v259
    %491 = vst [vmem:[#allocation8 + $0xc8] sm:$0xff] %v261
    %492 = vst [vmem:[#allocation8 + $0xe0] sm:$0xff] %v265
    %493 = vst [vmem:[#allocation8 + $0xe8] sm:$0xff] %v267
    %494 = vst [vmem:[#allocation8 + $0x100] sm:$0xff] %v271
    %495 = vst [vmem:[#allocation8 + $0x108] sm:$0xff] %v273
    %496 = vst [vmem:[#allocation8 + $0x120] sm:$0xff] %v277
    %497 = vst [vmem:[#allocation8 + $0x128] sm:$0xff] %v279
    %498 = vst [vmem:[#allocation8 + $0x140] sm:$0xff] %v283
    %499 = vst [vmem:[#allocation8 + $0x148] sm:$0xff] %v285
    %500 = vst [vmem:[#allocation8 + $0x160] sm:$0xff] %v289
    %501 = vst [vmem:[#allocation8 + $0x168] sm:$0xff] %v291
    %502 = vst [vmem:[#allocation8 + $0x180] sm:$0xff] %v295
    %503 = vst [vmem:[#allocation8 + $0x188] sm:$0xff] %v297
    %504 = vst [vmem:[#allocation8 + $0x1a0] sm:$0xff] %v301
    %505 = vst [vmem:[#allocation8 + $0x1a8] sm:$0xff] %v303
    %506 = vst [vmem:[#allocation8 + $0x1c0] sm:$0xff] %v307
    %507 = vst [vmem:[#allocation8 + $0x1c8] sm:$0xff] %v309
    %508 = vst [vmem:[#allocation8 + $0x1e0] sm:$0xff] %v313
    %509 = vst [vmem:[#allocation8 + $0x1e8] sm:$0xff] %v315
    %s510 = scalar_lea.vmem [#allocation8], 16
    %511 = vst [vmem:[%s510] sm:$0xff] %v384
    %512 = vst [vmem:[%s510 + $0x8] sm:$0xff] %v386
    %513 = vst [vmem:[%s510 + $0x20] sm:$0xff] %v390
    %514 = vst [vmem:[%s510 + $0x28] sm:$0xff] %v392
    %515 = vst [vmem:[%s510 + $0x40] sm:$0xff] %v396
    %516 = vst [vmem:[%s510 + $0x48] sm:$0xff] %v398
    %517 = vst [vmem:[%s510 + $0x60] sm:$0xff] %v402
    %518 = vst [vmem:[%s510 + $0x68] sm:$0xff] %v404
    %519 = vst [vmem:[%s510 + $0x80] sm:$0xff] %v408
    %520 = vst [vmem:[%s510 + $0x88] sm:$0xff] %v410
    %521 = vst [vmem:[%s510 + $0xa0] sm:$0xff] %v414
    %522 = vst [vmem:[%s510 + $0xa8] sm:$0xff] %v416
    %523 = vst [vmem:[%s510 + $0xc0] sm:$0xff] %v420
    %524 = vst [vmem:[%s510 + $0xc8] sm:$0xff] %v422
    %525 = vst [vmem:[%s510 + $0xe0] sm:$0xff] %v426
    %526 = vst [vmem:[%s510 + $0xe8] sm:$0xff] %v428
    %527 = vst [vmem:[%s510 + $0x100] sm:$0xff] %v432
    %528 = vst [vmem:[%s510 + $0x108] sm:$0xff] %v434
    %529 = vst [vmem:[%s510 + $0x120] sm:$0xff] %v438
    %530 = vst [vmem:[%s510 + $0x128] sm:$0xff] %v440
    %531 = vst [vmem:[%s510 + $0x140] sm:$0xff] %v444
    %532 = vst [vmem:[%s510 + $0x148] sm:$0xff] %v446
    %533 = vst [vmem:[%s510 + $0x160] sm:$0xff] %v450
    %534 = vst [vmem:[%s510 + $0x168] sm:$0xff] %v452
    %535 = vst [vmem:[%s510 + $0x180] sm:$0xff] %v456
    %536 = vst [vmem:[%s510 + $0x188] sm:$0xff] %v458
    %537 = vst [vmem:[%s510 + $0x1a0] sm:$0xff] %v462
    %538 = vst [vmem:[%s510 + $0x1a8] sm:$0xff] %v464
    %539 = vst [vmem:[%s510 + $0x1c0] sm:$0xff] %v468
    %540 = vst [vmem:[%s510 + $0x1c8] sm:$0xff] %v470
    %541 = vst [vmem:[%s510 + $0x1e0] sm:$0xff] %v474
    %542 = vst [vmem:[%s510 + $0x1e8] sm:$0xff] %v476
    // Predicated region
    $region26: #{up_block_forward.2} parent=1 // pred_check
      _
    $region27: #{up_block_forward.2} parent=1 // pred_check_branch
      %544 = sbr.rel (0) target = $region29
    $region28: #{up_block_forward.2} parent=1 // pred_region
      %s546 = ssub.s32 8192, 8192
      %547 = vsyncadd [#allocation4], %s546
      %s548 = sshll.u32 [#allocation8], 4
      %s549 = int_to_ptr.vmem [resolvable:$true] %s548
      %554 = dma.vmem_to_hbm [thread:$0]  %s549, 8192, %s3, [#allocation4], 256, 256, 16
    $region29: #{up_block_forward.2} parent=1 // pred_fallthru
      _
    // Predicated region
    $region30: #{up_block_forward.2} parent=1 // pred_check
      _
    $region31: #{up_block_forward.2} parent=1 // pred_check_branch
      %556 = sbr.rel (0) target = $region33
    $region32: #{up_block_forward.2} parent=1 // pred_region
      %557 = dma.done [#allocation4], 8192
    $region33: #{up_block_forward.2} parent=1 // pred_fallthru
      _
    %558 = vsyncpa [#allocation3], 1
    %559 = vsyncpa [#allocation6], 1
    %560 = vsyncpa [#allocation4], 1

// kernel: up_block_forward.3
$region0: #{up_block_forward.3}
  #allocation0 [shape = 'u32[]', space=smem, size = 0x4, offset = 0x4, fixed_abs, tag = 'smem constant byte address 0x4 - core index']
  #allocation1 [shape = 'u32[144,128]{1,0:T(1,128)}', space=vmem, size = 0x12000, scoped, tag = 'internal scratch']
  #allocation2 [shape = 'f32[18,18,256]{2,1,0:T(8,128)}', space=vmem, size = 0x6c000, scoped, tag = 'scratch operand']
  #allocation3 [shape = 'f32[18,18,128]{2,1,0:T(8,128)}', space=vmem, size = 0x36000, scoped, tag = 'scratch operand']
  %s0 = inlined_call_operand.hbm [shape: f32[2,16,16,128], index: 0, kind: input, shape index: {}]
  %s1 = inlined_call_operand.hbm [shape: f32[2,16,16,128], index: 1, kind: input, shape index: {}]
  %s2 = inlined_call_operand.hbm [shape: f32[2304,128], index: 2, kind: input, shape index: {}]
  %s3 = inlined_call_operand.hbm [shape: f32[1,128], index: 3, kind: input, shape index: {}]
  %s4 = inlined_call_operand.hbm [shape: f32[1,128], index: 4, kind: input, shape index: {}]
  %s5 = inlined_call_operand.hbm [shape: f32[1152,128], index: 5, kind: input, shape index: {}]
  %s6 = inlined_call_operand.hbm [shape: f32[1,128], index: 6, kind: input, shape index: {}]
  %s7 = inlined_call_operand.hbm [shape: f32[1,128], index: 7, kind: input, shape index: {}]
  %s8 = inlined_call_operand.hbm [shape: f32[2,16,16,128], index: 8, kind: output, shape index: {}]
  %s9 = sld [smem:[#allocation0]]
  $region97: #{up_block_forward.3} parent=0
    _
  %s11 = ssub.s32 1, %s9
  %s12 = scalar_select 0, %s11, %s9
  $region1: #{up_block_forward.3} parent=0
    #allocation4 [shape = 'u8[262144]{0}', space=vmem, size = 0x40000, scoped, tag = 'input window, operand 0']
    #allocation5 [shape = 's32[2]{0}', space=sflag, size = 0x8, scoped, tag = 'scoped memory for up_block_forward.3']
    #allocation6 [shape = 's32[2]{0}', space=sflag, size = 0x8, scoped, tag = 'scoped memory for up_block_forward.3']
    #allocation7 [shape = 'u8[262144]{0}', space=vmem, size = 0x40000, scoped, tag = 'input window, operand 1']
    #allocation8 [shape = 's32[2]{0}', space=sflag, size = 0x8, scoped, tag = 'scoped memory for up_block_forward.3']
    #allocation9 [shape = 'u8[1179648]{0}', space=vmem, size = 0x120000, scoped, tag = 'input window, operand 2, single buffered']
    #allocation10 [shape = 'u8[512]{0}', space=vmem, size = 0x400, scoped, tag = 'input window, operand 3, single buffered']
    #allocation11 [shape = 's32[1]{0}', space=sflag, size = 0x4, scoped, tag = 'scoped memory for up_block_forward.3']
    #allocation12 [shape = 'u8[512]{0}', space=vmem, size = 0x400, scoped, tag = 'input window, operand 4, single buffered']
    #allocation13 [shape = 'u8[589824]{0}', space=vmem, size = 0x90000, scoped, tag = 'input window, operand 5, single buffered']
    #allocation14 [shape = 's32[1]{0}', space=sflag, size = 0x4, scoped, tag = 'scoped memory for up_block_forward.3']
    #allocation15 [shape = 'u8[512]{0}', space=vmem, size = 0x400, scoped, tag = 'input window, operand 6, single buffered']
    #allocation16 [shape = 'u8[512]{0}', space=vmem, size = 0x400, scoped, tag = 'input window, operand 7, single buffered']
    #allocation17 [shape = 's32[1]{0}', space=sflag, size = 0x4, scoped, tag = 'scoped memory for up_block_forward.3']
    #allocation18 [shape = 'u8[262144]{0}', space=vmem, size = 0x40000, scoped, tag = 'output window, operand 0']
    %13 = vsyncpa [#allocation5], 0
    %s14 = scalar_lea.sflag [#allocation5], 1
    %15 = vsyncpa %s14, 0
    %16 = vsyncpa [#allocation8], 0
    %s17 = scalar_lea.sflag [#allocation8], 1
    %18 = vsyncpa %s17, 0
    %19 = vsyncpa [#allocation11], 0
    %20 = vsyncpa [#allocation14], 0
    %21 = vsyncpa [#allocation17], 0
    %22 = vsyncpa [#allocation6], 0
    %s23 = scalar_lea.sflag [#allocation6], 1
    %24 = vsyncpa %s23, 0
    loop: start=0, step=1, limit=4
    $region2: #{up_block_forward.3} parent=1 // loop_pre_header
      _
    $region3: #{up_block_forward.3} parent=1 // loop_header
      %s26 = sphi 0, %s30
      %p27 = scmp.ge.s32.totalorder %s26, 4
      %s36 = sphi 0, %s38
      %s39 = sphi 0, %s36
      %s40 = sphi 0, %s39
      %s56 = sphi 0, %s40
      %s62 = sphi 0, %s64
      %s65 = sphi 0, %s62
      %s66 = sphi 0, %s65
      %s82 = sphi 0, %s66
      %s86 = sphi 0, %s86
      %s88 = sphi 0, %s86
      %s89 = sphi 0, %s88
      %s103 = sphi 0, %s89
      %s107 = sphi 0, %s107
      %s109 = sphi 0, %s107
      %s110 = sphi 0, %s109
      %s124 = sphi 0, %s110
      %s128 = sphi 0, %s128
      %s130 = sphi 0, %s128
      %s131 = sphi 0, %s130
      %s145 = sphi 0, %s131
      %s149 = sphi 0, %s149
      %s151 = sphi 0, %s149
      %s152 = sphi 0, %s151
      %s166 = sphi 0, %s152
      %s170 = sphi 0, %s170
      %s172 = sphi 0, %s170
      %s173 = sphi 0, %s172
      %s187 = sphi 0, %s173
      %s191 = sphi 0, %s191
      %s193 = sphi 0, %s191
      %s194 = sphi 0, %s193
      %s208 = sphi 0, %s194
      %s214 = sphi 0, %s216
      %s217 = sphi 0, %s214
      %s218 = sphi 0, %s217
      %s234 = sphi 0, %s218
    $region4: #{up_block_forward.3} parent=1 // loop_header_branch
      %29 = sbr.rel (%p27) target = $region8
    $region5: #{up_block_forward.3} parent=1 // loop_body
      %s31 = ssub.s32 %s26, 1
      %s32 = ssub.s32 %s26, 2
      %s33 = sadd.s32 %s26, 1
      %s34 = ssub.s32 %s26, %s33
      %p35 = scmp.eq.s32.totalorder %s34, 0
      %s37 = sadd.s32 %s36, 1
      %s38 = scalar_select %p35, %s36, %s37
      %p41 = pneg %p35
      %p42 = scmp.eq.s32.totalorder %s26, 1
      %p43 = por %p41, %p42
      %p44 = scmp.ne.s32.totalorder %s36, %s39
      %p45 = scmp.eq.s32.totalorder %s26, 0
      %p46 = por %p44, %p45
      %p47 = scmp.ne.s32.totalorder %s36, %s39
      %p48 = scmp.eq.s32.totalorder %s31, 1
      %p49 = por %p47, %p48
      %p50 = scmp.ne.s32.totalorder %s39, %s40
      %p51 = scmp.eq.s32.totalorder %s31, 0
      %p52 = por %p50, %p51
      %p53 = scmp.ne.s32.totalorder %s39, %s40
      %p54 = scmp.eq.s32.totalorder %s32, 1
      %p55 = por %p53, %p54
      %p57 = scmp.ne.s32.totalorder %s40, %s56
      %p58 = scmp.eq.s32.totalorder %s32, 0
      %p59 = por %p57, %p58
      %s60 = ssub.s32 %s26, %s33
      %p61 = scmp.eq.s32.totalorder %s60, 0
      %s63 = sadd.s32 %s62, 1
      %s64 = scalar_select %p61, %s62, %s63
      %p67 = pneg %p61
      %p68 = scmp.eq.s32.totalorder %s26, 1
      %p69 = por %p67, %p68
      %p70 = scmp.ne.s32.totalorder %s62, %s65
      %p71 = scmp.eq.s32.totalorder %s26, 0
      %p72 = por %p70, %p71
      %p73 = scmp.ne.s32.totalorder %s62, %s65
      %p74 = scmp.eq.s32.totalorder %s31, 1
      %p75 = por %p73, %p74
      %p76 = scmp.ne.s32.totalorder %s65, %s66
      %p77 = scmp.eq.s32.totalorder %s31, 0
      %p78 = por %p76, %p77
      %p79 = scmp.ne.s32.totalorder %s65, %s66
      %p80 = scmp.eq.s32.totalorder %s32, 1
      %p81 = por %p79, %p80
      %p83 = scmp.ne.s32.totalorder %s66, %s82
      %p84 = scmp.eq.s32.totalorder %s32, 0
      %p85 = por %p83, %p84
      %s87 = sadd.s32 %s86, 1
      %p90 = scmp.eq.s32.totalorder %s26, 1
      %p91 = scmp.ne.s32.totalorder %s86, %s88
      %p92 = scmp.eq.s32.totalorder %s26, 0
      %p93 = por %p91, %p92
      %p94 = scmp.ne.s32.totalorder %s86, %s88
      %p95 = scmp.eq.s32.totalorder %s31, 1
      %p96 = por %p94, %p95
      %p97 = scmp.ne.s32.totalorder %s88, %s89
      %p98 = scmp.eq.s32.totalorder %s31, 0
      %p99 = por %p97, %p98
      %p100 = scmp.ne.s32.totalorder %s88, %s89
      %p101 = scmp.eq.s32.totalorder %s32, 1
      %p102 = por %p100, %p101
      %p104 = scmp.ne.s32.totalorder %s89, %s103
      %p105 = scmp.eq.s32.totalorder %s32, 0
      %p106 = por %p104, %p105
      %s108 = sadd.s32 %s107, 1
      %p111 = scmp.eq.s32.totalorder %s26, 1
      %p112 = scmp.ne.s32.totalorder %s107, %s109
      %p113 = scmp.eq.s32.totalorder %s26, 0
      %p114 = por %p112, %p113
      %p115 = scmp.ne.s32.totalorder %s107, %s109
      %p116 = scmp.eq.s32.totalorder %s31, 1
      %p117 = por %p115, %p116
      %p118 = scmp.ne.s32.totalorder %s109, %s110
      %p119 = scmp.eq.s32.totalorder %s31, 0
      %p120 = por %p118, %p119
      %p121 = scmp.ne.s32.totalorder %s109, %s110
      %p122 = scmp.eq.s32.totalorder %s32, 1
      %p123 = por %p121, %p122
      %p125 = scmp.ne.s32.totalorder %s110, %s124
      %p126 = scmp.eq.s32.totalorder %s32, 0
      %p127 = por %p125, %p126
      %s129 = sadd.s32 %s128, 1
      %p132 = scmp.eq.s32.totalorder %s26, 1
      %p133 = scmp.ne.s32.totalorder %s128, %s130
      %p134 = scmp.eq.s32.totalorder %s26, 0
      %p135 = por %p133, %p134
      %p136 = scmp.ne.s32.totalorder %s128, %s130
      %p137 = scmp.eq.s32.totalorder %s31, 1
      %p138 = por %p136, %p137
      %p139 = scmp.ne.s32.totalorder %s130, %s131
      %p140 = scmp.eq.s32.totalorder %s31, 0
      %p141 = por %p139, %p140
      %p142 = scmp.ne.s32.totalorder %s130, %s131
      %p143 = scmp.eq.s32.totalorder %s32, 1
      %p144 = por %p142, %p143
      %p146 = scmp.ne.s32.totalorder %s131, %s145
      %p147 = scmp.eq.s32.totalorder %s32, 0
      %p148 = por %p146, %p147
      %s150 = sadd.s32 %s149, 1
      %p153 = scmp.eq.s32.totalorder %s26, 1
      %p154 = scmp.ne.s32.totalorder %s149, %s151
      %p155 = scmp.eq.s32.totalorder %s26, 0
      %p156 = por %p154, %p155
      %p157 = scmp.ne.s32.totalorder %s149, %s151
      %p158 = scmp.eq.s32.totalorder %s31, 1
      %p159 = por %p157, %p158
      %p160 = scmp.ne.s32.totalorder %s151, %s152
      %p161 = scmp.eq.s32.totalorder %s31, 0
      %p162 = por %p160, %p161
      %p163 = scmp.ne.s32.totalorder %s151, %s152
      %p164 = scmp.eq.s32.totalorder %s32, 1
      %p165 = por %p163, %p164
      %p167 = scmp.ne.s32.totalorder %s152, %s166
      %p168 = scmp.eq.s32.totalorder %s32, 0
      %p169 = por %p167, %p168
      %s171 = sadd.s32 %s170, 1
      %p174 = scmp.eq.s32.totalorder %s26, 1
      %p175 = scmp.ne.s32.totalorder %s170, %s172
      %p176 = scmp.eq.s32.totalorder %s26, 0
      %p177 = por %p175, %p176
      %p178 = scmp.ne.s32.totalorder %s170, %s172
      %p179 = scmp.eq.s32.totalorder %s31, 1
      %p180 = por %p178, %p179
      %p181 = scmp.ne.s32.totalorder %s172, %s173
      %p182 = scmp.eq.s32.totalorder %s31, 0
      %p183 = por %p181, %p182
      %p184 = scmp.ne.s32.totalorder %s172, %s173
      %p185 = scmp.eq.s32.totalorder %s32, 1
      %p186 = por %p184, %p185
      %p188 = scmp.ne.s32.totalorder %s173, %s187
      %p189 = scmp.eq.s32.totalorder %s32, 0
      %p190 = por %p188, %p189
      %s192 = sadd.s32 %s191, 1
      %p195 = scmp.eq.s32.totalorder %s26, 1
      %p196 = scmp.ne.s32.totalorder %s191, %s193
      %p197 = scmp.eq.s32.totalorder %s26, 0
      %p198 = por %p196, %p197
      %p199 = scmp.ne.s32.totalorder %s191, %s193
      %p200 = scmp.eq.s32.totalorder %s31, 1
      %p201 = por %p199, %p200
      %p202 = scmp.ne.s32.totalorder %s193, %s194
      %p203 = scmp.eq.s32.totalorder %s31, 0
      %p204 = por %p202, %p203
      %p205 = scmp.ne.s32.totalorder %s193, %s194
      %p206 = scmp.eq.s32.totalorder %s32, 1
      %p207 = por %p205, %p206
      %p209 = scmp.ne.s32.totalorder %s194, %s208
      %p210 = scmp.eq.s32.totalorder %s32, 0
      %p211 = por %p209, %p210
      %s212 = ssub.s32 %s26, %s33
      %p213 = scmp.eq.s32.totalorder %s212, 0
      %s215 = sadd.s32 %s214, 1
      %s216 = scalar_select %p213, %s214, %s215
      %p219 = pneg %p213
      %p220 = scmp.eq.s32.totalorder %s26, 1
      %p221 = por %p219, %p220
      %p222 = scmp.ne.s32.totalorder %s214, %s217
      %p223 = scmp.eq.s32.totalorder %s26, 0
      %p224 = por %p222, %p223
      %p225 = scmp.ne.s32.totalorder %s214, %s217
      %p226 = scmp.eq.s32.totalorder %s31, 1
      %p227 = por %p225, %p226
      %p228 = scmp.ne.s32.totalorder %s217, %s218
      %p229 = scmp.eq.s32.totalorder %s31, 0
      %p230 = por %p228, %p229
      %p231 = scmp.ne.s32.totalorder %s217, %s218
      %p232 = scmp.eq.s32.totalorder %s32, 1
      %p233 = por %p231, %p232
      %p235 = scmp.ne.s32.totalorder %s218, %s234
      %p236 = scmp.eq.s32.totalorder %s32, 0
      %p237 = por %p235, %p236
      %p238 = scmp.le.s32.totalorder 1, %s26
      %p239 = scmp.lt.s32.totalorder %s26, 3
      %p240 = pnand %p238, %p239
      %p241 = pneg %p240
      // Predicated region
      $region9: #{up_block_forward.3} parent=5 // pred_check
        _
      $region10: #{up_block_forward.3} parent=5 // pred_check_branch
        %243 = sbr.rel (%p240) target = $region12
      $region11: #{up_block_forward.3} parent=5 // pred_region
        %s244 = ssub.s32 %s26, 1
        // Predicated region
        $region13: #{up_block_forward.3} parent=11 // pred_check
          %p245 = pneg %p99
        $region14: #{up_block_forward.3} parent=11 // pred_check_branch
          %247 = sbr.rel (%p245) target = $region16
        $region15: #{up_block_forward.3} parent=11 // pred_region
          %s249 = ssub.s32 36864, 36864
          %250 = vsyncadd [#allocation8], %s249
          %s251 = sshll.u32 [#allocation9], 4
          %s252 = int_to_ptr.vmem [resolvable:$true] %s251
          %257 = dma.hbm_to_vmem [thread:$0]  %s2, 36864, %s252, [#allocation8], 128, 128, 8
        $region16: #{up_block_forward.3} parent=11 // pred_fallthru
          _
        // Predicated region
        $region17: #{up_block_forward.3} parent=11 // pred_check
          %p258 = pneg %p120
        $region18: #{up_block_forward.3} parent=11 // pred_check_branch
          %260 = sbr.rel (%p258) target = $region20
        $region19: #{up_block_forward.3} parent=11 // pred_region
          %s262 = ssub.s32 16, 16
          %263 = vsyncadd [#allocation11], %s262
          %s265 = sshll.u32 [#allocation10], 4
          %s266 = int_to_ptr.vmem [resolvable:$true] %s265
          %268 = dma.hbm_to_vmem [thread:$0]  %s3, 16, %s266, [#allocation11]
        $region20: #{up_block_forward.3} parent=11 // pred_fallthru
          _
        // Predicated region
        $region21: #{up_block_forward.3} parent=11 // pred_check
          %p269 = pneg %p141
        $region22: #{up_block_forward.3} parent=11 // pred_check_branch
          %271 = sbr.rel (%p269) target = $region24
        $region23: #{up_block_forward.3} parent=11 // pred_region
          %s273 = ssub.s32 16, 16
          %274 = vsyncadd [#allocation11], %s273
          %s276 = sshll.u32 [#allocation12], 4
          %s277 = int_to_ptr.vmem [resolvable:$true] %s276
          %279 = dma.hbm_to_vmem [thread:$0]  %s4, 16, %s277, [#allocation11]
        $region24: #{up_block_forward.3} parent=11 // pred_fallthru
          _
        // Predicated region
        $region25: #{up_block_forward.3} parent=11 // pred_check
          %p280 = pneg %p162
        $region26: #{up_block_forward.3} parent=11 // pred_check_branch
          %282 = sbr.rel (%p280) target = $region28
        $region27: #{up_block_forward.3} parent=11 // pred_region
          %s284 = ssub.s32 18432, 18432
          %285 = vsyncadd [#allocation14], %s284
          %s286 = sshll.u32 [#allocation13], 4
          %s287 = int_to_ptr.vmem [resolvable:$true] %s286
          %292 = dma.hbm_to_vmem [thread:$0]  %s5, 18432, %s287, [#allocation14], 128, 128, 8
        $region28: #{up_block_forward.3} parent=11 // pred_fallthru
          _
        // Predicated region
        $region29: #{up_block_forward.3} parent=11 // pred_check
          %p293 = pneg %p183
        $region30: #{up_block_forward.3} parent=11 // pred_check_branch
          %295 = sbr.rel (%p293) target = $region32
        $region31: #{up_block_forward.3} parent=11 // pred_region
          %s297 = ssub.s32 16, 16
          %298 = vsyncadd [#allocation14], %s297
          %s300 = sshll.u32 [#allocation15], 4
          %s301 = int_to_ptr.vmem [resolvable:$true] %s300
          %303 = dma.hbm_to_vmem [thread:$0]  %s6, 16, %s301, [#allocation14]
        $region32: #{up_block_forward.3} parent=11 // pred_fallthru
          _
        // Predicated region
        $region33: #{up_block_forward.3} parent=11 // pred_check
          %p304 = pneg %p204
        $region34: #{up_block_forward.3} parent=11 // pred_check_branch
          %306 = sbr.rel (%p304) target = $region36
        $region35: #{up_block_forward.3} parent=11 // pred_region
          %s308 = ssub.s32 16, 16
          %309 = vsyncadd [#allocation17], %s308
          %s311 = sshll.u32 [#allocation16], 4
          %s312 = int_to_ptr.vmem [resolvable:$true] %s311
          %314 = dma.hbm_to_vmem [thread:$0]  %s7, 16, %s312, [#allocation17]
        $region36: #{up_block_forward.3} parent=11 // pred_fallthru
          _
      $region12: #{up_block_forward.3} parent=5 // pred_fallthru
        _
      %p315 = scmp.lt.s32.totalorder %s26, 2
      // Predicated region
      $region37: #{up_block_forward.3} parent=5 // pred_check
        %p316 = pneg %p315
      $region38: #{up_block_forward.3} parent=5 // pred_check_branch
        %318 = sbr.rel (%p316) target = $region40
      $region39: #{up_block_forward.3} parent=5 // pred_region
        // Predicated region
        $region41: #{up_block_forward.3} parent=39 // pred_check
          %p319 = pneg %p46
        $region42: #{up_block_forward.3} parent=39 // pred_check_branch
          %321 = sbr.rel (%p319) target = $region44
        $region43: #{up_block_forward.3} parent=39 // pred_region
          %s322 = sand.u32 %s36, 1
          %s323 = scalar_lea.sflag [#allocation5], %s322
          %s324 = sand.u32 %s36, 1
          %s325 = smul.addr %s324, 256
          %s326 = scalar_lea.vmem [#allocation4], %s325
          %s328 = ssub.s32 4096, 4096
          %329 = vsyncadd %s323, %s328
          %s330 = smul.addr %s26, 32
          %s331 = smul.addr %s330, 128
          %s332 = scalar_lea.hbm %s0, %s331
          %s333 = sshll.u32 %s326, 4
          %s334 = int_to_ptr.vmem [resolvable:$true] %s333
          %339 = dma.hbm_to_vmem [thread:$0]  %s332, 4096, %s334, %s323, 128, 128, 8
        $region44: #{up_block_forward.3} parent=39 // pred_fallthru
          _
        // Predicated region
        $region45: #{up_block_forward.3} parent=39 // pred_check
          %p340 = pneg %p72
        $region46: #{up_block_forward.3} parent=39 // pred_check_branch
          %342 = sbr.rel (%p340) target = $region48
        $region47: #{up_block_forward.3} parent=39 // pred_region
          %s343 = sand.u32 %s26, 1
          %s344 = scalar_lea.sflag [#allocation8], %s343
          %s345 = sand.u32 %s62, 1
          %s346 = smul.addr %s345, 256
          %s347 = scalar_lea.vmem [#allocation7], %s346
          %s349 = ssub.s32 4096, 4096
          %350 = vsyncadd %s344, %s349
          %s351 = smul.addr %s26, 32
          %s352 = smul.addr %s351, 128
          %s353 = scalar_lea.hbm %s1, %s352
          %s354 = sshll.u32 %s347, 4
          %s355 = int_to_ptr.vmem [resolvable:$true] %s354
          %360 = dma.hbm_to_vmem [thread:$0]  %s353, 4096, %s355, %s344, 128, 128, 8
        $region48: #{up_block_forward.3} parent=39 // pred_fallthru
          _
      $region40: #{up_block_forward.3} parent=5 // pred_fallthru
        _
      %p361 = scmp.le.s32.totalorder 1, %s26
      %p362 = scmp.lt.s32.totalorder %s26, 3
      %p363 = pnand %p361, %p362
      %p364 = pneg %p363
      // Predicated region
      $region49: #{up_block_forward.3} parent=5 // pred_check
        _
      $region50: #{up_block_forward.3} parent=5 // pred_check_branch
        %366 = sbr.rel (%p363) target = $region52
      $region51: #{up_block_forward.3} parent=5 // pred_region
        %s367 = ssub.s32 %s26, 1
        %s368 = sand.u32 %s39, 1
        %s369 = scalar_lea.sflag [#allocation5], %s368
        %s370 = sand.u32 %s39, 1
        %s371 = smul.addr %s370, 256
        %s372 = scalar_lea.vmem [#allocation4], %s371
        // Predicated region
        $region53: #{up_block_forward.3} parent=51 // pred_check
          %p373 = pneg %p52
        $region54: #{up_block_forward.3} parent=51 // pred_check_branch
          %375 = sbr.rel (%p373) target = $region56
        $region55: #{up_block_forward.3} parent=51 // pred_region
          %376 = dma.done %s369, 4096
        $region56: #{up_block_forward.3} parent=51 // pred_fallthru
          _
        %s377 = sand.u32 %s31, 1
        %s378 = scalar_lea.sflag [#allocation8], %s377
        %s379 = sand.u32 %s65, 1
        %s380 = smul.addr %s379, 256
        %s381 = scalar_lea.vmem [#allocation7], %s380
        // Predicated region
        $region57: #{up_block_forward.3} parent=51 // pred_check
          %p382 = pneg %p78
        $region58: #{up_block_forward.3} parent=51 // pred_check_branch
          %384 = sbr.rel (%p382) target = $region60
        $region59: #{up_block_forward.3} parent=51 // pred_region
          %385 = dma.done %s378, 4096
        $region60: #{up_block_forward.3} parent=51 // pred_fallthru
          _
        // Predicated region
        $region61: #{up_block_forward.3} parent=51 // pred_check
          %p386 = pneg %p99
        $region62: #{up_block_forward.3} parent=51 // pred_check_branch
          %388 = sbr.rel (%p386) target = $region64
        $region63: #{up_block_forward.3} parent=51 // pred_region
          %389 = dma.done [#allocation8], 36864
        $region64: #{up_block_forward.3} parent=51 // pred_fallthru
          _
        // Predicated region
        $region65: #{up_block_forward.3} parent=51 // pred_check
          %p390 = pneg %p120
        $region66: #{up_block_forward.3} parent=51 // pred_check_branch
          %392 = sbr.rel (%p390) target = $region68
        $region67: #{up_block_forward.3} parent=51 // pred_region
          %393 = dma.done [#allocation11], 16
        $region68: #{up_block_forward.3} parent=51 // pred_fallthru
          _
        // Predicated region
        $region69: #{up_block_forward.3} parent=51 // pred_check
          %p394 = pneg %p141
        $region70: #{up_block_forward.3} parent=51 // pred_check_branch
          %396 = sbr.rel (%p394) target = $region72
        $region71: #{up_block_forward.3} parent=51 // pred_region
          %397 = dma.done [#allocation11], 16
        $region72: #{up_block_forward.3} parent=51 // pred_fallthru
          _
        // Predicated region
        $region73: #{up_block_forward.3} parent=51 // pred_check
          %p398 = pneg %p162
        $region74: #{up_block_forward.3} parent=51 // pred_check_branch
          %400 = sbr.rel (%p398) target = $region76
        $region75: #{up_block_forward.3} parent=51 // pred_region
          %401 = dma.done [#allocation14], 18432
        $region76: #{up_block_forward.3} parent=51 // pred_fallthru
          _
        // Predicated region
        $region77: #{up_block_forward.3} parent=51 // pred_check
          %p402 = pneg %p183
        $region78: #{up_block_forward.3} parent=51 // pred_check_branch
          %404 = sbr.rel (%p402) target = $region80
        $region79: #{up_block_forward.3} parent=51 // pred_region
          %405 = dma.done [#allocation14], 16
        $region80: #{up_block_forward.3} parent=51 // pred_fallthru
          _
        // Predicated region
        $region81: #{up_block_forward.3} parent=51 // pred_check
          %p406 = pneg %p204
        $region82: #{up_block_forward.3} parent=51 // pred_check_branch
          %408 = sbr.rel (%p406) target = $region84
        $region83: #{up_block_forward.3} parent=51 // pred_region
          %409 = dma.done [#allocation17], 16
        $region84: #{up_block_forward.3} parent=51 // pred_fallthru
          _
        %s410 = sand.u32 %s39, 1
        %s411 = scalar_lea.sflag [#allocation5], %s410
        %s412 = sand.u32 %s39, 1
        %s413 = smul.addr %s412, 256
        %s414 = scalar_lea.vmem [#allocation4], %s413
        %p415 = pneg %p52
        %p416 = pneg %p49
        %s417 = sand.u32 %s31, 1
        %s418 = scalar_lea.sflag [#allocation8], %s417
        %s419 = sand.u32 %s65, 1
        %s420 = smul.addr %s419, 256
        %s421 = scalar_lea.vmem [#allocation7], %s420
        %p422 = pneg %p78
        %p423 = pneg %p75
        %p424 = pneg %p99
        %p425 = pneg %p96
        %p426 = pneg %p120
        %p427 = pneg %p117
        %p428 = pneg %p141
        %p429 = pneg %p138
        %p430 = pneg %p162
        %p431 = pneg %p159
        %p432 = pneg %p183
        %p433 = pneg %p180
        %p434 = pneg %p204
        %p435 = pneg %p201
        %p436 = pneg %p230
        %p437 = pneg %p227
        %s438 = sand.u32 %s217, 1
        %s439 = scalar_lea.sflag [#allocation6], %s438
        %s440 = sand.u32 %s217, 1
        %s441 = smul.addr %s440, 256
        %s442 = scalar_lea.vmem [#allocation18], %s441
        %443 = vst [vmem:[#allocation2] sm:$0xff] 0.0
        %444 = vst [vmem:[#allocation2 + $0x8] sm:$0xff] 0.0
        %445 = vst [vmem:[#allocation2 + $0x10] sm:$0xff] 0.0
        %446 = vst [vmem:[#allocation2 + $0x18] sm:$0xff] 0.0
        %447 = vst [vmem:[#allocation2 + $0x20] sm:$0x3] 0.0
        %448 = vst [vmem:[#allocation2 + $0x28] sm:$0x3] 0.0
        %s449 = scalar_lea.vmem [#allocation2], 816
        %450 = vst [vmem:[%s449] sm:$0xff] 0.0
        %451 = vst [vmem:[%s449 + $0x8] sm:$0xff] 0.0
        %452 = vst [vmem:[%s449 + $0x10] sm:$0xff] 0.0
        %453 = vst [vmem:[%s449 + $0x18] sm:$0xff] 0.0
        %454 = vst [vmem:[%s449 + $0x20] sm:$0x3] 0.0
        %455 = vst [vmem:[%s449 + $0x28] sm:$0x3] 0.0
        %v456 = vlaneseq
        %vm457 = vcmp.ge.s32.totalorder %v456, 0
        %vm458 = vcmp.lt.s32.totalorder %v456, 256
        %vm459 = vmand %vm457, %vm458
        %460 = vst.msk [vmem:[#allocation2] ss:$8 sm:$0x3] %vm459, 0.0
        %461 = vst.msk [vmem:[#allocation2] ss:$8 sm:$0x0] %vm459, 0.0
        %s462 = scalar_lea.vmem [#allocation2], 48
        %463 = vst.msk [vmem:[%s462] ss:$8 sm:$0x3] %vm459, 0.0
        %464 = vst.msk [vmem:[%s462] ss:$8 sm:$0x0] %vm459, 0.0
        %s465 = scalar_lea.vmem [#allocation2], 96
        %466 = vst.msk [vmem:[%s465] ss:$8 sm:$0x3] %vm459, 0.0
        %467 = vst.msk [vmem:[%s465] ss:$8 sm:$0x0] %vm459, 0.0
        %s468 = scalar_lea.vmem [#allocation2], 144
        %469 = vst.msk [vmem:[%s468] ss:$8 sm:$0x3] %vm459, 0.0
        %470 = vst.msk [vmem:[%s468] ss:$8 sm:$0x0] %vm459, 0.0
        %s471 = scalar_lea.vmem [#allocation2], 192
        %472 = vst.msk [vmem:[%s471] ss:$8 sm:$0x3] %vm459, 0.0
        %473 = vst.msk [vmem:[%s471] ss:$8 sm:$0x0] %vm459, 0.0
        %s474 = scalar_lea.vmem [#allocation2], 240
        %475 = vst.msk [vmem:[%s474] ss:$8 sm:$0x3] %vm459, 0.0
        %476 = vst.msk [vmem:[%s474] ss:$8 sm:$0x0] %vm459, 0.0
        %s477 = scalar_lea.vmem [#allocation2], 288
        %478 = vst.msk [vmem:[%s477] ss:$8 sm:$0x3] %vm459, 0.0
        %479 = vst.msk [vmem:[%s477] ss:$8 sm:$0x0] %vm459, 0.0
        %s480 = scalar_lea.vmem [#allocation2], 336
        %481 = vst.msk [vmem:[%s480] ss:$8 sm:$0x3] %vm459, 0.0
        %482 = vst.msk [vmem:[%s480] ss:$8 sm:$0x0] %vm459, 0.0
        %s483 = scalar_lea.vmem [#allocation2], 384
        %484 = vst.msk [vmem:[%s483] ss:$8 sm:$0x3] %vm459, 0.0
        %485 = vst.msk [vmem:[%s483] ss:$8 sm:$0x0] %vm459, 0.0
        %s486 = scalar_lea.vmem [#allocation2], 432
        %487 = vst.msk [vmem:[%s486] ss:$8 sm:$0x3] %vm459, 0.0
        %488 = vst.msk [vmem:[%s486] ss:$8 sm:$0x0] %vm459, 0.0
        %s489 = scalar_lea.vmem [#allocation2], 480
        %490 = vst.msk [vmem:[%s489] ss:$8 sm:$0x3] %vm459, 0.0
        %491 = vst.msk [vmem:[%s489] ss:$8 sm:$0x0] %vm459, 0.0
        %s492 = scalar_lea.vmem [#allocation2], 528
        %493 = vst.msk [vmem:[%s492] ss:$8 sm:$0x3] %vm459, 0.0
        %494 = vst.msk [vmem:[%s492] ss:$8 sm:$0x0] %vm459, 0.0
        %s495 = scalar_lea.vmem [#allocation2], 576
        %496 = vst.msk [vmem:[%s495] ss:$8 sm:$0x3] %vm459, 0.0
        %497 = vst.msk [vmem:[%s495] ss:$8 sm:$0x0] %vm459, 0.0
        %s498 = scalar_lea.vmem [#allocation2], 624
        %499 = vst.msk [vmem:[%s498] ss:$8 sm:$0x3] %vm459, 0.0
        %500 = vst.msk [vmem:[%s498] ss:$8 sm:$0x0] %vm459, 0.0
        %s501 = scalar_lea.vmem [#allocation2], 672
        %502 = vst.msk [vmem:[%s501] ss:$8 sm:$0x3] %vm459, 0.0
        %503 = vst.msk [vmem:[%s501] ss:$8 sm:$0x0] %vm459, 0.0
        %s504 = scalar_lea.vmem [#allocation2], 720
        %505 = vst.msk [vmem:[%s504] ss:$8 sm:$0x3] %vm459, 0.0
        %506 = vst.msk [vmem:[%s504] ss:$8 sm:$0x0] %vm459, 0.0
        %s507 = scalar_lea.vmem [#allocation2], 768
        %508 = vst.msk [vmem:[%s507] ss:$8 sm:$0x3] %vm459, 0.0
        %509 = vst.msk [vmem:[%s507] ss:$8 sm:$0x0] %vm459, 0.0
        %s510 = scalar_lea.vmem [#allocation2], 816
        %511 = vst.msk [vmem:[%s510] ss:$8 sm:$0x3] %vm459, 0.0
        %512 = vst.msk [vmem:[%s510] ss:$8 sm:$0x0] %vm459, 0.0
        %s513 = scalar_lea.vmem [#allocation2], 33
        %514 = vst.msk [vmem:[%s513] ss:$8 sm:$0x3] %vm459, 0.0
        %515 = vst.msk [vmem:[%s513] ss:$8 sm:$0x0] %vm459, 0.0
        %s516 = scalar_lea.vmem [#allocation2], 81
        %517 = vst.msk [vmem:[%s516] ss:$8 sm:$0x3] %vm459, 0.0
        %518 = vst.msk [vmem:[%s516] ss:$8 sm:$0x0] %vm459, 0.0
        %s519 = scalar_lea.vmem [#allocation2], 129
        %520 = vst.msk [vmem:[%s519] ss:$8 sm:$0x3] %vm459, 0.0
        %521 = vst.msk [vmem:[%s519] ss:$8 sm:$0x0] %vm459, 0.0
        %s522 = scalar_lea.vmem [#allocation2], 177
        %523 = vst.msk [vmem:[%s522] ss:$8 sm:$0x3] %vm459, 0.0
        %524 = vst.msk [vmem:[%s522] ss:$8 sm:$0x0] %vm459, 0.0
        %s525 = scalar_lea.vmem [#allocation2], 225
        %526 = vst.msk [vmem:[%s525] ss:$8 sm:$0x3] %vm459, 0.0
        %527 = vst.msk [vmem:[%s525] ss:$8 sm:$0x0] %vm459, 0.0
        %s528 = scalar_lea.vmem [#allocation2], 273
        %529 = vst.msk [vmem:[%s528] ss:$8 sm:$0x3] %vm459, 0.0
        %530 = vst.msk [vmem:[%s528] ss:$8 sm:$0x0] %vm459, 0.0
        %s531 = scalar_lea.vmem [#allocation2], 321
        %532 = vst.msk [vmem:[%s531] ss:$8 sm:$0x3] %vm459, 0.0
        %533 = vst.msk [vmem:[%s531] ss:$8 sm:$0x0] %vm459, 0.0
        %s534 = scalar_lea.vmem [#allocation2], 369
        %535 = vst.msk [vmem:[%s534] ss:$8 sm:$0x3] %vm459, 0.0
        %536 = vst.msk [vmem:[%s534] ss:$8 sm:$0x0] %vm459, 0.0
        %s537 = scalar_lea.vmem [#allocation2], 417
        %538 = vst.msk [vmem:[%s537] ss:$8 sm:$0x3] %vm459, 0.0
        %539 = vst.msk [vmem:[%s537] ss:$8 sm:$0x0] %vm459, 0.0
        %s540 = scalar_lea.vmem [#allocation2], 465
        %541 = vst.msk [vmem:[%s540] ss:$8 sm:$0x3] %vm459, 0.0
        %542 = vst.msk [vmem:[%s540] ss:$8 sm:$0x0] %vm459, 0.0
        %s543 = scalar_lea.vmem [#allocation2], 513
        %544 = vst.msk [vmem:[%s543] ss:$8 sm:$0x3] %vm459, 0.0
        %545 = vst.msk [vmem:[%s543] ss:$8 sm:$0x0] %vm459, 0.0
        %s546 = scalar_lea.vmem [#allocation2], 561
        %547 = vst.msk [vmem:[%s546] ss:$8 sm:$0x3] %vm459, 0.0
        %548 = vst.msk [vmem:[%s546] ss:$8 sm:$0x0] %vm459, 0.0
        %s549 = scalar_lea.vmem [#allocation2], 609
        %550 = vst.msk [vmem:[%s549] ss:$8 sm:$0x3] %vm459, 0.0
        %551 = vst.msk [vmem:[%s549] ss:$8 sm:$0x0] %vm459, 0.0
        %s552 = scalar_lea.vmem [#allocation2], 657
        %553 = vst.msk [vmem:[%s552] ss:$8 sm:$0x3] %vm459, 0.0
        %554 = vst.msk [vmem:[%s552] ss:$8 sm:$0x0] %vm459, 0.0
        %s555 = scalar_lea.vmem [#allocation2], 705
        %556 = vst.msk [vmem:[%s555] ss:$8 sm:$0x3] %vm459, 0.0
        %557 = vst.msk [vmem:[%s555] ss:$8 sm:$0x0] %vm459, 0.0
        %s558 = scalar_lea.vmem [#allocation2], 753
        %559 = vst.msk [vmem:[%s558] ss:$8 sm:$0x3] %vm459, 0.0
        %560 = vst.msk [vmem:[%s558] ss:$8 sm:$0x0] %vm459, 0.0
        %s561 = scalar_lea.vmem [#allocation2], 801
        %562 = vst.msk [vmem:[%s561] ss:$8 sm:$0x3] %vm459, 0.0
        %563 = vst.msk [vmem:[%s561] ss:$8 sm:$0x0] %vm459, 0.0
        %s564 = scalar_lea.vmem [#allocation2], 849
        %565 = vst.msk [vmem:[%s564] ss:$8 sm:$0x3] %vm459, 0.0
        %566 = vst.msk [vmem:[%s564] ss:$8 sm:$0x0] %vm459, 0.0
        %567 = vst [vmem:[#allocation3] sm:$0xff] 0.0
        %568 = vst [vmem:[#allocation3 + $0x8] sm:$0xff] 0.0
        %569 = vst [vmem:[#allocation3 + $0x10] sm:$0x3] 0.0
        %s570 = scalar_lea.vmem [#allocation3], 408
        %571 = vst [vmem:[%s570] sm:$0xff] 0.0
        %572 = vst [vmem:[%s570 + $0x8] sm:$0xff] 0.0
        %573 = vst [vmem:[%s570 + $0x10] sm:$0x3] 0.0
        %574 = vst [vmem:[#allocation3] sm:$0x1] 0.0
        %575 = vst [vmem:[#allocation3 + $0x18] sm:$0x1] 0.0
        %576 = vst [vmem:[#allocation3 + $0x30] sm:$0x1] 0.0
        %577 = vst [vmem:[#allocation3 + $0x48] sm:$0x1] 0.0
        %578 = vst [vmem:[#allocation3 + $0x60] sm:$0x1] 0.0
        %579 = vst [vmem:[#allocation3 + $0x78] sm:$0x1] 0.0
        %580 = vst [vmem:[#allocation3 + $0x90] sm:$0x1] 0.0
        %581 = vst [vmem:[#allocation3 + $0xa8] sm:$0x1] 0.0
        %582 = vst [vmem:[#allocation3 + $0xc0] sm:$0x1] 0.0
        %583 = vst [vmem:[#allocation3 + $0xd8] sm:$0x1] 0.0
        %584 = vst [vmem:[#allocation3 + $0xf0] sm:$0x1] 0.0
        %585 = vst [vmem:[#allocation3 + $0x108] sm:$0x1] 0.0
        %586 = vst [vmem:[#allocation3 + $0x120] sm:$0x1] 0.0
        %587 = vst [vmem:[#allocation3 + $0x138] sm:$0x1] 0.0
        %588 = vst [vmem:[#allocation3 + $0x150] sm:$0x1] 0.0
        %589 = vst [vmem:[#allocation3 + $0x168] sm:$0x1] 0.0
        %590 = vst [vmem:[#allocation3 + $0x180] sm:$0x1] 0.0
        %591 = vst [vmem:[#allocation3 + $0x198] sm:$0x1] 0.0
        %592 = vst [vmem:[#allocation3 + $0x11] sm:$0x1] 0.0
        %593 = vst [vmem:[#allocation3 + $0x29] sm:$0x1] 0.0
        %594 = vst [vmem:[#allocation3 + $0x41] sm:$0x1] 0.0
        %595 = vst [vmem:[#allocation3 + $0x59] sm:$0x1] 0.0
        %596 = vst [vmem:[#allocation3 + $0x71] sm:$0x1] 0.0
        %597 = vst [vmem:[#allocation3 + $0x89] sm:$0x1] 0.0
        %598 = vst [vmem:[#allocation3 + $0xa1] sm:$0x1] 0.0
        %599 = vst [vmem:[#allocation3 + $0xb9] sm:$0x1] 0.0
        %600 = vst [vmem:[#allocation3 + $0xd1] sm:$0x1] 0.0
        %601 = vst [vmem:[#allocation3 + $0xe9] sm:$0x1] 0.0
        %602 = vst [vmem:[#allocation3 + $0x101] sm:$0x1] 0.0
        %603 = vst [vmem:[#allocation3 + $0x119] sm:$0x1] 0.0
        %604 = vst [vmem:[#allocation3 + $0x131] sm:$0x1] 0.0
        %605 = vst [vmem:[#allocation3 + $0x149] sm:$0x1] 0.0
        %606 = vst [vmem:[#allocation3 + $0x161] sm:$0x1] 0.0
        %607 = vst [vmem:[#allocation3 + $0x179] sm:$0x1] 0.0
        %608 = vst [vmem:[#allocation3 + $0x191] sm:$0x1] 0.0
        %609 = vst [vmem:[#allocation3 + $0x1a9] sm:$0x1] 0.0
        %v610 = vld [vmem:[%s372] sm:$0xff]
        %v611 = vld [vmem:[%s372 + $0x8] sm:$0xff]
        %v612 = vld [vmem:[%s372 + $0x10] sm:$0xff]
        %v613 = vld [vmem:[%s372 + $0x18] sm:$0xff]
        %v614 = vld [vmem:[%s372 + $0x20] sm:$0xff]
        %v615 = vld [vmem:[%s372 + $0x28] sm:$0xff]
        %v616 = vld [vmem:[%s372 + $0x30] sm:$0xff]
        %v617 = vld [vmem:[%s372 + $0x38] sm:$0xff]
        %v618 = vld [vmem:[%s372 + $0x40] sm:$0xff]
        %v619 = vld [vmem:[%s372 + $0x48] sm:$0xff]
        %v620 = vld [vmem:[%s372 + $0x50] sm:$0xff]
        %v621 = vld [vmem:[%s372 + $0x58] sm:$0xff]
        %v622 = vld [vmem:[%s372 + $0x60] sm:$0xff]
        %v623 = vld [vmem:[%s372 + $0x68] sm:$0xff]
        %v624 = vld [vmem:[%s372 + $0x70] sm:$0xff]
        %v625 = vld [vmem:[%s372 + $0x78] sm:$0xff]
        %v626 = vld [vmem:[%s372 + $0x80] sm:$0xff]
        %v627 = vld [vmem:[%s372 + $0x88] sm:$0xff]
        %v628 = vld [vmem:[%s372 + $0x90] sm:$0xff]
        %v629 = vld [vmem:[%s372 + $0x98] sm:$0xff]
        %v630 = vld [vmem:[%s372 + $0xa0] sm:$0xff]
        %v631 = vld [vmem:[%s372 + $0xa8] sm:$0xff]
        %v632 = vld [vmem:[%s372 + $0xb0] sm:$0xff]
        %v633 = vld [vmem:[%s372 + $0xb8] sm:$0xff]
        %v634 = vld [vmem:[%s372 + $0xc0] sm:$0xff]
        %v635 = vld [vmem:[%s372 + $0xc8] sm:$0xff]
        %v636 = vld [vmem:[%s372 + $0xd0] sm:$0xff]
        %v637 = vld [vmem:[%s372 + $0xd8] sm:$0xff]
        %v638 = vld [vmem:[%s372 + $0xe0] sm:$0xff]
        %v639 = vld [vmem:[%s372 + $0xe8] sm:$0xff]
        %v640 = vld [vmem:[%s372 + $0xf0] sm:$0xff]
        %v641 = vld [vmem:[%s372 + $0xf8] sm:$0xff]
        %vm674 = vcmask 1040384
        %v675 = vrot.slane %v610, 7
        %v676 = vrot.slane %v611, 7
        %v677 = vsel %vm674, %v675, %v676
        %v678 = vrot.slane %v612, 7
        %v679 = vrot.slane %v613, 7
        %v680 = vsel %vm674, %v678, %v679
        %v681 = vrot.slane %v614, 7
        %v682 = vrot.slane %v615, 7
        %v683 = vsel %vm674, %v681, %v682
        %v684 = vrot.slane %v616, 7
        %v685 = vrot.slane %v617, 7
        %v686 = vsel %vm674, %v684, %v685
        %v687 = vrot.slane %v618, 7
        %v688 = vrot.slane %v619, 7
        %v689 = vsel %vm674, %v687, %v688
        %v690 = vrot.slane %v620, 7
        %v691 = vrot.slane %v621, 7
        %v692 = vsel %vm674, %v690, %v691
        %v693 = vrot.slane %v622, 7
        %v694 = vrot.slane %v623, 7
        %v695 = vsel %vm674, %v693, %v694
        %v696 = vrot.slane %v624, 7
        %v697 = vrot.slane %v625, 7
        %v698 = vsel %vm674, %v696, %v697
        %v699 = vrot.slane %v626, 7
        %v700 = vrot.slane %v627, 7
        %v701 = vsel %vm674, %v699, %v700
        %v702 = vrot.slane %v628, 7
        %v703 = vrot.slane %v629, 7
        %v704 = vsel %vm674, %v702, %v703
        %v705 = vrot.slane %v630, 7
        %v706 = vrot.slane %v631, 7
        %v707 = vsel %vm674, %v705, %v706
        %v708 = vrot.slane %v632, 7
        %v709 = vrot.slane %v633, 7
        %v710 = vsel %vm674, %v708, %v709
        %v711 = vrot.slane %v634, 7
        %v712 = vrot.slane %v635, 7
        %v713 = vsel %vm674, %v711, %v712
        %v714 = vrot.slane %v636, 7
        %v715 = vrot.slane %v637, 7
        %v716 = vsel %vm674, %v714, %v715
        %v717 = vrot.slane %v638, 7
        %v718 = vrot.slane %v639, 7
        %v719 = vsel %vm674, %v717, %v718
        %v720 = vrot.slane %v640, 7
        %v721 = vrot.slane %v641, 7
        %v722 = vsel %vm674, %v720, %v721
        %s771 = scalar_lea.vmem [#allocation2], 48
        %772 = vst [vmem:[%s771] sm:$0xfe] %v675
        %773 = vst [vmem:[%s771 + $0x10] sm:$0xff] %v677
        %774 = vst [vmem:[%s771 + $0x20] sm:$0x1] %v676
        %775 = vst [vmem:[%s771 + $0x30] sm:$0xfe] %v678
        %776 = vst [vmem:[%s771 + $0x40] sm:$0xff] %v680
        %777 = vst [vmem:[%s771 + $0x50] sm:$0x1] %v679
        %778 = vst [vmem:[%s771 + $0x60] sm:$0xfe] %v681
        %779 = vst [vmem:[%s771 + $0x70] sm:$0xff] %v683
        %780 = vst [vmem:[%s771 + $0x80] sm:$0x1] %v682
        %781 = vst [vmem:[%s771 + $0x90] sm:$0xfe] %v684
        %782 = vst [vmem:[%s771 + $0xa0] sm:$0xff] %v686
        %783 = vst [vmem:[%s771 + $0xb0] sm:$0x1] %v685
        %784 = vst [vmem:[%s771 + $0xc0] sm:$0xfe] %v687
        %785 = vst [vmem:[%s771 + $0xd0] sm:$0xff] %v689
        %786 = vst [vmem:[%s771 + $0xe0] sm:$0x1] %v688
        %787 = vst [vmem:[%s771 + $0xf0] sm:$0xfe] %v690
        %788 = vst [vmem:[%s771 + $0x100] sm:$0xff] %v692
        %789 = vst [vmem:[%s771 + $0x110] sm:$0x1] %v691
        %790 = vst [vmem:[%s771 + $0x120] sm:$0xfe] %v693
        %791 = vst [vmem:[%s771 + $0x130] sm:$0xff] %v695
        %792 = vst [vmem:[%s771 + $0x140] sm:$0x1] %v694
        %793 = vst [vmem:[%s771 + $0x150] sm:$0xfe] %v696
        %794 = vst [vmem:[%s771 + $0x160] sm:$0xff] %v698
        %795 = vst [vmem:[%s771 + $0x170] sm:$0x1] %v697
        %796 = vst [vmem:[%s771 + $0x180] sm:$0xfe] %v699
        %797 = vst [vmem:[%s771 + $0x190] sm:$0xff] %v701
        %798 = vst [vmem:[%s771 + $0x1a0] sm:$0x1] %v700
        %799 = vst [vmem:[%s771 + $0x1b0] sm:$0xfe] %v702
        %800 = vst [vmem:[%s771 + $0x1c0] sm:$0xff] %v704
        %801 = vst [vmem:[%s771 + $0x1d0] sm:$0x1] %v703
        %802 = vst [vmem:[%s771 + $0x1e0] sm:$0xfe] %v705
        %803 = vst [vmem:[%s771 + $0x1f0] sm:$0xff] %v707
        %804 = vst [vmem:[%s771 + $0x200] sm:$0x1] %v706
        %805 = vst [vmem:[%s771 + $0x210] sm:$0xfe] %v708
        %806 = vst [vmem:[%s771 + $0x220] sm:$0xff] %v710
        %807 = vst [vmem:[%s771 + $0x230] sm:$0x1] %v709
        %808 = vst [vmem:[%s771 + $0x240] sm:$0xfe] %v711
        %809 = vst [vmem:[%s771 + $0x250] sm:$0xff] %v713
        %810 = vst [vmem:[%s771 + $0x260] sm:$0x1] %v712
        %811 = vst [vmem:[%s771 + $0x270] sm:$0xfe] %v714
        %812 = vst [vmem:[%s771 + $0x280] sm:$0xff] %v716
        %813 = vst [vmem:[%s771 + $0x290] sm:$0x1] %v715
        %814 = vst [vmem:[%s771 + $0x2a0] sm:$0xfe] %v717
        %815 = vst [vmem:[%s771 + $0x2b0] sm:$0xff] %v719
        %816 = vst [vmem:[%s771 + $0x2c0] sm:$0x1] %v718
        %817 = vst [vmem:[%s771 + $0x2d0] sm:$0xfe] %v720
        %818 = vst [vmem:[%s771 + $0x2e0] sm:$0xff] %v722
        %819 = vst [vmem:[%s771 + $0x2f0] sm:$0x1] %v721
        %v820 = vld [vmem:[%s381] sm:$0xff]
        %v821 = vld [vmem:[%s381 + $0x8] sm:$0xff]
        %v822 = vld [vmem:[%s381 + $0x10] sm:$0xff]
        %v823 = vld [vmem:[%s381 + $0x18] sm:$0xff]
        %v824 = vld [vmem:[%s381 + $0x20] sm:$0xff]
        %v825 = vld [vmem:[%s381 + $0x28] sm:$0xff]
        %v826 = vld [vmem:[%s381 + $0x30] sm:$0xff]
        %v827 = vld [vmem:[%s381 + $0x38] sm:$0xff]
        %v828 = vld [vmem:[%s381 + $0x40] sm:$0xff]
        %v829 = vld [vmem:[%s381 + $0x48] sm:$0xff]
        %v830 = vld [vmem:[%s381 + $0x50] sm:$0xff]
        %v831 = vld [vmem:[%s381 + $0x58] sm:$0xff]
        %v832 = vld [vmem:[%s381 + $0x60] sm:$0xff]
        %v833 = vld [vmem:[%s381 + $0x68] sm:$0xff]
        %v834 = vld [vmem:[%s381 + $0x70] sm:$0xff]
        %v835 = vld [vmem:[%s381 + $0x78] sm:$0xff]
        %v836 = vld [vmem:[%s381 + $0x80] sm:$0xff]
        %v837 = vld [vmem:[%s381 + $0x88] sm:$0xff]
        %v838 = vld [vmem:[%s381 + $0x90] sm:$0xff]
        %v839 = vld [vmem:[%s381 + $0x98] sm:$0xff]
        %v840 = vld [vmem:[%s381 + $0xa0] sm:$0xff]
        %v841 = vld [vmem:[%s381 + $0xa8] sm:$0xff]
        %v842 = vld [vmem:[%s381 + $0xb0] sm:$0xff]
        %v843 = vld [vmem:[%s381 + $0xb8] sm:$0xff]
        %v844 = vld [vmem:[%s381 + $0xc0] sm:$0xff]
        %v845 = vld [vmem:[%s381 + $0xc8] sm:$0xff]
        %v846 = vld [vmem:[%s381 + $0xd0] sm:$0xff]
        %v847 = vld [vmem:[%s381 + $0xd8] sm:$0xff]
        %v848 = vld [vmem:[%s381 + $0xe0] sm:$0xff]
        %v849 = vld [vmem:[%s381 + $0xe8] sm:$0xff]
        %v850 = vld [vmem:[%s381 + $0xf0] sm:$0xff]
        %v851 = vld [vmem:[%s381 + $0xf8] sm:$0xff]
        %v884 = vrot.slane %v820, 7
        %v885 = vrot.slane %v821, 7
        %v886 = vsel %vm674, %v884, %v885
        %v887 = vrot.slane %v822, 7
        %v888 = vrot.slane %v823, 7
        %v889 = vsel %vm674, %v887, %v888
        %v890 = vrot.slane %v824, 7
        %v891 = vrot.slane %v825, 7
        %v892 = vsel %vm674, %v890, %v891
        %v893 = vrot.slane %v826, 7
        %v894 = vrot.slane %v827, 7
        %v895 = vsel %vm674, %v893, %v894
        %v896 = vrot.slane %v828, 7
        %v897 = vrot.slane %v829, 7
        %v898 = vsel %vm674, %v896, %v897
        %v899 = vrot.slane %v830, 7
        %v900 = vrot.slane %v831, 7
        %v901 = vsel %vm674, %v899, %v900
        %v902 = vrot.slane %v832, 7
        %v903 = vrot.slane %v833, 7
        %v904 = vsel %vm674, %v902, %v903
        %v905 = vrot.slane %v834, 7
        %v906 = vrot.slane %v835, 7
        %v907 = vsel %vm674, %v905, %v906
        %v908 = vrot.slane %v836, 7
        %v909 = vrot.slane %v837, 7
        %v910 = vsel %vm674, %v908, %v909
        %v911 = vrot.slane %v838, 7
        %v912 = vrot.slane %v839, 7
        %v913 = vsel %vm674, %v911, %v912
        %v914 = vrot.slane %v840, 7
        %v915 = vrot.slane %v841, 7
        %v916 = vsel %vm674, %v914, %v915
        %v917 = vrot.slane %v842, 7
        %v918 = vrot.slane %v843, 7
        %v919 = vsel %vm674, %v917, %v918
        %v920 = vrot.slane %v844, 7
        %v921 = vrot.slane %v845, 7
        %v922 = vsel %vm674, %v920, %v921
        %v923 = vrot.slane %v846, 7
        %v924 = vrot.slane %v847, 7
        %v925 = vsel %vm674, %v923, %v924
        %v926 = vrot.slane %v848, 7
        %v927 = vrot.slane %v849, 7
        %v928 = vsel %vm674, %v926, %v927
        %v929 = vrot.slane %v850, 7
        %v930 = vrot.slane %v851, 7
        %v931 = vsel %vm674, %v929, %v930
        %980 = vst [vmem:[%s771 + $0x8] sm:$0xfe] %v884
        %981 = vst [vmem:[%s771 + $0x18] sm:$0xff] %v886
        %982 = vst [vmem:[%s771 + $0x28] sm:$0x1] %v885
        %983 = vst [vmem:[%s771 + $0x38] sm:$0xfe] %v887
        %984 = vst [vmem:[%s771 + $0x48] sm:$0xff] %v889
        %985 = vst [vmem:[%s771 + $0x58] sm:$0x1] %v888
        %986 = vst [vmem:[%s771 + $0x68] sm:$0xfe] %v890
        %987 = vst [vmem:[%s771 + $0x78] sm:$0xff] %v892
        %988 = vst [vmem:[%s771 + $0x88] sm:$0x1] %v891
        %989 = vst [vmem:[%s771 + $0x98] sm:$0xfe] %v893
        %990 = vst [vmem:[%s771 + $0xa8] sm:$0xff] %v895
        %991 = vst [vmem:[%s771 + $0xb8] sm:$0x1] %v894
        %992 = vst [vmem:[%s771 + $0xc8] sm:$0xfe] %v896
        %993 = vst [vmem:[%s771 + $0xd8] sm:$0xff] %v898
        %994 = vst [vmem:[%s771 + $0xe8] sm:$0x1] %v897
        %995 = vst [vmem:[%s771 + $0xf8] sm:$0xfe] %v899
        %996 = vst [vmem:[%s771 + $0x108] sm:$0xff] %v901
        %997 = vst [vmem:[%s771 + $0x118] sm:$0x1] %v900
        %998 = vst [vmem:[%s771 + $0x128] sm:$0xfe] %v902
        %999 = vst [vmem:[%s771 + $0x138] sm:$0xff] %v904
        %1000 = vst [vmem:[%s771 + $0x148] sm:$0x1] %v903
        %1001 = vst [vmem:[%s771 + $0x158] sm:$0xfe] %v905
        %1002 = vst [vmem:[%s771 + $0x168] sm:$0xff] %v907
        %1003 = vst [vmem:[%s771 + $0x178] sm:$0x1] %v906
        %1004 = vst [vmem:[%s771 + $0x188] sm:$0xfe] %v908
        %1005 = vst [vmem:[%s771 + $0x198] sm:$0xff] %v910
        %1006 = vst [vmem:[%s771 + $0x1a8] sm:$0x1] %v909
        %1007 = vst [vmem:[%s771 + $0x1b8] sm:$0xfe] %v911
        %1008 = vst [vmem:[%s771 + $0x1c8] sm:$0xff] %v913
        %1009 = vst [vmem:[%s771 + $0x1d8] sm:$0x1] %v912
        %1010 = vst [vmem:[%s771 + $0x1e8] sm:$0xfe] %v914
        %1011 = vst [vmem:[%s771 + $0x1f8] sm:$0xff] %v916
        %1012 = vst [vmem:[%s771 + $0x208] sm:$0x1] %v915
        %1013 = vst [vmem:[%s771 + $0x218] sm:$0xfe] %v917
        %1014 = vst [vmem:[%s771 + $0x228] sm:$0xff] %v919
        %1015 = vst [vmem:[%s771 + $0x238] sm:$0x1] %v918
        %1016 = vst [vmem:[%s771 + $0x248] sm:$0xfe] %v920
        %1017 = vst [vmem:[%s771 + $0x258] sm:$0xff] %v922
        %1018 = vst [vmem:[%s771 + $0x268] sm:$0x1] %v921
        %1019 = vst [vmem:[%s771 + $0x278] sm:$0xfe] %v923
        %1020 = vst [vmem:[%s771 + $0x288] sm:$0xff] %v925
        %1021 = vst [vmem:[%s771 + $0x298] sm:$0x1] %v924
        %1022 = vst [vmem:[%s771 + $0x2a8] sm:$0xfe] %v926
        %1023 = vst [vmem:[%s771 + $0x2b8] sm:$0xff] %v928
        %1024 = vst [vmem:[%s771 + $0x2c8] sm:$0x1] %v927
        %1025 = vst [vmem:[%s771 + $0x2d8] sm:$0xfe] %v929
        %1026 = vst [vmem:[%s771 + $0x2e8] sm:$0xff] %v931
        %1027 = vst [vmem:[%s771 + $0x2f8] sm:$0x1] %v930
        %v1028 = vld [vmem:[#allocation2] sm:$0xff]
        %v1029 = vld [vmem:[#allocation2 + $0x8] sm:$0xff]
        %v1030 = vld [vmem:[#allocation2 + $0x10] sm:$0xff]
        %v1031 = vld [vmem:[#allocation2 + $0x18] sm:$0xff]
        %v1032 = vld [vmem:[#allocation2 + $0x30] sm:$0xff]
        %v1033 = vld [vmem:[#allocation2 + $0x38] sm:$0xff]
        %v1034 = vld [vmem:[#allocation2 + $0x40] sm:$0xff]
        %v1035 = vld [vmem:[#allocation2 + $0x48] sm:$0xff]
        %v1036 = vld [vmem:[#allocation2 + $0x60] sm:$0xff]
        %v1037 = vld [vmem:[#allocation2 + $0x68] sm:$0xff]
        %v1038 = vld [vmem:[#allocation2 + $0x70] sm:$0xff]
        %v1039 = vld [vmem:[#allocation2 + $0x78] sm:$0xff]
        %v1040 = vld [vmem:[#allocation2 + $0x90] sm:$0xff]
        %v1041 = vld [vmem:[#allocation2 + $0x98] sm:$0xff]
        %v1042 = vld [vmem:[#allocation2 + $0xa0] sm:$0xff]
        %v1043 = vld [vmem:[#allocation2 + $0xa8] sm:$0xff]
        %v1044 = vld [vmem:[#allocation2 + $0xc0] sm:$0xff]
        %v1045 = vld [vmem:[#allocation2 + $0xc8] sm:$0xff]
        %v1046 = vld [vmem:[#allocation2 + $0xd0] sm:$0xff]
        %v1047 = vld [vmem:[#allocation2 + $0xd8] sm:$0xff]
        %v1048 = vld [vmem:[#allocation2 + $0xf0] sm:$0xff]
        %v1049 = vld [vmem:[#allocation2 + $0xf8] sm:$0xff]
        %v1050 = vld [vmem:[#allocation2 + $0x100] sm:$0xff]
        %v1051 = vld [vmem:[#allocation2 + $0x108] sm:$0xff]
        %v1052 = vld [vmem:[#allocation2 + $0x120] sm:$0xff]
        %v1053 = vld [vmem:[#allocation2 + $0x128] sm:$0xff]
        %v1054 = vld [vmem:[#allocation2 + $0x130] sm:$0xff]
        %v1055 = vld [vmem:[#allocation2 + $0x138] sm:$0xff]
        %v1056 = vld [vmem:[#allocation2 + $0x150] sm:$0xff]
        %v1057 = vld [vmem:[#allocation2 + $0x158] sm:$0xff]
        %v1058 = vld [vmem:[#allocation2 + $0x160] sm:$0xff]
        %v1059 = vld [vmem:[#allocation2 + $0x168] sm:$0xff]
        %v1060 = vld [vmem:[#allocation2 + $0x180] sm:$0xff]
        %v1061 = vld [vmem:[#allocation2 + $0x188] sm:$0xff]
        %v1062 = vld [vmem:[#allocation2 + $0x190] sm:$0xff]
        %v1063 = vld [vmem:[#allocation2 + $0x198] sm:$0xff]
        %v1064 = vld [vmem:[#allocation2 + $0x1b0] sm:$0xff]
        %v1065 = vld [vmem:[#allocation2 + $0x1b8] sm:$0xff]
        %v1066 = vld [vmem:[#allocation2 + $0x1c0] sm:$0xff]
        %v1067 = vld [vmem:[#allocation2 + $0x1c8] sm:$0xff]
        %v1068 = vld [vmem:[#allocation2 + $0x1e0] sm:$0xff]
        %v1069 = vld [vmem:[#allocation2 + $0x1e8] sm:$0xff]
        %v1070 = vld [vmem:[#allocation2 + $0x1f0] sm:$0xff]
        %v1071 = vld [vmem:[#allocation2 + $0x1f8] sm:$0xff]
        %v1072 = vld [vmem:[#allocation2 + $0x210] sm:$0xff]
        %v1073 = vld [vmem:[#allocation2 + $0x218] sm:$0xff]
        %v1074 = vld [vmem:[#allocation2 + $0x220] sm:$0xff]
        %v1075 = vld [vmem:[#allocation2 + $0x228] sm:$0xff]
        %v1076 = vld [vmem:[#allocation2 + $0x240] sm:$0xff]
        %v1077 = vld [vmem:[#allocation2 + $0x248] sm:$0xff]
        %v1078 = vld [vmem:[#allocation2 + $0x250] sm:$0xff]
        %v1079 = vld [vmem:[#allocation2 + $0x258] sm:$0xff]
        %v1080 = vld [vmem:[#allocation2 + $0x270] sm:$0xff]
        %v1081 = vld [vmem:[#allocation2 + $0x278] sm:$0xff]
        %v1082 = vld [vmem:[#allocation2 + $0x280] sm:$0xff]
        %v1083 = vld [vmem:[#allocation2 + $0x288] sm:$0xff]
        %v1084 = vld [vmem:[#allocation2 + $0x2a0] sm:$0xff]
        %v1085 = vld [vmem:[#allocation2 + $0x2a8] sm:$0xff]
        %v1086 = vld [vmem:[#allocation2 + $0x2b0] sm:$0xff]
        %v1087 = vld [vmem:[#allocation2 + $0x2b8] sm:$0xff]
        %v1088 = vld [vmem:[#allocation2 + $0x2d0] sm:$0xff]
        %v1089 = vld [vmem:[#allocation2 + $0x2d8] sm:$0xff]
        %v1090 = vld [vmem:[#allocation2 + $0x2e0] sm:$0xff]
        %v1091 = vld [vmem:[#allocation2 + $0x2e8] sm:$0xff]
        %v1092 = vld [vmem:[#allocation9] sm:$0xff]
        %v1093 = vld [vmem:[#allocation9 + $0x8] sm:$0xff]
        %v1094 = vld [vmem:[#allocation9 + $0x10] sm:$0xff]
        %v1095 = vld [vmem:[#allocation9 + $0x18] sm:$0xff]
        %v1096 = vld [vmem:[#allocation9 + $0x20] sm:$0xff]
        %v1097 = vld [vmem:[#allocation9 + $0x28] sm:$0xff]
        %v1098 = vld [vmem:[#allocation9 + $0x30] sm:$0xff]
        %v1099 = vld [vmem:[#allocation9 + $0x38] sm:$0xff]
        %v1100 = vld [vmem:[#allocation9 + $0x40] sm:$0xff]
        %v1101 = vld [vmem:[#allocation9 + $0x48] sm:$0xff]
        %v1102 = vld [vmem:[#allocation9 + $0x50] sm:$0xff]
        %v1103 = vld [vmem:[#allocation9 + $0x58] sm:$0xff]
        %v1104 = vld [vmem:[#allocation9 + $0x60] sm:$0xff]
        %v1105 = vld [vmem:[#allocation9 + $0x68] sm:$0xff]
        %v1106 = vld [vmem:[#allocation9 + $0x70] sm:$0xff]
        %v1107 = vld [vmem:[#allocation9 + $0x78] sm:$0xff]
        %v1108 = vld [vmem:[#allocation9 + $0x80] sm:$0xff]
        %v1109 = vld [vmem:[#allocation9 + $0x88] sm:$0xff]
        %v1110 = vld [vmem:[#allocation9 + $0x90] sm:$0xff]
        %v1111 = vld [vmem:[#allocation9 + $0x98] sm:$0xff]
        %v1112 = vld [vmem:[#allocation9 + $0xa0] sm:$0xff]
        %v1113 = vld [vmem:[#allocation9 + $0xa8] sm:$0xff]
        %v1114 = vld [vmem:[#allocation9 + $0xb0] sm:$0xff]
        %v1115 = vld [vmem:[#allocation9 + $0xb8] sm:$0xff]
        %v1116 = vld [vmem:[#allocation9 + $0xc0] sm:$0xff]
        %v1117 = vld [vmem:[#allocation9 + $0xc8] sm:$0xff]
        %v1118 = vld [vmem:[#allocation9 + $0xd0] sm:$0xff]
        %v1119 = vld [vmem:[#allocation9 + $0xd8] sm:$0xff]
        %v1120 = vld [vmem:[#allocation9 + $0xe0] sm:$0xff]
        %v1121 = vld [vmem:[#allocation9 + $0xe8] sm:$0xff]
        %v1122 = vld [vmem:[#allocation9 + $0xf0] sm:$0xff]
        %v1123 = vld [vmem:[#allocation9 + $0xf8] sm:$0xff]
        %v1124 = vld [vmem:[#allocation2] sm:$0xfe]
        %v1125 = vld [vmem:[#allocation2 + $0x8] sm:$0xfe]
        %v1126 = vld [vmem:[#allocation2 + $0x20] sm:$0x1]
        %v1127 = vld [vmem:[#allocation2 + $0x28] sm:$0x1]
        %v1128 = vld [vmem:[#allocation2 + $0x30] sm:$0xfe]
        %v1129 = vld [vmem:[#allocation2 + $0x38] sm:$0xfe]
        %v1130 = vld [vmem:[#allocation2 + $0x50] sm:$0x1]
        %v1131 = vld [vmem:[#allocation2 + $0x58] sm:$0x1]
        %v1132 = vld [vmem:[#allocation2 + $0x60] sm:$0xfe]
        %v1133 = vld [vmem:[#allocation2 + $0x68] sm:$0xfe]
        %v1134 = vld [vmem:[#allocation2 + $0x80] sm:$0x1]
        %v1135 = vld [vmem:[#allocation2 + $0x88] sm:$0x1]
        %v1136 = vld [vmem:[#allocation2 + $0x90] sm:$0xfe]
        %v1137 = vld [vmem:[#allocation2 + $0x98] sm:$0xfe]
        %v1138 = vld [vmem:[#allocation2 + $0xb0] sm:$0x1]
        %v1139 = vld [vmem:[#allocation2 + $0xb8] sm:$0x1]
        %v1140 = vld [vmem:[#allocation2 + $0xc0] sm:$0xfe]
        %v1141 = vld [vmem:[#allocation2 + $0xc8] sm:$0xfe]
        %v1142 = vld [vmem:[#allocation2 + $0xe0] sm:$0x1]
        %v1143 = vld [vmem:[#allocation2 + $0xe8] sm:$0x1]
        %v1144 = vld [vmem:[#allocation2 + $0xf0] sm:$0xfe]
        %v1145 = vld [vmem:[#allocation2 + $0xf8] sm:$0xfe]
        %v1146 = vld [vmem:[#allocation2 + $0x110] sm:$0x1]
        %v1147 = vld [vmem:[#allocation2 + $0x118] sm:$0x1]
        %v1148 = vld [vmem:[#allocation2 + $0x120] sm:$0xfe]
        %v1149 = vld [vmem:[#allocation2 + $0x128] sm:$0xfe]
        %v1150 = vld [vmem:[#allocation2 + $0x140] sm:$0x1]
        %v1151 = vld [vmem:[#allocation2 + $0x148] sm:$0x1]
        %v1152 = vld [vmem:[#allocation2 + $0x150] sm:$0xfe]
        %v1153 = vld [vmem:[#allocation2 + $0x158] sm:$0xfe]
        %v1154 = vld [vmem:[#allocation2 + $0x170] sm:$0x1]
        %v1155 = vld [vmem:[#allocation2 + $0x178] sm:$0x1]
        %v1156 = vld [vmem:[#allocation2 + $0x180] sm:$0xfe]
        %v1157 = vld [vmem:[#allocation2 + $0x188] sm:$0xfe]
        %v1158 = vld [vmem:[#allocation2 + $0x1a0] sm:$0x1]
        %v1159 = vld [vmem:[#allocation2 + $0x1a8] sm:$0x1]
        %v1160 = vld [vmem:[#allocation2 + $0x1b0] sm:$0xfe]
        %v1161 = vld [vmem:[#allocation2 + $0x1b8] sm:$0xfe]
        %v1162 = vld [vmem:[#allocation2 + $0x1d0] sm:$0x1]
        %v1163 = vld [vmem:[#allocation2 + $0x1d8] sm:$0x1]
        %v1164 = vld [vmem:[#allocation2 + $0x1e0] sm:$0xfe]
        %v1165 = vld [vmem:[#allocation2 + $0x1e8] sm:$0xfe]
        %v1166 = vld [vmem:[#allocation2 + $0x200] sm:$0x1]
        %v1167 = vld [vmem:[#allocation2 + $0x208] sm:$0x1]
        %v1168 = vld [vmem:[#allocation2 + $0x210] sm:$0xfe]
        %v1169 = vld [vmem:[#allocation2 + $0x218] sm:$0xfe]
        %v1170 = vld [vmem:[#allocation2 + $0x230] sm:$0x1]
        %v1171 = vld [vmem:[#allocation2 + $0x238] sm:$0x1]
        %v1172 = vld [vmem:[#allocation2 + $0x240] sm:$0xfe]
        %v1173 = vld [vmem:[#allocation2 + $0x248] sm:$0xfe]
        %v1174 = vld [vmem:[#allocation2 + $0x260] sm:$0x1]
        %v1175 = vld [vmem:[#allocation2 + $0x268] sm:$0x1]
        %v1176 = vld [vmem:[#allocation2 + $0x270] sm:$0xfe]
        %v1177 = vld [vmem:[#allocation2 + $0x278] sm:$0xfe]
        %v1178 = vld [vmem:[#allocation2 + $0x290] sm:$0x1]
        %v1179 = vld [vmem:[#allocation2 + $0x298] sm:$0x1]
        %v1180 = vld [vmem:[#allocation2 + $0x2a0] sm:$0xfe]
        %v1181 = vld [vmem:[#allocation2 + $0x2a8] sm:$0xfe]
        %v1182 = vld [vmem:[#allocation2 + $0x2c0] sm:$0x1]
        %v1183 = vld [vmem:[#allocation2 + $0x2c8] sm:$0x1]
        %v1184 = vld [vmem:[#allocation2 + $0x2d0] sm:$0xfe]
        %v1185 = vld [vmem:[#allocation2 + $0x2d8] sm:$0xfe]
        %v1186 = vld [vmem:[#allocation2 + $0x2f0] sm:$0x1]
        %v1187 = vld [vmem:[#allocation2 + $0x2f8] sm:$0x1]
        %vm1284 = vcmask 1046528
        %v1285 = vrot.slane %v1124, 1
        %v1286 = vrot.slane %v1030, 1
        %v1287 = vsel %vm1284, %v1285, %v1286
        %v1288 = vrot.slane %v1125, 1
        %v1289 = vrot.slane %v1031, 1
        %v1290 = vsel %vm1284, %v1288, %v1289
        %v1291 = vrot.slane %v1126, 1
        %v1292 = vsel %vm1284, %v1286, %v1291
        %v1293 = vrot.slane %v1127, 1
        %v1294 = vsel %vm1284, %v1289, %v1293
        %v1295 = vrot.slane %v1128, 1
        %v1296 = vrot.slane %v1034, 1
        %v1297 = vsel %vm1284, %v1295, %v1296
        %v1298 = vrot.slane %v1129, 1
        %v1299 = vrot.slane %v1035, 1
        %v1300 = vsel %vm1284, %v1298, %v1299
        %v1301 = vrot.slane %v1130, 1
        %v1302 = vsel %vm1284, %v1296, %v1301
        %v1303 = vrot.slane %v1131, 1
        %v1304 = vsel %vm1284, %v1299, %v1303
        %v1305 = vrot.slane %v1132, 1
        %v1306 = vrot.slane %v1038, 1
        %v1307 = vsel %vm1284, %v1305, %v1306
        %v1308 = vrot.slane %v1133, 1
        %v1309 = vrot.slane %v1039, 1
        %v1310 = vsel %vm1284, %v1308, %v1309
        %v1311 = vrot.slane %v1134, 1
        %v1312 = vsel %vm1284, %v1306, %v1311
        %v1313 = vrot.slane %v1135, 1
        %v1314 = vsel %vm1284, %v1309, %v1313
        %v1315 = vrot.slane %v1136, 1
        %v1316 = vrot.slane %v1042, 1
        %v1317 = vsel %vm1284, %v1315, %v1316
        %v1318 = vrot.slane %v1137, 1
        %v1319 = vrot.slane %v1043, 1
        %v1320 = vsel %vm1284, %v1318, %v1319
        %v1321 = vrot.slane %v1138, 1
        %v1322 = vsel %vm1284, %v1316, %v1321
        %v1323 = vrot.slane %v1139, 1
        %v1324 = vsel %vm1284, %v1319, %v1323
        %v1325 = vrot.slane %v1140, 1
        %v1326 = vrot.slane %v1046, 1
        %v1327 = vsel %vm1284, %v1325, %v1326
        %v1328 = vrot.slane %v1141, 1
        %v1329 = vrot.slane %v1047, 1
        %v1330 = vsel %vm1284, %v1328, %v1329
        %v1331 = vrot.slane %v1142, 1
        %v1332 = vsel %vm1284, %v1326, %v1331
        %v1333 = vrot.slane %v1143, 1
        %v1334 = vsel %vm1284, %v1329, %v1333
        %v1335 = vrot.slane %v1144, 1
        %v1336 = vrot.slane %v1050, 1
        %v1337 = vsel %vm1284, %v1335, %v1336
        %v1338 = vrot.slane %v1145, 1
        %v1339 = vrot.slane %v1051, 1
        %v1340 = vsel %vm1284, %v1338, %v1339
        %v1341 = vrot.slane %v1146, 1
        %v1342 = vsel %vm1284, %v1336, %v1341
        %v1343 = vrot.slane %v1147, 1
        %v1344 = vsel %vm1284, %v1339, %v1343
        %v1345 = vrot.slane %v1148, 1
        %v1346 = vrot.slane %v1054, 1
        %v1347 = vsel %vm1284, %v1345, %v1346
        %v1348 = vrot.slane %v1149, 1
        %v1349 = vrot.slane %v1055, 1
        %v1350 = vsel %vm1284, %v1348, %v1349
        %v1351 = vrot.slane %v1150, 1
        %v1352 = vsel %vm1284, %v1346, %v1351
        %v1353 = vrot.slane %v1151, 1
        %v1354 = vsel %vm1284, %v1349, %v1353
        %v1355 = vrot.slane %v1152, 1
        %v1356 = vrot.slane %v1058, 1
        %v1357 = vsel %vm1284, %v1355, %v1356
        %v1358 = vrot.slane %v1153, 1
        %v1359 = vrot.slane %v1059, 1
        %v1360 = vsel %vm1284, %v1358, %v1359
        %v1361 = vrot.slane %v1154, 1
        %v1362 = vsel %vm1284, %v1356, %v1361
        %v1363 = vrot.slane %v1155, 1
        %v1364 = vsel %vm1284, %v1359, %v1363
        %v1365 = vrot.slane %v1156, 1
        %v1366 = vrot.slane %v1062, 1
        %v1367 = vsel %vm1284, %v1365, %v1366
        %v1368 = vrot.slane %v1157, 1
        %v1369 = vrot.slane %v1063, 1
        %v1370 = vsel %vm1284, %v1368, %v1369
        %v1371 = vrot.slane %v1158, 1
        %v1372 = vsel %vm1284, %v1366, %v1371
        %v1373 = vrot.slane %v1159, 1
        %v1374 = vsel %vm1284, %v1369, %v1373
        %v1375 = vrot.slane %v1160, 1
        %v1376 = vrot.slane %v1066, 1
        %v1377 = vsel %vm1284, %v1375, %v1376
        %v1378 = vrot.slane %v1161, 1
        %v1379 = vrot.slane %v1067, 1
        %v1380 = vsel %vm1284, %v1378, %v1379
        %v1381 = vrot.slane %v1162, 1
        %v1382 = vsel %vm1284, %v1376, %v1381
        %v1383 = vrot.slane %v1163, 1
        %v1384 = vsel %vm1284, %v1379, %v1383
        %v1385 = vrot.slane %v1164, 1
        %v1386 = vrot.slane %v1070, 1
        %v1387 = vsel %vm1284, %v1385, %v1386
        %v1388 = vrot.slane %v1165, 1
        %v1389 = vrot.slane %v1071, 1
        %v1390 = vsel %vm1284, %v1388, %v1389
        %v1391 = vrot.slane %v1166, 1
        %v1392 = vsel %vm1284, %v1386, %v1391
        %v1393 = vrot.slane %v1167, 1
        %v1394 = vsel %vm1284, %v1389, %v1393
        %v1395 = vrot.slane %v1168, 1
        %v1396 = vrot.slane %v1074, 1
        %v1397 = vsel %vm1284, %v1395, %v1396
        %v1398 = vrot.slane %v1169, 1
        %v1399 = vrot.slane %v1075, 1
        %v1400 = vsel %vm1284, %v1398, %v1399
        %v1401 = vrot.slane %v1170, 1
        %v1402 = vsel %vm1284, %v1396, %v1401
        %v1403 = vrot.slane %v1171, 1
        %v1404 = vsel %vm1284, %v1399, %v1403
        %v1405 = vrot.slane %v1172, 1
        %v1406 = vrot.slane %v1078, 1
        %v1407 = vsel %vm1284, %v1405, %v1406
        %v1408 = vrot.slane %v1173, 1
        %v1409 = vrot.slane %v1079, 1
        %v1410 = vsel %vm1284, %v1408, %v1409
        %v1411 = vrot.slane %v1174, 1
        %v1412 = vsel %vm1284, %v1406, %v1411
        %v1413 = vrot.slane %v1175, 1
        %v1414 = vsel %vm1284, %v1409, %v1413
        %v1415 = vrot.slane %v1176, 1
        %v1416 = vrot.slane %v1082, 1
        %v1417 = vsel %vm1284, %v1415, %v1416
        %v1418 = vrot.slane %v1177, 1
        %v1419 = vrot.slane %v1083, 1
        %v1420 = vsel %vm1284, %v1418, %v1419
        %v1421 = vrot.slane %v1178, 1
        %v1422 = vsel %vm1284, %v1416, %v1421
        %v1423 = vrot.slane %v1179, 1
        %v1424 = vsel %vm1284, %v1419, %v1423
        %v1425 = vrot.slane %v1180, 1
        %v1426 = vrot.slane %v1086, 1
        %v1427 = vsel %vm1284, %v1425, %v1426
        %v1428 = vrot.slane %v1181, 1
        %v1429 = vrot.slane %v1087, 1
        %v1430 = vsel %vm1284, %v1428, %v1429
        %v1431 = vrot.slane %v1182, 1
        %v1432 = vsel %vm1284, %v1426, %v1431
        %v1433 = vrot.slane %v1183, 1
        %v1434 = vsel %vm1284, %v1429, %v1433
        %v1435 = vrot.slane %v1184, 1
        %v1436 = vrot.slane %v1090, 1
        %v1437 = vsel %vm1284, %v1435, %v1436
        %v1438 = vrot.slane %v1185, 1
        %v1439 = vrot.slane %v1091, 1
        %v1440 = vsel %vm1284, %v1438, %v1439
        %v1441 = vrot.slane %v1186, 1
        %v1442 = vsel %vm1284, %v1436, %v1441
        %v1443 = vrot.slane %v1187, 1
        %v1444 = vsel %vm1284, %v1439, %v1443
        %v1509 = vld [vmem:[#allocation9 + $0x100] sm:$0xff]
        %v1510 = vld [vmem:[#allocation9 + $0x108] sm:$0xff]
        %v1511 = vld [vmem:[#allocation9 + $0x110] sm:$0xff]
        %v1512 = vld [vmem:[#allocation9 + $0x118] sm:$0xff]
        %v1513 = vld [vmem:[#allocation9 + $0x120] sm:$0xff]
        %v1514 = vld [vmem:[#allocation9 + $0x128] sm:$0xff]
        %v1515 = vld [vmem:[#allocation9 + $0x130] sm:$0xff]
        %v1516 = vld [vmem:[#allocation9 + $0x138] sm:$0xff]
        %v1517 = vld [vmem:[#allocation9 + $0x140] sm:$0xff]
        %v1518 = vld [vmem:[#allocation9 + $0x148] sm:$0xff]
        %v1519 = vld [vmem:[#allocation9 + $0x150] sm:$0xff]
        %v1520 = vld [vmem:[#allocation9 + $0x158] sm:$0xff]
        %v1521 = vld [vmem:[#allocation9 + $0x160] sm:$0xff]
        %v1522 = vld [vmem:[#allocation9 + $0x168] sm:$0xff]
        %v1523 = vld [vmem:[#allocation9 + $0x170] sm:$0xff]
        %v1524 = vld [vmem:[#allocation9 + $0x178] sm:$0xff]
        %v1525 = vld [vmem:[#allocation9 + $0x180] sm:$0xff]
        %v1526 = vld [vmem:[#allocation9 + $0x188] sm:$0xff]
        %v1527 = vld [vmem:[#allocation9 + $0x190] sm:$0xff]
        %v1528 = vld [vmem:[#allocation9 + $0x198] sm:$0xff]
        %v1529 = vld [vmem:[#allocation9 + $0x1a0] sm:$0xff]
        %v1530 = vld [vmem:[#allocation9 + $0x1a8] sm:$0xff]
        %v1531 = vld [vmem:[#allocation9 + $0x1b0] sm:$0xff]
        %v1532 = vld [vmem:[#allocation9 + $0x1b8] sm:$0xff]
        %v1533 = vld [vmem:[#allocation9 + $0x1c0] sm:$0xff]
        %v1534 = vld [vmem:[#allocation9 + $0x1c8] sm:$0xff]
        %v1535 = vld [vmem:[#allocation9 + $0x1d0] sm:$0xff]
        %v1536 = vld [vmem:[#allocation9 + $0x1d8] sm:$0xff]
        %v1537 = vld [vmem:[#allocation9 + $0x1e0] sm:$0xff]
        %v1538 = vld [vmem:[#allocation9 + $0x1e8] sm:$0xff]
        %v1539 = vld [vmem:[#allocation9 + $0x1f0] sm:$0xff]
        %v1540 = vld [vmem:[#allocation9 + $0x1f8] sm:$0xff]
        %1541 = vmatprep.subr.mxu0 0.0
        %1542 = vmatpush1.msra.mxu0 %v1509
        %1543 = vmatprep.subr.mxu0 0.0
        %1544 = vmatpush1.msra.mxu0 %v1510
        %1545 = vmatprep.subr.mxu0 0.0
        %1546 = vmatpush1.msra.mxu0 %v1511
        %1547 = vmatprep.subr.mxu0 0.0
        %1548 = vmatpush1.msra.mxu0 %v1512
        %1549 = vmatprep.subr.mxu0 0.0
        %1550 = vmatpush1.msra.mxu0 %v1513
        %1551 = vmatprep.subr.mxu0 0.0
        %1552 = vmatpush1.msra.mxu0 %v1514
        %1553 = vmatprep.subr.mxu0 0.0
        %1554 = vmatpush1.msra.mxu0 %v1515
        %1555 = vmatprep.subr.mxu0 0.0
        %1556 = vmatpush1.msra.mxu0 %v1516
        %1557 = vmatprep.subr.mxu0 0.0
        %1558 = vmatpush1.msra.mxu0 %v1517
        %1559 = vmatprep.subr.mxu0 0.0
        %1560 = vmatpush1.msra.mxu0 %v1518
        %1561 = vmatprep.subr.mxu0 0.0
        %1562 = vmatpush1.msra.mxu0 %v1519
        %1563 = vmatprep.subr.mxu0 0.0
        %1564 = vmatpush1.msra.mxu0 %v1520
        %1565 = vmatprep.subr.mxu0 0.0
        %1566 = vmatpush1.msra.mxu0 %v1521
        %1567 = vmatprep.subr.mxu0 0.0
        %1568 = vmatpush1.msra.mxu0 %v1522
        %1569 = vmatprep.subr.mxu0 0.0
        %1570 = vmatpush1.msra.mxu0 %v1523
        %1571 = vmatprep.subr.mxu0 0.0
        %1572 = vmatpush1.msra.mxu0 %v1524
        %1573 = vmatprep.subr.mxu0 0.0
        %1574 = vmatpush1.msra.mxu0 %v1525
        %1575 = vmatprep.subr.mxu0 0.0
        %1576 = vmatpush1.msra.mxu0 %v1526
        %1577 = vmatprep.subr.mxu0 0.0
        %1578 = vmatpush1.msra.mxu0 %v1527
        %1579 = vmatprep.subr.mxu0 0.0
        %1580 = vmatpush1.msra.mxu0 %v1528
        %1581 = vmatprep.subr.mxu0 0.0
        %1582 = vmatpush1.msra.mxu0 %v1529
        %1583 = vmatprep.subr.mxu0 0.0
        %1584 = vmatpush1.msra.mxu0 %v1530
        %1585 = vmatprep.subr.mxu0 0.0
        %1586 = vmatpush1.msra.mxu0 %v1531
        %1587 = vmatprep.subr.mxu0 0.0
        %1588 = vmatpush1.msra.mxu0 %v1532
        %1589 = vmatprep.subr.mxu0 0.0
        %1590 = vmatpush1.msra.mxu0 %v1533
        %1591 = vmatprep.subr.mxu0 0.0
        %1592 = vmatpush1.msra.mxu0 %v1534
        %1593 = vmatprep.subr.mxu0 0.0
        %1594 = vmatpush1.msra.mxu0 %v1535
        %1595 = vmatprep.subr.mxu0 0.0
        %1596 = vmatpush1.msra.mxu0 %v1536
        %1597 = vmatprep.subr.mxu0 0.0
        %1598 = vmatpush1.msra.mxu0 %v1537
        %1599 = vmatprep.subr.mxu0 0.0
        %1600 = vmatpush1.msra.mxu0 %v1538
        %1601 = vmatprep.subr.mxu0 0.0
        %1602 = vmatpush1.msra.mxu0 %v1539
        %1603 = vmatprep.subr.mxu0 0.0
        %1604 = vmatpush1.msra.mxu0 %v1540
        %1605 = vmatprep.mubr.f32.mxu0 %v1290
        %1606 = vmatmul.mubr.f32.gmra.mrb[0].mxu0 %v1287
        %v1607 = vpop.f32.mrb[0].mxu0
        %v1608 = vadd.f32 0.0, %v1607
        %v1609 = vpop.f32.mrb[0].mxu0
        %1610 = vmatprep.mubr.f32.mxu0 %v1294
        %1611 = vmatmul.mubr.f32.gmra.mrb[0].mxu0 %v1292
        %v1612 = vpop.f32.mrb[0].mxu0
        %v1613 = vadd.f32 0.0, %v1612
        %v1614 = vpop.f32.mrb[0].mxu0
        %1615 = vmatprep.mubr.f32.mxu0 %v1300
        %1616 = vmatmul.mubr.f32.gmra.mrb[0].mxu0 %v1297
        %v1617 = vpop.f32.mrb[0].mxu0
        %v1618 = vadd.f32 0.0, %v1617
        %v1619 = vpop.f32.mrb[0].mxu0
        %1620 = vmatprep.mubr.f32.mxu0 %v1304
        %1621 = vmatmul.mubr.f32.gmra.mrb[0].mxu0 %v1302
        %v1622 = vpop.f32.mrb[0].mxu0
        %v1623 = vadd.f32 0.0, %v1622
        %v1624 = vpop.f32.mrb[0].mxu0
        %1625 = vmatprep.mubr.f32.mxu0 %v1310
        %1626 = vmatmul.mubr.f32.gmra.mrb[0].mxu0 %v1307
        %v1627 = vpop.f32.mrb[0].mxu0
        %v1628 = vadd.f32 0.0, %v1627
        %v1629 = vpop.f32.mrb[0].mxu0
        %1630 = vmatprep.mubr.f32.mxu0 %v1314
        %1631 = vmatmul.mubr.f32.gmra.mrb[0].mxu0 %v1312
        %v1632 = vpop.f32.mrb[0].mxu0
        %v1633 = vadd.f32 0.0, %v1632
        %v1634 = vpop.f32.mrb[0].mxu0
        %1635 = vmatprep.mubr.f32.mxu0 %v1320
        %1636 = vmatmul.mubr.f32.gmra.mrb[0].mxu0 %v1317
        %v1637 = vpop.f32.mrb[0].mxu0
        %v1638 = vadd.f32 0.0, %v1637
        %v1639 = vpop.f32.mrb[0].mxu0
        %1640 = vmatprep.mubr.f32.mxu0 %v1324
        %1641 = vmatmul.mubr.f32.gmra.mrb[0].mxu0 %v1322
        %v1642 = vpop.f32.mrb[0].mxu0
        %v1643 = vadd.f32 0.0, %v1642
        %v1644 = vpop.f32.mrb[0].mxu0
        %1645 = vmatprep.mubr.f32.mxu0 %v1330
        %1646 = vmatmul.mubr.f32.gmra.mrb[0].mxu0 %v1327
        %v1647 = vpop.f32.mrb[0].mxu0
        %v1648 = vadd.f32 0.0, %v1647
        %v1649 = vpop.f32.mrb[0].mxu0
        %1650 = vmatprep.mubr.f32.mxu0 %v1334
        %1651 = vmatmul.mubr.f32.gmra.mrb[0].mxu0 %v1332
        %v1652 = vpop.f32.mrb[0].mxu0
        %v1653 = vadd.f32 0.0, %v1652
        %v1654 = vpop.f32.mrb[0].mxu0
        %1655 = vmatprep.mubr.f32.mxu0 %v1340
        %1656 = vmatmul.mubr.f32.gmra.mrb[0].mxu0 %v1337
        %v1657 = vpop.f32.mrb[0].mxu0
        %v1658 = vadd.f32 0.0, %v1657
        %v1659 = vpop.f32.mrb[0].mxu0
        %1660 = vmatprep.mubr.f32.mxu0 %v1344
        %1661 = vmatmul.mubr.f32.gmra.mrb[0].mxu0 %v1342
        %v1662 = vpop.f32.mrb[0].mxu0
        %v1663 = vadd.f32 0.0, %v1662
        %v1664 = vpop.f32.mrb[0].mxu0
        %1665 = vmatprep.mubr.f32.mxu0 %v1350
        %1666 = vmatmul.mubr.f32.gmra.mrb[0].mxu0 %v1347
        %v1667 = vpop.f32.mrb[0].mxu0
        %v1668 = vadd.f32 0.0, %v1667
        %v1669 = vpop.f32.mrb[0].mxu0
        %1670 = vmatprep.mubr.f32.mxu0 %v1354
        %1671 = vmatmul.mubr.f32.gmra.mrb[0].mxu0 %v1352
        %v1672 = vpop.f32.mrb[0].mxu0
        %v1673 = vadd.f32 0.0, %v1672
        %v1674 = vpop.f32.mrb[0].mxu0
        %1675 = vmatprep.mubr.f32.mxu0 %v1360
        %1676 = vmatmul.mubr.f32.gmra.mrb[0].mxu0 %v1357
        %v1677 = vpop.f32.mrb[0].mxu0
        %v1678 = vadd.f32 0.0, %v1677
        %v1679 = vpop.f32.mrb[0].mxu0
        %1680 = vmatprep.mubr.f32.mxu0 %v1364
        %1681 = vmatmul.mubr.f32.gmra.mrb[0].mxu0 %v1362
        %v1682 = vpop.f32.mrb[0].mxu0
        %v1683 = vadd.f32 0.0, %v1682
        %v1684 = vpop.f32.mrb[0].mxu0
        %1685 = vmatprep.mubr.f32.mxu0 %v1370
        %1686 = vmatmul.mubr.f32.gmra.mrb[0].mxu0 %v1367
        %v1687 = vpop.f32.mrb[0].mxu0
        %v1688 = vadd.f32 0.0, %v1687
        %v1689 = vpop.f32.mrb[0].mxu0
        %1690 = vmatprep.mubr.f32.mxu0 %v1374
        %1691 = vmatmul.mubr.f32.gmra.mrb[0].mxu0 %v1372
        %v1692 = vpop.f32.mrb[0].mxu0
        %v1693 = vadd.f32 0.0, %v1692
        %v1694 = vpop.f32.mrb[0].mxu0
        %1695 = vmatprep.mubr.f32.mxu0 %v1380
        %1696 = vmatmul.mubr.f32.gmra.mrb[0].mxu0 %v1377
        %v1697 = vpop.f32.mrb[0].mxu0
        %v1698 = vadd.f32 0.0, %v1697
        %v1699 = vpop.f32.mrb[0].mxu0
        %1700 = vmatprep.mubr.f32.mxu0 %v1384
        %1701 = vmatmul.mubr.f32.gmra.mrb[0].mxu0 %v1382
        %v1702 = vpop.f32.mrb[0].mxu0
        %v1703 = vadd.f32 0.0, %v1702
        %v1704 = vpop.f32.mrb[0].mxu0
        %1705 = vmatprep.mubr.f32.mxu0 %v1390
        %1706 = vmatmul.mubr.f32.gmra.mrb[0].mxu0 %v1387
        %v1707 = vpop.f32.mrb[0].mxu0
        %v1708 = vadd.f32 0.0, %v1707
        %v1709 = vpop.f32.mrb[0].mxu0
        %1710 = vmatprep.mubr.f32.mxu0 %v1394
        %1711 = vmatmul.mubr.f32.gmra.mrb[0].mxu0 %v1392
        %v1712 = vpop.f32.mrb[0].mxu0
        %v1713 = vadd.f32 0.0, %v1712
        %v1714 = vpop.f32.mrb[0].mxu0
        %1715 = vmatprep.mubr.f32.mxu0 %v1400
        %1716 = vmatmul.mubr.f32.gmra.mrb[0].mxu0 %v1397
        %v1717 = vpop.f32.mrb[0].mxu0
        %v1718 = vadd.f32 0.0, %v1717
        %v1719 = vpop.f32.mrb[0].mxu0
        %1720 = vmatprep.mubr.f32.mxu0 %v1404
        %1721 = vmatmul.mubr.f32.gmra.mrb[0].mxu0 %v1402
        %v1722 = vpop.f32.mrb[0].mxu0
        %v1723 = vadd.f32 0.0, %v1722
        %v1724 = vpop.f32.mrb[0].mxu0
        %1725 = vmatprep.mubr.f32.mxu0 %v1410
        %1726 = vmatmul.mubr.f32.gmra.mrb[0].mxu0 %v1407
        %v1727 = vpop.f32.mrb[0].mxu0
        %v1728 = vadd.f32 0.0, %v1727
        %v1729 = vpop.f32.mrb[0].mxu0
        %1730 = vmatprep.mubr.f32.mxu0 %v1414
        %1731 = vmatmul.mubr.f32.gmra.mrb[0].mxu0 %v1412
        %v1732 = vpop.f32.mrb[0].mxu0
        %v1733 = vadd.f32 0.0, %v1732
        %v1734 = vpop.f32.mrb[0].mxu0
        %1735 = vmatprep.mubr.f32.mxu0 %v1420
        %1736 = vmatmul.mubr.f32.gmra.mrb[0].mxu0 %v1417
        %v1737 = vpop.f32.mrb[0].mxu0
        %v1738 = vadd.f32 0.0, %v1737
        %v1739 = vpop.f32.mrb[0].mxu0
        %1740 = vmatprep.mubr.f32.mxu0 %v1424
        %1741 = vmatmul.mubr.f32.gmra.mrb[0].mxu0 %v1422
        %v1742 = vpop.f32.mrb[0].mxu0
        %v1743 = vadd.f32 0.0, %v1742
        %v1744 = vpop.f32.mrb[0].mxu0
        %1745 = vmatprep.mubr.f32.mxu0 %v1430
        %1746 = vmatmul.mubr.f32.gmra.mrb[0].mxu0 %v1427
        %v1747 = vpop.f32.mrb[0].mxu0
        %v1748 = vadd.f32 0.0, %v1747
        %v1749 = vpop.f32.mrb[0].mxu0
        %1750 = vmatprep.mubr.f32.mxu0 %v1434
        %1751 = vmatmul.mubr.f32.gmra.mrb[0].mxu0 %v1432
        %v1752 = vpop.f32.mrb[0].mxu0
        %v1753 = vadd.f32 0.0, %v1752
        %v1754 = vpop.f32.mrb[0].mxu0
        %1755 = vmatprep.mubr.f32.mxu0 %v1440
        %1756 = vmatmul.mubr.f32.gmra.mrb[0].mxu0 %v1437
        %v1757 = vpop.f32.mrb[0].mxu0
        %v1758 = vadd.f32 0.0, %v1757
        %v1759 = vpop.f32.mrb[0].mxu0
        %1760 = vmatprep.mubr.f32.mxu0 %v1444
        %1761 = vmatmul.mubr.f32.gmra.mrb[0].mxu0 %v1442
        %v1762 = vpop.f32.mrb[0].mxu0
        %v1763 = vadd.f32 0.0, %v1762
        %v1764 = vpop.f32.mrb[0].mxu0
        %1765 = vdwg.mxu0
        %1766 = vmatprep.subr.mxu0 0.0
        %1767 = vmatpush1.msra.mxu0 %v1092
        %1768 = vmatprep.subr.mxu0 0.0
        %1769 = vmatpush1.msra.mxu0 %v1093
        %1770 = vmatprep.subr.mxu0 0.0
        %1771 = vmatpush1.msra.mxu0 %v1094
        %1772 = vmatprep.subr.mxu0 0.0
        %1773 = vmatpush1.msra.mxu0 %v1095
        %1774 = vmatprep.subr.mxu0 0.0
        %1775 = vmatpush1.msra.mxu0 %v1096
        %1776 = vmatprep.subr.mxu0 0.0
        %1777 = vmatpush1.msra.mxu0 %v1097
        %1778 = vmatprep.subr.mxu0 0.0
        %1779 = vmatpush1.msra.mxu0 %v1098
        %1780 = vmatprep.subr.mxu0 0.0
        %1781 = vmatpush1.msra.mxu0 %v1099
        %1782 = vmatprep.subr.mxu0 0.0
        %1783 = vmatpush1.msra.mxu0 %v1100
        %1784 = vmatprep.subr.mxu0 0.0
        %1785 = vmatpush1.msra.mxu0 %v1101
        %1786 = vmatprep.subr.mxu0 0.0
        %1787 = vmatpush1.msra.mxu0 %v1102
        %1788 = vmatprep.subr.mxu0 0.0
        %1789 = vmatpush1.msra.mxu0 %v1103
        %1790 = vmatprep.subr.mxu0 0.0
        %1791 = vmatpush1.msra.mxu0 %v1104
        %1792 = vmatprep.subr.mxu0 0.0
        %1793 = vmatpush1.msra.mxu0 %v1105
        %1794 = vmatprep.subr.mxu0 0.0
        %1795 = vmatpush1.msra.mxu0 %v1106
        %1796 = vmatprep.subr.mxu0 0.0
        %1797 = vmatpush1.msra.mxu0 %v1107
        %1798 = vmatprep.subr.mxu0 0.0
        %1799 = vmatpush1.msra.mxu0 %v1108
        %1800 = vmatprep.subr.mxu0 0.0
        %1801 = vmatpush1.msra.mxu0 %v1109
        %1802 = vmatprep.subr.mxu0 0.0
        %1803 = vmatpush1.msra.mxu0 %v1110
        %1804 = vmatprep.subr.mxu0 0.0
        %1805 = vmatpush1.msra.mxu0 %v1111
        %1806 = vmatprep.subr.mxu0 0.0
        %1807 = vmatpush1.msra.mxu0 %v1112
        %1808 = vmatprep.subr.mxu0 0.0
        %1809 = vmatpush1.msra.mxu0 %v1113
        %1810 = vmatprep.subr.mxu0 0.0
        %1811 = vmatpush1.msra.mxu0 %v1114
        %1812 = vmatprep.subr.mxu0 0.0
        %1813 = vmatpush1.msra.mxu0 %v1115
        %1814 = vmatprep.subr.mxu0 0.0
        %1815 = vmatpush1.msra.mxu0 %v1116
        %1816 = vmatprep.subr.mxu0 0.0
        %1817 = vmatpush1.msra.mxu0 %v1117
        %1818 = vmatprep.subr.mxu0 0.0
        %1819 = vmatpush1.msra.mxu0 %v1118
        %1820 = vmatprep.subr.mxu0 0.0
        %1821 = vmatpush1.msra.mxu0 %v1119
        %1822 = vmatprep.subr.mxu0 0.0
        %1823 = vmatpush1.msra.mxu0 %v1120
        %1824 = vmatprep.subr.mxu0 0.0
        %1825 = vmatpush1.msra.mxu0 %v1121
        %1826 = vmatprep.subr.mxu0 0.0
        %1827 = vmatpush1.msra.mxu0 %v1122
        %1828 = vmatprep.subr.mxu0 0.0
        %1829 = vmatpush1.msra.mxu0 %v1123
        %1830 = vmatprep.mubr.f32.mxu0 %v1029
        %1831 = vmatmul.mubr.f32.gmra.mrb[0].mxu0 %v1028
        %v1832 = vpop.f32.mrb[0].mxu0
        %v1833 = vadd.f32 %v1608, %v1832
        %v1834 = vpop.f32.mrb[0].mxu0
        %1835 = vmatprep.mubr.f32.mxu0 %v1031
        %1836 = vmatmul.mubr.f32.gmra.mrb[0].mxu0 %v1030
        %v1837 = vpop.f32.mrb[0].mxu0
        %v1838 = vadd.f32 %v1613, %v1837
        %v1839 = vpop.f32.mrb[0].mxu0
        %1840 = vmatprep.mubr.f32.mxu0 %v1033
        %1841 = vmatmul.mubr.f32.gmra.mrb[0].mxu0 %v1032
        %v1842 = vpop.f32.mrb[0].mxu0
        %v1843 = vadd.f32 %v1618, %v1842
        %v1844 = vpop.f32.mrb[0].mxu0
        %1845 = vmatprep.mubr.f32.mxu0 %v1035
        %1846 = vmatmul.mubr.f32.gmra.mrb[0].mxu0 %v1034
        %v1847 = vpop.f32.mrb[0].mxu0
        %v1848 = vadd.f32 %v1623, %v1847
        %v1849 = vpop.f32.mrb[0].mxu0
        %1850 = vmatprep.mubr.f32.mxu0 %v1037
        %1851 = vmatmul.mubr.f32.gmra.mrb[0].mxu0 %v1036
        %v1852 = vpop.f32.mrb[0].mxu0
        %v1853 = vadd.f32 %v1628, %v1852
        %v1854 = vpop.f32.mrb[0].mxu0
        %1855 = vmatprep.mubr.f32.mxu0 %v1039
        %1856 = vmatmul.mubr.f32.gmra.mrb[0].mxu0 %v1038
        %v1857 = vpop.f32.mrb[0].mxu0
        %v1858 = vadd.f32 %v1633, %v1857
        %v1859 = vpop.f32.mrb[0].mxu0
        %1860 = vmatprep.mubr.f32.mxu0 %v1041
        %1861 = vmatmul.mubr.f32.gmra.mrb[0].mxu0 %v1040
        %v1862 = vpop.f32.mrb[0].mxu0
        %v1863 = vadd.f32 %v1638, %v1862
        %v1864 = vpop.f32.mrb[0].mxu0
        %1865 = vmatprep.mubr.f32.mxu0 %v1043
        %1866 = vmatmul.mubr.f32.gmra.mrb[0].mxu0 %v1042
        %v1867 = vpop.f32.mrb[0].mxu0
        %v1868 = vadd.f32 %v1643, %v1867
        %v1869 = vpop.f32.mrb[0].mxu0
        %1870 = vmatprep.mubr.f32.mxu0 %v1045
        %1871 = vmatmul.mubr.f32.gmra.mrb[0].mxu0 %v1044
        %v1872 = vpop.f32.mrb[0].mxu0
        %v1873 = vadd.f32 %v1648, %v1872
        %v1874 = vpop.f32.mrb[0].mxu0
        %1875 = vmatprep.mubr.f32.mxu0 %v1047
        %1876 = vmatmul.mubr.f32.gmra.mrb[0].mxu0 %v1046
        %v1877 = vpop.f32.mrb[0].mxu0
        %v1878 = vadd.f32 %v1653, %v1877
        %v1879 = vpop.f32.mrb[0].mxu0
        %1880 = vmatprep.mubr.f32.mxu0 %v1049
        %1881 = vmatmul.mubr.f32.gmra.mrb[0].mxu0 %v1048
        %v1882 = vpop.f32.mrb[0].mxu0
        %v1883 = vadd.f32 %v1658, %v1882
        %v1884 = vpop.f32.mrb[0].mxu0
        %1885 = vmatprep.mubr.f32.mxu0 %v1051
        %1886 = vmatmul.mubr.f32.gmra.mrb[0].mxu0 %v1050
        %v1887 = vpop.f32.mrb[0].mxu0
        %v1888 = vadd.f32 %v1663, %v1887
        %v1889 = vpop.f32.mrb[0].mxu0
        %1890 = vmatprep.mubr.f32.mxu0 %v1053
        %1891 = vmatmul.mubr.f32.gmra.mrb[0].mxu0 %v1052
        %v1892 = vpop.f32.mrb[0].mxu0
        %v1893 = vadd.f32 %v1668, %v1892
        %v1894 = vpop.f32.mrb[0].mxu0
        %1895 = vmatprep.mubr.f32.mxu0 %v1055
        %1896 = vmatmul.mubr.f32.gmra.mrb[0].mxu0 %v1054
        %v1897 = vpop.f32.mrb[0].mxu0
        %v1898 = vadd.f32 %v1673, %v1897
        %v1899 = vpop.f32.mrb[0].mxu0
        %1900 = vmatprep.mubr.f32.mxu0 %v1057
        %1901 = vmatmul.mubr.f32.gmra.mrb[0].mxu0 %v1056
        %v1902 = vpop.f32.mrb[0].mxu0
        %v1903 = vadd.f32 %v1678, %v1902
        %v1904 = vpop.f32.mrb[0].mxu0
        %1905 = vmatprep.mubr.f32.mxu0 %v1059
        %1906 = vmatmul.mubr.f32.gmra.mrb[0].mxu0 %v1058
        %v1907 = vpop.f32.mrb[0].mxu0
        %v1908 = vadd.f32 %v1683, %v1907
        %v1909 = vpop.f32.mrb[0].mxu0
        %1910 = vmatprep.mubr.f32.mxu0 %v1061
        %1911 = vmatmul.mubr.f32.gmra.mrb[0].mxu0 %v1060
        %v1912 = vpop.f32.mrb[0].mxu0
        %v1913 = vadd.f32 %v1688, %v1912
        %v1914 = vpop.f32.mrb[0].mxu0
        %1915 = vmatprep.mubr.f32.mxu0 %v1063
        %1916 = vmatmul.mubr.f32.gmra.mrb[0].mxu0 %v1062
        %v1917 = vpop.f32.mrb[0].mxu0
        %v1918 = vadd.f32 %v1693, %v1917
        %v1919 = vpop.f32.mrb[0].mxu0
        %1920 = vmatprep.mubr.f32.mxu0 %v1065
        %1921 = vmatmul.mubr.f32.gmra.mrb[0].mxu0 %v1064
        %v1922 = vpop.f32.mrb[0].mxu0
        %v1923 = vadd.f32 %v1698, %v1922
        %v1924 = vpop.f32.mrb[0].mxu0
        %1925 = vmatprep.mubr.f32.mxu0 %v1067
        %1926 = vmatmul.mubr.f32.gmra.mrb[0].mxu0 %v1066
        %v1927 = vpop.f32.mrb[0].mxu0
        %v1928 = vadd.f32 %v1703, %v1927
        %v1929 = vpop.f32.mrb[0].mxu0
        %1930 = vmatprep.mubr.f32.mxu0 %v1069
        %1931 = vmatmul.mubr.f32.gmra.mrb[0].mxu0 %v1068
        %v1932 = vpop.f32.mrb[0].mxu0
        %v1933 = vadd.f32 %v1708, %v1932
        %v1934 = vpop.f32.mrb[0].mxu0
        %1935 = vmatprep.mubr.f32.mxu0 %v1071
        %1936 = vmatmul.mubr.f32.gmra.mrb[0].mxu0 %v1070
        %v1937 = vpop.f32.mrb[0].mxu0
        %v1938 = vadd.f32 %v1713, %v1937
        %v1939 = vpop.f32.mrb[0].mxu0
        %1940 = vmatprep.mubr.f32.mxu0 %v1073
        %1941 = vmatmul.mubr.f32.gmra.mrb[0].mxu0 %v1072
        %v1942 = vpop.f32.mrb[0].mxu0
        %v1943 = vadd.f32 %v1718, %v1942
        %v1944 = vpop.f32.mrb[0].mxu0
        %1945 = vmatprep.mubr.f32.mxu0 %v1075
        %1946 = vmatmul.mubr.f32.gmra.mrb[0].mxu0 %v1074
        %v1947 = vpop.f32.mrb[0].mxu0
        %v1948 = vadd.f32 %v1723, %v1947
        %v1949 = vpop.f32.mrb[0].mxu0
        %1950 = vmatprep.mubr.f32.mxu0 %v1077
        %1951 = vmatmul.mubr.f32.gmra.mrb[0].mxu0 %v1076
        %v1952 = vpop.f32.mrb[0].mxu0
        %v1953 = vadd.f32 %v1728, %v1952
        %v1954 = vpop.f32.mrb[0].mxu0
        %1955 = vmatprep.mubr.f32.mxu0 %v1079
        %1956 = vmatmul.mubr.f32.gmra.mrb[0].mxu0 %v1078
        %v1957 = vpop.f32.mrb[0].mxu0
        %v1958 = vadd.f32 %v1733, %v1957
        %v1959 = vpop.f32.mrb[0].mxu0
        %1960 = vmatprep.mubr.f32.mxu0 %v1081
        %1961 = vmatmul.mubr.f32.gmra.mrb[0].mxu0 %v1080
        %v1962 = vpop.f32.mrb[0].mxu0
        %v1963 = vadd.f32 %v1738, %v1962
        %v1964 = vpop.f32.mrb[0].mxu0
        %1965 = vmatprep.mubr.f32.mxu0 %v1083
        %1966 = vmatmul.mubr.f32.gmra.mrb[0].mxu0 %v1082
        %v1967 = vpop.f32.mrb[0].mxu0
        %v1968 = vadd.f32 %v1743, %v1967
        %v1969 = vpop.f32.mrb[0].mxu0
        %1970 = vmatprep.mubr.f32.mxu0 %v1085
        %1971 = vmatmul.mubr.f32.gmra.mrb[0].mxu0 %v1084
        %v1972 = vpop.f32.mrb[0].mxu0
        %v1973 = vadd.f32 %v1748, %v1972
        %v1974 = vpop.f32.mrb[0].mxu0
        %1975 = vmatprep.mubr.f32.mxu0 %v1087
        %1976 = vmatmul.mubr.f32.gmra.mrb[0].mxu0 %v1086
        %v1977 = vpop.f32.mrb[0].mxu0
        %v1978 = vadd.f32 %v1753, %v1977
        %v1979 = vpop.f32.mrb[0].mxu0
        %1980 = vmatprep.mubr.f32.mxu0 %v1089
        %1981 = vmatmul.mubr.f32.gmra.mrb[0].mxu0 %v1088
        %v1982 = vpop.f32.mrb[0].mxu0
        %v1983 = vadd.f32 %v1758, %v1982
        %v1984 = vpop.f32.mrb[0].mxu0
        %1985 = vmatprep.mubr.f32.mxu0 %v1091
        %1986 = vmatmul.mubr.f32.gmra.mrb[0].mxu0 %v1090
        %v1987 = vpop.f32.mrb[0].mxu0
        %v1988 = vadd.f32 %v1763, %v1987
        %v1989 = vpop.f32.mrb[0].mxu0
        %1990 = vdwg.mxu0
        %v1991 = vld [vmem:[#allocation2] sm:$0xfc]
        %v1992 = vld [vmem:[#allocation2 + $0x8] sm:$0xfc]
        %v1993 = vld [vmem:[#allocation2 + $0x20] sm:$0x3]
        %v1994 = vld [vmem:[#allocation2 + $0x28] sm:$0x3]
        %v1995 = vld [vmem:[#allocation2 + $0x30] sm:$0xfc]
        %v1996 = vld [vmem:[#allocation2 + $0x38] sm:$0xfc]
        %v1997 = vld [vmem:[#allocation2 + $0x50] sm:$0x3]
        %v1998 = vld [vmem:[#allocation2 + $0x58] sm:$0x3]
        %v1999 = vld [vmem:[#allocation2 + $0x60] sm:$0xfc]
        %v2000 = vld [vmem:[#allocation2 + $0x68] sm:$0xfc]
        %v2001 = vld [vmem:[#allocation2 + $0x80] sm:$0x3]
        %v2002 = vld [vmem:[#allocation2 + $0x88] sm:$0x3]
        %v2003 = vld [vmem:[#allocation2 + $0x90] sm:$0xfc]
        %v2004 = vld [vmem:[#allocation2 + $0x98] sm:$0xfc]
        %v2005 = vld [vmem:[#allocation2 + $0xb0] sm:$0x3]
        %v2006 = vld [vmem:[#allocation2 + $0xb8] sm:$0x3]
        %v2007 = vld [vmem:[#allocation2 + $0xc0] sm:$0xfc]
        %v2008 = vld [vmem:[#allocation2 + $0xc8] sm:$0xfc]
        %v2009 = vld [vmem:[#allocation2 + $0xe0] sm:$0x3]
        %v2010 = vld [vmem:[#allocation2 + $0xe8] sm:$0x3]
        %v2011 = vld [vmem:[#allocation2 + $0xf0] sm:$0xfc]
        %v2012 = vld [vmem:[#allocation2 + $0xf8] sm:$0xfc]
        %v2013 = vld [vmem:[#allocation2 + $0x110] sm:$0x3]
        %v2014 = vld [vmem:[#allocation2 + $0x118] sm:$0x3]
        %v2015 = vld [vmem:[#allocation2 + $0x120] sm:$0xfc]
        %v2016 = vld [vmem:[#allocation2 + $0x128] sm:$0xfc]
        %v2017 = vld [vmem:[#allocation2 + $0x140] sm:$0x3]
        %v2018 = vld [vmem:[#allocation2 + $0x148] sm:$0x3]
        %v2019 = vld [vmem:[#allocation2 + $0x150] sm:$0xfc]
        %v2020 = vld [vmem:[#allocation2 + $0x158] sm:$0xfc]
        %v2021 = vld [vmem:[#allocation2 + $0x170] sm:$0x3]
        %v2022 = vld [vmem:[#allocation2 + $0x178] sm:$0x3]
        %v2023 = vld [vmem:[#allocation2 + $0x180] sm:$0xfc]
        %v2024 = vld [vmem:[#allocation2 + $0x188] sm:$0xfc]
        %v2025 = vld [vmem:[#allocation2 + $0x1a0] sm:$0x3]
        %v2026 = vld [vmem:[#allocation2 + $0x1a8] sm:$0x3]
        %v2027 = vld [vmem:[#allocation2 + $0x1b0] sm:$0xfc]
        %v2028 = vld [vmem:[#allocation2 + $0x1b8] sm:$0xfc]
        %v2029 = vld [vmem:[#allocation2 + $0x1d0] sm:$0x3]
        %v2030 = vld [vmem:[#allocation2 + $0x1d8] sm:$0x3]
        %v2031 = vld [vmem:[#allocation2 + $0x1e0] sm:$0xfc]
        %v2032 = vld [vmem:[#allocation2 + $0x1e8] sm:$0xfc]
        %v2033 = vld [vmem:[#allocation2 + $0x200] sm:$0x3]
        %v2034 = vld [vmem:[#allocation2 + $0x208] sm:$0x3]
        %v2035 = vld [vmem:[#allocation2 + $0x210] sm:$0xfc]
        %v2036 = vld [vmem:[#allocation2 + $0x218] sm:$0xfc]
        %v2037 = vld [vmem:[#allocation2 + $0x230] sm:$0x3]
        %v2038 = vld [vmem:[#allocation2 + $0x238] sm:$0x3]
        %v2039 = vld [vmem:[#allocation2 + $0x240] sm:$0xfc]
        %v2040 = vld [vmem:[#allocation2 + $0x248] sm:$0xfc]
        %v2041 = vld [vmem:[#allocation2 + $0x260] sm:$0x3]
        %v2042 = vld [vmem:[#allocation2 + $0x268] sm:$0x3]
        %v2043 = vld [vmem:[#allocation2 + $0x270] sm:$0xfc]
        %v2044 = vld [vmem:[#allocation2 + $0x278] sm:$0xfc]
        %v2045 = vld [vmem:[#allocation2 + $0x290] sm:$0x3]
        %v2046 = vld [vmem:[#allocation2 + $0x298] sm:$0x3]
        %v2047 = vld [vmem:[#allocation2 + $0x2a0] sm:$0xfc]
        %v2048 = vld [vmem:[#allocation2 + $0x2a8] sm:$0xfc]
        %v2049 = vld [vmem:[#allocation2 + $0x2c0] sm:$0x3]
        %v2050 = vld [vmem:[#allocation2 + $0x2c8] sm:$0x3]
        %v2051 = vld [vmem:[#allocation2 + $0x2d0] sm:$0xfc]
        %v2052 = vld [vmem:[#allocation2 + $0x2d8] sm:$0xfc]
        %v2053 = vld [vmem:[#allocation2 + $0x2f0] sm:$0x3]
        %v2054 = vld [vmem:[#allocation2 + $0x2f8] sm:$0x3]
        %vm2119 = vcmask 1045504
        %v2120 = vrot.slane %v1991, 2
        %v2121 = vrot.slane %v1030, 2
        %v2122 = vsel %vm2119, %v2120, %v2121
        %v2123 = vrot.slane %v1992, 2
        %v2124 = vrot.slane %v1031, 2
        %v2125 = vsel %vm2119, %v2123, %v2124
        %v2126 = vrot.slane %v1993, 2
        %v2127 = vsel %vm2119, %v2121, %v2126
        %v2128 = vrot.slane %v1994, 2
        %v2129 = vsel %vm2119, %v2124, %v2128
        %v2130 = vrot.slane %v1995, 2
        %v2131 = vrot.slane %v1034, 2
        %v2132 = vsel %vm2119, %v2130, %v2131
        %v2133 = vrot.slane %v1996, 2
        %v2134 = vrot.slane %v1035, 2
        %v2135 = vsel %vm2119, %v2133, %v2134
        %v2136 = vrot.slane %v1997, 2
        %v2137 = vsel %vm2119, %v2131, %v2136
        %v2138 = vrot.slane %v1998, 2
        %v2139 = vsel %vm2119, %v2134, %v2138
        %v2140 = vrot.slane %v1999, 2
        %v2141 = vrot.slane %v1038, 2
        %v2142 = vsel %vm2119, %v2140, %v2141
        %v2143 = vrot.slane %v2000, 2
        %v2144 = vrot.slane %v1039, 2
        %v2145 = vsel %vm2119, %v2143, %v2144
        %v2146 = vrot.slane %v2001, 2
        %v2147 = vsel %vm2119, %v2141, %v2146
        %v2148 = vrot.slane %v2002, 2
        %v2149 = vsel %vm2119, %v2144, %v2148
        %v2150 = vrot.slane %v2003, 2
        %v2151 = vrot.slane %v1042, 2
        %v2152 = vsel %vm2119, %v2150, %v2151
        %v2153 = vrot.slane %v2004, 2
        %v2154 = vrot.slane %v1043, 2
        %v2155 = vsel %vm2119, %v2153, %v2154
        %v2156 = vrot.slane %v2005, 2
        %v2157 = vsel %vm2119, %v2151, %v2156
        %v2158 = vrot.slane %v2006, 2
        %v2159 = vsel %vm2119, %v2154, %v2158
        %v2160 = vrot.slane %v2007, 2
        %v2161 = vrot.slane %v1046, 2
        %v2162 = vsel %vm2119, %v2160, %v2161
        %v2163 = vrot.slane %v2008, 2
        %v2164 = vrot.slane %v1047, 2
        %v2165 = vsel %vm2119, %v2163, %v2164
        %v2166 = vrot.slane %v2009, 2
        %v2167 = vsel %vm2119, %v2161, %v2166
        %v2168 = vrot.slane %v2010, 2
        %v2169 = vsel %vm2119, %v2164, %v2168
        %v2170 = vrot.slane %v2011, 2
        %v2171 = vrot.slane %v1050, 2
        %v2172 = vsel %vm2119, %v2170, %v2171
        %v2173 = vrot.slane %v2012, 2
        %v2174 = vrot.slane %v1051, 2
        %v2175 = vsel %vm2119, %v2173, %v2174
        %v2176 = vrot.slane %v2013, 2
        %v2177 = vsel %vm2119, %v2171, %v2176
        %v2178 = vrot.slane %v2014, 2
        %v2179 = vsel %vm2119, %v2174, %v2178
        %v2180 = vrot.slane %v2015, 2
        %v2181 = vrot.slane %v1054, 2
        %v2182 = vsel %vm2119, %v2180, %v2181
        %v2183 = vrot.slane %v2016, 2
        %v2184 = vrot.slane %v1055, 2
        %v2185 = vsel %vm2119, %v2183, %v2184
        %v2186 = vrot.slane %v2017, 2
        %v2187 = vsel %vm2119, %v2181, %v2186
        %v2188 = vrot.slane %v2018, 2
        %v2189 = vsel %vm2119, %v2184, %v2188
        %v2190 = vrot.slane %v2019, 2
        %v2191 = vrot.slane %v1058, 2
        %v2192 = vsel %vm2119, %v2190, %v2191
        %v2193 = vrot.slane %v2020, 2
        %v2194 = vrot.slane %v1059, 2
        %v2195 = vsel %vm2119, %v2193, %v2194
        %v2196 = vrot.slane %v2021, 2
        %v2197 = vsel %vm2119, %v2191, %v2196
        %v2198 = vrot.slane %v2022, 2
        %v2199 = vsel %vm2119, %v2194, %v2198
        %v2200 = vrot.slane %v2023, 2
        %v2201 = vrot.slane %v1062, 2
        %v2202 = vsel %vm2119, %v2200, %v2201
        %v2203 = vrot.slane %v2024, 2
        %v2204 = vrot.slane %v1063, 2
        %v2205 = vsel %vm2119, %v2203, %v2204
        %v2206 = vrot.slane %v2025, 2
        %v2207 = vsel %vm2119, %v2201, %v2206
        %v2208 = vrot.slane %v2026, 2
        %v2209 = vsel %vm2119, %v2204, %v2208
        %v2210 = vrot.slane %v2027, 2
        %v2211 = vrot.slane %v1066, 2
        %v2212 = vsel %vm2119, %v2210, %v2211
        %v2213 = vrot.slane %v2028, 2
        %v2214 = vrot.slane %v1067, 2
        %v2215 = vsel %vm2119, %v2213, %v2214
        %v2216 = vrot.slane %v2029, 2
        %v2217 = vsel %vm2119, %v2211, %v2216
        %v2218 = vrot.slane %v2030, 2
        %v2219 = vsel %vm2119, %v2214, %v2218
        %v2220 = vrot.slane %v2031, 2
        %v2221 = vrot.slane %v1070, 2
        %v2222 = vsel %vm2119, %v2220, %v2221
        %v2223 = vrot.slane %v2032, 2
        %v2224 = vrot.slane %v1071, 2
        %v2225 = vsel %vm2119, %v2223, %v2224
        %v2226 = vrot.slane %v2033, 2
        %v2227 = vsel %vm2119, %v2221, %v2226
        %v2228 = vrot.slane %v2034, 2
        %v2229 = vsel %vm2119, %v2224, %v2228
        %v2230 = vrot.slane %v2035, 2
        %v2231 = vrot.slane %v1074, 2
        %v2232 = vsel %vm2119, %v2230, %v2231
        %v2233 = vrot.slane %v2036, 2
        %v2234 = vrot.slane %v1075, 2
        %v2235 = vsel %vm2119, %v2233, %v2234
        %v2236 = vrot.slane %v2037, 2
        %v2237 = vsel %vm2119, %v2231, %v2236
        %v2238 = vrot.slane %v2038, 2
        %v2239 = vsel %vm2119, %v2234, %v2238
        %v2240 = vrot.slane %v2039, 2
        %v2241 = vrot.slane %v1078, 2
        %v2242 = vsel %vm2119, %v2240, %v2241
        %v2243 = vrot.slane %v2040, 2
        %v2244 = vrot.slane %v1079, 2
        %v2245 = vsel %vm2119, %v2243, %v2244
        %v2246 = vrot.slane %v2041, 2
        %v2247 = vsel %vm2119, %v2241, %v2246
        %v2248 = vrot.slane %v2042, 2
        %v2249 = vsel %vm2119, %v2244, %v2248
        %v2250 = vrot.slane %v2043, 2
        %v2251 = vrot.slane %v1082, 2
        %v2252 = vsel %vm2119, %v2250, %v2251
        %v2253 = vrot.slane %v2044, 2
        %v2254 = vrot.slane %v1083, 2
        %v2255 = vsel %vm2119, %v2253, %v2254
        %v2256 = vrot.slane %v2045, 2
        %v2257 = vsel %vm2119, %v2251, %v2256
        %v2258 = vrot.slane %v2046, 2
        %v2259 = vsel %vm2119, %v2254, %v2258
        %v2260 = vrot.slane %v2047, 2
        %v2261 = vrot.slane %v1086, 2
        %v2262 = vsel %vm2119, %v2260, %v2261
        %v2263 = vrot.slane %v2048, 2
        %v2264 = vrot.slane %v1087, 2
        %v2265 = vsel %vm2119, %v2263, %v2264
        %v2266 = vrot.slane %v2049, 2
        %v2267 = vsel %vm2119, %v2261, %v2266
        %v2268 = vrot.slane %v2050, 2
        %v2269 = vsel %vm2119, %v2264, %v2268
        %v2270 = vrot.slane %v2051, 2
        %v2271 = vrot.slane %v1090, 2
        %v2272 = vsel %vm2119, %v2270, %v2271
        %v2273 = vrot.slane %v2052, 2
        %v2274 = vrot.slane %v1091, 2
        %v2275 = vsel %vm2119, %v2273, %v2274
        %v2276 = vrot.slane %v2053, 2
        %v2277 = vsel %vm2119, %v2271, %v2276
        %v2278 = vrot.slane %v2054, 2
        %v2279 = vsel %vm2119, %v2274, %v2278
        %v2344 = vld [vmem:[#allocation9 + $0x200] sm:$0xff]
        %v2345 = vld [vmem:[#allocation9 + $0x208] sm:$0xff]
        %v2346 = vld [vmem:[#allocation9 + $0x210] sm:$0xff]
        %v2347 = vld [vmem:[#allocation9 + $0x218] sm:$0xff]
        %v2348 = vld [vmem:[#allocation9 + $0x220] sm:$0xff]
        %v2349 = vld [vmem:[#allocation9 + $0x228] sm:$0xff]
        %v2350 = vld [vmem:[#allocation9 + $0x230] sm:$0xff]
        %v2351 = vld [vmem:[#allocation9 + $0x238] sm:$0xff]
        %v2352 = vld [vmem:[#allocation9 + $0x240] sm:$0xff]
        %v2353 = vld [vmem:[#allocation9 + $0x248] sm:$0xff]
        %v2354 = vld [vmem:[#allocation9 + $0x250] sm:$0xff]
        %v2355 = vld [vmem:[#allocation9 + $0x258] sm:$0xff]
        %v2356 = vld [vmem:[#allocation9 + $0x260] sm:$0xff]
        %v2357 = vld [vmem:[#allocation9 + $0x268] sm:$0xff]
        %v2358 = vld [vmem:[#allocation9 + $0x270] sm:$0xff]
        %v2359 = vld [vmem:[#allocation9 + $0x278] sm:$0xff]
        %v2360 = vld [vmem:[#allocation9 + $0x280] sm:$0xff]
        %v2361 = vld [vmem:[#allocation9 + $0x288] sm:$0xff]
        %v2362 = vld [vmem:[#allocation9 + $0x290] sm:$0xff]
        %v2363 = vld [vmem:[#allocation9 + $0x298] sm:$0xff]
        %v2364 = vld [vmem:[#allocation9 + $0x2a0] sm:$0xff]
        %v2365 = vld [vmem:[#allocation9 + $0x2a8] sm:$0xff]
        %v2366 = vld [vmem:[#allocation9 + $0x2b0] sm:$0xff]
        %v2367 = vld [vmem:[#allocation9 + $0x2b8] sm:$0xff]
        %v2368 = vld [vmem:[#allocation9 + $0x2c0] sm:$0xff]
        %v2369 = vld [vmem:[#allocation9 + $0x2c8] sm:$0xff]
        %v2370 = vld [vmem:[#allocation9 + $0x2d0] sm:$0xff]
        %v2371 = vld [vmem:[#allocation9 + $0x2d8] sm:$0xff]
        %v2372 = vld [vmem:[#allocation9 + $0x2e0] sm:$0xff]
        %v2373 = vld [vmem:[#allocation9 + $0x2e8] sm:$0xff]
        %v2374 = vld [vmem:[#allocation9 + $0x2f0] sm:$0xff]
        %v2375 = vld [vmem:[#allocation9 + $0x2f8] sm:$0xff]
        %2376 = vmatprep.subr.mxu0 0.0
        %2377 = vmatpush1.msra.mxu0 %v2344
        %2378 = vmatprep.subr.mxu0 0.0
        %2379 = vmatpush1.msra.mxu0 %v2345
        %2380 = vmatprep.subr.mxu0 0.0
        %2381 = vmatpush1.msra.mxu0 %v2346
        %2382 = vmatprep.subr.mxu0 0.0
        %2383 = vmatpush1.msra.mxu0 %v2347
        %2384 = vmatprep.subr.mxu0 0.0
        %2385 = vmatpush1.msra.mxu0 %v2348
        %2386 = vmatprep.subr.mxu0 0.0
        %2387 = vmatpush1.msra.mxu0 %v2349
        %2388 = vmatprep.subr.mxu0 0.0
        %2389 = vmatpush1.msra.mxu0 %v2350
        %2390 = vmatprep.subr.mxu0 0.0
        %2391 = vmatpush1.msra.mxu0 %v2351
        %2392 = vmatprep.subr.mxu0 0.0
        %2393 = vmatpush1.msra.mxu0 %v2352
        %2394 = vmatprep.subr.mxu0 0.0
        %2395 = vmatpush1.msra.mxu0 %v2353
        %2396 = vmatprep.subr.mxu0 0.0
        %2397 = vmatpush1.msra.mxu0 %v2354
        %2398 = vmatprep.subr.mxu0 0.0
        %2399 = vmatpush1.msra.mxu0 %v2355
        %2400 = vmatprep.subr.mxu0 0.0
        %2401 = vmatpush1.msra.mxu0 %v2356
        %2402 = vmatprep.subr.mxu0 0.0
        %2403 = vmatpush1.msra.mxu0 %v2357
        %2404 = vmatprep.subr.mxu0 0.0
        %2405 = vmatpush1.msra.mxu0 %v2358
        %2406 = vmatprep.subr.mxu0 0.0
        %2407 = vmatpush1.msra.mxu0 %v2359
        %2408 = vmatprep.subr.mxu0 0.0
        %2409 = vmatpush1.msra.mxu0 %v2360
        %2410 = vmatprep.subr.mxu0 0.0
        %2411 = vmatpush1.msra.mxu0 %v2361
        %2412 = vmatprep.subr.mxu0 0.0
        %2413 = vmatpush1.msra.mxu0 %v2362
        %2414 = vmatprep.subr.mxu0 0.0
        %2415 = vmatpush1.msra.mxu0 %v2363
        %2416 = vmatprep.subr.mxu0 0.0
        %2417 = vmatpush1.msra.mxu0 %v2364
        %2418 = vmatprep.subr.mxu0 0.0
        %2419 = vmatpush1.msra.mxu0 %v2365
        %2420 = vmatprep.subr.mxu0 0.0
        %2421 = vmatpush1.msra.mxu0 %v2366
        %2422 = vmatprep.subr.mxu0 0.0
        %2423 = vmatpush1.msra.mxu0 %v2367
        %2424 = vmatprep.subr.mxu0 0.0
        %2425 = vmatpush1.msra.mxu0 %v2368
        %2426 = vmatprep.subr.mxu0 0.0
        %2427 = vmatpush1.msra.mxu0 %v2369
        %2428 = vmatprep.subr.mxu0 0.0
        %2429 = vmatpush1.msra.mxu0 %v2370
        %2430 = vmatprep.subr.mxu0 0.0
        %2431 = vmatpush1.msra.mxu0 %v2371
        %2432 = vmatprep.subr.mxu0 0.0
        %2433 = vmatpush1.msra.mxu0 %v2372
        %2434 = vmatprep.subr.mxu0 0.0
        %2435 = vmatpush1.msra.mxu0 %v2373
        %2436 = vmatprep.subr.mxu0 0.0
        %2437 = vmatpush1.msra.mxu0 %v2374
        %2438 = vmatprep.subr.mxu0 0.0
        %2439 = vmatpush1.msra.mxu0 %v2375
        %2440 = vmatprep.mubr.f32.mxu0 %v2125
        %2441 = vmatmul.mubr.f32.gmra.mrb[0].mxu0 %v2122
        %v2442 = vpop.f32.mrb[0].mxu0
        %v2443 = vadd.f32 0.0, %v2442
        %v2444 = vpop.f32.mrb[0].mxu0
        %2445 = vmatprep.mubr.f32.mxu0 %v2129
        %2446 = vmatmul.mubr.f32.gmra.mrb[0].mxu0 %v2127
        %v2447 = vpop.f32.mrb[0].mxu0
        %v2448 = vadd.f32 0.0, %v2447
        %v2449 = vpop.f32.mrb[0].mxu0
        %2450 = vmatprep.mubr.f32.mxu0 %v2135
        %2451 = vmatmul.mubr.f32.gmra.mrb[0].mxu0 %v2132
        %v2452 = vpop.f32.mrb[0].mxu0
        %v2453 = vadd.f32 0.0, %v2452
        %v2454 = vpop.f32.mrb[0].mxu0
        %2455 = vmatprep.mubr.f32.mxu0 %v2139
        %2456 = vmatmul.mubr.f32.gmra.mrb[0].mxu0 %v2137
        %v2457 = vpop.f32.mrb[0].mxu0
        %v2458 = vadd.f32 0.0, %v2457
        %v2459 = vpop.f32.mrb[0].mxu0
        %2460 = vmatprep.mubr.f32.mxu0 %v2145
        %2461 = vmatmul.mubr.f32.gmra.mrb[0].mxu0 %v2142
        %v2462 = vpop.f32.mrb[0].mxu0
        %v2463 = vadd.f32 0.0, %v2462
        %v2464 = vpop.f32.mrb[0].mxu0
        %2465 = vmatprep.mubr.f32.mxu0 %v2149
        %2466 = vmatmul.mubr.f32.gmra.mrb[0].mxu0 %v2147
        %v2467 = vpop.f32.mrb[0].mxu0
        %v2468 = vadd.f32 0.0, %v2467
        %v2469 = vpop.f32.mrb[0].mxu0
        %2470 = vmatprep.mubr.f32.mxu0 %v2155
        %2471 = vmatmul.mubr.f32.gmra.mrb[0].mxu0 %v2152
        %v2472 = vpop.f32.mrb[0].mxu0
        %v2473 = vadd.f32 0.0, %v2472
        %v2474 = vpop.f32.mrb[0].mxu0
        %2475 = vmatprep.mubr.f32.mxu0 %v2159
        %2476 = vmatmul.mubr.f32.gmra.mrb[0].mxu0 %v2157
        %v2477 = vpop.f32.mrb[0].mxu0
        %v2478 = vadd.f32 0.0, %v2477
        %v2479 = vpop.f32.mrb[0].mxu0
        %2480 = vmatprep.mubr.f32.mxu0 %v2165
        %2481 = vmatmul.mubr.f32.gmra.mrb[0].mxu0 %v2162
        %v2482 = vpop.f32.mrb[0].mxu0
        %v2483 = vadd.f32 0.0, %v2482
        %v2484 = vpop.f32.mrb[0].mxu0
        %2485 = vmatprep.mubr.f32.mxu0 %v2169
        %2486 = vmatmul.mubr.f32.gmra.mrb[0].mxu0 %v2167
        %v2487 = vpop.f32.mrb[0].mxu0
        %v2488 = vadd.f32 0.0, %v2487
        %v2489 = vpop.f32.mrb[0].mxu0
        %2490 = vmatprep.mubr.f32.mxu0 %v2175
        %2491 = vmatmul.mubr.f32.gmra.mrb[0].mxu0 %v2172
        %v2492 = vpop.f32.mrb[0].mxu0
        %v2493 = vadd.f32 0.0, %v2492
        %v2494 = vpop.f32.mrb[0].mxu0
        %2495 = vmatprep.mubr.f32.mxu0 %v2179
        %2496 = vmatmul.mubr.f32.gmra.mrb[0].mxu0 %v2177
        %v2497 = vpop.f32.mrb[0].mxu0
        %v2498 = vadd.f32 0.0, %v2497
        %v2499 = vpop.f32.mrb[0].mxu0
        %2500 = vmatprep.mubr.f32.mxu0 %v2185
        %2501 = vmatmul.mubr.f32.gmra.mrb[0].mxu0 %v2182
        %v2502 = vpop.f32.mrb[0].mxu0
        %v2503 = vadd.f32 0.0, %v2502
        %v2504 = vpop.f32.mrb[0].mxu0
        %2505 = vmatprep.mubr.f32.mxu0 %v2189
        %2506 = vmatmul.mubr.f32.gmra.mrb[0].mxu0 %v2187
        %v2507 = vpop.f32.mrb[0].mxu0
        %v2508 = vadd.f32 0.0, %v2507
        %v2509 = vpop.f32.mrb[0].mxu0
        %2510 = vmatprep.mubr.f32.mxu0 %v2195
        %2511 = vmatmul.mubr.f32.gmra.mrb[0].mxu0 %v2192
        %v2512 = vpop.f32.mrb[0].mxu0
        %v2513 = vadd.f32 0.0, %v2512
        %v2514 = vpop.f32.mrb[0].mxu0
        %2515 = vmatprep.mubr.f32.mxu0 %v2199
        %2516 = vmatmul.mubr.f32.gmra.mrb[0].mxu0 %v2197
        %v2517 = vpop.f32.mrb[0].mxu0
        %v2518 = vadd.f32 0.0, %v2517
        %v2519 = vpop.f32.mrb[0].mxu0
        %2520 = vmatprep.mubr.f32.mxu0 %v2205
        %2521 = vmatmul.mubr.f32.gmra.mrb[0].mxu0 %v2202
        %v2522 = vpop.f32.mrb[0].mxu0
        %v2523 = vadd.f32 0.0, %v2522
        %v2524 = vpop.f32.mrb[0].mxu0
        %2525 = vmatprep.mubr.f32.mxu0 %v2209
        %2526 = vmatmul.mubr.f32.gmra.mrb[0].mxu0 %v2207
        %v2527 = vpop.f32.mrb[0].mxu0
        %v2528 = vadd.f32 0.0, %v2527
        %v2529 = vpop.f32.mrb[0].mxu0
        %2530 = vmatprep.mubr.f32.mxu0 %v2215
        %2531 = vmatmul.mubr.f32.gmra.mrb[0].mxu0 %v2212
        %v2532 = vpop.f32.mrb[0].mxu0
        %v2533 = vadd.f32 0.0, %v2532
        %v2534 = vpop.f32.mrb[0].mxu0
        %2535 = vmatprep.mubr.f32.mxu0 %v2219
        %2536 = vmatmul.mubr.f32.gmra.mrb[0].mxu0 %v2217
        %v2537 = vpop.f32.mrb[0].mxu0
        %v2538 = vadd.f32 0.0, %v2537
        %v2539 = vpop.f32.mrb[0].mxu0
        %2540 = vmatprep.mubr.f32.mxu0 %v2225
        %2541 = vmatmul.mubr.f32.gmra.mrb[0].mxu0 %v2222
        %v2542 = vpop.f32.mrb[0].mxu0
        %v2543 = vadd.f32 0.0, %v2542
        %v2544 = vpop.f32.mrb[0].mxu0
        %2545 = vmatprep.mubr.f32.mxu0 %v2229
        %2546 = vmatmul.mubr.f32.gmra.mrb[0].mxu0 %v2227
        %v2547 = vpop.f32.mrb[0].mxu0
        %v2548 = vadd.f32 0.0, %v2547
        %v2549 = vpop.f32.mrb[0].mxu0
        %2550 = vmatprep.mubr.f32.mxu0 %v2235
        %2551 = vmatmul.mubr.f32.gmra.mrb[0].mxu0 %v2232
        %v2552 = vpop.f32.mrb[0].mxu0
        %v2553 = vadd.f32 0.0, %v2552
        %v2554 = vpop.f32.mrb[0].mxu0
        %2555 = vmatprep.mubr.f32.mxu0 %v2239
        %2556 = vmatmul.mubr.f32.gmra.mrb[0].mxu0 %v2237
        %v2557 = vpop.f32.mrb[0].mxu0
        %v2558 = vadd.f32 0.0, %v2557
        %v2559 = vpop.f32.mrb[0].mxu0
        %2560 = vmatprep.mubr.f32.mxu0 %v2245
        %2561 = vmatmul.mubr.f32.gmra.mrb[0].mxu0 %v2242
        %v2562 = vpop.f32.mrb[0].mxu0
        %v2563 = vadd.f32 0.0, %v2562
        %v2564 = vpop.f32.mrb[0].mxu0
        %2565 = vmatprep.mubr.f32.mxu0 %v2249
        %2566 = vmatmul.mubr.f32.gmra.mrb[0].mxu0 %v2247
        %v2567 = vpop.f32.mrb[0].mxu0
        %v2568 = vadd.f32 0.0, %v2567
        %v2569 = vpop.f32.mrb[0].mxu0
        %2570 = vmatprep.mubr.f32.mxu0 %v2255
        %2571 = vmatmul.mubr.f32.gmra.mrb[0].mxu0 %v2252
        %v2572 = vpop.f32.mrb[0].mxu0
        %v2573 = vadd.f32 0.0, %v2572
        %v2574 = vpop.f32.mrb[0].mxu0
        %2575 = vmatprep.mubr.f32.mxu0 %v2259
        %2576 = vmatmul.mubr.f32.gmra.mrb[0].mxu0 %v2257
        %v2577 = vpop.f32.mrb[0].mxu0
        %v2578 = vadd.f32 0.0, %v2577
        %v2579 = vpop.f32.mrb[0].mxu0
        %2580 = vmatprep.mubr.f32.mxu0 %v2265
        %2581 = vmatmul.mubr.f32.gmra.mrb[0].mxu0 %v2262
        %v2582 = vpop.f32.mrb[0].mxu0
        %v2583 = vadd.f32 0.0, %v2582
        %v2584 = vpop.f32.mrb[0].mxu0
        %2585 = vmatprep.mubr.f32.mxu0 %v2269
        %2586 = vmatmul.mubr.f32.gmra.mrb[0].mxu0 %v2267
        %v2587 = vpop.f32.mrb[0].mxu0
        %v2588 = vadd.f32 0.0, %v2587
        %v2589 = vpop.f32.mrb[0].mxu0
        %2590 = vmatprep.mubr.f32.mxu0 %v2275
        %2591 = vmatmul.mubr.f32.gmra.mrb[0].mxu0 %v2272
        %v2592 = vpop.f32.mrb[0].mxu0
        %v2593 = vadd.f32 0.0, %v2592
        %v2594 = vpop.f32.mrb[0].mxu0
        %2595 = vmatprep.mubr.f32.mxu0 %v2279
        %2596 = vmatmul.mubr.f32.gmra.mrb[0].mxu0 %v2277
        %v2597 = vpop.f32.mrb[0].mxu0
        %v2598 = vadd.f32 0.0, %v2597
        %v2599 = vpop.f32.mrb[0].mxu0
        %2600 = vdwg.mxu0
        %v2601 = vadd.f32 %v1833, %v2443
        %v2602 = vadd.f32 %v1838, %v2448
        %v2603 = vadd.f32 %v1843, %v2453
        %v2604 = vadd.f32 %v1848, %v2458
        %v2605 = vadd.f32 %v1853, %v2463
        %v2606 = vadd.f32 %v1858, %v2468
        %v2607 = vadd.f32 %v1863, %v2473
        %v2608 = vadd.f32 %v1868, %v2478
        %v2609 = vadd.f32 %v1873, %v2483
        %v2610 = vadd.f32 %v1878, %v2488
        %v2611 = vadd.f32 %v1883, %v2493
        %v2612 = vadd.f32 %v1888, %v2498
        %v2613 = vadd.f32 %v1893, %v2503
        %v2614 = vadd.f32 %v1898, %v2508
        %v2615 = vadd.f32 %v1903, %v2513
        %v2616 = vadd.f32 %v1908, %v2518
        %v2617 = vadd.f32 %v1913, %v2523
        %v2618 = vadd.f32 %v1918, %v2528
        %v2619 = vadd.f32 %v1923, %v2533
        %v2620 = vadd.f32 %v1928, %v2538
        %v2621 = vadd.f32 %v1933, %v2543
        %v2622 = vadd.f32 %v1938, %v2548
        %v2623 = vadd.f32 %v1943, %v2553
        %v2624 = vadd.f32 %v1948, %v2558
        %v2625 = vadd.f32 %v1953, %v2563
        %v2626 = vadd.f32 %v1958, %v2568
        %v2627 = vadd.f32 %v1963, %v2573
        %v2628 = vadd.f32 %v1968, %v2578
        %v2629 = vadd.f32 %v1973, %v2583
        %v2630 = vadd.f32 %v1978, %v2588
        %v2631 = vadd.f32 %v1983, %v2593
        %v2632 = vadd.f32 %v1988, %v2598
        %v2633 = vld [vmem:[%s771] sm:$0xff]
        %v2634 = vld [vmem:[%s771 + $0x8] sm:$0xff]
        %v2635 = vld [vmem:[%s771 + $0x10] sm:$0xff]
        %v2636 = vld [vmem:[%s771 + $0x18] sm:$0xff]
        %v2637 = vld [vmem:[%s771 + $0x30] sm:$0xff]
        %v2638 = vld [vmem:[%s771 + $0x38] sm:$0xff]
        %v2639 = vld [vmem:[%s771 + $0x40] sm:$0xff]
        %v2640 = vld [vmem:[%s771 + $0x48] sm:$0xff]
        %v2641 = vld [vmem:[%s771 + $0x60] sm:$0xff]
        %v2642 = vld [vmem:[%s771 + $0x68] sm:$0xff]
        %v2643 = vld [vmem:[%s771 + $0x70] sm:$0xff]
        %v2644 = vld [vmem:[%s771 + $0x78] sm:$0xff]
        %v2645 = vld [vmem:[%s771 + $0x90] sm:$0xff]
        %v2646 = vld [vmem:[%s771 + $0x98] sm:$0xff]
        %v2647 = vld [vmem:[%s771 + $0xa0] sm:$0xff]
        %v2648 = vld [vmem:[%s771 + $0xa8] sm:$0xff]
        %v2649 = vld [vmem:[%s771 + $0xc0] sm:$0xff]
        %v2650 = vld [vmem:[%s771 + $0xc8] sm:$0xff]
        %v2651 = vld [vmem:[%s771 + $0xd0] sm:$0xff]
        %v2652 = vld [vmem:[%s771 + $0xd8] sm:$0xff]
        %v2653 = vld [vmem:[%s771 + $0xf0] sm:$0xff]
        %v2654 = vld [vmem:[%s771 + $0xf8] sm:$0xff]
        %v2655 = vld [vmem:[%s771 + $0x100] sm:$0xff]
        %v2656 = vld [vmem:[%s771 + $0x108] sm:$0xff]
        %v2657 = vld [vmem:[%s771 + $0x120] sm:$0xff]
        %v2658 = vld [vmem:[%s771 + $0x128] sm:$0xff]
        %v2659 = vld [vmem:[%s771 + $0x130] sm:$0xff]
        %v2660 = vld [vmem:[%s771 + $0x138] sm:$0xff]
        %v2661 = vld [vmem:[%s771 + $0x150] sm:$0xff]
        %v2662 = vld [vmem:[%s771 + $0x158] sm:$0xff]
        %v2663 = vld [vmem:[%s771 + $0x160] sm:$0xff]
        %v2664 = vld [vmem:[%s771 + $0x168] sm:$0xff]
        %v2665 = vld [vmem:[%s771 + $0x180] sm:$0xff]
        %v2666 = vld [vmem:[%s771 + $0x188] sm:$0xff]
        %v2667 = vld [vmem:[%s771 + $0x190] sm:$0xff]
        %v2668 = vld [vmem:[%s771 + $0x198] sm:$0xff]
        %v2669 = vld [vmem:[%s771 + $0x1b0] sm:$0xff]
        %v2670 = vld [vmem:[%s771 + $0x1b8] sm:$0xff]
        %v2671 = vld [vmem:[%s771 + $0x1c0] sm:$0xff]
        %v2672 = vld [vmem:[%s771 + $0x1c8] sm:$0xff]
        %v2673 = vld [vmem:[%s771 + $0x1e0] sm:$0xff]
        %v2674 = vld [vmem:[%s771 + $0x1e8] sm:$0xff]
        %v2675 = vld [vmem:[%s771 + $0x1f0] sm:$0xff]
        %v2676 = vld [vmem:[%s771 + $0x1f8] sm:$0xff]
        %v2677 = vld [vmem:[%s771 + $0x210] sm:$0xff]
        %v2678 = vld [vmem:[%s771 + $0x218] sm:$0xff]
        %v2679 = vld [vmem:[%s771 + $0x220] sm:$0xff]
        %v2680 = vld [vmem:[%s771 + $0x228] sm:$0xff]
        %v2681 = vld [vmem:[%s771 + $0x240] sm:$0xff]
        %v2682 = vld [vmem:[%s771 + $0x248] sm:$0xff]
        %v2683 = vld [vmem:[%s771 + $0x250] sm:$0xff]
        %v2684 = vld [vmem:[%s771 + $0x258] sm:$0xff]
        %v2685 = vld [vmem:[%s771 + $0x270] sm:$0xff]
        %v2686 = vld [vmem:[%s771 + $0x278] sm:$0xff]
        %v2687 = vld [vmem:[%s771 + $0x280] sm:$0xff]
        %v2688 = vld [vmem:[%s771 + $0x288] sm:$0xff]
        %v2689 = vld [vmem:[%s771 + $0x2a0] sm:$0xff]
        %v2690 = vld [vmem:[%s771 + $0x2a8] sm:$0xff]
        %v2691 = vld [vmem:[%s771 + $0x2b0] sm:$0xff]
        %v2692 = vld [vmem:[%s771 + $0x2b8] sm:$0xff]
        %v2693 = vld [vmem:[%s771 + $0x2d0] sm:$0xff]
        %v2694 = vld [vmem:[%s771 + $0x2d8] sm:$0xff]
        %v2695 = vld [vmem:[%s771 + $0x2e0] sm:$0xff]
        %v2696 = vld [vmem:[%s771 + $0x2e8] sm:$0xff]
        %v2697 = vld [vmem:[#allocation9 + $0x300] sm:$0xff]
        %v2698 = vld [vmem:[#allocation9 + $0x308] sm:$0xff]
        %v2699 = vld [vmem:[#allocation9 + $0x310] sm:$0xff]
        %v2700 = vld [vmem:[#allocation9 + $0x318] sm:$0xff]
        %v2701 = vld [vmem:[#allocation9 + $0x320] sm:$0xff]
        %v2702 = vld [vmem:[#allocation9 + $0x328] sm:$0xff]
        %v2703 = vld [vmem:[#allocation9 + $0x330] sm:$0xff]
        %v2704 = vld [vmem:[#allocation9 + $0x338] sm:$0xff]
        %v2705 = vld [vmem:[#allocation9 + $0x340] sm:$0xff]
        %v2706 = vld [vmem:[#allocation9 + $0x348] sm:$0xff]
        %v2707 = vld [vmem:[#allocation9 + $0x350] sm:$0xff]
        %v2708 = vld [vmem:[#allocation9 + $0x358] sm:$0xff]
        %v2709 = vld [vmem:[#allocation9 + $0x360] sm:$0xff]
        %v2710 = vld [vmem:[#allocation9 + $0x368] sm:$0xff]
        %v2711 = vld [vmem:[#allocation9 + $0x370] sm:$0xff]
        %v2712 = vld [vmem:[#allocation9 + $0x378] sm:$0xff]
        %v2713 = vld [vmem:[#allocation9 + $0x380] sm:$0xff]
        %v2714 = vld [vmem:[#allocation9 + $0x388] sm:$0xff]
        %v2715 = vld [vmem:[#allocation9 + $0x390] sm:$0xff]
        %v2716 = vld [vmem:[#allocation9 + $0x398] sm:$0xff]
        %v2717 = vld [vmem:[#allocation9 + $0x3a0] sm:$0xff]
        %v2718 = vld [vmem:[#allocation9 + $0x3a8] sm:$0xff]
        %v2719 = vld [vmem:[#allocation9 + $0x3b0] sm:$0xff]
        %v2720 = vld [vmem:[#allocation9 + $0x3b8] sm:$0xff]
        %v2721 = vld [vmem:[#allocation9 + $0x3c0] sm:$0xff]
        %v2722 = vld [vmem:[#allocation9 + $0x3c8] sm:$0xff]
        %v2723 = vld [vmem:[#allocation9 + $0x3d0] sm:$0xff]
        %v2724 = vld [vmem:[#allocation9 + $0x3d8] sm:$0xff]
        %v2725 = vld [vmem:[#allocation9 + $0x3e0] sm:$0xff]
        %v2726 = vld [vmem:[#allocation9 + $0x3e8] sm:$0xff]
        %v2727 = vld [vmem:[#allocation9 + $0x3f0] sm:$0xff]
        %v2728 = vld [vmem:[#allocation9 + $0x3f8] sm:$0xff]
        %2729 = vmatprep.subr.mxu0 0.0
        %2730 = vmatpush1.msra.mxu0 %v2697
        %2731 = vmatprep.subr.mxu0 0.0
        %2732 = vmatpush1.msra.mxu0 %v2698
        %2733 = vmatprep.subr.mxu0 0.0
        %2734 = vmatpush1.msra.mxu0 %v2699
        %2735 = vmatprep.subr.mxu0 0.0
        %2736 = vmatpush1.msra.mxu0 %v2700
        %2737 = vmatprep.subr.mxu0 0.0
        %2738 = vmatpush1.msra.mxu0 %v2701
        %2739 = vmatprep.subr.mxu0 0.0
        %2740 = vmatpush1.msra.mxu0 %v2702
        %2741 = vmatprep.subr.mxu0 0.0
        %2742 = vmatpush1.msra.mxu0 %v2703
        %2743 = vmatprep.subr.mxu0 0.0
        %2744 = vmatpush1.msra.mxu0 %v2704
        %2745 = vmatprep.subr.mxu0 0.0
        %2746 = vmatpush1.msra.mxu0 %v2705
        %2747 = vmatprep.subr.mxu0 0.0
        %2748 = vmatpush1.msra.mxu0 %v2706
        %2749 = vmatprep.subr.mxu0 0.0
        %2750 = vmatpush1.msra.mxu0 %v2707
        %2751 = vmatprep.subr.mxu0 0.0
        %2752 = vmatpush1.msra.mxu0 %v2708
        %2753 = vmatprep.subr.mxu0 0.0
        %2754 = vmatpush1.msra.mxu0 %v2709
        %2755 = vmatprep.subr.mxu0 0.0
        %2756 = vmatpush1.msra.mxu0 %v2710
        %2757 = vmatprep.subr.mxu0 0.0
        %2758 = vmatpush1.msra.mxu0 %v2711
        %2759 = vmatprep.subr.mxu0 0.0
        %2760 = vmatpush1.msra.mxu0 %v2712
        %2761 = vmatprep.subr.mxu0 0.0
        %2762 = vmatpush1.msra.mxu0 %v2713
        %2763 = vmatprep.subr.mxu0 0.0
        %2764 = vmatpush1.msra.mxu0 %v2714
        %2765 = vmatprep.subr.mxu0 0.0
        %2766 = vmatpush1.msra.mxu0 %v2715
        %2767 = vmatprep.subr.mxu0 0.0
        %2768 = vmatpush1.msra.mxu0 %v2716
        %2769 = vmatprep.subr.mxu0 0.0
        %2770 = vmatpush1.msra.mxu0 %v2717
        %2771 = vmatprep.subr.mxu0 0.0
        %2772 = vmatpush1.msra.mxu0 %v2718
        %2773 = vmatprep.subr.mxu0 0.0
        %2774 = vmatpush1.msra.mxu0 %v2719
        %2775 = vmatprep.subr.mxu0 0.0
        %2776 = vmatpush1.msra.mxu0 %v2720
        %2777 = vmatprep.subr.mxu0 0.0
        %2778 = vmatpush1.msra.mxu0 %v2721
        %2779 = vmatprep.subr.mxu0 0.0
        %2780 = vmatpush1.msra.mxu0 %v2722
        %2781 = vmatprep.subr.mxu0 0.0
        %2782 = vmatpush1.msra.mxu0 %v2723
        %2783 = vmatprep.subr.mxu0 0.0
        %2784 = vmatpush1.msra.mxu0 %v2724
        %2785 = vmatprep.subr.mxu0 0.0
        %2786 = vmatpush1.msra.mxu0 %v2725
        %2787 = vmatprep.subr.mxu0 0.0
        %2788 = vmatpush1.msra.mxu0 %v2726
        %2789 = vmatprep.subr.mxu0 0.0
        %2790 = vmatpush1.msra.mxu0 %v2727
        %2791 = vmatprep.subr.mxu0 0.0
        %2792 = vmatpush1.msra.mxu0 %v2728
        %2793 = vmatprep.mubr.f32.mxu0 %v2634
        %2794 = vmatmul.mubr.f32.gmra.mrb[0].mxu0 %v2633
        %v2795 = vpop.f32.mrb[0].mxu0
        %v2796 = vadd.f32 0.0, %v2795
        %v2797 = vpop.f32.mrb[0].mxu0
        %2798 = vmatprep.mubr.f32.mxu0 %v2636
        %2799 = vmatmul.mubr.f32.gmra.mrb[0].mxu0 %v2635
        %v2800 = vpop.f32.mrb[0].mxu0
        %v2801 = vadd.f32 0.0, %v2800
        %v2802 = vpop.f32.mrb[0].mxu0
        %2803 = vmatprep.mubr.f32.mxu0 %v2638
        %2804 = vmatmul.mubr.f32.gmra.mrb[0].mxu0 %v2637
        %v2805 = vpop.f32.mrb[0].mxu0
        %v2806 = vadd.f32 0.0, %v2805
        %v2807 = vpop.f32.mrb[0].mxu0
        %2808 = vmatprep.mubr.f32.mxu0 %v2640
        %2809 = vmatmul.mubr.f32.gmra.mrb[0].mxu0 %v2639
        %v2810 = vpop.f32.mrb[0].mxu0
        %v2811 = vadd.f32 0.0, %v2810
        %v2812 = vpop.f32.mrb[0].mxu0
        %2813 = vmatprep.mubr.f32.mxu0 %v2642
        %2814 = vmatmul.mubr.f32.gmra.mrb[0].mxu0 %v2641
        %v2815 = vpop.f32.mrb[0].mxu0
        %v2816 = vadd.f32 0.0, %v2815
        %v2817 = vpop.f32.mrb[0].mxu0
        %2818 = vmatprep.mubr.f32.mxu0 %v2644
        %2819 = vmatmul.mubr.f32.gmra.mrb[0].mxu0 %v2643
        %v2820 = vpop.f32.mrb[0].mxu0
        %v2821 = vadd.f32 0.0, %v2820
        %v2822 = vpop.f32.mrb[0].mxu0
        %2823 = vmatprep.mubr.f32.mxu0 %v2646
        %2824 = vmatmul.mubr.f32.gmra.mrb[0].mxu0 %v2645
        %v2825 = vpop.f32.mrb[0].mxu0
        %v2826 = vadd.f32 0.0, %v2825
        %v2827 = vpop.f32.mrb[0].mxu0
        %2828 = vmatprep.mubr.f32.mxu0 %v2648
        %2829 = vmatmul.mubr.f32.gmra.mrb[0].mxu0 %v2647
        %v2830 = vpop.f32.mrb[0].mxu0
        %v2831 = vadd.f32 0.0, %v2830
        %v2832 = vpop.f32.mrb[0].mxu0
        %2833 = vmatprep.mubr.f32.mxu0 %v2650
        %2834 = vmatmul.mubr.f32.gmra.mrb[0].mxu0 %v2649
        %v2835 = vpop.f32.mrb[0].mxu0
        %v2836 = vadd.f32 0.0, %v2835
        %v2837 = vpop.f32.mrb[0].mxu0
        %2838 = vmatprep.mubr.f32.mxu0 %v2652
        %2839 = vmatmul.mubr.f32.gmra.mrb[0].mxu0 %v2651
        %v2840 = vpop.f32.mrb[0].mxu0
        %v2841 = vadd.f32 0.0, %v2840
        %v2842 = vpop.f32.mrb[0].mxu0
        %2843 = vmatprep.mubr.f32.mxu0 %v2654
        %2844 = vmatmul.mubr.f32.gmra.mrb[0].mxu0 %v2653
        %v2845 = vpop.f32.mrb[0].mxu0
        %v2846 = vadd.f32 0.0, %v2845
        %v2847 = vpop.f32.mrb[0].mxu0
        %2848 = vmatprep.mubr.f32.mxu0 %v2656
        %2849 = vmatmul.mubr.f32.gmra.mrb[0].mxu0 %v2655
        %v2850 = vpop.f32.mrb[0].mxu0
        %v2851 = vadd.f32 0.0, %v2850
        %v2852 = vpop.f32.mrb[0].mxu0
        %2853 = vmatprep.mubr.f32.mxu0 %v2658
        %2854 = vmatmul.mubr.f32.gmra.mrb[0].mxu0 %v2657
        %v2855 = vpop.f32.mrb[0].mxu0
        %v2856 = vadd.f32 0.0, %v2855
        %v2857 = vpop.f32.mrb[0].mxu0
        %2858 = vmatprep.mubr.f32.mxu0 %v2660
        %2859 = vmatmul.mubr.f32.gmra.mrb[0].mxu0 %v2659
        %v2860 = vpop.f32.mrb[0].mxu0
        %v2861 = vadd.f32 0.0, %v2860
        %v2862 = vpop.f32.mrb[0].mxu0
        %2863 = vmatprep.mubr.f32.mxu0 %v2662
        %2864 = vmatmul.mubr.f32.gmra.mrb[0].mxu0 %v2661
        %v2865 = vpop.f32.mrb[0].mxu0
        %v2866 = vadd.f32 0.0, %v2865
        %v2867 = vpop.f32.mrb[0].mxu0
        %2868 = vmatprep.mubr.f32.mxu0 %v2664
        %2869 = vmatmul.mubr.f32.gmra.mrb[0].mxu0 %v2663
        %v2870 = vpop.f32.mrb[0].mxu0
        %v2871 = vadd.f32 0.0, %v2870
        %v2872 = vpop.f32.mrb[0].mxu0
        %2873 = vmatprep.mubr.f32.mxu0 %v2666
        %2874 = vmatmul.mubr.f32.gmra.mrb[0].mxu0 %v2665
        %v2875 = vpop.f32.mrb[0].mxu0
        %v2876 = vadd.f32 0.0, %v2875
        %v2877 = vpop.f32.mrb[0].mxu0
        %2878 = vmatprep.mubr.f32.mxu0 %v2668
        %2879 = vmatmul.mubr.f32.gmra.mrb[0].mxu0 %v2667
        %v2880 = vpop.f32.mrb[0].mxu0
        %v2881 = vadd.f32 0.0, %v2880
        %v2882 = vpop.f32.mrb[0].mxu0
        %2883 = vmatprep.mubr.f32.mxu0 %v2670
        %2884 = vmatmul.mubr.f32.gmra.mrb[0].mxu0 %v2669
        %v2885 = vpop.f32.mrb[0].mxu0
        %v2886 = vadd.f32 0.0, %v2885
        %v2887 = vpop.f32.mrb[0].mxu0
        %2888 = vmatprep.mubr.f32.mxu0 %v2672
        %2889 = vmatmul.mubr.f32.gmra.mrb[0].mxu0 %v2671
        %v2890 = vpop.f32.mrb[0].mxu0
        %v2891 = vadd.f32 0.0, %v2890
        %v2892 = vpop.f32.mrb[0].mxu0
        %2893 = vmatprep.mubr.f32.mxu0 %v2674
        %2894 = vmatmul.mubr.f32.gmra.mrb[0].mxu0 %v2673
        %v2895 = vpop.f32.mrb[0].mxu0
        %v2896 = vadd.f32 0.0, %v2895
        %v2897 = vpop.f32.mrb[0].mxu0
        %2898 = vmatprep.mubr.f32.mxu0 %v2676
        %2899 = vmatmul.mubr.f32.gmra.mrb[0].mxu0 %v2675
        %v2900 = vpop.f32.mrb[0].mxu0
        %v2901 = vadd.f32 0.0, %v2900
        %v2902 = vpop.f32.mrb[0].mxu0
        %2903 = vmatprep.mubr.f32.mxu0 %v2678
        %2904 = vmatmul.mubr.f32.gmra.mrb[0].mxu0 %v2677
        %v2905 = vpop.f32.mrb[0].mxu0
        %v2906 = vadd.f32 0.0, %v2905
        %v2907 = vpop.f32.mrb[0].mxu0
        %2908 = vmatprep.mubr.f32.mxu0 %v2680
        %2909 = vmatmul.mubr.f32.gmra.mrb[0].mxu0 %v2679
        %v2910 = vpop.f32.mrb[0].mxu0
        %v2911 = vadd.f32 0.0, %v2910
        %v2912 = vpop.f32.mrb[0].mxu0
        %2913 = vmatprep.mubr.f32.mxu0 %v2682
        %2914 = vmatmul.mubr.f32.gmra.mrb[0].mxu0 %v2681
        %v2915 = vpop.f32.mrb[0].mxu0
        %v2916 = vadd.f32 0.0, %v2915
        %v2917 = vpop.f32.mrb[0].mxu0
        %2918 = vmatprep.mubr.f32.mxu0 %v2684
        %2919 = vmatmul.mubr.f32.gmra.mrb[0].mxu0 %v2683
        %v2920 = vpop.f32.mrb[0].mxu0
        %v2921 = vadd.f32 0.0, %v2920
        %v2922 = vpop.f32.mrb[0].mxu0
        %2923 = vmatprep.mubr.f32.mxu0 %v2686
        %2924 = vmatmul.mubr.f32.gmra.mrb[0].mxu0 %v2685
        %v2925 = vpop.f32.mrb[0].mxu0
        %v2926 = vadd.f32 0.0, %v2925
        %v2927 = vpop.f32.mrb[0].mxu0
        %2928 = vmatprep.mubr.f32.mxu0 %v2688
        %2929 = vmatmul.mubr.f32.gmra.mrb[0].mxu0 %v2687
        %v2930 = vpop.f32.mrb[0].mxu0
        %v2931 = vadd.f32 0.0, %v2930
        %v2932 = vpop.f32.mrb[0].mxu0
        %2933 = vmatprep.mubr.f32.mxu0 %v2690
        %2934 = vmatmul.mubr.f32.gmra.mrb[0].mxu0 %v2689
        %v2935 = vpop.f32.mrb[0].mxu0
        %v2936 = vadd.f32 0.0, %v2935
        %v2937 = vpop.f32.mrb[0].mxu0
        %2938 = vmatprep.mubr.f32.mxu0 %v2692
        %2939 = vmatmul.mubr.f32.gmra.mrb[0].mxu0 %v2691
        %v2940 = vpop.f32.mrb[0].mxu0
        %v2941 = vadd.f32 0.0, %v2940
        %v2942 = vpop.f32.mrb[0].mxu0
        %2943 = vmatprep.mubr.f32.mxu0 %v2694
        %2944 = vmatmul.mubr.f32.gmra.mrb[0].mxu0 %v2693
        %v2945 = vpop.f32.mrb[0].mxu0
        %v2946 = vadd.f32 0.0, %v2945
        %v2947 = vpop.f32.mrb[0].mxu0
        %2948 = vmatprep.mubr.f32.mxu0 %v2696
        %2949 = vmatmul.mubr.f32.gmra.mrb[0].mxu0 %v2695
        %v2950 = vpop.f32.mrb[0].mxu0
        %v2951 = vadd.f32 0.0, %v2950
        %v2952 = vpop.f32.mrb[0].mxu0
        %2953 = vdwg.mxu0
        %v2954 = vadd.f32 %v2601, %v2796
        %v2955 = vadd.f32 %v2602, %v2801
        %v2956 = vadd.f32 %v2603, %v2806
        %v2957 = vadd.f32 %v2604, %v2811
        %v2958 = vadd.f32 %v2605, %v2816
        %v2959 = vadd.f32 %v2606, %v2821
        %v2960 = vadd.f32 %v2607, %v2826
        %v2961 = vadd.f32 %v2608, %v2831
        %v2962 = vadd.f32 %v2609, %v2836
        %v2963 = vadd.f32 %v2610, %v2841
        %v2964 = vadd.f32 %v2611, %v2846
        %v2965 = vadd.f32 %v2612, %v2851
        %v2966 = vadd.f32 %v2613, %v2856
        %v2967 = vadd.f32 %v2614, %v2861
        %v2968 = vadd.f32 %v2615, %v2866
        %v2969 = vadd.f32 %v2616, %v2871
        %v2970 = vadd.f32 %v2617, %v2876
        %v2971 = vadd.f32 %v2618, %v2881
        %v2972 = vadd.f32 %v2619, %v2886
        %v2973 = vadd.f32 %v2620, %v2891
        %v2974 = vadd.f32 %v2621, %v2896
        %v2975 = vadd.f32 %v2622, %v2901
        %v2976 = vadd.f32 %v2623, %v2906
        %v2977 = vadd.f32 %v2624, %v2911
        %v2978 = vadd.f32 %v2625, %v2916
        %v2979 = vadd.f32 %v2626, %v2921
        %v2980 = vadd.f32 %v2627, %v2926
        %v2981 = vadd.f32 %v2628, %v2931
        %v2982 = vadd.f32 %v2629, %v2936
        %v2983 = vadd.f32 %v2630, %v2941
        %v2984 = vadd.f32 %v2631, %v2946
        %v2985 = vadd.f32 %v2632, %v2951
        %v2986 = vld [vmem:[%s771] sm:$0xfe]
        %v2987 = vld [vmem:[%s771 + $0x8] sm:$0xfe]
        %v2988 = vld [vmem:[%s771 + $0x10] sm:$0xff]
        %v2989 = vld [vmem:[%s771 + $0x18] sm:$0xff]
        %v2990 = vld [vmem:[%s771 + $0x20] sm:$0x1]
        %v2991 = vld [vmem:[%s771 + $0x28] sm:$0x1]
        %v2992 = vld [vmem:[%s771 + $0x30] sm:$0xfe]
        %v2993 = vld [vmem:[%s771 + $0x38] sm:$0xfe]
        %v2994 = vld [vmem:[%s771 + $0x40] sm:$0xff]
        %v2995 = vld [vmem:[%s771 + $0x48] sm:$0xff]
        %v2996 = vld [vmem:[%s771 + $0x50] sm:$0x1]
        %v2997 = vld [vmem:[%s771 + $0x58] sm:$0x1]
        %v2998 = vld [vmem:[%s771 + $0x60] sm:$0xfe]
        %v2999 = vld [vmem:[%s771 + $0x68] sm:$0xfe]
        %v3000 = vld [vmem:[%s771 + $0x70] sm:$0xff]
        %v3001 = vld [vmem:[%s771 + $0x78] sm:$0xff]
        %v3002 = vld [vmem:[%s771 + $0x80] sm:$0x1]
        %v3003 = vld [vmem:[%s771 + $0x88] sm:$0x1]
        %v3004 = vld [vmem:[%s771 + $0x90] sm:$0xfe]
        %v3005 = vld [vmem:[%s771 + $0x98] sm:$0xfe]
        %v3006 = vld [vmem:[%s771 + $0xa0] sm:$0xff]
        %v3007 = vld [vmem:[%s771 + $0xa8] sm:$0xff]
        %v3008 = vld [vmem:[%s771 + $0xb0] sm:$0x1]
        %v3009 = vld [vmem:[%s771 + $0xb8] sm:$0x1]
        %v3010 = vld [vmem:[%s771 + $0xc0] sm:$0xfe]
        %v3011 = vld [vmem:[%s771 + $0xc8] sm:$0xfe]
        %v3012 = vld [vmem:[%s771 + $0xd0] sm:$0xff]
        %v3013 = vld [vmem:[%s771 + $0xd8] sm:$0xff]
        %v3014 = vld [vmem:[%s771 + $0xe0] sm:$0x1]
        %v3015 = vld [vmem:[%s771 + $0xe8] sm:$0x1]
        %v3016 = vld [vmem:[%s771 + $0xf0] sm:$0xfe]
        %v3017 = vld [vmem:[%s771 + $0xf8] sm:$0xfe]
        %v3018 = vld [vmem:[%s771 + $0x100] sm:$0xff]
        %v3019 = vld [vmem:[%s771 + $0x108] sm:$0xff]
        %v3020 = vld [vmem:[%s771 + $0x110] sm:$0x1]
        %v3021 = vld [vmem:[%s771 + $0x118] sm:$0x1]
        %v3022 = vld [vmem:[%s771 + $0x120] sm:$0xfe]
        %v3023 = vld [vmem:[%s771 + $0x128] sm:$0xfe]
        %v3024 = vld [vmem:[%s771 + $0x130] sm:$0xff]
        %v3025 = vld [vmem:[%s771 + $0x138] sm:$0xff]
        %v3026 = vld [vmem:[%s771 + $0x140] sm:$0x1]
        %v3027 = vld [vmem:[%s771 + $0x148] sm:$0x1]
        %v3028 = vld [vmem:[%s771 + $0x150] sm:$0xfe]
        %v3029 = vld [vmem:[%s771 + $0x158] sm:$0xfe]
        %v3030 = vld [vmem:[%s771 + $0x160] sm:$0xff]
        %v3031 = vld [vmem:[%s771 + $0x168] sm:$0xff]
        %v3032 = vld [vmem:[%s771 + $0x170] sm:$0x1]
        %v3033 = vld [vmem:[%s771 + $0x178] sm:$0x1]
        %v3034 = vld [vmem:[%s771 + $0x180] sm:$0xfe]
        %v3035 = vld [vmem:[%s771 + $0x188] sm:$0xfe]
        %v3036 = vld [vmem:[%s771 + $0x190] sm:$0xff]
        %v3037 = vld [vmem:[%s771 + $0x198] sm:$0xff]
        %v3038 = vld [vmem:[%s771 + $0x1a0] sm:$0x1]
        %v3039 = vld [vmem:[%s771 + $0x1a8] sm:$0x1]
        %v3040 = vld [vmem:[%s771 + $0x1b0] sm:$0xfe]
        %v3041 = vld [vmem:[%s771 + $0x1b8] sm:$0xfe]
        %v3042 = vld [vmem:[%s771 + $0x1c0] sm:$0xff]
        %v3043 = vld [vmem:[%s771 + $0x1c8] sm:$0xff]
        %v3044 = vld [vmem:[%s771 + $0x1d0] sm:$0x1]
        %v3045 = vld [vmem:[%s771 + $0x1d8] sm:$0x1]
        %v3046 = vld [vmem:[%s771 + $0x1e0] sm:$0xfe]
        %v3047 = vld [vmem:[%s771 + $0x1e8] sm:$0xfe]
        %v3048 = vld [vmem:[%s771 + $0x1f0] sm:$0xff]
        %v3049 = vld [vmem:[%s771 + $0x1f8] sm:$0xff]
        %v3050 = vld [vmem:[%s771 + $0x200] sm:$0x1]
        %v3051 = vld [vmem:[%s771 + $0x208] sm:$0x1]
        %v3052 = vld [vmem:[%s771 + $0x210] sm:$0xfe]
        %v3053 = vld [vmem:[%s771 + $0x218] sm:$0xfe]
        %v3054 = vld [vmem:[%s771 + $0x220] sm:$0xff]
        %v3055 = vld [vmem:[%s771 + $0x228] sm:$0xff]
        %v3056 = vld [vmem:[%s771 + $0x230] sm:$0x1]
        %v3057 = vld [vmem:[%s771 + $0x238] sm:$0x1]
        %v3058 = vld [vmem:[%s771 + $0x240] sm:$0xfe]
        %v3059 = vld [vmem:[%s771 + $0x248] sm:$0xfe]
        %v3060 = vld [vmem:[%s771 + $0x250] sm:$0xff]
        %v3061 = vld [vmem:[%s771 + $0x258] sm:$0xff]
        %v3062 = vld [vmem:[%s771 + $0x260] sm:$0x1]
        %v3063 = vld [vmem:[%s771 + $0x268] sm:$0x1]
        %v3064 = vld [vmem:[%s771 + $0x270] sm:$0xfe]
        %v3065 = vld [vmem:[%s771 + $0x278] sm:$0xfe]
        %v3066 = vld [vmem:[%s771 + $0x280] sm:$0xff]
        %v3067 = vld [vmem:[%s771 + $0x288] sm:$0xff]
        %v3068 = vld [vmem:[%s771 + $0x290] sm:$0x1]
        %v3069 = vld [vmem:[%s771 + $0x298] sm:$0x1]
        %v3070 = vld [vmem:[%s771 + $0x2a0] sm:$0xfe]
        %v3071 = vld [vmem:[%s771 + $0x2a8] sm:$0xfe]
        %v3072 = vld [vmem:[%s771 + $0x2b0] sm:$0xff]
        %v3073 = vld [vmem:[%s771 + $0x2b8] sm:$0xff]
        %v3074 = vld [vmem:[%s771 + $0x2c0] sm:$0x1]
        %v3075 = vld [vmem:[%s771 + $0x2c8] sm:$0x1]
        %v3076 = vld [vmem:[%s771 + $0x2d0] sm:$0xfe]
        %v3077 = vld [vmem:[%s771 + $0x2d8] sm:$0xfe]
        %v3078 = vld [vmem:[%s771 + $0x2e0] sm:$0xff]
        %v3079 = vld [vmem:[%s771 + $0x2e8] sm:$0xff]
        %v3080 = vld [vmem:[%s771 + $0x2f0] sm:$0x1]
        %v3081 = vld [vmem:[%s771 + $0x2f8] sm:$0x1]
        %v3178 = vrot.slane %v2986, 1
        %v3179 = vrot.slane %v2988, 1
        %v3180 = vsel %vm1284, %v3178, %v3179
        %v3181 = vrot.slane %v2987, 1
        %v3182 = vrot.slane %v2989, 1
        %v3183 = vsel %vm1284, %v3181, %v3182
        %v3184 = vrot.slane %v2990, 1
        %v3185 = vsel %vm1284, %v3179, %v3184
        %v3186 = vrot.slane %v2991, 1
        %v3187 = vsel %vm1284, %v3182, %v3186
        %v3188 = vrot.slane %v2992, 1
        %v3189 = vrot.slane %v2994, 1
        %v3190 = vsel %vm1284, %v3188, %v3189
        %v3191 = vrot.slane %v2993, 1
        %v3192 = vrot.slane %v2995, 1
        %v3193 = vsel %vm1284, %v3191, %v3192
        %v3194 = vrot.slane %v2996, 1
        %v3195 = vsel %vm1284, %v3189, %v3194
        %v3196 = vrot.slane %v2997, 1
        %v3197 = vsel %vm1284, %v3192, %v3196
        %v3198 = vrot.slane %v2998, 1
        %v3199 = vrot.slane %v3000, 1
        %v3200 = vsel %vm1284, %v3198, %v3199
        %v3201 = vrot.slane %v2999, 1
        %v3202 = vrot.slane %v3001, 1
        %v3203 = vsel %vm1284, %v3201, %v3202
        %v3204 = vrot.slane %v3002, 1
        %v3205 = vsel %vm1284, %v3199, %v3204
        %v3206 = vrot.slane %v3003, 1
        %v3207 = vsel %vm1284, %v3202, %v3206
        %v3208 = vrot.slane %v3004, 1
        %v3209 = vrot.slane %v3006, 1
        %v3210 = vsel %vm1284, %v3208, %v3209
        %v3211 = vrot.slane %v3005, 1
        %v3212 = vrot.slane %v3007, 1
        %v3213 = vsel %vm1284, %v3211, %v3212
        %v3214 = vrot.slane %v3008, 1
        %v3215 = vsel %vm1284, %v3209, %v3214
        %v3216 = vrot.slane %v3009, 1
        %v3217 = vsel %vm1284, %v3212, %v3216
        %v3218 = vrot.slane %v3010, 1
        %v3219 = vrot.slane %v3012, 1
        %v3220 = vsel %vm1284, %v3218, %v3219
        %v3221 = vrot.slane %v3011, 1
        %v3222 = vrot.slane %v3013, 1
        %v3223 = vsel %vm1284, %v3221, %v3222
        %v3224 = vrot.slane %v3014, 1
        %v3225 = vsel %vm1284, %v3219, %v3224
        %v3226 = vrot.slane %v3015, 1
        %v3227 = vsel %vm1284, %v3222, %v3226
        %v3228 = vrot.slane %v3016, 1
        %v3229 = vrot.slane %v3018, 1
        %v3230 = vsel %vm1284, %v3228, %v3229
        %v3231 = vrot.slane %v3017, 1
        %v3232 = vrot.slane %v3019, 1
        %v3233 = vsel %vm1284, %v3231, %v3232
        %v3234 = vrot.slane %v3020, 1
        %v3235 = vsel %vm1284, %v3229, %v3234
        %v3236 = vrot.slane %v3021, 1
        %v3237 = vsel %vm1284, %v3232, %v3236
        %v3238 = vrot.slane %v3022, 1
        %v3239 = vrot.slane %v3024, 1
        %v3240 = vsel %vm1284, %v3238, %v3239
        %v3241 = vrot.slane %v3023, 1
        %v3242 = vrot.slane %v3025, 1
        %v3243 = vsel %vm1284, %v3241, %v3242
        %v3244 = vrot.slane %v3026, 1
        %v3245 = vsel %vm1284, %v3239, %v3244
        %v3246 = vrot.slane %v3027, 1
        %v3247 = vsel %vm1284, %v3242, %v3246
        %v3248 = vrot.slane %v3028, 1
        %v3249 = vrot.slane %v3030, 1
        %v3250 = vsel %vm1284, %v3248, %v3249
        %v3251 = vrot.slane %v3029, 1
        %v3252 = vrot.slane %v3031, 1
        %v3253 = vsel %vm1284, %v3251, %v3252
        %v3254 = vrot.slane %v3032, 1
        %v3255 = vsel %vm1284, %v3249, %v3254
        %v3256 = vrot.slane %v3033, 1
        %v3257 = vsel %vm1284, %v3252, %v3256
        %v3258 = vrot.slane %v3034, 1
        %v3259 = vrot.slane %v3036, 1
        %v3260 = vsel %vm1284, %v3258, %v3259
        %v3261 = vrot.slane %v3035, 1
        %v3262 = vrot.slane %v3037, 1
        %v3263 = vsel %vm1284, %v3261, %v3262
        %v3264 = vrot.slane %v3038, 1
        %v3265 = vsel %vm1284, %v3259, %v3264
        %v3266 = vrot.slane %v3039, 1
        %v3267 = vsel %vm1284, %v3262, %v3266
        %v3268 = vrot.slane %v3040, 1
        %v3269 = vrot.slane %v3042, 1
        %v3270 = vsel %vm1284, %v3268, %v3269
        %v3271 = vrot.slane %v3041, 1
        %v3272 = vrot.slane %v3043, 1
        %v3273 = vsel %vm1284, %v3271, %v3272
        %v3274 = vrot.slane %v3044, 1
        %v3275 = vsel %vm1284, %v3269, %v3274
        %v3276 = vrot.slane %v3045, 1
        %v3277 = vsel %vm1284, %v3272, %v3276
        %v3278 = vrot.slane %v3046, 1
        %v3279 = vrot.slane %v3048, 1
        %v3280 = vsel %vm1284, %v3278, %v3279
        %v3281 = vrot.slane %v3047, 1
        %v3282 = vrot.slane %v3049, 1
        %v3283 = vsel %vm1284, %v3281, %v3282
        %v3284 = vrot.slane %v3050, 1
        %v3285 = vsel %vm1284, %v3279, %v3284
        %v3286 = vrot.slane %v3051, 1
        %v3287 = vsel %vm1284, %v3282, %v3286
        %v3288 = vrot.slane %v3052, 1
        %v3289 = vrot.slane %v3054, 1
        %v3290 = vsel %vm1284, %v3288, %v3289
        %v3291 = vrot.slane %v3053, 1
        %v3292 = vrot.slane %v3055, 1
        %v3293 = vsel %vm1284, %v3291, %v3292
        %v3294 = vrot.slane %v3056, 1
        %v3295 = vsel %vm1284, %v3289, %v3294
        %v3296 = vrot.slane %v3057, 1
        %v3297 = vsel %vm1284, %v3292, %v3296
        %v3298 = vrot.slane %v3058, 1
        %v3299 = vrot.slane %v3060, 1
        %v3300 = vsel %vm1284, %v3298, %v3299
        %v3301 = vrot.slane %v3059, 1
        %v3302 = vrot.slane %v3061, 1
        %v3303 = vsel %vm1284, %v3301, %v3302
        %v3304 = vrot.slane %v3062, 1
        %v3305 = vsel %vm1284, %v3299, %v3304
        %v3306 = vrot.slane %v3063, 1
        %v3307 = vsel %vm1284, %v3302, %v3306
        %v3308 = vrot.slane %v3064, 1
        %v3309 = vrot.slane %v3066, 1
        %v3310 = vsel %vm1284, %v3308, %v3309
        %v3311 = vrot.slane %v3065, 1
        %v3312 = vrot.slane %v3067, 1
        %v3313 = vsel %vm1284, %v3311, %v3312
        %v3314 = vrot.slane %v3068, 1
        %v3315 = vsel %vm1284, %v3309, %v3314
        %v3316 = vrot.slane %v3069, 1
        %v3317 = vsel %vm1284, %v3312, %v3316
        %v3318 = vrot.slane %v3070, 1
        %v3319 = vrot.slane %v3072, 1
        %v3320 = vsel %vm1284, %v3318, %v3319
        %v3321 = vrot.slane %v3071, 1
        %v3322 = vrot.slane %v3073, 1
        %v3323 = vsel %vm1284, %v3321, %v3322
        %v3324 = vrot.slane %v3074, 1
        %v3325 = vsel %vm1284, %v3319, %v3324
        %v3326 = vrot.slane %v3075, 1
        %v3327 = vsel %vm1284, %v3322, %v3326
        %v3328 = vrot.slane %v3076, 1
        %v3329 = vrot.slane %v3078, 1
        %v3330 = vsel %vm1284, %v3328, %v3329
        %v3331 = vrot.slane %v3077, 1
        %v3332 = vrot.slane %v3079, 1
        %v3333 = vsel %vm1284, %v3331, %v3332
        %v3334 = vrot.slane %v3080, 1
        %v3335 = vsel %vm1284, %v3329, %v3334
        %v3336 = vrot.slane %v3081, 1
        %v3337 = vsel %vm1284, %v3332, %v3336
        %v3402 = vld [vmem:[#allocation9 + $0x400] sm:$0xff]
        %v3403 = vld [vmem:[#allocation9 + $0x408] sm:$0xff]
        %v3404 = vld [vmem:[#allocation9 + $0x410] sm:$0xff]
        %v3405 = vld [vmem:[#allocation9 + $0x418] sm:$0xff]
        %v3406 = vld [vmem:[#allocation9 + $0x420] sm:$0xff]
        %v3407 = vld [vmem:[#allocation9 + $0x428] sm:$0xff]
        %v3408 = vld [vmem:[#allocation9 + $0x430] sm:$0xff]
        %v3409 = vld [vmem:[#allocation9 + $0x438] sm:$0xff]
        %v3410 = vld [vmem:[#allocation9 + $0x440] sm:$0xff]
        %v3411 = vld [vmem:[#allocation9 + $0x448] sm:$0xff]
        %v3412 = vld [vmem:[#allocation9 + $0x450] sm:$0xff]
        %v3413 = vld [vmem:[#allocation9 + $0x458] sm:$0xff]
        %v3414 = vld [vmem:[#allocation9 + $0x460] sm:$0xff]
        %v3415 = vld [vmem:[#allocation9 + $0x468] sm:$0xff]
        %v3416 = vld [vmem:[#allocation9 + $0x470] sm:$0xff]
        %v3417 = vld [vmem:[#allocation9 + $0x478] sm:$0xff]
        %v3418 = vld [vmem:[#allocation9 + $0x480] sm:$0xff]
        %v3419 = vld [vmem:[#allocation9 + $0x488] sm:$0xff]
        %v3420 = vld [vmem:[#allocation9 + $0x490] sm:$0xff]
        %v3421 = vld [vmem:[#allocation9 + $0x498] sm:$0xff]
        %v3422 = vld [vmem:[#allocation9 + $0x4a0] sm:$0xff]
        %v3423 = vld [vmem:[#allocation9 + $0x4a8] sm:$0xff]
        %v3424 = vld [vmem:[#allocation9 + $0x4b0] sm:$0xff]
        %v3425 = vld [vmem:[#allocation9 + $0x4b8] sm:$0xff]
        %v3426 = vld [vmem:[#allocation9 + $0x4c0] sm:$0xff]
        %v3427 = vld [vmem:[#allocation9 + $0x4c8] sm:$0xff]
        %v3428 = vld [vmem:[#allocation9 + $0x4d0] sm:$0xff]
        %v3429 = vld [vmem:[#allocation9 + $0x4d8] sm:$0xff]
        %v3430 = vld [vmem:[#allocation9 + $0x4e0] sm:$0xff]
        %v3431 = vld [vmem:[#allocation9 + $0x4e8] sm:$0xff]
        %v3432 = vld [vmem:[#allocation9 + $0x4f0] sm:$0xff]
        %v3433 = vld [vmem:[#allocation9 + $0x4f8] sm:$0xff]
        %3434 = vmatprep.subr.mxu0 0.0
        %3435 = vmatpush1.msra.mxu0 %v3402
        %3436 = vmatprep.subr.mxu0 0.0
        %3437 = vmatpush1.msra.mxu0 %v3403
        %3438 = vmatprep.subr.mxu0 0.0
        %3439 = vmatpush1.msra.mxu0 %v3404
        %3440 = vmatprep.subr.mxu0 0.0
        %3441 = vmatpush1.msra.mxu0 %v3405
        %3442 = vmatprep.subr.mxu0 0.0
        %3443 = vmatpush1.msra.mxu0 %v3406
        %3444 = vmatprep.subr.mxu0 0.0
        %3445 = vmatpush1.msra.mxu0 %v3407
        %3446 = vmatprep.subr.mxu0 0.0
        %3447 = vmatpush1.msra.mxu0 %v3408
        %3448 = vmatprep.subr.mxu0 0.0
        %3449 = vmatpush1.msra.mxu0 %v3409
        %3450 = vmatprep.subr.mxu0 0.0
        %3451 = vmatpush1.msra.mxu0 %v3410
        %3452 = vmatprep.subr.mxu0 0.0
        %3453 = vmatpush1.msra.mxu0 %v3411
        %3454 = vmatprep.subr.mxu0 0.0
        %3455 = vmatpush1.msra.mxu0 %v3412
        %3456 = vmatprep.subr.mxu0 0.0
        %3457 = vmatpush1.msra.mxu0 %v3413
        %3458 = vmatprep.subr.mxu0 0.0
        %3459 = vmatpush1.msra.mxu0 %v3414
        %3460 = vmatprep.subr.mxu0 0.0
        %3461 = vmatpush1.msra.mxu0 %v3415
        %3462 = vmatprep.subr.mxu0 0.0
        %3463 = vmatpush1.msra.mxu0 %v3416
        %3464 = vmatprep.subr.mxu0 0.0
        %3465 = vmatpush1.msra.mxu0 %v3417
        %3466 = vmatprep.subr.mxu0 0.0
        %3467 = vmatpush1.msra.mxu0 %v3418
        %3468 = vmatprep.subr.mxu0 0.0
        %3469 = vmatpush1.msra.mxu0 %v3419
        %3470 = vmatprep.subr.mxu0 0.0
        %3471 = vmatpush1.msra.mxu0 %v3420
        %3472 = vmatprep.subr.mxu0 0.0
        %3473 = vmatpush1.msra.mxu0 %v3421
        %3474 = vmatprep.subr.mxu0 0.0
        %3475 = vmatpush1.msra.mxu0 %v3422
        %3476 = vmatprep.subr.mxu0 0.0
        %3477 = vmatpush1.msra.mxu0 %v3423
        %3478 = vmatprep.subr.mxu0 0.0
        %3479 = vmatpush1.msra.mxu0 %v3424
        %3480 = vmatprep.subr.mxu0 0.0
        %3481 = vmatpush1.msra.mxu0 %v3425
        %3482 = vmatprep.subr.mxu0 0.0
        %3483 = vmatpush1.msra.mxu0 %v3426
        %3484 = vmatprep.subr.mxu0 0.0
        %3485 = vmatpush1.msra.mxu0 %v3427
        %3486 = vmatprep.subr.mxu0 0.0
        %3487 = vmatpush1.msra.mxu0 %v3428
        %3488 = vmatprep.subr.mxu0 0.0
        %3489 = vmatpush1.msra.mxu0 %v3429
        %3490 = vmatprep.subr.mxu0 0.0
        %3491 = vmatpush1.msra.mxu0 %v3430
        %3492 = vmatprep.subr.mxu0 0.0
        %3493 = vmatpush1.msra.mxu0 %v3431
        %3494 = vmatprep.subr.mxu0 0.0
        %3495 = vmatpush1.msra.mxu0 %v3432
        %3496 = vmatprep.subr.mxu0 0.0
        %3497 = vmatpush1.msra.mxu0 %v3433
        %3498 = vmatprep.mubr.f32.mxu0 %v3183
        %3499 = vmatmul.mubr.f32.gmra.mrb[0].mxu0 %v3180
        %v3500 = vpop.f32.mrb[0].mxu0
        %v3501 = vadd.f32 0.0, %v3500
        %v3502 = vpop.f32.mrb[0].mxu0
        %3503 = vmatprep.mubr.f32.mxu0 %v3187
        %3504 = vmatmul.mubr.f32.gmra.mrb[0].mxu0 %v3185
        %v3505 = vpop.f32.mrb[0].mxu0
        %v3506 = vadd.f32 0.0, %v3505
        %v3507 = vpop.f32.mrb[0].mxu0
        %3508 = vmatprep.mubr.f32.mxu0 %v3193
        %3509 = vmatmul.mubr.f32.gmra.mrb[0].mxu0 %v3190
        %v3510 = vpop.f32.mrb[0].mxu0
        %v3511 = vadd.f32 0.0, %v3510
        %v3512 = vpop.f32.mrb[0].mxu0
        %3513 = vmatprep.mubr.f32.mxu0 %v3197
        %3514 = vmatmul.mubr.f32.gmra.mrb[0].mxu0 %v3195
        %v3515 = vpop.f32.mrb[0].mxu0
        %v3516 = vadd.f32 0.0, %v3515
        %v3517 = vpop.f32.mrb[0].mxu0
        %3518 = vmatprep.mubr.f32.mxu0 %v3203
        %3519 = vmatmul.mubr.f32.gmra.mrb[0].mxu0 %v3200
        %v3520 = vpop.f32.mrb[0].mxu0
        %v3521 = vadd.f32 0.0, %v3520
        %v3522 = vpop.f32.mrb[0].mxu0
        %3523 = vmatprep.mubr.f32.mxu0 %v3207
        %3524 = vmatmul.mubr.f32.gmra.mrb[0].mxu0 %v3205
        %v3525 = vpop.f32.mrb[0].mxu0
        %v3526 = vadd.f32 0.0, %v3525
        %v3527 = vpop.f32.mrb[0].mxu0
        %3528 = vmatprep.mubr.f32.mxu0 %v3213
        %3529 = vmatmul.mubr.f32.gmra.mrb[0].mxu0 %v3210
        %v3530 = vpop.f32.mrb[0].mxu0
        %v3531 = vadd.f32 0.0, %v3530
        %v3532 = vpop.f32.mrb[0].mxu0
        %3533 = vmatprep.mubr.f32.mxu0 %v3217
        %3534 = vmatmul.mubr.f32.gmra.mrb[0].mxu0 %v3215
        %v3535 = vpop.f32.mrb[0].mxu0
        %v3536 = vadd.f32 0.0, %v3535
        %v3537 = vpop.f32.mrb[0].mxu0
        %3538 = vmatprep.mubr.f32.mxu0 %v3223
        %3539 = vmatmul.mubr.f32.gmra.mrb[0].mxu0 %v3220
        %v3540 = vpop.f32.mrb[0].mxu0
        %v3541 = vadd.f32 0.0, %v3540
        %v3542 = vpop.f32.mrb[0].mxu0
        %3543 = vmatprep.mubr.f32.mxu0 %v3227
        %3544 = vmatmul.mubr.f32.gmra.mrb[0].mxu0 %v3225
        %v3545 = vpop.f32.mrb[0].mxu0
        %v3546 = vadd.f32 0.0, %v3545
        %v3547 = vpop.f32.mrb[0].mxu0
        %3548 = vmatprep.mubr.f32.mxu0 %v3233
        %3549 = vmatmul.mubr.f32.gmra.mrb[0].mxu0 %v3230
        %v3550 = vpop.f32.mrb[0].mxu0
        %v3551 = vadd.f32 0.0, %v3550
        %v3552 = vpop.f32.mrb[0].mxu0
        %3553 = vmatprep.mubr.f32.mxu0 %v3237
        %3554 = vmatmul.mubr.f32.gmra.mrb[0].mxu0 %v3235
        %v3555 = vpop.f32.mrb[0].mxu0
        %v3556 = vadd.f32 0.0, %v3555
        %v3557 = vpop.f32.mrb[0].mxu0
        %3558 = vmatprep.mubr.f32.mxu0 %v3243
        %3559 = vmatmul.mubr.f32.gmra.mrb[0].mxu0 %v3240
        %v3560 = vpop.f32.mrb[0].mxu0
        %v3561 = vadd.f32 0.0, %v3560
        %v3562 = vpop.f32.mrb[0].mxu0
        %3563 = vmatprep.mubr.f32.mxu0 %v3247
        %3564 = vmatmul.mubr.f32.gmra.mrb[0].mxu0 %v3245
        %v3565 = vpop.f32.mrb[0].mxu0
        %v3566 = vadd.f32 0.0, %v3565
        %v3567 = vpop.f32.mrb[0].mxu0
        %3568 = vmatprep.mubr.f32.mxu0 %v3253
        %3569 = vmatmul.mubr.f32.gmra.mrb[0].mxu0 %v3250
        %v3570 = vpop.f32.mrb[0].mxu0
        %v3571 = vadd.f32 0.0, %v3570
        %v3572 = vpop.f32.mrb[0].mxu0
        %3573 = vmatprep.mubr.f32.mxu0 %v3257
        %3574 = vmatmul.mubr.f32.gmra.mrb[0].mxu0 %v3255
        %v3575 = vpop.f32.mrb[0].mxu0
        %v3576 = vadd.f32 0.0, %v3575
        %v3577 = vpop.f32.mrb[0].mxu0
        %3578 = vmatprep.mubr.f32.mxu0 %v3263
        %3579 = vmatmul.mubr.f32.gmra.mrb[0].mxu0 %v3260
        %v3580 = vpop.f32.mrb[0].mxu0
        %v3581 = vadd.f32 0.0, %v3580
        %v3582 = vpop.f32.mrb[0].mxu0
        %3583 = vmatprep.mubr.f32.mxu0 %v3267
        %3584 = vmatmul.mubr.f32.gmra.mrb[0].mxu0 %v3265
        %v3585 = vpop.f32.mrb[0].mxu0
        %v3586 = vadd.f32 0.0, %v3585
        %v3587 = vpop.f32.mrb[0].mxu0
        %3588 = vmatprep.mubr.f32.mxu0 %v3273
        %3589 = vmatmul.mubr.f32.gmra.mrb[0].mxu0 %v3270
        %v3590 = vpop.f32.mrb[0].mxu0
        %v3591 = vadd.f32 0.0, %v3590
        %v3592 = vpop.f32.mrb[0].mxu0
        %3593 = vmatprep.mubr.f32.mxu0 %v3277
        %3594 = vmatmul.mubr.f32.gmra.mrb[0].mxu0 %v3275
        %v3595 = vpop.f32.mrb[0].mxu0
        %v3596 = vadd.f32 0.0, %v3595
        %v3597 = vpop.f32.mrb[0].mxu0
        %3598 = vmatprep.mubr.f32.mxu0 %v3283
        %3599 = vmatmul.mubr.f32.gmra.mrb[0].mxu0 %v3280
        %v3600 = vpop.f32.mrb[0].mxu0
        %v3601 = vadd.f32 0.0, %v3600
        %v3602 = vpop.f32.mrb[0].mxu0
        %3603 = vmatprep.mubr.f32.mxu0 %v3287
        %3604 = vmatmul.mubr.f32.gmra.mrb[0].mxu0 %v3285
        %v3605 = vpop.f32.mrb[0].mxu0
        %v3606 = vadd.f32 0.0, %v3605
        %v3607 = vpop.f32.mrb[0].mxu0
        %3608 = vmatprep.mubr.f32.mxu0 %v3293
        %3609 = vmatmul.mubr.f32.gmra.mrb[0].mxu0 %v3290
        %v3610 = vpop.f32.mrb[0].mxu0
        %v3611 = vadd.f32 0.0, %v3610
        %v3612 = vpop.f32.mrb[0].mxu0
        %3613 = vmatprep.mubr.f32.mxu0 %v3297
        %3614 = vmatmul.mubr.f32.gmra.mrb[0].mxu0 %v3295
        %v3615 = vpop.f32.mrb[0].mxu0
        %v3616 = vadd.f32 0.0, %v3615
        %v3617 = vpop.f32.mrb[0].mxu0
        %3618 = vmatprep.mubr.f32.mxu0 %v3303
        %3619 = vmatmul.mubr.f32.gmra.mrb[0].mxu0 %v3300
        %v3620 = vpop.f32.mrb[0].mxu0
        %v3621 = vadd.f32 0.0, %v3620
        %v3622 = vpop.f32.mrb[0].mxu0
        %3623 = vmatprep.mubr.f32.mxu0 %v3307
        %3624 = vmatmul.mubr.f32.gmra.mrb[0].mxu0 %v3305
        %v3625 = vpop.f32.mrb[0].mxu0
        %v3626 = vadd.f32 0.0, %v3625
        %v3627 = vpop.f32.mrb[0].mxu0
        %3628 = vmatprep.mubr.f32.mxu0 %v3313
        %3629 = vmatmul.mubr.f32.gmra.mrb[0].mxu0 %v3310
        %v3630 = vpop.f32.mrb[0].mxu0
        %v3631 = vadd.f32 0.0, %v3630
        %v3632 = vpop.f32.mrb[0].mxu0
        %3633 = vmatprep.mubr.f32.mxu0 %v3317
        %3634 = vmatmul.mubr.f32.gmra.mrb[0].mxu0 %v3315
        %v3635 = vpop.f32.mrb[0].mxu0
        %v3636 = vadd.f32 0.0, %v3635
        %v3637 = vpop.f32.mrb[0].mxu0
        %3638 = vmatprep.mubr.f32.mxu0 %v3323
        %3639 = vmatmul.mubr.f32.gmra.mrb[0].mxu0 %v3320
        %v3640 = vpop.f32.mrb[0].mxu0
        %v3641 = vadd.f32 0.0, %v3640
        %v3642 = vpop.f32.mrb[0].mxu0
        %3643 = vmatprep.mubr.f32.mxu0 %v3327
        %3644 = vmatmul.mubr.f32.gmra.mrb[0].mxu0 %v3325
        %v3645 = vpop.f32.mrb[0].mxu0
        %v3646 = vadd.f32 0.0, %v3645
        %v3647 = vpop.f32.mrb[0].mxu0
        %3648 = vmatprep.mubr.f32.mxu0 %v3333
        %3649 = vmatmul.mubr.f32.gmra.mrb[0].mxu0 %v3330
        %v3650 = vpop.f32.mrb[0].mxu0
        %v3651 = vadd.f32 0.0, %v3650
        %v3652 = vpop.f32.mrb[0].mxu0
        %3653 = vmatprep.mubr.f32.mxu0 %v3337
        %3654 = vmatmul.mubr.f32.gmra.mrb[0].mxu0 %v3335
        %v3655 = vpop.f32.mrb[0].mxu0
        %v3656 = vadd.f32 0.0, %v3655
        %v3657 = vpop.f32.mrb[0].mxu0
        %3658 = vdwg.mxu0
        %v3659 = vadd.f32 %v2954, %v3501
        %v3660 = vadd.f32 %v2955, %v3506
        %v3661 = vadd.f32 %v2956, %v3511
        %v3662 = vadd.f32 %v2957, %v3516
        %v3663 = vadd.f32 %v2958, %v3521
        %v3664 = vadd.f32 %v2959, %v3526
        %v3665 = vadd.f32 %v2960, %v3531
        %v3666 = vadd.f32 %v2961, %v3536
        %v3667 = vadd.f32 %v2962, %v3541
        %v3668 = vadd.f32 %v2963, %v3546
        %v3669 = vadd.f32 %v2964, %v3551
        %v3670 = vadd.f32 %v2965, %v3556
        %v3671 = vadd.f32 %v2966, %v3561
        %v3672 = vadd.f32 %v2967, %v3566
        %v3673 = vadd.f32 %v2968, %v3571
        %v3674 = vadd.f32 %v2969, %v3576
        %v3675 = vadd.f32 %v2970, %v3581
        %v3676 = vadd.f32 %v2971, %v3586
        %v3677 = vadd.f32 %v2972, %v3591
        %v3678 = vadd.f32 %v2973, %v3596
        %v3679 = vadd.f32 %v2974, %v3601
        %v3680 = vadd.f32 %v2975, %v3606
        %v3681 = vadd.f32 %v2976, %v3611
        %v3682 = vadd.f32 %v2977, %v3616
        %v3683 = vadd.f32 %v2978, %v3621
        %v3684 = vadd.f32 %v2979, %v3626
        %v3685 = vadd.f32 %v2980, %v3631
        %v3686 = vadd.f32 %v2981, %v3636
        %v3687 = vadd.f32 %v2982, %v3641
        %v3688 = vadd.f32 %v2983, %v3646
        %v3689 = vadd.f32 %v2984, %v3651
        %v3690 = vadd.f32 %v2985, %v3656
        %v3691 = vld [vmem:[%s771] sm:$0xfc]
        %v3692 = vld [vmem:[%s771 + $0x8] sm:$0xfc]
        %v3693 = vld [vmem:[%s771 + $0x20] sm:$0x3]
        %v3694 = vld [vmem:[%s771 + $0x28] sm:$0x3]
        %v3695 = vld [vmem:[%s771 + $0x30] sm:$0xfc]
        %v3696 = vld [vmem:[%s771 + $0x38] sm:$0xfc]
        %v3697 = vld [vmem:[%s771 + $0x50] sm:$0x3]
        %v3698 = vld [vmem:[%s771 + $0x58] sm:$0x3]
        %v3699 = vld [vmem:[%s771 + $0x60] sm:$0xfc]
        %v3700 = vld [vmem:[%s771 + $0x68] sm:$0xfc]
        %v3701 = vld [vmem:[%s771 + $0x80] sm:$0x3]
        %v3702 = vld [vmem:[%s771 + $0x88] sm:$0x3]
        %v3703 = vld [vmem:[%s771 + $0x90] sm:$0xfc]
        %v3704 = vld [vmem:[%s771 + $0x98] sm:$0xfc]
        %v3705 = vld [vmem:[%s771 + $0xb0] sm:$0x3]
        %v3706 = vld [vmem:[%s771 + $0xb8] sm:$0x3]
        %v3707 = vld [vmem:[%s771 + $0xc0] sm:$0xfc]
        %v3708 = vld [vmem:[%s771 + $0xc8] sm:$0xfc]
        %v3709 = vld [vmem:[%s771 + $0xe0] sm:$0x3]
        %v3710 = vld [vmem:[%s771 + $0xe8] sm:$0x3]
        %v3711 = vld [vmem:[%s771 + $0xf0] sm:$0xfc]
        %v3712 = vld [vmem:[%s771 + $0xf8] sm:$0xfc]
        %v3713 = vld [vmem:[%s771 + $0x110] sm:$0x3]
        %v3714 = vld [vmem:[%s771 + $0x118] sm:$0x3]
        %v3715 = vld [vmem:[%s771 + $0x120] sm:$0xfc]
        %v3716 = vld [vmem:[%s771 + $0x128] sm:$0xfc]
        %v3717 = vld [vmem:[%s771 + $0x140] sm:$0x3]
        %v3718 = vld [vmem:[%s771 + $0x148] sm:$0x3]
        %v3719 = vld [vmem:[%s771 + $0x150] sm:$0xfc]
        %v3720 = vld [vmem:[%s771 + $0x158] sm:$0xfc]
        %v3721 = vld [vmem:[%s771 + $0x170] sm:$0x3]
        %v3722 = vld [vmem:[%s771 + $0x178] sm:$0x3]
        %v3723 = vld [vmem:[%s771 + $0x180] sm:$0xfc]
        %v3724 = vld [vmem:[%s771 + $0x188] sm:$0xfc]
        %v3725 = vld [vmem:[%s771 + $0x1a0] sm:$0x3]
        %v3726 = vld [vmem:[%s771 + $0x1a8] sm:$0x3]
        %v3727 = vld [vmem:[%s771 + $0x1b0] sm:$0xfc]
        %v3728 = vld [vmem:[%s771 + $0x1b8] sm:$0xfc]
        %v3729 = vld [vmem:[%s771 + $0x1d0] sm:$0x3]
        %v3730 = vld [vmem:[%s771 + $0x1d8] sm:$0x3]
        %v3731 = vld [vmem:[%s771 + $0x1e0] sm:$0xfc]
        %v3732 = vld [vmem:[%s771 + $0x1e8] sm:$0xfc]
        %v3733 = vld [vmem:[%s771 + $0x200] sm:$0x3]
        %v3734 = vld [vmem:[%s771 + $0x208] sm:$0x3]
        %v3735 = vld [vmem:[%s771 + $0x210] sm:$0xfc]
        %v3736 = vld [vmem:[%s771 + $0x218] sm:$0xfc]
        %v3737 = vld [vmem:[%s771 + $0x230] sm:$0x3]
        %v3738 = vld [vmem:[%s771 + $0x238] sm:$0x3]
        %v3739 = vld [vmem:[%s771 + $0x240] sm:$0xfc]
        %v3740 = vld [vmem:[%s771 + $0x248] sm:$0xfc]
        %v3741 = vld [vmem:[%s771 + $0x260] sm:$0x3]
        %v3742 = vld [vmem:[%s771 + $0x268] sm:$0x3]
        %v3743 = vld [vmem:[%s771 + $0x270] sm:$0xfc]
        %v3744 = vld [vmem:[%s771 + $0x278] sm:$0xfc]
        %v3745 = vld [vmem:[%s771 + $0x290] sm:$0x3]
        %v3746 = vld [vmem:[%s771 + $0x298] sm:$0x3]
        %v3747 = vld [vmem:[%s771 + $0x2a0] sm:$0xfc]
        %v3748 = vld [vmem:[%s771 + $0x2a8] sm:$0xfc]
        %v3749 = vld [vmem:[%s771 + $0x2c0] sm:$0x3]
        %v3750 = vld [vmem:[%s771 + $0x2c8] sm:$0x3]
        %v3751 = vld [vmem:[%s771 + $0x2d0] sm:$0xfc]
        %v3752 = vld [vmem:[%s771 + $0x2d8] sm:$0xfc]
        %v3753 = vld [vmem:[%s771 + $0x2f0] sm:$0x3]
        %v3754 = vld [vmem:[%s771 + $0x2f8] sm:$0x3]
        %v3819 = vrot.slane %v3691, 2
        %v3820 = vrot.slane %v2988, 2
        %v3821 = vsel %vm2119, %v3819, %v3820
        %v3822 = vrot.slane %v3692, 2
        %v3823 = vrot.slane %v2989, 2
        %v3824 = vsel %vm2119, %v3822, %v3823
        %v3825 = vrot.slane %v3693, 2
        %v3826 = vsel %vm2119, %v3820, %v3825
        %v3827 = vrot.slane %v3694, 2
        %v3828 = vsel %vm2119, %v3823, %v3827
        %v3829 = vrot.slane %v3695, 2
        %v3830 = vrot.slane %v2994, 2
        %v3831 = vsel %vm2119, %v3829, %v3830
        %v3832 = vrot.slane %v3696, 2
        %v3833 = vrot.slane %v2995, 2
        %v3834 = vsel %vm2119, %v3832, %v3833
        %v3835 = vrot.slane %v3697, 2
        %v3836 = vsel %vm2119, %v3830, %v3835
        %v3837 = vrot.slane %v3698, 2
        %v3838 = vsel %vm2119, %v3833, %v3837
        %v3839 = vrot.slane %v3699, 2
        %v3840 = vrot.slane %v3000, 2
        %v3841 = vsel %vm2119, %v3839, %v3840
        %v3842 = vrot.slane %v3700, 2
        %v3843 = vrot.slane %v3001, 2
        %v3844 = vsel %vm2119, %v3842, %v3843
        %v3845 = vrot.slane %v3701, 2
        %v3846 = vsel %vm2119, %v3840, %v3845
        %v3847 = vrot.slane %v3702, 2
        %v3848 = vsel %vm2119, %v3843, %v3847
        %v3849 = vrot.slane %v3703, 2
        %v3850 = vrot.slane %v3006, 2
        %v3851 = vsel %vm2119, %v3849, %v3850
        %v3852 = vrot.slane %v3704, 2
        %v3853 = vrot.slane %v3007, 2
        %v3854 = vsel %vm2119, %v3852, %v3853
        %v3855 = vrot.slane %v3705, 2
        %v3856 = vsel %vm2119, %v3850, %v3855
        %v3857 = vrot.slane %v3706, 2
        %v3858 = vsel %vm2119, %v3853, %v3857
        %v3859 = vrot.slane %v3707, 2
        %v3860 = vrot.slane %v3012, 2
        %v3861 = vsel %vm2119, %v3859, %v3860
        %v3862 = vrot.slane %v3708, 2
        %v3863 = vrot.slane %v3013, 2
        %v3864 = vsel %vm2119, %v3862, %v3863
        %v3865 = vrot.slane %v3709, 2
        %v3866 = vsel %vm2119, %v3860, %v3865
        %v3867 = vrot.slane %v3710, 2
        %v3868 = vsel %vm2119, %v3863, %v3867
        %v3869 = vrot.slane %v3711, 2
        %v3870 = vrot.slane %v3018, 2
        %v3871 = vsel %vm2119, %v3869, %v3870
        %v3872 = vrot.slane %v3712, 2
        %v3873 = vrot.slane %v3019, 2
        %v3874 = vsel %vm2119, %v3872, %v3873
        %v3875 = vrot.slane %v3713, 2
        %v3876 = vsel %vm2119, %v3870, %v3875
        %v3877 = vrot.slane %v3714, 2
        %v3878 = vsel %vm2119, %v3873, %v3877
        %v3879 = vrot.slane %v3715, 2
        %v3880 = vrot.slane %v3024, 2
        %v3881 = vsel %vm2119, %v3879, %v3880
        %v3882 = vrot.slane %v3716, 2
        %v3883 = vrot.slane %v3025, 2
        %v3884 = vsel %vm2119, %v3882, %v3883
        %v3885 = vrot.slane %v3717, 2
        %v3886 = vsel %vm2119, %v3880, %v3885
        %v3887 = vrot.slane %v3718, 2
        %v3888 = vsel %vm2119, %v3883, %v3887
        %v3889 = vrot.slane %v3719, 2
        %v3890 = vrot.slane %v3030, 2
        %v3891 = vsel %vm2119, %v3889, %v3890
        %v3892 = vrot.slane %v3720, 2
        %v3893 = vrot.slane %v3031, 2
        %v3894 = vsel %vm2119, %v3892, %v3893
        %v3895 = vrot.slane %v3721, 2
        %v3896 = vsel %vm2119, %v3890, %v3895
        %v3897 = vrot.slane %v3722, 2
        %v3898 = vsel %vm2119, %v3893, %v3897
        %v3899 = vrot.slane %v3723, 2
        %v3900 = vrot.slane %v3036, 2
        %v3901 = vsel %vm2119, %v3899, %v3900
        %v3902 = vrot.slane %v3724, 2
        %v3903 = vrot.slane %v3037, 2
        %v3904 = vsel %vm2119, %v3902, %v3903
        %v3905 = vrot.slane %v3725, 2
        %v3906 = vsel %vm2119, %v3900, %v3905
        %v3907 = vrot.slane %v3726, 2
        %v3908 = vsel %vm2119, %v3903, %v3907
        %v3909 = vrot.slane %v3727, 2
        %v3910 = vrot.slane %v3042, 2
        %v3911 = vsel %vm2119, %v3909, %v3910
        %v3912 = vrot.slane %v3728, 2
        %v3913 = vrot.slane %v3043, 2
        %v3914 = vsel %vm2119, %v3912, %v3913
        %v3915 = vrot.slane %v3729, 2
        %v3916 = vsel %vm2119, %v3910, %v3915
        %v3917 = vrot.slane %v3730, 2
        %v3918 = vsel %vm2119, %v3913, %v3917
        %v3919 = vrot.slane %v3731, 2
        %v3920 = vrot.slane %v3048, 2
        %v3921 = vsel %vm2119, %v3919, %v3920
        %v3922 = vrot.slane %v3732, 2
        %v3923 = vrot.slane %v3049, 2
        %v3924 = vsel %vm2119, %v3922, %v3923
        %v3925 = vrot.slane %v3733, 2
        %v3926 = vsel %vm2119, %v3920, %v3925
        %v3927 = vrot.slane %v3734, 2
        %v3928 = vsel %vm2119, %v3923, %v3927
        %v3929 = vrot.slane %v3735, 2
        %v3930 = vrot.slane %v3054, 2
        %v3931 = vsel %vm2119, %v3929, %v3930
        %v3932 = vrot.slane %v3736, 2
        %v3933 = vrot.slane %v3055, 2
        %v3934 = vsel %vm2119, %v3932, %v3933
        %v3935 = vrot.slane %v3737, 2
        %v3936 = vsel %vm2119, %v3930, %v3935
        %v3937 = vrot.slane %v3738, 2
        %v3938 = vsel %vm2119, %v3933, %v3937
        %v3939 = vrot.slane %v3739, 2
        %v3940 = vrot.slane %v3060, 2
        %v3941 = vsel %vm2119, %v3939, %v3940
        %v3942 = vrot.slane %v3740, 2
        %v3943 = vrot.slane %v3061, 2
        %v3944 = vsel %vm2119, %v3942, %v3943
        %v3945 = vrot.slane %v3741, 2
        %v3946 = vsel %vm2119, %v3940, %v3945
        %v3947 = vrot.slane %v3742, 2
        %v3948 = vsel %vm2119, %v3943, %v3947
        %v3949 = vrot.slane %v3743, 2
        %v3950 = vrot.slane %v3066, 2
        %v3951 = vsel %vm2119, %v3949, %v3950
        %v3952 = vrot.slane %v3744, 2
        %v3953 = vrot.slane %v3067, 2
        %v3954 = vsel %vm2119, %v3952, %v3953
        %v3955 = vrot.slane %v3745, 2
        %v3956 = vsel %vm2119, %v3950, %v3955
        %v3957 = vrot.slane %v3746, 2
        %v3958 = vsel %vm2119, %v3953, %v3957
        %v3959 = vrot.slane %v3747, 2
        %v3960 = vrot.slane %v3072, 2
        %v3961 = vsel %vm2119, %v3959, %v3960
        %v3962 = vrot.slane %v3748, 2
        %v3963 = vrot.slane %v3073, 2
        %v3964 = vsel %vm2119, %v3962, %v3963
        %v3965 = vrot.slane %v3749, 2
        %v3966 = vsel %vm2119, %v3960, %v3965
        %v3967 = vrot.slane %v3750, 2
        %v3968 = vsel %vm2119, %v3963, %v3967
        %v3969 = vrot.slane %v3751, 2
        %v3970 = vrot.slane %v3078, 2
        %v3971 = vsel %vm2119, %v3969, %v3970
        %v3972 = vrot.slane %v3752, 2
        %v3973 = vrot.slane %v3079, 2
        %v3974 = vsel %vm2119, %v3972, %v3973
        %v3975 = vrot.slane %v3753, 2
        %v3976 = vsel %vm2119, %v3970, %v3975
        %v3977 = vrot.slane %v3754, 2
        %v3978 = vsel %vm2119, %v3973, %v3977
        %v4043 = vld [vmem:[#allocation9 + $0x500] sm:$0xff]
        %v4044 = vld [vmem:[#allocation9 + $0x508] sm:$0xff]
        %v4045 = vld [vmem:[#allocation9 + $0x510] sm:$0xff]
        %v4046 = vld [vmem:[#allocation9 + $0x518] sm:$0xff]
        %v4047 = vld [vmem:[#allocation9 + $0x520] sm:$0xff]
        %v4048 = vld [vmem:[#allocation9 + $0x528] sm:$0xff]
        %v4049 = vld [vmem:[#allocation9 + $0x530] sm:$0xff]
        %v4050 = vld [vmem:[#allocation9 + $0x538] sm:$0xff]
        %v4051 = vld [vmem:[#allocation9 + $0x540] sm:$0xff]
        %v4052 = vld [vmem:[#allocation9 + $0x548] sm:$0xff]
        %v4053 = vld [vmem:[#allocation9 + $0x550] sm:$0xff]
        %v4054 = vld [vmem:[#allocation9 + $0x558] sm:$0xff]
        %v4055 = vld [vmem:[#allocation9 + $0x560] sm:$0xff]
        %v4056 = vld [vmem:[#allocation9 + $0x568] sm:$0xff]
        %v4057 = vld [vmem:[#allocation9 + $0x570] sm:$0xff]
        %v4058 = vld [vmem:[#allocation9 + $0x578] sm:$0xff]
        %v4059 = vld [vmem:[#allocation9 + $0x580] sm:$0xff]
        %v4060 = vld [vmem:[#allocation9 + $0x588] sm:$0xff]
        %v4061 = vld [vmem:[#allocation9 + $0x590] sm:$0xff]
        %v4062 = vld [vmem:[#allocation9 + $0x598] sm:$0xff]
        %v4063 = vld [vmem:[#allocation9 + $0x5a0] sm:$0xff]
        %v4064 = vld [vmem:[#allocation9 + $0x5a8] sm:$0xff]
        %v4065 = vld [vmem:[#allocation9 + $0x5b0] sm:$0xff]
        %v4066 = vld [vmem:[#allocation9 + $0x5b8] sm:$0xff]
        %v4067 = vld [vmem:[#allocation9 + $0x5c0] sm:$0xff]
        %v4068 = vld [vmem:[#allocation9 + $0x5c8] sm:$0xff]
        %v4069 = vld [vmem:[#allocation9 + $0x5d0] sm:$0xff]
        %v4070 = vld [vmem:[#allocation9 + $0x5d8] sm:$0xff]
        %v4071 = vld [vmem:[#allocation9 + $0x5e0] sm:$0xff]
        %v4072 = vld [vmem:[#allocation9 + $0x5e8] sm:$0xff]
        %v4073 = vld [vmem:[#allocation9 + $0x5f0] sm:$0xff]
        %v4074 = vld [vmem:[#allocation9 + $0x5f8] sm:$0xff]
        %4075 = vmatprep.subr.mxu0 0.0
        %4076 = vmatpush1.msra.mxu0 %v4043
        %4077 = vmatprep.subr.mxu0 0.0
        %4078 = vmatpush1.msra.mxu0 %v4044
        %4079 = vmatprep.subr.mxu0 0.0
        %4080 = vmatpush1.msra.mxu0 %v4045
        %4081 = vmatprep.subr.mxu0 0.0
        %4082 = vmatpush1.msra.mxu0 %v4046
        %4083 = vmatprep.subr.mxu0 0.0
        %4084 = vmatpush1.msra.mxu0 %v4047
        %4085 = vmatprep.subr.mxu0 0.0
        %4086 = vmatpush1.msra.mxu0 %v4048
        %4087 = vmatprep.subr.mxu0 0.0
        %4088 = vmatpush1.msra.mxu0 %v4049
        %4089 = vmatprep.subr.mxu0 0.0
        %4090 = vmatpush1.msra.mxu0 %v4050
        %4091 = vmatprep.subr.mxu0 0.0
        %4092 = vmatpush1.msra.mxu0 %v4051
        %4093 = vmatprep.subr.mxu0 0.0
        %4094 = vmatpush1.msra.mxu0 %v4052
        %4095 = vmatprep.subr.mxu0 0.0
        %4096 = vmatpush1.msra.mxu0 %v4053
        %4097 = vmatprep.subr.mxu0 0.0
        %4098 = vmatpush1.msra.mxu0 %v4054
        %4099 = vmatprep.subr.mxu0 0.0
        %4100 = vmatpush1.msra.mxu0 %v4055
        %4101 = vmatprep.subr.mxu0 0.0
        %4102 = vmatpush1.msra.mxu0 %v4056
        %4103 = vmatprep.subr.mxu0 0.0
        %4104 = vmatpush1.msra.mxu0 %v4057
        %4105 = vmatprep.subr.mxu0 0.0
        %4106 = vmatpush1.msra.mxu0 %v4058
        %4107 = vmatprep.subr.mxu0 0.0
        %4108 = vmatpush1.msra.mxu0 %v4059
        %4109 = vmatprep.subr.mxu0 0.0
        %4110 = vmatpush1.msra.mxu0 %v4060
        %4111 = vmatprep.subr.mxu0 0.0
        %4112 = vmatpush1.msra.mxu0 %v4061
        %4113 = vmatprep.subr.mxu0 0.0
        %4114 = vmatpush1.msra.mxu0 %v4062
        %4115 = vmatprep.subr.mxu0 0.0
        %4116 = vmatpush1.msra.mxu0 %v4063
        %4117 = vmatprep.subr.mxu0 0.0
        %4118 = vmatpush1.msra.mxu0 %v4064
        %4119 = vmatprep.subr.mxu0 0.0
        %4120 = vmatpush1.msra.mxu0 %v4065
        %4121 = vmatprep.subr.mxu0 0.0
        %4122 = vmatpush1.msra.mxu0 %v4066
        %4123 = vmatprep.subr.mxu0 0.0
        %4124 = vmatpush1.msra.mxu0 %v4067
        %4125 = vmatprep.subr.mxu0 0.0
        %4126 = vmatpush1.msra.mxu0 %v4068
        %4127 = vmatprep.subr.mxu0 0.0
        %4128 = vmatpush1.msra.mxu0 %v4069
        %4129 = vmatprep.subr.mxu0 0.0
        %4130 = vmatpush1.msra.mxu0 %v4070
        %4131 = vmatprep.subr.mxu0 0.0
        %4132 = vmatpush1.msra.mxu0 %v4071
        %4133 = vmatprep.subr.mxu0 0.0
        %4134 = vmatpush1.msra.mxu0 %v4072
        %4135 = vmatprep.subr.mxu0 0.0
        %4136 = vmatpush1.msra.mxu0 %v4073
        %4137 = vmatprep.subr.mxu0 0.0
        %4138 = vmatpush1.msra.mxu0 %v4074
        %4139 = vmatprep.mubr.f32.mxu0 %v3824
        %4140 = vmatmul.mubr.f32.gmra.mrb[0].mxu0 %v3821
        %v4141 = vpop.f32.mrb[0].mxu0
        %v4142 = vadd.f32 0.0, %v4141
        %v4143 = vpop.f32.mrb[0].mxu0
        %4144 = vmatprep.mubr.f32.mxu0 %v3828
        %4145 = vmatmul.mubr.f32.gmra.mrb[0].mxu0 %v3826
        %v4146 = vpop.f32.mrb[0].mxu0
        %v4147 = vadd.f32 0.0, %v4146
        %v4148 = vpop.f32.mrb[0].mxu0
        %4149 = vmatprep.mubr.f32.mxu0 %v3834
        %4150 = vmatmul.mubr.f32.gmra.mrb[0].mxu0 %v3831
        %v4151 = vpop.f32.mrb[0].mxu0
        %v4152 = vadd.f32 0.0, %v4151
        %v4153 = vpop.f32.mrb[0].mxu0
        %4154 = vmatprep.mubr.f32.mxu0 %v3838
        %4155 = vmatmul.mubr.f32.gmra.mrb[0].mxu0 %v3836
        %v4156 = vpop.f32.mrb[0].mxu0
        %v4157 = vadd.f32 0.0, %v4156
        %v4158 = vpop.f32.mrb[0].mxu0
        %4159 = vmatprep.mubr.f32.mxu0 %v3844
        %4160 = vmatmul.mubr.f32.gmra.mrb[0].mxu0 %v3841
        %v4161 = vpop.f32.mrb[0].mxu0
        %v4162 = vadd.f32 0.0, %v4161
        %v4163 = vpop.f32.mrb[0].mxu0
        %4164 = vmatprep.mubr.f32.mxu0 %v3848
        %4165 = vmatmul.mubr.f32.gmra.mrb[0].mxu0 %v3846
        %v4166 = vpop.f32.mrb[0].mxu0
        %v4167 = vadd.f32 0.0, %v4166
        %v4168 = vpop.f32.mrb[0].mxu0
        %4169 = vmatprep.mubr.f32.mxu0 %v3854
        %4170 = vmatmul.mubr.f32.gmra.mrb[0].mxu0 %v3851
        %v4171 = vpop.f32.mrb[0].mxu0
        %v4172 = vadd.f32 0.0, %v4171
        %v4173 = vpop.f32.mrb[0].mxu0
        %4174 = vmatprep.mubr.f32.mxu0 %v3858
        %4175 = vmatmul.mubr.f32.gmra.mrb[0].mxu0 %v3856
        %v4176 = vpop.f32.mrb[0].mxu0
        %v4177 = vadd.f32 0.0, %v4176
        %v4178 = vpop.f32.mrb[0].mxu0
        %4179 = vmatprep.mubr.f32.mxu0 %v3864
        %4180 = vmatmul.mubr.f32.gmra.mrb[0].mxu0 %v3861
        %v4181 = vpop.f32.mrb[0].mxu0
        %v4182 = vadd.f32 0.0, %v4181
        %v4183 = vpop.f32.mrb[0].mxu0
        %4184 = vmatprep.mubr.f32.mxu0 %v3868
        %4185 = vmatmul.mubr.f32.gmra.mrb[0].mxu0 %v3866
        %v4186 = vpop.f32.mrb[0].mxu0
        %v4187 = vadd.f32 0.0, %v4186
        %v4188 = vpop.f32.mrb[0].mxu0
        %4189 = vmatprep.mubr.f32.mxu0 %v3874
        %4190 = vmatmul.mubr.f32.gmra.mrb[0].mxu0 %v3871
        %v4191 = vpop.f32.mrb[0].mxu0
        %v4192 = vadd.f32 0.0, %v4191
        %v4193 = vpop.f32.mrb[0].mxu0
        %4194 = vmatprep.mubr.f32.mxu0 %v3878
        %4195 = vmatmul.mubr.f32.gmra.mrb[0].mxu0 %v3876
        %v4196 = vpop.f32.mrb[0].mxu0
        %v4197 = vadd.f32 0.0, %v4196
        %v4198 = vpop.f32.mrb[0].mxu0
        %4199 = vmatprep.mubr.f32.mxu0 %v3884
        %4200 = vmatmul.mubr.f32.gmra.mrb[0].mxu0 %v3881
        %v4201 = vpop.f32.mrb[0].mxu0
        %v4202 = vadd.f32 0.0, %v4201
        %v4203 = vpop.f32.mrb[0].mxu0
        %4204 = vmatprep.mubr.f32.mxu0 %v3888
        %4205 = vmatmul.mubr.f32.gmra.mrb[0].mxu0 %v3886
        %v4206 = vpop.f32.mrb[0].mxu0
        %v4207 = vadd.f32 0.0, %v4206
        %v4208 = vpop.f32.mrb[0].mxu0
        %4209 = vmatprep.mubr.f32.mxu0 %v3894
        %4210 = vmatmul.mubr.f32.gmra.mrb[0].mxu0 %v3891
        %v4211 = vpop.f32.mrb[0].mxu0
        %v4212 = vadd.f32 0.0, %v4211
        %v4213 = vpop.f32.mrb[0].mxu0
        %4214 = vmatprep.mubr.f32.mxu0 %v3898
        %4215 = vmatmul.mubr.f32.gmra.mrb[0].mxu0 %v3896
        %v4216 = vpop.f32.mrb[0].mxu0
        %v4217 = vadd.f32 0.0, %v4216
        %v4218 = vpop.f32.mrb[0].mxu0
        %4219 = vmatprep.mubr.f32.mxu0 %v3904
        %4220 = vmatmul.mubr.f32.gmra.mrb[0].mxu0 %v3901
        %v4221 = vpop.f32.mrb[0].mxu0
        %v4222 = vadd.f32 0.0, %v4221
        %v4223 = vpop.f32.mrb[0].mxu0
        %4224 = vmatprep.mubr.f32.mxu0 %v3908
        %4225 = vmatmul.mubr.f32.gmra.mrb[0].mxu0 %v3906
        %v4226 = vpop.f32.mrb[0].mxu0
        %v4227 = vadd.f32 0.0, %v4226
        %v4228 = vpop.f32.mrb[0].mxu0
        %4229 = vmatprep.mubr.f32.mxu0 %v3914
        %4230 = vmatmul.mubr.f32.gmra.mrb[0].mxu0 %v3911
        %v4231 = vpop.f32.mrb[0].mxu0
        %v4232 = vadd.f32 0.0, %v4231
        %v4233 = vpop.f32.mrb[0].mxu0
        %4234 = vmatprep.mubr.f32.mxu0 %v3918
        %4235 = vmatmul.mubr.f32.gmra.mrb[0].mxu0 %v3916
        %v4236 = vpop.f32.mrb[0].mxu0
        %v4237 = vadd.f32 0.0, %v4236
        %v4238 = vpop.f32.mrb[0].mxu0
        %4239 = vmatprep.mubr.f32.mxu0 %v3924
        %4240 = vmatmul.mubr.f32.gmra.mrb[0].mxu0 %v3921
        %v4241 = vpop.f32.mrb[0].mxu0
        %v4242 = vadd.f32 0.0, %v4241
        %v4243 = vpop.f32.mrb[0].mxu0
        %4244 = vmatprep.mubr.f32.mxu0 %v3928
        %4245 = vmatmul.mubr.f32.gmra.mrb[0].mxu0 %v3926
        %v4246 = vpop.f32.mrb[0].mxu0
        %v4247 = vadd.f32 0.0, %v4246
        %v4248 = vpop.f32.mrb[0].mxu0
        %4249 = vmatprep.mubr.f32.mxu0 %v3934
        %4250 = vmatmul.mubr.f32.gmra.mrb[0].mxu0 %v3931
        %v4251 = vpop.f32.mrb[0].mxu0
        %v4252 = vadd.f32 0.0, %v4251
        %v4253 = vpop.f32.mrb[0].mxu0
        %4254 = vmatprep.mubr.f32.mxu0 %v3938
        %4255 = vmatmul.mubr.f32.gmra.mrb[0].mxu0 %v3936
        %v4256 = vpop.f32.mrb[0].mxu0
        %v4257 = vadd.f32 0.0, %v4256
        %v4258 = vpop.f32.mrb[0].mxu0
        %4259 = vmatprep.mubr.f32.mxu0 %v3944
        %4260 = vmatmul.mubr.f32.gmra.mrb[0].mxu0 %v3941
        %v4261 = vpop.f32.mrb[0].mxu0
        %v4262 = vadd.f32 0.0, %v4261
        %v4263 = vpop.f32.mrb[0].mxu0
        %4264 = vmatprep.mubr.f32.mxu0 %v3948
        %4265 = vmatmul.mubr.f32.gmra.mrb[0].mxu0 %v3946
        %v4266 = vpop.f32.mrb[0].mxu0
        %v4267 = vadd.f32 0.0, %v4266
        %v4268 = vpop.f32.mrb[0].mxu0
        %4269 = vmatprep.mubr.f32.mxu0 %v3954
        %4270 = vmatmul.mubr.f32.gmra.mrb[0].mxu0 %v3951
        %v4271 = vpop.f32.mrb[0].mxu0
        %v4272 = vadd.f32 0.0, %v4271
        %v4273 = vpop.f32.mrb[0].mxu0
        %4274 = vmatprep.mubr.f32.mxu0 %v3958
        %4275 = vmatmul.mubr.f32.gmra.mrb[0].mxu0 %v3956
        %v4276 = vpop.f32.mrb[0].mxu0
        %v4277 = vadd.f32 0.0, %v4276
        %v4278 = vpop.f32.mrb[0].mxu0
        %4279 = vmatprep.mubr.f32.mxu0 %v3964
        %4280 = vmatmul.mubr.f32.gmra.mrb[0].mxu0 %v3961
        %v4281 = vpop.f32.mrb[0].mxu0
        %v4282 = vadd.f32 0.0, %v4281
        %v4283 = vpop.f32.mrb[0].mxu0
        %4284 = vmatprep.mubr.f32.mxu0 %v3968
        %4285 = vmatmul.mubr.f32.gmra.mrb[0].mxu0 %v3966
        %v4286 = vpop.f32.mrb[0].mxu0
        %v4287 = vadd.f32 0.0, %v4286
        %v4288 = vpop.f32.mrb[0].mxu0
        %4289 = vmatprep.mubr.f32.mxu0 %v3974
        %4290 = vmatmul.mubr.f32.gmra.mrb[0].mxu0 %v3971
        %v4291 = vpop.f32.mrb[0].mxu0
        %v4292 = vadd.f32 0.0, %v4291
        %v4293 = vpop.f32.mrb[0].mxu0
        %4294 = vmatprep.mubr.f32.mxu0 %v3978
        %4295 = vmatmul.mubr.f32.gmra.mrb[0].mxu0 %v3976
        %v4296 = vpop.f32.mrb[0].mxu0
        %v4297 = vadd.f32 0.0, %v4296
        %v4298 = vpop.f32.mrb[0].mxu0
        %4299 = vdwg.mxu0
        %v4300 = vadd.f32 %v3659, %v4142
        %v4301 = vadd.f32 %v3660, %v4147
        %v4302 = vadd.f32 %v3661, %v4152
        %v4303 = vadd.f32 %v3662, %v4157
        %v4304 = vadd.f32 %v3663, %v4162
        %v4305 = vadd.f32 %v3664, %v4167
        %v4306 = vadd.f32 %v3665, %v4172
        %v4307 = vadd.f32 %v3666, %v4177
        %v4308 = vadd.f32 %v3667, %v4182
        %v4309 = vadd.f32 %v3668, %v4187
        %v4310 = vadd.f32 %v3669, %v4192
        %v4311 = vadd.f32 %v3670, %v4197
        %v4312 = vadd.f32 %v3671, %v4202
        %v4313 = vadd.f32 %v3672, %v4207
        %v4314 = vadd.f32 %v3673, %v4212
        %v4315 = vadd.f32 %v3674, %v4217
        %v4316 = vadd.f32 %v3675, %v4222
        %v4317 = vadd.f32 %v3676, %v4227
        %v4318 = vadd.f32 %v3677, %v4232
        %v4319 = vadd.f32 %v3678, %v4237
        %v4320 = vadd.f32 %v3679, %v4242
        %v4321 = vadd.f32 %v3680, %v4247
        %v4322 = vadd.f32 %v3681, %v4252
        %v4323 = vadd.f32 %v3682, %v4257
        %v4324 = vadd.f32 %v3683, %v4262
        %v4325 = vadd.f32 %v3684, %v4267
        %v4326 = vadd.f32 %v3685, %v4272
        %v4327 = vadd.f32 %v3686, %v4277
        %v4328 = vadd.f32 %v3687, %v4282
        %v4329 = vadd.f32 %v3688, %v4287
        %v4330 = vadd.f32 %v3689, %v4292
        %v4331 = vadd.f32 %v3690, %v4297
        %s4332 = scalar_lea.vmem [#allocation2], 96
        %v4333 = vld [vmem:[%s4332] sm:$0xff]
        %v4334 = vld [vmem:[%s4332 + $0x8] sm:$0xff]
        %v4335 = vld [vmem:[%s4332 + $0x10] sm:$0xff]
        %v4336 = vld [vmem:[%s4332 + $0x18] sm:$0xff]
        %v4337 = vld [vmem:[%s4332 + $0x30] sm:$0xff]
        %v4338 = vld [vmem:[%s4332 + $0x38] sm:$0xff]
        %v4339 = vld [vmem:[%s4332 + $0x40] sm:$0xff]
        %v4340 = vld [vmem:[%s4332 + $0x48] sm:$0xff]
        %v4341 = vld [vmem:[%s4332 + $0x60] sm:$0xff]
        %v4342 = vld [vmem:[%s4332 + $0x68] sm:$0xff]
        %v4343 = vld [vmem:[%s4332 + $0x70] sm:$0xff]
        %v4344 = vld [vmem:[%s4332 + $0x78] sm:$0xff]
        %v4345 = vld [vmem:[%s4332 + $0x90] sm:$0xff]
        %v4346 = vld [vmem:[%s4332 + $0x98] sm:$0xff]
        %v4347 = vld [vmem:[%s4332 + $0xa0] sm:$0xff]
        %v4348 = vld [vmem:[%s4332 + $0xa8] sm:$0xff]
        %v4349 = vld [vmem:[%s4332 + $0xc0] sm:$0xff]
        %v4350 = vld [vmem:[%s4332 + $0xc8] sm:$0xff]
        %v4351 = vld [vmem:[%s4332 + $0xd0] sm:$0xff]
        %v4352 = vld [vmem:[%s4332 + $0xd8] sm:$0xff]
        %v4353 = vld [vmem:[%s4332 + $0xf0] sm:$0xff]
        %v4354 = vld [vmem:[%s4332 + $0xf8] sm:$0xff]
        %v4355 = vld [vmem:[%s4332 + $0x100] sm:$0xff]
        %v4356 = vld [vmem:[%s4332 + $0x108] sm:$0xff]
        %v4357 = vld [vmem:[%s4332 + $0x120] sm:$0xff]
        %v4358 = vld [vmem:[%s4332 + $0x128] sm:$0xff]
        %v4359 = vld [vmem:[%s4332 + $0x130] sm:$0xff]
        %v4360 = vld [vmem:[%s4332 + $0x138] sm:$0xff]
        %v4361 = vld [vmem:[%s4332 + $0x150] sm:$0xff]
        %v4362 = vld [vmem:[%s4332 + $0x158] sm:$0xff]
        %v4363 = vld [vmem:[%s4332 + $0x160] sm:$0xff]
        %v4364 = vld [vmem:[%s4332 + $0x168] sm:$0xff]
        %v4365 = vld [vmem:[%s4332 + $0x180] sm:$0xff]
        %v4366 = vld [vmem:[%s4332 + $0x188] sm:$0xff]
        %v4367 = vld [vmem:[%s4332 + $0x190] sm:$0xff]
        %v4368 = vld [vmem:[%s4332 + $0x198] sm:$0xff]
        %v4369 = vld [vmem:[%s4332 + $0x1b0] sm:$0xff]
        %v4370 = vld [vmem:[%s4332 + $0x1b8] sm:$0xff]
        %v4371 = vld [vmem:[%s4332 + $0x1c0] sm:$0xff]
        %v4372 = vld [vmem:[%s4332 + $0x1c8] sm:$0xff]
        %v4373 = vld [vmem:[%s4332 + $0x1e0] sm:$0xff]
        %v4374 = vld [vmem:[%s4332 + $0x1e8] sm:$0xff]
        %v4375 = vld [vmem:[%s4332 + $0x1f0] sm:$0xff]
        %v4376 = vld [vmem:[%s4332 + $0x1f8] sm:$0xff]
        %v4377 = vld [vmem:[%s4332 + $0x210] sm:$0xff]
        %v4378 = vld [vmem:[%s4332 + $0x218] sm:$0xff]
        %v4379 = vld [vmem:[%s4332 + $0x220] sm:$0xff]
        %v4380 = vld [vmem:[%s4332 + $0x228] sm:$0xff]
        %v4381 = vld [vmem:[%s4332 + $0x240] sm:$0xff]
        %v4382 = vld [vmem:[%s4332 + $0x248] sm:$0xff]
        %v4383 = vld [vmem:[%s4332 + $0x250] sm:$0xff]
        %v4384 = vld [vmem:[%s4332 + $0x258] sm:$0xff]
        %v4385 = vld [vmem:[%s4332 + $0x270] sm:$0xff]
        %v4386 = vld [vmem:[%s4332 + $0x278] sm:$0xff]
        %v4387 = vld [vmem:[%s4332 + $0x280] sm:$0xff]
        %v4388 = vld [vmem:[%s4332 + $0x288] sm:$0xff]
        %v4389 = vld [vmem:[%s4332 + $0x2a0] sm:$0xff]
        %v4390 = vld [vmem:[%s4332 + $0x2a8] sm:$0xff]
        %v4391 = vld [vmem:[%s4332 + $0x2b0] sm:$0xff]
        %v4392 = vld [vmem:[%s4332 + $0x2b8] sm:$0xff]
        %v4393 = vld [vmem:[%s4332 + $0x2d0] sm:$0xff]
        %v4394 = vld [vmem:[%s4332 + $0x2d8] sm:$0xff]
        %v4395 = vld [vmem:[%s4332 + $0x2e0] sm:$0xff]
        %v4396 = vld [vmem:[%s4332 + $0x2e8] sm:$0xff]
        %v4397 = vld [vmem:[#allocation9 + $0x600] sm:$0xff]
        %v4398 = vld [vmem:[#allocation9 + $0x608] sm:$0xff]
        %v4399 = vld [vmem:[#allocation9 + $0x610] sm:$0xff]
        %v4400 = vld [vmem:[#allocation9 + $0x618] sm:$0xff]
        %v4401 = vld [vmem:[#allocation9 + $0x620] sm:$0xff]
        %v4402 = vld [vmem:[#allocation9 + $0x628] sm:$0xff]
        %v4403 = vld [vmem:[#allocation9 + $0x630] sm:$0xff]
        %v4404 = vld [vmem:[#allocation9 + $0x638] sm:$0xff]
        %v4405 = vld [vmem:[#allocation9 + $0x640] sm:$0xff]
        %v4406 = vld [vmem:[#allocation9 + $0x648] sm:$0xff]
        %v4407 = vld [vmem:[#allocation9 + $0x650] sm:$0xff]
        %v4408 = vld [vmem:[#allocation9 + $0x658] sm:$0xff]
        %v4409 = vld [vmem:[#allocation9 + $0x660] sm:$0xff]
        %v4410 = vld [vmem:[#allocation9 + $0x668] sm:$0xff]
        %v4411 = vld [vmem:[#allocation9 + $0x670] sm:$0xff]
        %v4412 = vld [vmem:[#allocation9 + $0x678] sm:$0xff]
        %v4413 = vld [vmem:[#allocation9 + $0x680] sm:$0xff]
        %v4414 = vld [vmem:[#allocation9 + $0x688] sm:$0xff]
        %v4415 = vld [vmem:[#allocation9 + $0x690] sm:$0xff]
        %v4416 = vld [vmem:[#allocation9 + $0x698] sm:$0xff]
        %v4417 = vld [vmem:[#allocation9 + $0x6a0] sm:$0xff]
        %v4418 = vld [vmem:[#allocation9 + $0x6a8] sm:$0xff]
        %v4419 = vld [vmem:[#allocation9 + $0x6b0] sm:$0xff]
        %v4420 = vld [vmem:[#allocation9 + $0x6b8] sm:$0xff]
        %v4421 = vld [vmem:[#allocation9 + $0x6c0] sm:$0xff]
        %v4422 = vld [vmem:[#allocation9 + $0x6c8] sm:$0xff]
        %v4423 = vld [vmem:[#allocation9 + $0x6d0] sm:$0xff]
        %v4424 = vld [vmem:[#allocation9 + $0x6d8] sm:$0xff]
        %v4425 = vld [vmem:[#allocation9 + $0x6e0] sm:$0xff]
        %v4426 = vld [vmem:[#allocation9 + $0x6e8] sm:$0xff]
        %v4427 = vld [vmem:[#allocation9 + $0x6f0] sm:$0xff]
        %v4428 = vld [vmem:[#allocation9 + $0x6f8] sm:$0xff]
        %4429 = vmatprep.subr.mxu0 0.0
        %4430 = vmatpush1.msra.mxu0 %v4397
        %4431 = vmatprep.subr.mxu0 0.0
        %4432 = vmatpush1.msra.mxu0 %v4398
        %4433 = vmatprep.subr.mxu0 0.0
        %4434 = vmatpush1.msra.mxu0 %v4399
        %4435 = vmatprep.subr.mxu0 0.0
        %4436 = vmatpush1.msra.mxu0 %v4400
        %4437 = vmatprep.subr.mxu0 0.0
        %4438 = vmatpush1.msra.mxu0 %v4401
        %4439 = vmatprep.subr.mxu0 0.0
        %4440 = vmatpush1.msra.mxu0 %v4402
        %4441 = vmatprep.subr.mxu0 0.0
        %4442 = vmatpush1.msra.mxu0 %v4403
        %4443 = vmatprep.subr.mxu0 0.0
        %4444 = vmatpush1.msra.mxu0 %v4404
        %4445 = vmatprep.subr.mxu0 0.0
        %4446 = vmatpush1.msra.mxu0 %v4405
        %4447 = vmatprep.subr.mxu0 0.0
        %4448 = vmatpush1.msra.mxu0 %v4406
        %4449 = vmatprep.subr.mxu0 0.0
        %4450 = vmatpush1.msra.mxu0 %v4407
        %4451 = vmatprep.subr.mxu0 0.0
        %4452 = vmatpush1.msra.mxu0 %v4408
        %4453 = vmatprep.subr.mxu0 0.0
        %4454 = vmatpush1.msra.mxu0 %v4409
        %4455 = vmatprep.subr.mxu0 0.0
        %4456 = vmatpush1.msra.mxu0 %v4410
        %4457 = vmatprep.subr.mxu0 0.0
        %4458 = vmatpush1.msra.mxu0 %v4411
        %4459 = vmatprep.subr.mxu0 0.0
        %4460 = vmatpush1.msra.mxu0 %v4412
        %4461 = vmatprep.subr.mxu0 0.0
        %4462 = vmatpush1.msra.mxu0 %v4413
        %4463 = vmatprep.subr.mxu0 0.0
        %4464 = vmatpush1.msra.mxu0 %v4414
        %4465 = vmatprep.subr.mxu0 0.0
        %4466 = vmatpush1.msra.mxu0 %v4415
        %4467 = vmatprep.subr.mxu0 0.0
        %4468 = vmatpush1.msra.mxu0 %v4416
        %4469 = vmatprep.subr.mxu0 0.0
        %4470 = vmatpush1.msra.mxu0 %v4417
        %4471 = vmatprep.subr.mxu0 0.0
        %4472 = vmatpush1.msra.mxu0 %v4418
        %4473 = vmatprep.subr.mxu0 0.0
        %4474 = vmatpush1.msra.mxu0 %v4419
        %4475 = vmatprep.subr.mxu0 0.0
        %4476 = vmatpush1.msra.mxu0 %v4420
        %4477 = vmatprep.subr.mxu0 0.0
        %4478 = vmatpush1.msra.mxu0 %v4421
        %4479 = vmatprep.subr.mxu0 0.0
        %4480 = vmatpush1.msra.mxu0 %v4422
        %4481 = vmatprep.subr.mxu0 0.0
        %4482 = vmatpush1.msra.mxu0 %v4423
        %4483 = vmatprep.subr.mxu0 0.0
        %4484 = vmatpush1.msra.mxu0 %v4424
        %4485 = vmatprep.subr.mxu0 0.0
        %4486 = vmatpush1.msra.mxu0 %v4425
        %4487 = vmatprep.subr.mxu0 0.0
        %4488 = vmatpush1.msra.mxu0 %v4426
        %4489 = vmatprep.subr.mxu0 0.0
        %4490 = vmatpush1.msra.mxu0 %v4427
        %4491 = vmatprep.subr.mxu0 0.0
        %4492 = vmatpush1.msra.mxu0 %v4428
        %4493 = vmatprep.mubr.f32.mxu0 %v4334
        %4494 = vmatmul.mubr.f32.gmra.mrb[0].mxu0 %v4333
        %v4495 = vpop.f32.mrb[0].mxu0
        %v4496 = vadd.f32 0.0, %v4495
        %v4497 = vpop.f32.mrb[0].mxu0
        %4498 = vmatprep.mubr.f32.mxu0 %v4336
        %4499 = vmatmul.mubr.f32.gmra.mrb[0].mxu0 %v4335
        %v4500 = vpop.f32.mrb[0].mxu0
        %v4501 = vadd.f32 0.0, %v4500
        %v4502 = vpop.f32.mrb[0].mxu0
        %4503 = vmatprep.mubr.f32.mxu0 %v4338
        %4504 = vmatmul.mubr.f32.gmra.mrb[0].mxu0 %v4337
        %v4505 = vpop.f32.mrb[0].mxu0
        %v4506 = vadd.f32 0.0, %v4505
        %v4507 = vpop.f32.mrb[0].mxu0
        %4508 = vmatprep.mubr.f32.mxu0 %v4340
        %4509 = vmatmul.mubr.f32.gmra.mrb[0].mxu0 %v4339
        %v4510 = vpop.f32.mrb[0].mxu0
        %v4511 = vadd.f32 0.0, %v4510
        %v4512 = vpop.f32.mrb[0].mxu0
        %4513 = vmatprep.mubr.f32.mxu0 %v4342
        %4514 = vmatmul.mubr.f32.gmra.mrb[0].mxu0 %v4341
        %v4515 = vpop.f32.mrb[0].mxu0
        %v4516 = vadd.f32 0.0, %v4515
        %v4517 = vpop.f32.mrb[0].mxu0
        %4518 = vmatprep.mubr.f32.mxu0 %v4344
        %4519 = vmatmul.mubr.f32.gmra.mrb[0].mxu0 %v4343
        %v4520 = vpop.f32.mrb[0].mxu0
        %v4521 = vadd.f32 0.0, %v4520
        %v4522 = vpop.f32.mrb[0].mxu0
        %4523 = vmatprep.mubr.f32.mxu0 %v4346
        %4524 = vmatmul.mubr.f32.gmra.mrb[0].mxu0 %v4345
        %v4525 = vpop.f32.mrb[0].mxu0
        %v4526 = vadd.f32 0.0, %v4525
        %v4527 = vpop.f32.mrb[0].mxu0
        %4528 = vmatprep.mubr.f32.mxu0 %v4348
        %4529 = vmatmul.mubr.f32.gmra.mrb[0].mxu0 %v4347
        %v4530 = vpop.f32.mrb[0].mxu0
        %v4531 = vadd.f32 0.0, %v4530
        %v4532 = vpop.f32.mrb[0].mxu0
        %4533 = vmatprep.mubr.f32.mxu0 %v4350
        %4534 = vmatmul.mubr.f32.gmra.mrb[0].mxu0 %v4349
        %v4535 = vpop.f32.mrb[0].mxu0
        %v4536 = vadd.f32 0.0, %v4535
        %v4537 = vpop.f32.mrb[0].mxu0
        %4538 = vmatprep.mubr.f32.mxu0 %v4352
        %4539 = vmatmul.mubr.f32.gmra.mrb[0].mxu0 %v4351
        %v4540 = vpop.f32.mrb[0].mxu0
        %v4541 = vadd.f32 0.0, %v4540
        %v4542 = vpop.f32.mrb[0].mxu0
        %4543 = vmatprep.mubr.f32.mxu0 %v4354
        %4544 = vmatmul.mubr.f32.gmra.mrb[0].mxu0 %v4353
        %v4545 = vpop.f32.mrb[0].mxu0
        %v4546 = vadd.f32 0.0, %v4545
        %v4547 = vpop.f32.mrb[0].mxu0
        %4548 = vmatprep.mubr.f32.mxu0 %v4356
        %4549 = vmatmul.mubr.f32.gmra.mrb[0].mxu0 %v4355
        %v4550 = vpop.f32.mrb[0].mxu0
        %v4551 = vadd.f32 0.0, %v4550
        %v4552 = vpop.f32.mrb[0].mxu0
        %4553 = vmatprep.mubr.f32.mxu0 %v4358
        %4554 = vmatmul.mubr.f32.gmra.mrb[0].mxu0 %v4357
        %v4555 = vpop.f32.mrb[0].mxu0
        %v4556 = vadd.f32 0.0, %v4555
        %v4557 = vpop.f32.mrb[0].mxu0
        %4558 = vmatprep.mubr.f32.mxu0 %v4360
        %4559 = vmatmul.mubr.f32.gmra.mrb[0].mxu0 %v4359
        %v4560 = vpop.f32.mrb[0].mxu0
        %v4561 = vadd.f32 0.0, %v4560
        %v4562 = vpop.f32.mrb[0].mxu0
        %4563 = vmatprep.mubr.f32.mxu0 %v4362
        %4564 = vmatmul.mubr.f32.gmra.mrb[0].mxu0 %v4361
        %v4565 = vpop.f32.mrb[0].mxu0
        %v4566 = vadd.f32 0.0, %v4565
        %v4567 = vpop.f32.mrb[0].mxu0
        %4568 = vmatprep.mubr.f32.mxu0 %v4364
        %4569 = vmatmul.mubr.f32.gmra.mrb[0].mxu0 %v4363
        %v4570 = vpop.f32.mrb[0].mxu0
        %v4571 = vadd.f32 0.0, %v4570
        %v4572 = vpop.f32.mrb[0].mxu0
        %4573 = vmatprep.mubr.f32.mxu0 %v4366
        %4574 = vmatmul.mubr.f32.gmra.mrb[0].mxu0 %v4365
        %v4575 = vpop.f32.mrb[0].mxu0
        %v4576 = vadd.f32 0.0, %v4575
        %v4577 = vpop.f32.mrb[0].mxu0
        %4578 = vmatprep.mubr.f32.mxu0 %v4368
        %4579 = vmatmul.mubr.f32.gmra.mrb[0].mxu0 %v4367
        %v4580 = vpop.f32.mrb[0].mxu0
        %v4581 = vadd.f32 0.0, %v4580
        %v4582 = vpop.f32.mrb[0].mxu0
        %4583 = vmatprep.mubr.f32.mxu0 %v4370
        %4584 = vmatmul.mubr.f32.gmra.mrb[0].mxu0 %v4369
        %v4585 = vpop.f32.mrb[0].mxu0
        %v4586 = vadd.f32 0.0, %v4585
        %v4587 = vpop.f32.mrb[0].mxu0
        %4588 = vmatprep.mubr.f32.mxu0 %v4372
        %4589 = vmatmul.mubr.f32.gmra.mrb[0].mxu0 %v4371
        %v4590 = vpop.f32.mrb[0].mxu0
        %v4591 = vadd.f32 0.0, %v4590
        %v4592 = vpop.f32.mrb[0].mxu0
        %4593 = vmatprep.mubr.f32.mxu0 %v4374
        %4594 = vmatmul.mubr.f32.gmra.mrb[0].mxu0 %v4373
        %v4595 = vpop.f32.mrb[0].mxu0
        %v4596 = vadd.f32 0.0, %v4595
        %v4597 = vpop.f32.mrb[0].mxu0
        %4598 = vmatprep.mubr.f32.mxu0 %v4376
        %4599 = vmatmul.mubr.f32.gmra.mrb[0].mxu0 %v4375
        %v4600 = vpop.f32.mrb[0].mxu0
        %v4601 = vadd.f32 0.0, %v4600
        %v4602 = vpop.f32.mrb[0].mxu0
        %4603 = vmatprep.mubr.f32.mxu0 %v4378
        %4604 = vmatmul.mubr.f32.gmra.mrb[0].mxu0 %v4377
        %v4605 = vpop.f32.mrb[0].mxu0
        %v4606 = vadd.f32 0.0, %v4605
        %v4607 = vpop.f32.mrb[0].mxu0
        %4608 = vmatprep.mubr.f32.mxu0 %v4380
        %4609 = vmatmul.mubr.f32.gmra.mrb[0].mxu0 %v4379
        %v4610 = vpop.f32.mrb[0].mxu0
        %v4611 = vadd.f32 0.0, %v4610
        %v4612 = vpop.f32.mrb[0].mxu0
        %4613 = vmatprep.mubr.f32.mxu0 %v4382
        %4614 = vmatmul.mubr.f32.gmra.mrb[0].mxu0 %v4381
        %v4615 = vpop.f32.mrb[0].mxu0
        %v4616 = vadd.f32 0.0, %v4615
        %v4617 = vpop.f32.mrb[0].mxu0
        %4618 = vmatprep.mubr.f32.mxu0 %v4384
        %4619 = vmatmul.mubr.f32.gmra.mrb[0].mxu0 %v4383
        %v4620 = vpop.f32.mrb[0].mxu0
        %v4621 = vadd.f32 0.0, %v4620
        %v4622 = vpop.f32.mrb[0].mxu0
        %4623 = vmatprep.mubr.f32.mxu0 %v4386
        %4624 = vmatmul.mubr.f32.gmra.mrb[0].mxu0 %v4385
        %v4625 = vpop.f32.mrb[0].mxu0
        %v4626 = vadd.f32 0.0, %v4625
        %v4627 = vpop.f32.mrb[0].mxu0
        %4628 = vmatprep.mubr.f32.mxu0 %v4388
        %4629 = vmatmul.mubr.f32.gmra.mrb[0].mxu0 %v4387
        %v4630 = vpop.f32.mrb[0].mxu0
        %v4631 = vadd.f32 0.0, %v4630
        %v4632 = vpop.f32.mrb[0].mxu0
        %4633 = vmatprep.mubr.f32.mxu0 %v4390
        %4634 = vmatmul.mubr.f32.gmra.mrb[0].mxu0 %v4389
        %v4635 = vpop.f32.mrb[0].mxu0
        %v4636 = vadd.f32 0.0, %v4635
        %v4637 = vpop.f32.mrb[0].mxu0
        %4638 = vmatprep.mubr.f32.mxu0 %v4392
        %4639 = vmatmul.mubr.f32.gmra.mrb[0].mxu0 %v4391
        %v4640 = vpop.f32.mrb[0].mxu0
        %v4641 = vadd.f32 0.0, %v4640
        %v4642 = vpop.f32.mrb[0].mxu0
        %4643 = vmatprep.mubr.f32.mxu0 %v4394
        %4644 = vmatmul.mubr.f32.gmra.mrb[0].mxu0 %v4393
        %v4645 = vpop.f32.mrb[0].mxu0
        %v4646 = vadd.f32 0.0, %v4645
        %v4647 = vpop.f32.mrb[0].mxu0
        %4648 = vmatprep.mubr.f32.mxu0 %v4396
        %4649 = vmatmul.mubr.f32.gmra.mrb[0].mxu0 %v4395
        %v4650 = vpop.f32.mrb[0].mxu0
        %v4651 = vadd.f32 0.0, %v4650
        %v4652 = vpop.f32.mrb[0].mxu0
        %4653 = vdwg.mxu0
        %v4654 = vadd.f32 %v4300, %v4496
        %v4655 = vadd.f32 %v4301, %v4501
        %v4656 = vadd.f32 %v4302, %v4506
        %v4657 = vadd.f32 %v4303, %v4511
        %v4658 = vadd.f32 %v4304, %v4516
        %v4659 = vadd.f32 %v4305, %v4521
        %v4660 = vadd.f32 %v4306, %v4526
        %v4661 = vadd.f32 %v4307, %v4531
        %v4662 = vadd.f32 %v4308, %v4536
        %v4663 = vadd.f32 %v4309, %v4541
        %v4664 = vadd.f32 %v4310, %v4546
        %v4665 = vadd.f32 %v4311, %v4551
        %v4666 = vadd.f32 %v4312, %v4556
        %v4667 = vadd.f32 %v4313, %v4561
        %v4668 = vadd.f32 %v4314, %v4566
        %v4669 = vadd.f32 %v4315, %v4571
        %v4670 = vadd.f32 %v4316, %v4576
        %v4671 = vadd.f32 %v4317, %v4581
        %v4672 = vadd.f32 %v4318, %v4586
        %v4673 = vadd.f32 %v4319, %v4591
        %v4674 = vadd.f32 %v4320, %v4596
        %v4675 = vadd.f32 %v4321, %v4601
        %v4676 = vadd.f32 %v4322, %v4606
        %v4677 = vadd.f32 %v4323, %v4611
        %v4678 = vadd.f32 %v4324, %v4616
        %v4679 = vadd.f32 %v4325, %v4621
        %v4680 = vadd.f32 %v4326, %v4626
        %v4681 = vadd.f32 %v4327, %v4631
        %v4682 = vadd.f32 %v4328, %v4636
        %v4683 = vadd.f32 %v4329, %v4641
        %v4684 = vadd.f32 %v4330, %v4646
        %v4685 = vadd.f32 %v4331, %v4651
        %v4686 = vld [vmem:[%s4332] sm:$0xfe]
        %v4687 = vld [vmem:[%s4332 + $0x8] sm:$0xfe]
        %v4688 = vld [vmem:[%s4332 + $0x10] sm:$0xff]
        %v4689 = vld [vmem:[%s4332 + $0x18] sm:$0xff]
        %v4690 = vld [vmem:[%s4332 + $0x20] sm:$0x1]
        %v4691 = vld [vmem:[%s4332 + $0x28] sm:$0x1]
        %v4692 = vld [vmem:[%s4332 + $0x30] sm:$0xfe]
        %v4693 = vld [vmem:[%s4332 + $0x38] sm:$0xfe]
        %v4694 = vld [vmem:[%s4332 + $0x40] sm:$0xff]
        %v4695 = vld [vmem:[%s4332 + $0x48] sm:$0xff]
        %v4696 = vld [vmem:[%s4332 + $0x50] sm:$0x1]
        %v4697 = vld [vmem:[%s4332 + $0x58] sm:$0x1]
        %v4698 = vld [vmem:[%s4332 + $0x60] sm:$0xfe]
        %v4699 = vld [vmem:[%s4332 + $0x68] sm:$0xfe]
        %v4700 = vld [vmem:[%s4332 + $0x70] sm:$0xff]
        %v4701 = vld [vmem:[%s4332 + $0x78] sm:$0xff]
        %v4702 = vld [vmem:[%s4332 + $0x80] sm:$0x1]
        %v4703 = vld [vmem:[%s4332 + $0x88] sm:$0x1]
        %v4704 = vld [vmem:[%s4332 + $0x90] sm:$0xfe]
        %v4705 = vld [vmem:[%s4332 + $0x98] sm:$0xfe]
        %v4706 = vld [vmem:[%s4332 + $0xa0] sm:$0xff]
        %v4707 = vld [vmem:[%s4332 + $0xa8] sm:$0xff]
        %v4708 = vld [vmem:[%s4332 + $0xb0] sm:$0x1]
        %v4709 = vld [vmem:[%s4332 + $0xb8] sm:$0x1]
        %v4710 = vld [vmem:[%s4332 + $0xc0] sm:$0xfe]
        %v4711 = vld [vmem:[%s4332 + $0xc8] sm:$0xfe]
        %v4712 = vld [vmem:[%s4332 + $0xd0] sm:$0xff]
        %v4713 = vld [vmem:[%s4332 + $0xd8] sm:$0xff]
        %v4714 = vld [vmem:[%s4332 + $0xe0] sm:$0x1]
        %v4715 = vld [vmem:[%s4332 + $0xe8] sm:$0x1]
        %v4716 = vld [vmem:[%s4332 + $0xf0] sm:$0xfe]
        %v4717 = vld [vmem:[%s4332 + $0xf8] sm:$0xfe]
        %v4718 = vld [vmem:[%s4332 + $0x100] sm:$0xff]
        %v4719 = vld [vmem:[%s4332 + $0x108] sm:$0xff]
        %v4720 = vld [vmem:[%s4332 + $0x110] sm:$0x1]
        %v4721 = vld [vmem:[%s4332 + $0x118] sm:$0x1]
        %v4722 = vld [vmem:[%s4332 + $0x120] sm:$0xfe]
        %v4723 = vld [vmem:[%s4332 + $0x128] sm:$0xfe]
        %v4724 = vld [vmem:[%s4332 + $0x130] sm:$0xff]
        %v4725 = vld [vmem:[%s4332 + $0x138] sm:$0xff]
        %v4726 = vld [vmem:[%s4332 + $0x140] sm:$0x1]
        %v4727 = vld [vmem:[%s4332 + $0x148] sm:$0x1]
        %v4728 = vld [vmem:[%s4332 + $0x150] sm:$0xfe]
        %v4729 = vld [vmem:[%s4332 + $0x158] sm:$0xfe]
        %v4730 = vld [vmem:[%s4332 + $0x160] sm:$0xff]
        %v4731 = vld [vmem:[%s4332 + $0x168] sm:$0xff]
        %v4732 = vld [vmem:[%s4332 + $0x170] sm:$0x1]
        %v4733 = vld [vmem:[%s4332 + $0x178] sm:$0x1]
        %v4734 = vld [vmem:[%s4332 + $0x180] sm:$0xfe]
        %v4735 = vld [vmem:[%s4332 + $0x188] sm:$0xfe]
        %v4736 = vld [vmem:[%s4332 + $0x190] sm:$0xff]
        %v4737 = vld [vmem:[%s4332 + $0x198] sm:$0xff]
        %v4738 = vld [vmem:[%s4332 + $0x1a0] sm:$0x1]
        %v4739 = vld [vmem:[%s4332 + $0x1a8] sm:$0x1]
        %v4740 = vld [vmem:[%s4332 + $0x1b0] sm:$0xfe]
        %v4741 = vld [vmem:[%s4332 + $0x1b8] sm:$0xfe]
        %v4742 = vld [vmem:[%s4332 + $0x1c0] sm:$0xff]
        %v4743 = vld [vmem:[%s4332 + $0x1c8] sm:$0xff]
        %v4744 = vld [vmem:[%s4332 + $0x1d0] sm:$0x1]
        %v4745 = vld [vmem:[%s4332 + $0x1d8] sm:$0x1]
        %v4746 = vld [vmem:[%s4332 + $0x1e0] sm:$0xfe]
        %v4747 = vld [vmem:[%s4332 + $0x1e8] sm:$0xfe]
        %v4748 = vld [vmem:[%s4332 + $0x1f0] sm:$0xff]
        %v4749 = vld [vmem:[%s4332 + $0x1f8] sm:$0xff]
        %v4750 = vld [vmem:[%s4332 + $0x200] sm:$0x1]
        %v4751 = vld [vmem:[%s4332 + $0x208] sm:$0x1]
        %v4752 = vld [vmem:[%s4332 + $0x210] sm:$0xfe]
        %v4753 = vld [vmem:[%s4332 + $0x218] sm:$0xfe]
        %v4754 = vld [vmem:[%s4332 + $0x220] sm:$0xff]
        %v4755 = vld [vmem:[%s4332 + $0x228] sm:$0xff]
        %v4756 = vld [vmem:[%s4332 + $0x230] sm:$0x1]
        %v4757 = vld [vmem:[%s4332 + $0x238] sm:$0x1]
        %v4758 = vld [vmem:[%s4332 + $0x240] sm:$0xfe]
        %v4759 = vld [vmem:[%s4332 + $0x248] sm:$0xfe]
        %v4760 = vld [vmem:[%s4332 + $0x250] sm:$0xff]
        %v4761 = vld [vmem:[%s4332 + $0x258] sm:$0xff]
        %v4762 = vld [vmem:[%s4332 + $0x260] sm:$0x1]
        %v4763 = vld [vmem:[%s4332 + $0x268] sm:$0x1]
        %v4764 = vld [vmem:[%s4332 + $0x270] sm:$0xfe]
        %v4765 = vld [vmem:[%s4332 + $0x278] sm:$0xfe]
        %v4766 = vld [vmem:[%s4332 + $0x280] sm:$0xff]
        %v4767 = vld [vmem:[%s4332 + $0x288] sm:$0xff]
        %v4768 = vld [vmem:[%s4332 + $0x290] sm:$0x1]
        %v4769 = vld [vmem:[%s4332 + $0x298] sm:$0x1]
        %v4770 = vld [vmem:[%s4332 + $0x2a0] sm:$0xfe]
        %v4771 = vld [vmem:[%s4332 + $0x2a8] sm:$0xfe]
        %v4772 = vld [vmem:[%s4332 + $0x2b0] sm:$0xff]
        %v4773 = vld [vmem:[%s4332 + $0x2b8] sm:$0xff]
        %v4774 = vld [vmem:[%s4332 + $0x2c0] sm:$0x1]
        %v4775 = vld [vmem:[%s4332 + $0x2c8] sm:$0x1]
        %v4776 = vld [vmem:[%s4332 + $0x2d0] sm:$0xfe]
        %v4777 = vld [vmem:[%s4332 + $0x2d8] sm:$0xfe]
        %v4778 = vld [vmem:[%s4332 + $0x2e0] sm:$0xff]
        %v4779 = vld [vmem:[%s4332 + $0x2e8] sm:$0xff]
        %v4780 = vld [vmem:[%s4332 + $0x2f0] sm:$0x1]
        %v4781 = vld [vmem:[%s4332 + $0x2f8] sm:$0x1]
        %v4878 = vrot.slane %v4686, 1
        %v4879 = vrot.slane %v4688, 1
        %v4880 = vsel %vm1284, %v4878, %v4879
        %v4881 = vrot.slane %v4687, 1
        %v4882 = vrot.slane %v4689, 1
        %v4883 = vsel %vm1284, %v4881, %v4882
        %v4884 = vrot.slane %v4690, 1
        %v4885 = vsel %vm1284, %v4879, %v4884
        %v4886 = vrot.slane %v4691, 1
        %v4887 = vsel %vm1284, %v4882, %v4886
        %v4888 = vrot.slane %v4692, 1
        %v4889 = vrot.slane %v4694, 1
        %v4890 = vsel %vm1284, %v4888, %v4889
        %v4891 = vrot.slane %v4693, 1
        %v4892 = vrot.slane %v4695, 1
        %v4893 = vsel %vm1284, %v4891, %v4892
        %v4894 = vrot.slane %v4696, 1
        %v4895 = vsel %vm1284, %v4889, %v4894
        %v4896 = vrot.slane %v4697, 1
        %v4897 = vsel %vm1284, %v4892, %v4896
        %v4898 = vrot.slane %v4698, 1
        %v4899 = vrot.slane %v4700, 1
        %v4900 = vsel %vm1284, %v4898, %v4899
        %v4901 = vrot.slane %v4699, 1
        %v4902 = vrot.slane %v4701, 1
        %v4903 = vsel %vm1284, %v4901, %v4902
        %v4904 = vrot.slane %v4702, 1
        %v4905 = vsel %vm1284, %v4899, %v4904
        %v4906 = vrot.slane %v4703, 1
        %v4907 = vsel %vm1284, %v4902, %v4906
        %v4908 = vrot.slane %v4704, 1
        %v4909 = vrot.slane %v4706, 1
        %v4910 = vsel %vm1284, %v4908, %v4909
        %v4911 = vrot.slane %v4705, 1
        %v4912 = vrot.slane %v4707, 1
        %v4913 = vsel %vm1284, %v4911, %v4912
        %v4914 = vrot.slane %v4708, 1
        %v4915 = vsel %vm1284, %v4909, %v4914
        %v4916 = vrot.slane %v4709, 1
        %v4917 = vsel %vm1284, %v4912, %v4916
        %v4918 = vrot.slane %v4710, 1
        %v4919 = vrot.slane %v4712, 1
        %v4920 = vsel %vm1284, %v4918, %v4919
        %v4921 = vrot.slane %v4711, 1
        %v4922 = vrot.slane %v4713, 1
        %v4923 = vsel %vm1284, %v4921, %v4922
        %v4924 = vrot.slane %v4714, 1
        %v4925 = vsel %vm1284, %v4919, %v4924
        %v4926 = vrot.slane %v4715, 1
        %v4927 = vsel %vm1284, %v4922, %v4926
        %v4928 = vrot.slane %v4716, 1
        %v4929 = vrot.slane %v4718, 1
        %v4930 = vsel %vm1284, %v4928, %v4929
        %v4931 = vrot.slane %v4717, 1
        %v4932 = vrot.slane %v4719, 1
        %v4933 = vsel %vm1284, %v4931, %v4932
        %v4934 = vrot.slane %v4720, 1
        %v4935 = vsel %vm1284, %v4929, %v4934
        %v4936 = vrot.slane %v4721, 1
        %v4937 = vsel %vm1284, %v4932, %v4936
        %v4938 = vrot.slane %v4722, 1
        %v4939 = vrot.slane %v4724, 1
        %v4940 = vsel %vm1284, %v4938, %v4939
        %v4941 = vrot.slane %v4723, 1
        %v4942 = vrot.slane %v4725, 1
        %v4943 = vsel %vm1284, %v4941, %v4942
        %v4944 = vrot.slane %v4726, 1
        %v4945 = vsel %vm1284, %v4939, %v4944
        %v4946 = vrot.slane %v4727, 1
        %v4947 = vsel %vm1284, %v4942, %v4946
        %v4948 = vrot.slane %v4728, 1
        %v4949 = vrot.slane %v4730, 1
        %v4950 = vsel %vm1284, %v4948, %v4949
        %v4951 = vrot.slane %v4729, 1
        %v4952 = vrot.slane %v4731, 1
        %v4953 = vsel %vm1284, %v4951, %v4952
        %v4954 = vrot.slane %v4732, 1
        %v4955 = vsel %vm1284, %v4949, %v4954
        %v4956 = vrot.slane %v4733, 1
        %v4957 = vsel %vm1284, %v4952, %v4956
        %v4958 = vrot.slane %v4734, 1
        %v4959 = vrot.slane %v4736, 1
        %v4960 = vsel %vm1284, %v4958, %v4959
        %v4961 = vrot.slane %v4735, 1
        %v4962 = vrot.slane %v4737, 1
        %v4963 = vsel %vm1284, %v4961, %v4962
        %v4964 = vrot.slane %v4738, 1
        %v4965 = vsel %vm1284, %v4959, %v4964
        %v4966 = vrot.slane %v4739, 1
        %v4967 = vsel %vm1284, %v4962, %v4966
        %v4968 = vrot.slane %v4740, 1
        %v4969 = vrot.slane %v4742, 1
        %v4970 = vsel %vm1284, %v4968, %v4969
        %v4971 = vrot.slane %v4741, 1
        %v4972 = vrot.slane %v4743, 1
        %v4973 = vsel %vm1284, %v4971, %v4972
        %v4974 = vrot.slane %v4744, 1
        %v4975 = vsel %vm1284, %v4969, %v4974
        %v4976 = vrot.slane %v4745, 1
        %v4977 = vsel %vm1284, %v4972, %v4976
        %v4978 = vrot.slane %v4746, 1
        %v4979 = vrot.slane %v4748, 1
        %v4980 = vsel %vm1284, %v4978, %v4979
        %v4981 = vrot.slane %v4747, 1
        %v4982 = vrot.slane %v4749, 1
        %v4983 = vsel %vm1284, %v4981, %v4982
        %v4984 = vrot.slane %v4750, 1
        %v4985 = vsel %vm1284, %v4979, %v4984
        %v4986 = vrot.slane %v4751, 1
        %v4987 = vsel %vm1284, %v4982, %v4986
        %v4988 = vrot.slane %v4752, 1
        %v4989 = vrot.slane %v4754, 1
        %v4990 = vsel %vm1284, %v4988, %v4989
        %v4991 = vrot.slane %v4753, 1
        %v4992 = vrot.slane %v4755, 1
        %v4993 = vsel %vm1284, %v4991, %v4992
        %v4994 = vrot.slane %v4756, 1
        %v4995 = vsel %vm1284, %v4989, %v4994
        %v4996 = vrot.slane %v4757, 1
        %v4997 = vsel %vm1284, %v4992, %v4996
        %v4998 = vrot.slane %v4758, 1
        %v4999 = vrot.slane %v4760, 1
        %v5000 = vsel %vm1284, %v4998, %v4999
        %v5001 = vrot.slane %v4759, 1
        %v5002 = vrot.slane %v4761, 1
        %v5003 = vsel %vm1284, %v5001, %v5002
        %v5004 = vrot.slane %v4762, 1
        %v5005 = vsel %vm1284, %v4999, %v5004
        %v5006 = vrot.slane %v4763, 1
        %v5007 = vsel %vm1284, %v5002, %v5006
        %v5008 = vrot.slane %v4764, 1
        %v5009 = vrot.slane %v4766, 1
        %v5010 = vsel %vm1284, %v5008, %v5009
        %v5011 = vrot.slane %v4765, 1
        %v5012 = vrot.slane %v4767, 1
        %v5013 = vsel %vm1284, %v5011, %v5012
        %v5014 = vrot.slane %v4768, 1
        %v5015 = vsel %vm1284, %v5009, %v5014
        %v5016 = vrot.slane %v4769, 1
        %v5017 = vsel %vm1284, %v5012, %v5016
        %v5018 = vrot.slane %v4770, 1
        %v5019 = vrot.slane %v4772, 1
        %v5020 = vsel %vm1284, %v5018, %v5019
        %v5021 = vrot.slane %v4771, 1
        %v5022 = vrot.slane %v4773, 1
        %v5023 = vsel %vm1284, %v5021, %v5022
        %v5024 = vrot.slane %v4774, 1
        %v5025 = vsel %vm1284, %v5019, %v5024
        %v5026 = vrot.slane %v4775, 1
        %v5027 = vsel %vm1284, %v5022, %v5026
        %v5028 = vrot.slane %v4776, 1
        %v5029 = vrot.slane %v4778, 1
        %v5030 = vsel %vm1284, %v5028, %v5029
        %v5031 = vrot.slane %v4777, 1
        %v5032 = vrot.slane %v4779, 1
        %v5033 = vsel %vm1284, %v5031, %v5032
        %v5034 = vrot.slane %v4780, 1
        %v5035 = vsel %vm1284, %v5029, %v5034
        %v5036 = vrot.slane %v4781, 1
        %v5037 = vsel %vm1284, %v5032, %v5036
        %v5102 = vld [vmem:[#allocation9 + $0x700] sm:$0xff]
        %v5103 = vld [vmem:[#allocation9 + $0x708] sm:$0xff]
        %v5104 = vld [vmem:[#allocation9 + $0x710] sm:$0xff]
        %v5105 = vld [vmem:[#allocation9 + $0x718] sm:$0xff]
        %v5106 = vld [vmem:[#allocation9 + $0x720] sm:$0xff]
        %v5107 = vld [vmem:[#allocation9 + $0x728] sm:$0xff]
        %v5108 = vld [vmem:[#allocation9 + $0x730] sm:$0xff]
        %v5109 = vld [vmem:[#allocation9 + $0x738] sm:$0xff]
        %v5110 = vld [vmem:[#allocation9 + $0x740] sm:$0xff]
        %v5111 = vld [vmem:[#allocation9 + $0x748] sm:$0xff]
        %v5112 = vld [vmem:[#allocation9 + $0x750] sm:$0xff]
        %v5113 = vld [vmem:[#allocation9 + $0x758] sm:$0xff]
        %v5114 = vld [vmem:[#allocation9 + $0x760] sm:$0xff]
        %v5115 = vld [vmem:[#allocation9 + $0x768] sm:$0xff]
        %v5116 = vld [vmem:[#allocation9 + $0x770] sm:$0xff]
        %v5117 = vld [vmem:[#allocation9 + $0x778] sm:$0xff]
        %v5118 = vld [vmem:[#allocation9 + $0x780] sm:$0xff]
        %v5119 = vld [vmem:[#allocation9 + $0x788] sm:$0xff]
        %v5120 = vld [vmem:[#allocation9 + $0x790] sm:$0xff]
        %v5121 = vld [vmem:[#allocation9 + $0x798] sm:$0xff]
        %v5122 = vld [vmem:[#allocation9 + $0x7a0] sm:$0xff]
        %v5123 = vld [vmem:[#allocation9 + $0x7a8] sm:$0xff]
        %v5124 = vld [vmem:[#allocation9 + $0x7b0] sm:$0xff]
        %v5125 = vld [vmem:[#allocation9 + $0x7b8] sm:$0xff]
        %v5126 = vld [vmem:[#allocation9 + $0x7c0] sm:$0xff]
        %v5127 = vld [vmem:[#allocation9 + $0x7c8] sm:$0xff]
        %v5128 = vld [vmem:[#allocation9 + $0x7d0] sm:$0xff]
        %v5129 = vld [vmem:[#allocation9 + $0x7d8] sm:$0xff]
        %v5130 = vld [vmem:[#allocation9 + $0x7e0] sm:$0xff]
        %v5131 = vld [vmem:[#allocation9 + $0x7e8] sm:$0xff]
        %v5132 = vld [vmem:[#allocation9 + $0x7f0] sm:$0xff]
        %v5133 = vld [vmem:[#allocation9 + $0x7f8] sm:$0xff]
        %5134 = vmatprep.subr.mxu0 0.0
        %5135 = vmatpush1.msra.mxu0 %v5102
        %5136 = vmatprep.subr.mxu0 0.0
        %5137 = vmatpush1.msra.mxu0 %v5103
        %5138 = vmatprep.subr.mxu0 0.0
        %5139 = vmatpush1.msra.mxu0 %v5104
        %5140 = vmatprep.subr.mxu0 0.0
        %5141 = vmatpush1.msra.mxu0 %v5105
        %5142 = vmatprep.subr.mxu0 0.0
        %5143 = vmatpush1.msra.mxu0 %v5106
        %5144 = vmatprep.subr.mxu0 0.0
        %5145 = vmatpush1.msra.mxu0 %v5107
        %5146 = vmatprep.subr.mxu0 0.0
        %5147 = vmatpush1.msra.mxu0 %v5108
        %5148 = vmatprep.subr.mxu0 0.0
        %5149 = vmatpush1.msra.mxu0 %v5109
        %5150 = vmatprep.subr.mxu0 0.0
        %5151 = vmatpush1.msra.mxu0 %v5110
        %5152 = vmatprep.subr.mxu0 0.0
        %5153 = vmatpush1.msra.mxu0 %v5111
        %5154 = vmatprep.subr.mxu0 0.0
        %5155 = vmatpush1.msra.mxu0 %v5112
        %5156 = vmatprep.subr.mxu0 0.0
        %5157 = vmatpush1.msra.mxu0 %v5113
        %5158 = vmatprep.subr.mxu0 0.0
        %5159 = vmatpush1.msra.mxu0 %v5114
        %5160 = vmatprep.subr.mxu0 0.0
        %5161 = vmatpush1.msra.mxu0 %v5115
        %5162 = vmatprep.subr.mxu0 0.0
        %5163 = vmatpush1.msra.mxu0 %v5116
        %5164 = vmatprep.subr.mxu0 0.0
        %5165 = vmatpush1.msra.mxu0 %v5117
        %5166 = vmatprep.subr.mxu0 0.0
        %5167 = vmatpush1.msra.mxu0 %v5118
        %5168 = vmatprep.subr.mxu0 0.0
        %5169 = vmatpush1.msra.mxu0 %v5119
        %5170 = vmatprep.subr.mxu0 0.0
        %5171 = vmatpush1.msra.mxu0 %v5120
        %5172 = vmatprep.subr.mxu0 0.0
        %5173 = vmatpush1.msra.mxu0 %v5121
        %5174 = vmatprep.subr.mxu0 0.0
        %5175 = vmatpush1.msra.mxu0 %v5122
        %5176 = vmatprep.subr.mxu0 0.0
        %5177 = vmatpush1.msra.mxu0 %v5123
        %5178 = vmatprep.subr.mxu0 0.0
        %5179 = vmatpush1.msra.mxu0 %v5124
        %5180 = vmatprep.subr.mxu0 0.0
        %5181 = vmatpush1.msra.mxu0 %v5125
        %5182 = vmatprep.subr.mxu0 0.0
        %5183 = vmatpush1.msra.mxu0 %v5126
        %5184 = vmatprep.subr.mxu0 0.0
        %5185 = vmatpush1.msra.mxu0 %v5127
        %5186 = vmatprep.subr.mxu0 0.0
        %5187 = vmatpush1.msra.mxu0 %v5128
        %5188 = vmatprep.subr.mxu0 0.0
        %5189 = vmatpush1.msra.mxu0 %v5129
        %5190 = vmatprep.subr.mxu0 0.0
        %5191 = vmatpush1.msra.mxu0 %v5130
        %5192 = vmatprep.subr.mxu0 0.0
        %5193 = vmatpush1.msra.mxu0 %v5131
        %5194 = vmatprep.subr.mxu0 0.0
        %5195 = vmatpush1.msra.mxu0 %v5132
        %5196 = vmatprep.subr.mxu0 0.0
        %5197 = vmatpush1.msra.mxu0 %v5133
        %5198 = vmatprep.mubr.f32.mxu0 %v4883
        %5199 = vmatmul.mubr.f32.gmra.mrb[0].mxu0 %v4880
        %v5200 = vpop.f32.mrb[0].mxu0
        %v5201 = vadd.f32 0.0, %v5200
        %v5202 = vpop.f32.mrb[0].mxu0
        %5203 = vmatprep.mubr.f32.mxu0 %v4887
        %5204 = vmatmul.mubr.f32.gmra.mrb[0].mxu0 %v4885
        %v5205 = vpop.f32.mrb[0].mxu0
        %v5206 = vadd.f32 0.0, %v5205
        %v5207 = vpop.f32.mrb[0].mxu0
        %5208 = vmatprep.mubr.f32.mxu0 %v4893
        %5209 = vmatmul.mubr.f32.gmra.mrb[0].mxu0 %v4890
        %v5210 = vpop.f32.mrb[0].mxu0
        %v5211 = vadd.f32 0.0, %v5210
        %v5212 = vpop.f32.mrb[0].mxu0
        %5213 = vmatprep.mubr.f32.mxu0 %v4897
        %5214 = vmatmul.mubr.f32.gmra.mrb[0].mxu0 %v4895
        %v5215 = vpop.f32.mrb[0].mxu0
        %v5216 = vadd.f32 0.0, %v5215
        %v5217 = vpop.f32.mrb[0].mxu0
        %5218 = vmatprep.mubr.f32.mxu0 %v4903
        %5219 = vmatmul.mubr.f32.gmra.mrb[0].mxu0 %v4900
        %v5220 = vpop.f32.mrb[0].mxu0
        %v5221 = vadd.f32 0.0, %v5220
        %v5222 = vpop.f32.mrb[0].mxu0
        %5223 = vmatprep.mubr.f32.mxu0 %v4907
        %5224 = vmatmul.mubr.f32.gmra.mrb[0].mxu0 %v4905
        %v5225 = vpop.f32.mrb[0].mxu0
        %v5226 = vadd.f32 0.0, %v5225
        %v5227 = vpop.f32.mrb[0].mxu0
        %5228 = vmatprep.mubr.f32.mxu0 %v4913
        %5229 = vmatmul.mubr.f32.gmra.mrb[0].mxu0 %v4910
        %v5230 = vpop.f32.mrb[0].mxu0
        %v5231 = vadd.f32 0.0, %v5230
        %v5232 = vpop.f32.mrb[0].mxu0
        %5233 = vmatprep.mubr.f32.mxu0 %v4917
        %5234 = vmatmul.mubr.f32.gmra.mrb[0].mxu0 %v4915
        %v5235 = vpop.f32.mrb[0].mxu0
        %v5236 = vadd.f32 0.0, %v5235
        %v5237 = vpop.f32.mrb[0].mxu0
        %5238 = vmatprep.mubr.f32.mxu0 %v4923
        %5239 = vmatmul.mubr.f32.gmra.mrb[0].mxu0 %v4920
        %v5240 = vpop.f32.mrb[0].mxu0
        %v5241 = vadd.f32 0.0, %v5240
        %v5242 = vpop.f32.mrb[0].mxu0
        %5243 = vmatprep.mubr.f32.mxu0 %v4927
        %5244 = vmatmul.mubr.f32.gmra.mrb[0].mxu0 %v4925
        %v5245 = vpop.f32.mrb[0].mxu0
        %v5246 = vadd.f32 0.0, %v5245
        %v5247 = vpop.f32.mrb[0].mxu0
        %5248 = vmatprep.mubr.f32.mxu0 %v4933
        %5249 = vmatmul.mubr.f32.gmra.mrb[0].mxu0 %v4930
        %v5250 = vpop.f32.mrb[0].mxu0
        %v5251 = vadd.f32 0.0, %v5250
        %v5252 = vpop.f32.mrb[0].mxu0
        %5253 = vmatprep.mubr.f32.mxu0 %v4937
        %5254 = vmatmul.mubr.f32.gmra.mrb[0].mxu0 %v4935
        %v5255 = vpop.f32.mrb[0].mxu0
        %v5256 = vadd.f32 0.0, %v5255
        %v5257 = vpop.f32.mrb[0].mxu0
        %5258 = vmatprep.mubr.f32.mxu0 %v4943
        %5259 = vmatmul.mubr.f32.gmra.mrb[0].mxu0 %v4940
        %v5260 = vpop.f32.mrb[0].mxu0
        %v5261 = vadd.f32 0.0, %v5260
        %v5262 = vpop.f32.mrb[0].mxu0
        %5263 = vmatprep.mubr.f32.mxu0 %v4947
        %5264 = vmatmul.mubr.f32.gmra.mrb[0].mxu0 %v4945
        %v5265 = vpop.f32.mrb[0].mxu0
        %v5266 = vadd.f32 0.0, %v5265
        %v5267 = vpop.f32.mrb[0].mxu0
        %5268 = vmatprep.mubr.f32.mxu0 %v4953
        %5269 = vmatmul.mubr.f32.gmra.mrb[0].mxu0 %v4950
        %v5270 = vpop.f32.mrb[0].mxu0
        %v5271 = vadd.f32 0.0, %v5270
        %v5272 = vpop.f32.mrb[0].mxu0
        %5273 = vmatprep.mubr.f32.mxu0 %v4957
        %5274 = vmatmul.mubr.f32.gmra.mrb[0].mxu0 %v4955
        %v5275 = vpop.f32.mrb[0].mxu0
        %v5276 = vadd.f32 0.0, %v5275
        %v5277 = vpop.f32.mrb[0].mxu0
        %5278 = vmatprep.mubr.f32.mxu0 %v4963
        %5279 = vmatmul.mubr.f32.gmra.mrb[0].mxu0 %v4960
        %v5280 = vpop.f32.mrb[0].mxu0
        %v5281 = vadd.f32 0.0, %v5280
        %v5282 = vpop.f32.mrb[0].mxu0
        %5283 = vmatprep.mubr.f32.mxu0 %v4967
        %5284 = vmatmul.mubr.f32.gmra.mrb[0].mxu0 %v4965
        %v5285 = vpop.f32.mrb[0].mxu0
        %v5286 = vadd.f32 0.0, %v5285
        %v5287 = vpop.f32.mrb[0].mxu0
        %5288 = vmatprep.mubr.f32.mxu0 %v4973
        %5289 = vmatmul.mubr.f32.gmra.mrb[0].mxu0 %v4970
        %v5290 = vpop.f32.mrb[0].mxu0
        %v5291 = vadd.f32 0.0, %v5290
        %v5292 = vpop.f32.mrb[0].mxu0
        %5293 = vmatprep.mubr.f32.mxu0 %v4977
        %5294 = vmatmul.mubr.f32.gmra.mrb[0].mxu0 %v4975
        %v5295 = vpop.f32.mrb[0].mxu0
        %v5296 = vadd.f32 0.0, %v5295
        %v5297 = vpop.f32.mrb[0].mxu0
        %5298 = vmatprep.mubr.f32.mxu0 %v4983
        %5299 = vmatmul.mubr.f32.gmra.mrb[0].mxu0 %v4980
        %v5300 = vpop.f32.mrb[0].mxu0
        %v5301 = vadd.f32 0.0, %v5300
        %v5302 = vpop.f32.mrb[0].mxu0
        %5303 = vmatprep.mubr.f32.mxu0 %v4987
        %5304 = vmatmul.mubr.f32.gmra.mrb[0].mxu0 %v4985
        %v5305 = vpop.f32.mrb[0].mxu0
        %v5306 = vadd.f32 0.0, %v5305
        %v5307 = vpop.f32.mrb[0].mxu0
        %5308 = vmatprep.mubr.f32.mxu0 %v4993
        %5309 = vmatmul.mubr.f32.gmra.mrb[0].mxu0 %v4990
        %v5310 = vpop.f32.mrb[0].mxu0
        %v5311 = vadd.f32 0.0, %v5310
        %v5312 = vpop.f32.mrb[0].mxu0
        %5313 = vmatprep.mubr.f32.mxu0 %v4997
        %5314 = vmatmul.mubr.f32.gmra.mrb[0].mxu0 %v4995
        %v5315 = vpop.f32.mrb[0].mxu0
        %v5316 = vadd.f32 0.0, %v5315
        %v5317 = vpop.f32.mrb[0].mxu0
        %5318 = vmatprep.mubr.f32.mxu0 %v5003
        %5319 = vmatmul.mubr.f32.gmra.mrb[0].mxu0 %v5000
        %v5320 = vpop.f32.mrb[0].mxu0
        %v5321 = vadd.f32 0.0, %v5320
        %v5322 = vpop.f32.mrb[0].mxu0
        %5323 = vmatprep.mubr.f32.mxu0 %v5007
        %5324 = vmatmul.mubr.f32.gmra.mrb[0].mxu0 %v5005
        %v5325 = vpop.f32.mrb[0].mxu0
        %v5326 = vadd.f32 0.0, %v5325
        %v5327 = vpop.f32.mrb[0].mxu0
        %5328 = vmatprep.mubr.f32.mxu0 %v5013
        %5329 = vmatmul.mubr.f32.gmra.mrb[0].mxu0 %v5010
        %v5330 = vpop.f32.mrb[0].mxu0
        %v5331 = vadd.f32 0.0, %v5330
        %v5332 = vpop.f32.mrb[0].mxu0
        %5333 = vmatprep.mubr.f32.mxu0 %v5017
        %5334 = vmatmul.mubr.f32.gmra.mrb[0].mxu0 %v5015
        %v5335 = vpop.f32.mrb[0].mxu0
        %v5336 = vadd.f32 0.0, %v5335
        %v5337 = vpop.f32.mrb[0].mxu0
        %5338 = vmatprep.mubr.f32.mxu0 %v5023
        %5339 = vmatmul.mubr.f32.gmra.mrb[0].mxu0 %v5020
        %v5340 = vpop.f32.mrb[0].mxu0
        %v5341 = vadd.f32 0.0, %v5340
        %v5342 = vpop.f32.mrb[0].mxu0
        %5343 = vmatprep.mubr.f32.mxu0 %v5027
        %5344 = vmatmul.mubr.f32.gmra.mrb[0].mxu0 %v5025
        %v5345 = vpop.f32.mrb[0].mxu0
        %v5346 = vadd.f32 0.0, %v5345
        %v5347 = vpop.f32.mrb[0].mxu0
        %5348 = vmatprep.mubr.f32.mxu0 %v5033
        %5349 = vmatmul.mubr.f32.gmra.mrb[0].mxu0 %v5030
        %v5350 = vpop.f32.mrb[0].mxu0
        %v5351 = vadd.f32 0.0, %v5350
        %v5352 = vpop.f32.mrb[0].mxu0
        %5353 = vmatprep.mubr.f32.mxu0 %v5037
        %5354 = vmatmul.mubr.f32.gmra.mrb[0].mxu0 %v5035
        %v5355 = vpop.f32.mrb[0].mxu0
        %v5356 = vadd.f32 0.0, %v5355
        %v5357 = vpop.f32.mrb[0].mxu0
        %5358 = vdwg.mxu0
        %v5359 = vadd.f32 %v4654, %v5201
        %v5360 = vadd.f32 %v4655, %v5206
        %v5361 = vadd.f32 %v4656, %v5211
        %v5362 = vadd.f32 %v4657, %v5216
        %v5363 = vadd.f32 %v4658, %v5221
        %v5364 = vadd.f32 %v4659, %v5226
        %v5365 = vadd.f32 %v4660, %v5231
        %v5366 = vadd.f32 %v4661, %v5236
        %v5367 = vadd.f32 %v4662, %v5241
        %v5368 = vadd.f32 %v4663, %v5246
        %v5369 = vadd.f32 %v4664, %v5251
        %v5370 = vadd.f32 %v4665, %v5256
        %v5371 = vadd.f32 %v4666, %v5261
        %v5372 = vadd.f32 %v4667, %v5266
        %v5373 = vadd.f32 %v4668, %v5271
        %v5374 = vadd.f32 %v4669, %v5276
        %v5375 = vadd.f32 %v4670, %v5281
        %v5376 = vadd.f32 %v4671, %v5286
        %v5377 = vadd.f32 %v4672, %v5291
        %v5378 = vadd.f32 %v4673, %v5296
        %v5379 = vadd.f32 %v4674, %v5301
        %v5380 = vadd.f32 %v4675, %v5306
        %v5381 = vadd.f32 %v4676, %v5311
        %v5382 = vadd.f32 %v4677, %v5316
        %v5383 = vadd.f32 %v4678, %v5321
        %v5384 = vadd.f32 %v4679, %v5326
        %v5385 = vadd.f32 %v4680, %v5331
        %v5386 = vadd.f32 %v4681, %v5336
        %v5387 = vadd.f32 %v4682, %v5341
        %v5388 = vadd.f32 %v4683, %v5346
        %v5389 = vadd.f32 %v4684, %v5351
        %v5390 = vadd.f32 %v4685, %v5356
        %v5391 = vld [vmem:[%s4332] sm:$0xfc]
        %v5392 = vld [vmem:[%s4332 + $0x8] sm:$0xfc]
        %v5393 = vld [vmem:[%s4332 + $0x20] sm:$0x3]
        %v5394 = vld [vmem:[%s4332 + $0x28] sm:$0x3]
        %v5395 = vld [vmem:[%s4332 + $0x30] sm:$0xfc]
        %v5396 = vld [vmem:[%s4332 + $0x38] sm:$0xfc]
        %v5397 = vld [vmem:[%s4332 + $0x50] sm:$0x3]
        %v5398 = vld [vmem:[%s4332 + $0x58] sm:$0x3]
        %v5399 = vld [vmem:[%s4332 + $0x60] sm:$0xfc]
        %v5400 = vld [vmem:[%s4332 + $0x68] sm:$0xfc]
        %v5401 = vld [vmem:[%s4332 + $0x80] sm:$0x3]
        %v5402 = vld [vmem:[%s4332 + $0x88] sm:$0x3]
        %v5403 = vld [vmem:[%s4332 + $0x90] sm:$0xfc]
        %v5404 = vld [vmem:[%s4332 + $0x98] sm:$0xfc]
        %v5405 = vld [vmem:[%s4332 + $0xb0] sm:$0x3]
        %v5406 = vld [vmem:[%s4332 + $0xb8] sm:$0x3]
        %v5407 = vld [vmem:[%s4332 + $0xc0] sm:$0xfc]
        %v5408 = vld [vmem:[%s4332 + $0xc8] sm:$0xfc]
        %v5409 = vld [vmem:[%s4332 + $0xe0] sm:$0x3]
        %v5410 = vld [vmem:[%s4332 + $0xe8] sm:$0x3]
        %v5411 = vld [vmem:[%s4332 + $0xf0] sm:$0xfc]
        %v5412 = vld [vmem:[%s4332 + $0xf8] sm:$0xfc]
        %v5413 = vld [vmem:[%s4332 + $0x110] sm:$0x3]
        %v5414 = vld [vmem:[%s4332 + $0x118] sm:$0x3]
        %v5415 = vld [vmem:[%s4332 + $0x120] sm:$0xfc]
        %v5416 = vld [vmem:[%s4332 + $0x128] sm:$0xfc]
        %v5417 = vld [vmem:[%s4332 + $0x140] sm:$0x3]
        %v5418 = vld [vmem:[%s4332 + $0x148] sm:$0x3]
        %v5419 = vld [vmem:[%s4332 + $0x150] sm:$0xfc]
        %v5420 = vld [vmem:[%s4332 + $0x158] sm:$0xfc]
        %v5421 = vld [vmem:[%s4332 + $0x170] sm:$0x3]
        %v5422 = vld [vmem:[%s4332 + $0x178] sm:$0x3]
        %v5423 = vld [vmem:[%s4332 + $0x180] sm:$0xfc]
        %v5424 = vld [vmem:[%s4332 + $0x188] sm:$0xfc]
        %v5425 = vld [vmem:[%s4332 + $0x1a0] sm:$0x3]
        %v5426 = vld [vmem:[%s4332 + $0x1a8] sm:$0x3]
        %v5427 = vld [vmem:[%s4332 + $0x1b0] sm:$0xfc]
        %v5428 = vld [vmem:[%s4332 + $0x1b8] sm:$0xfc]
        %v5429 = vld [vmem:[%s4332 + $0x1d0] sm:$0x3]
        %v5430 = vld [vmem:[%s4332 + $0x1d8] sm:$0x3]
        %v5431 = vld [vmem:[%s4332 + $0x1e0] sm:$0xfc]
        %v5432 = vld [vmem:[%s4332 + $0x1e8] sm:$0xfc]
        %v5433 = vld [vmem:[%s4332 + $0x200] sm:$0x3]
        %v5434 = vld [vmem:[%s4332 + $0x208] sm:$0x3]
        %v5435 = vld [vmem:[%s4332 + $0x210] sm:$0xfc]
        %v5436 = vld [vmem:[%s4332 + $0x218] sm:$0xfc]
        %v5437 = vld [vmem:[%s4332 + $0x230] sm:$0x3]
        %v5438 = vld [vmem:[%s4332 + $0x238] sm:$0x3]
        %v5439 = vld [vmem:[%s4332 + $0x240] sm:$0xfc]
        %v5440 = vld [vmem:[%s4332 + $0x248] sm:$0xfc]
        %v5441 = vld [vmem:[%s4332 + $0x260] sm:$0x3]
        %v5442 = vld [vmem:[%s4332 + $0x268] sm:$0x3]
        %v5443 = vld [vmem:[%s4332 + $0x270] sm:$0xfc]
        %v5444 = vld [vmem:[%s4332 + $0x278] sm:$0xfc]
        %v5445 = vld [vmem:[%s4332 + $0x290] sm:$0x3]
        %v5446 = vld [vmem:[%s4332 + $0x298] sm:$0x3]
        %v5447 = vld [vmem:[%s4332 + $0x2a0] sm:$0xfc]
        %v5448 = vld [vmem:[%s4332 + $0x2a8] sm:$0xfc]
        %v5449 = vld [vmem:[%s4332 + $0x2c0] sm:$0x3]
        %v5450 = vld [vmem:[%s4332 + $0x2c8] sm:$0x3]
        %v5451 = vld [vmem:[%s4332 + $0x2d0] sm:$0xfc]
        %v5452 = vld [vmem:[%s4332 + $0x2d8] sm:$0xfc]
        %v5453 = vld [vmem:[%s4332 + $0x2f0] sm:$0x3]
        %v5454 = vld [vmem:[%s4332 + $0x2f8] sm:$0x3]
        %v5519 = vrot.slane %v5391, 2
        %v5520 = vrot.slane %v4688, 2
        %v5521 = vsel %vm2119, %v5519, %v5520
        %v5522 = vrot.slane %v5392, 2
        %v5523 = vrot.slane %v4689, 2
        %v5524 = vsel %vm2119, %v5522, %v5523
        %v5525 = vrot.slane %v5393, 2
        %v5526 = vsel %vm2119, %v5520, %v5525
        %v5527 = vrot.slane %v5394, 2
        %v5528 = vsel %vm2119, %v5523, %v5527
        %v5529 = vrot.slane %v5395, 2
        %v5530 = vrot.slane %v4694, 2
        %v5531 = vsel %vm2119, %v5529, %v5530
        %v5532 = vrot.slane %v5396, 2
        %v5533 = vrot.slane %v4695, 2
        %v5534 = vsel %vm2119, %v5532, %v5533
        %v5535 = vrot.slane %v5397, 2
        %v5536 = vsel %vm2119, %v5530, %v5535
        %v5537 = vrot.slane %v5398, 2
        %v5538 = vsel %vm2119, %v5533, %v5537
        %v5539 = vrot.slane %v5399, 2
        %v5540 = vrot.slane %v4700, 2
        %v5541 = vsel %vm2119, %v5539, %v5540
        %v5542 = vrot.slane %v5400, 2
        %v5543 = vrot.slane %v4701, 2
        %v5544 = vsel %vm2119, %v5542, %v5543
        %v5545 = vrot.slane %v5401, 2
        %v5546 = vsel %vm2119, %v5540, %v5545
        %v5547 = vrot.slane %v5402, 2
        %v5548 = vsel %vm2119, %v5543, %v5547
        %v5549 = vrot.slane %v5403, 2
        %v5550 = vrot.slane %v4706, 2
        %v5551 = vsel %vm2119, %v5549, %v5550
        %v5552 = vrot.slane %v5404, 2
        %v5553 = vrot.slane %v4707, 2
        %v5554 = vsel %vm2119, %v5552, %v5553
        %v5555 = vrot.slane %v5405, 2
        %v5556 = vsel %vm2119, %v5550, %v5555
        %v5557 = vrot.slane %v5406, 2
        %v5558 = vsel %vm2119, %v5553, %v5557
        %v5559 = vrot.slane %v5407, 2
        %v5560 = vrot.slane %v4712, 2
        %v5561 = vsel %vm2119, %v5559, %v5560
        %v5562 = vrot.slane %v5408, 2
        %v5563 = vrot.slane %v4713, 2
        %v5564 = vsel %vm2119, %v5562, %v5563
        %v5565 = vrot.slane %v5409, 2
        %v5566 = vsel %vm2119, %v5560, %v5565
        %v5567 = vrot.slane %v5410, 2
        %v5568 = vsel %vm2119, %v5563, %v5567
        %v5569 = vrot.slane %v5411, 2
        %v5570 = vrot.slane %v4718, 2
        %v5571 = vsel %vm2119, %v5569, %v5570
        %v5572 = vrot.slane %v5412, 2
        %v5573 = vrot.slane %v4719, 2
        %v5574 = vsel %vm2119, %v5572, %v5573
        %v5575 = vrot.slane %v5413, 2
        %v5576 = vsel %vm2119, %v5570, %v5575
        %v5577 = vrot.slane %v5414, 2
        %v5578 = vsel %vm2119, %v5573, %v5577
        %v5579 = vrot.slane %v5415, 2
        %v5580 = vrot.slane %v4724, 2
        %v5581 = vsel %vm2119, %v5579, %v5580
        %v5582 = vrot.slane %v5416, 2
        %v5583 = vrot.slane %v4725, 2
        %v5584 = vsel %vm2119, %v5582, %v5583
        %v5585 = vrot.slane %v5417, 2
        %v5586 = vsel %vm2119, %v5580, %v5585
        %v5587 = vrot.slane %v5418, 2
        %v5588 = vsel %vm2119, %v5583, %v5587
        %v5589 = vrot.slane %v5419, 2
        %v5590 = vrot.slane %v4730, 2
        %v5591 = vsel %vm2119, %v5589, %v5590
        %v5592 = vrot.slane %v5420, 2
        %v5593 = vrot.slane %v4731, 2
        %v5594 = vsel %vm2119, %v5592, %v5593
        %v5595 = vrot.slane %v5421, 2
        %v5596 = vsel %vm2119, %v5590, %v5595
        %v5597 = vrot.slane %v5422, 2
        %v5598 = vsel %vm2119, %v5593, %v5597
        %v5599 = vrot.slane %v5423, 2
        %v5600 = vrot.slane %v4736, 2
        %v5601 = vsel %vm2119, %v5599, %v5600
        %v5602 = vrot.slane %v5424, 2
        %v5603 = vrot.slane %v4737, 2
        %v5604 = vsel %vm2119, %v5602, %v5603
        %v5605 = vrot.slane %v5425, 2
        %v5606 = vsel %vm2119, %v5600, %v5605
        %v5607 = vrot.slane %v5426, 2
        %v5608 = vsel %vm2119, %v5603, %v5607
        %v5609 = vrot.slane %v5427, 2
        %v5610 = vrot.slane %v4742, 2
        %v5611 = vsel %vm2119, %v5609, %v5610
        %v5612 = vrot.slane %v5428, 2
        %v5613 = vrot.slane %v4743, 2
        %v5614 = vsel %vm2119, %v5612, %v5613
        %v5615 = vrot.slane %v5429, 2
        %v5616 = vsel %vm2119, %v5610, %v5615
        %v5617 = vrot.slane %v5430, 2
        %v5618 = vsel %vm2119, %v5613, %v5617
        %v5619 = vrot.slane %v5431, 2
        %v5620 = vrot.slane %v4748, 2
        %v5621 = vsel %vm2119, %v5619, %v5620
        %v5622 = vrot.slane %v5432, 2
        %v5623 = vrot.slane %v4749, 2
        %v5624 = vsel %vm2119, %v5622, %v5623
        %v5625 = vrot.slane %v5433, 2
        %v5626 = vsel %vm2119, %v5620, %v5625
        %v5627 = vrot.slane %v5434, 2
        %v5628 = vsel %vm2119, %v5623, %v5627
        %v5629 = vrot.slane %v5435, 2
        %v5630 = vrot.slane %v4754, 2
        %v5631 = vsel %vm2119, %v5629, %v5630
        %v5632 = vrot.slane %v5436, 2
        %v5633 = vrot.slane %v4755, 2
        %v5634 = vsel %vm2119, %v5632, %v5633
        %v5635 = vrot.slane %v5437, 2
        %v5636 = vsel %vm2119, %v5630, %v5635
        %v5637 = vrot.slane %v5438, 2
        %v5638 = vsel %vm2119, %v5633, %v5637
        %v5639 = vrot.slane %v5439, 2
        %v5640 = vrot.slane %v4760, 2
        %v5641 = vsel %vm2119, %v5639, %v5640
        %v5642 = vrot.slane %v5440, 2
        %v5643 = vrot.slane %v4761, 2
        %v5644 = vsel %vm2119, %v5642, %v5643
        %v5645 = vrot.slane %v5441, 2
        %v5646 = vsel %vm2119, %v5640, %v5645
        %v5647 = vrot.slane %v5442, 2
        %v5648 = vsel %vm2119, %v5643, %v5647
        %v5649 = vrot.slane %v5443, 2
        %v5650 = vrot.slane %v4766, 2
        %v5651 = vsel %vm2119, %v5649, %v5650
        %v5652 = vrot.slane %v5444, 2
        %v5653 = vrot.slane %v4767, 2
        %v5654 = vsel %vm2119, %v5652, %v5653
        %v5655 = vrot.slane %v5445, 2
        %v5656 = vsel %vm2119, %v5650, %v5655
        %v5657 = vrot.slane %v5446, 2
        %v5658 = vsel %vm2119, %v5653, %v5657
        %v5659 = vrot.slane %v5447, 2
        %v5660 = vrot.slane %v4772, 2
        %v5661 = vsel %vm2119, %v5659, %v5660
        %v5662 = vrot.slane %v5448, 2
        %v5663 = vrot.slane %v4773, 2
        %v5664 = vsel %vm2119, %v5662, %v5663
        %v5665 = vrot.slane %v5449, 2
        %v5666 = vsel %vm2119, %v5660, %v5665
        %v5667 = vrot.slane %v5450, 2
        %v5668 = vsel %vm2119, %v5663, %v5667
        %v5669 = vrot.slane %v5451, 2
        %v5670 = vrot.slane %v4778, 2
        %v5671 = vsel %vm2119, %v5669, %v5670
        %v5672 = vrot.slane %v5452, 2
        %v5673 = vrot.slane %v4779, 2
        %v5674 = vsel %vm2119, %v5672, %v5673
        %v5675 = vrot.slane %v5453, 2
        %v5676 = vsel %vm2119, %v5670, %v5675
        %v5677 = vrot.slane %v5454, 2
        %v5678 = vsel %vm2119, %v5673, %v5677
        %v5743 = vld [vmem:[#allocation9 + $0x800] sm:$0xff]
        %v5744 = vld [vmem:[#allocation9 + $0x808] sm:$0xff]
        %v5745 = vld [vmem:[#allocation9 + $0x810] sm:$0xff]
        %v5746 = vld [vmem:[#allocation9 + $0x818] sm:$0xff]
        %v5747 = vld [vmem:[#allocation9 + $0x820] sm:$0xff]
        %v5748 = vld [vmem:[#allocation9 + $0x828] sm:$0xff]
        %v5749 = vld [vmem:[#allocation9 + $0x830] sm:$0xff]
        %v5750 = vld [vmem:[#allocation9 + $0x838] sm:$0xff]
        %v5751 = vld [vmem:[#allocation9 + $0x840] sm:$0xff]
        %v5752 = vld [vmem:[#allocation9 + $0x848] sm:$0xff]
        %v5753 = vld [vmem:[#allocation9 + $0x850] sm:$0xff]
        %v5754 = vld [vmem:[#allocation9 + $0x858] sm:$0xff]
        %v5755 = vld [vmem:[#allocation9 + $0x860] sm:$0xff]
        %v5756 = vld [vmem:[#allocation9 + $0x868] sm:$0xff]
        %v5757 = vld [vmem:[#allocation9 + $0x870] sm:$0xff]
        %v5758 = vld [vmem:[#allocation9 + $0x878] sm:$0xff]
        %v5759 = vld [vmem:[#allocation9 + $0x880] sm:$0xff]
        %v5760 = vld [vmem:[#allocation9 + $0x888] sm:$0xff]
        %v5761 = vld [vmem:[#allocation9 + $0x890] sm:$0xff]
        %v5762 = vld [vmem:[#allocation9 + $0x898] sm:$0xff]
        %v5763 = vld [vmem:[#allocation9 + $0x8a0] sm:$0xff]
        %v5764 = vld [vmem:[#allocation9 + $0x8a8] sm:$0xff]
        %v5765 = vld [vmem:[#allocation9 + $0x8b0] sm:$0xff]
        %v5766 = vld [vmem:[#allocation9 + $0x8b8] sm:$0xff]
        %v5767 = vld [vmem:[#allocation9 + $0x8c0] sm:$0xff]
        %v5768 = vld [vmem:[#allocation9 + $0x8c8] sm:$0xff]
        %v5769 = vld [vmem:[#allocation9 + $0x8d0] sm:$0xff]
        %v5770 = vld [vmem:[#allocation9 + $0x8d8] sm:$0xff]
        %v5771 = vld [vmem:[#allocation9 + $0x8e0] sm:$0xff]
        %v5772 = vld [vmem:[#allocation9 + $0x8e8] sm:$0xff]
        %v5773 = vld [vmem:[#allocation9 + $0x8f0] sm:$0xff]
        %v5774 = vld [vmem:[#allocation9 + $0x8f8] sm:$0xff]
        %5775 = vmatprep.subr.mxu0 0.0
        %5776 = vmatpush1.msra.mxu0 %v5743
        %5777 = vmatprep.subr.mxu0 0.0
        %5778 = vmatpush1.msra.mxu0 %v5744
        %5779 = vmatprep.subr.mxu0 0.0
        %5780 = vmatpush1.msra.mxu0 %v5745
        %5781 = vmatprep.subr.mxu0 0.0
        %5782 = vmatpush1.msra.mxu0 %v5746
        %5783 = vmatprep.subr.mxu0 0.0
        %5784 = vmatpush1.msra.mxu0 %v5747
        %5785 = vmatprep.subr.mxu0 0.0
        %5786 = vmatpush1.msra.mxu0 %v5748
        %5787 = vmatprep.subr.mxu0 0.0
        %5788 = vmatpush1.msra.mxu0 %v5749
        %5789 = vmatprep.subr.mxu0 0.0
        %5790 = vmatpush1.msra.mxu0 %v5750
        %5791 = vmatprep.subr.mxu0 0.0
        %5792 = vmatpush1.msra.mxu0 %v5751
        %5793 = vmatprep.subr.mxu0 0.0
        %5794 = vmatpush1.msra.mxu0 %v5752
        %5795 = vmatprep.subr.mxu0 0.0
        %5796 = vmatpush1.msra.mxu0 %v5753
        %5797 = vmatprep.subr.mxu0 0.0
        %5798 = vmatpush1.msra.mxu0 %v5754
        %5799 = vmatprep.subr.mxu0 0.0
        %5800 = vmatpush1.msra.mxu0 %v5755
        %5801 = vmatprep.subr.mxu0 0.0
        %5802 = vmatpush1.msra.mxu0 %v5756
        %5803 = vmatprep.subr.mxu0 0.0
        %5804 = vmatpush1.msra.mxu0 %v5757
        %5805 = vmatprep.subr.mxu0 0.0
        %5806 = vmatpush1.msra.mxu0 %v5758
        %5807 = vmatprep.subr.mxu0 0.0
        %5808 = vmatpush1.msra.mxu0 %v5759
        %5809 = vmatprep.subr.mxu0 0.0
        %5810 = vmatpush1.msra.mxu0 %v5760
        %5811 = vmatprep.subr.mxu0 0.0
        %5812 = vmatpush1.msra.mxu0 %v5761
        %5813 = vmatprep.subr.mxu0 0.0
        %5814 = vmatpush1.msra.mxu0 %v5762
        %5815 = vmatprep.subr.mxu0 0.0
        %5816 = vmatpush1.msra.mxu0 %v5763
        %5817 = vmatprep.subr.mxu0 0.0
        %5818 = vmatpush1.msra.mxu0 %v5764
        %5819 = vmatprep.subr.mxu0 0.0
        %5820 = vmatpush1.msra.mxu0 %v5765
        %5821 = vmatprep.subr.mxu0 0.0
        %5822 = vmatpush1.msra.mxu0 %v5766
        %5823 = vmatprep.subr.mxu0 0.0
        %5824 = vmatpush1.msra.mxu0 %v5767
        %5825 = vmatprep.subr.mxu0 0.0
        %5826 = vmatpush1.msra.mxu0 %v5768
        %5827 = vmatprep.subr.mxu0 0.0
        %5828 = vmatpush1.msra.mxu0 %v5769
        %5829 = vmatprep.subr.mxu0 0.0
        %5830 = vmatpush1.msra.mxu0 %v5770
        %5831 = vmatprep.subr.mxu0 0.0
        %5832 = vmatpush1.msra.mxu0 %v5771
        %5833 = vmatprep.subr.mxu0 0.0
        %5834 = vmatpush1.msra.mxu0 %v5772
        %5835 = vmatprep.subr.mxu0 0.0
        %5836 = vmatpush1.msra.mxu0 %v5773
        %5837 = vmatprep.subr.mxu0 0.0
        %5838 = vmatpush1.msra.mxu0 %v5774
        %5839 = vmatprep.mubr.f32.mxu0 %v5524
        %5840 = vmatmul.mubr.f32.gmra.mrb[0].mxu0 %v5521
        %v5841 = vpop.f32.mrb[0].mxu0
        %v5842 = vadd.f32 0.0, %v5841
        %v5843 = vpop.f32.mrb[0].mxu0
        %5844 = vmatprep.mubr.f32.mxu0 %v5528
        %5845 = vmatmul.mubr.f32.gmra.mrb[0].mxu0 %v5526
        %v5846 = vpop.f32.mrb[0].mxu0
        %v5847 = vadd.f32 0.0, %v5846
        %v5848 = vpop.f32.mrb[0].mxu0
        %5849 = vmatprep.mubr.f32.mxu0 %v5534
        %5850 = vmatmul.mubr.f32.gmra.mrb[0].mxu0 %v5531
        %v5851 = vpop.f32.mrb[0].mxu0
        %v5852 = vadd.f32 0.0, %v5851
        %v5853 = vpop.f32.mrb[0].mxu0
        %5854 = vmatprep.mubr.f32.mxu0 %v5538
        %5855 = vmatmul.mubr.f32.gmra.mrb[0].mxu0 %v5536
        %v5856 = vpop.f32.mrb[0].mxu0
        %v5857 = vadd.f32 0.0, %v5856
        %v5858 = vpop.f32.mrb[0].mxu0
        %5859 = vmatprep.mubr.f32.mxu0 %v5544
        %5860 = vmatmul.mubr.f32.gmra.mrb[0].mxu0 %v5541
        %v5861 = vpop.f32.mrb[0].mxu0
        %v5862 = vadd.f32 0.0, %v5861
        %v5863 = vpop.f32.mrb[0].mxu0
        %5864 = vmatprep.mubr.f32.mxu0 %v5548
        %5865 = vmatmul.mubr.f32.gmra.mrb[0].mxu0 %v5546
        %v5866 = vpop.f32.mrb[0].mxu0
        %v5867 = vadd.f32 0.0, %v5866
        %v5868 = vpop.f32.mrb[0].mxu0
        %5869 = vmatprep.mubr.f32.mxu0 %v5554
        %5870 = vmatmul.mubr.f32.gmra.mrb[0].mxu0 %v5551
        %v5871 = vpop.f32.mrb[0].mxu0
        %v5872 = vadd.f32 0.0, %v5871
        %v5873 = vpop.f32.mrb[0].mxu0
        %5874 = vmatprep.mubr.f32.mxu0 %v5558
        %5875 = vmatmul.mubr.f32.gmra.mrb[0].mxu0 %v5556
        %v5876 = vpop.f32.mrb[0].mxu0
        %v5877 = vadd.f32 0.0, %v5876
        %v5878 = vpop.f32.mrb[0].mxu0
        %5879 = vmatprep.mubr.f32.mxu0 %v5564
        %5880 = vmatmul.mubr.f32.gmra.mrb[0].mxu0 %v5561
        %v5881 = vpop.f32.mrb[0].mxu0
        %v5882 = vadd.f32 0.0, %v5881
        %v5883 = vpop.f32.mrb[0].mxu0
        %5884 = vmatprep.mubr.f32.mxu0 %v5568
        %5885 = vmatmul.mubr.f32.gmra.mrb[0].mxu0 %v5566
        %v5886 = vpop.f32.mrb[0].mxu0
        %v5887 = vadd.f32 0.0, %v5886
        %v5888 = vpop.f32.mrb[0].mxu0
        %5889 = vmatprep.mubr.f32.mxu0 %v5574
        %5890 = vmatmul.mubr.f32.gmra.mrb[0].mxu0 %v5571
        %v5891 = vpop.f32.mrb[0].mxu0
        %v5892 = vadd.f32 0.0, %v5891
        %v5893 = vpop.f32.mrb[0].mxu0
        %5894 = vmatprep.mubr.f32.mxu0 %v5578
        %5895 = vmatmul.mubr.f32.gmra.mrb[0].mxu0 %v5576
        %v5896 = vpop.f32.mrb[0].mxu0
        %v5897 = vadd.f32 0.0, %v5896
        %v5898 = vpop.f32.mrb[0].mxu0
        %5899 = vmatprep.mubr.f32.mxu0 %v5584
        %5900 = vmatmul.mubr.f32.gmra.mrb[0].mxu0 %v5581
        %v5901 = vpop.f32.mrb[0].mxu0
        %v5902 = vadd.f32 0.0, %v5901
        %v5903 = vpop.f32.mrb[0].mxu0
        %5904 = vmatprep.mubr.f32.mxu0 %v5588
        %5905 = vmatmul.mubr.f32.gmra.mrb[0].mxu0 %v5586
        %v5906 = vpop.f32.mrb[0].mxu0
        %v5907 = vadd.f32 0.0, %v5906
        %v5908 = vpop.f32.mrb[0].mxu0
        %5909 = vmatprep.mubr.f32.mxu0 %v5594
        %5910 = vmatmul.mubr.f32.gmra.mrb[0].mxu0 %v5591
        %v5911 = vpop.f32.mrb[0].mxu0
        %v5912 = vadd.f32 0.0, %v5911
        %v5913 = vpop.f32.mrb[0].mxu0
        %5914 = vmatprep.mubr.f32.mxu0 %v5598
        %5915 = vmatmul.mubr.f32.gmra.mrb[0].mxu0 %v5596
        %v5916 = vpop.f32.mrb[0].mxu0
        %v5917 = vadd.f32 0.0, %v5916
        %v5918 = vpop.f32.mrb[0].mxu0
        %5919 = vmatprep.mubr.f32.mxu0 %v5604
        %5920 = vmatmul.mubr.f32.gmra.mrb[0].mxu0 %v5601
        %v5921 = vpop.f32.mrb[0].mxu0
        %v5922 = vadd.f32 0.0, %v5921
        %v5923 = vpop.f32.mrb[0].mxu0
        %5924 = vmatprep.mubr.f32.mxu0 %v5608
        %5925 = vmatmul.mubr.f32.gmra.mrb[0].mxu0 %v5606
        %v5926 = vpop.f32.mrb[0].mxu0
        %v5927 = vadd.f32 0.0, %v5926
        %v5928 = vpop.f32.mrb[0].mxu0
        %5929 = vmatprep.mubr.f32.mxu0 %v5614
        %5930 = vmatmul.mubr.f32.gmra.mrb[0].mxu0 %v5611
        %v5931 = vpop.f32.mrb[0].mxu0
        %v5932 = vadd.f32 0.0, %v5931
        %v5933 = vpop.f32.mrb[0].mxu0
        %5934 = vmatprep.mubr.f32.mxu0 %v5618
        %5935 = vmatmul.mubr.f32.gmra.mrb[0].mxu0 %v5616
        %v5936 = vpop.f32.mrb[0].mxu0
        %v5937 = vadd.f32 0.0, %v5936
        %v5938 = vpop.f32.mrb[0].mxu0
        %5939 = vmatprep.mubr.f32.mxu0 %v5624
        %5940 = vmatmul.mubr.f32.gmra.mrb[0].mxu0 %v5621
        %v5941 = vpop.f32.mrb[0].mxu0
        %v5942 = vadd.f32 0.0, %v5941
        %v5943 = vpop.f32.mrb[0].mxu0
        %5944 = vmatprep.mubr.f32.mxu0 %v5628
        %5945 = vmatmul.mubr.f32.gmra.mrb[0].mxu0 %v5626
        %v5946 = vpop.f32.mrb[0].mxu0
        %v5947 = vadd.f32 0.0, %v5946
        %v5948 = vpop.f32.mrb[0].mxu0
        %5949 = vmatprep.mubr.f32.mxu0 %v5634
        %5950 = vmatmul.mubr.f32.gmra.mrb[0].mxu0 %v5631
        %v5951 = vpop.f32.mrb[0].mxu0
        %v5952 = vadd.f32 0.0, %v5951
        %v5953 = vpop.f32.mrb[0].mxu0
        %5954 = vmatprep.mubr.f32.mxu0 %v5638
        %5955 = vmatmul.mubr.f32.gmra.mrb[0].mxu0 %v5636
        %v5956 = vpop.f32.mrb[0].mxu0
        %v5957 = vadd.f32 0.0, %v5956
        %v5958 = vpop.f32.mrb[0].mxu0
        %5959 = vmatprep.mubr.f32.mxu0 %v5644
        %5960 = vmatmul.mubr.f32.gmra.mrb[0].mxu0 %v5641
        %v5961 = vpop.f32.mrb[0].mxu0
        %v5962 = vadd.f32 0.0, %v5961
        %v5963 = vpop.f32.mrb[0].mxu0
        %5964 = vmatprep.mubr.f32.mxu0 %v5648
        %5965 = vmatmul.mubr.f32.gmra.mrb[0].mxu0 %v5646
        %v5966 = vpop.f32.mrb[0].mxu0
        %v5967 = vadd.f32 0.0, %v5966
        %v5968 = vpop.f32.mrb[0].mxu0
        %5969 = vmatprep.mubr.f32.mxu0 %v5654
        %5970 = vmatmul.mubr.f32.gmra.mrb[0].mxu0 %v5651
        %v5971 = vpop.f32.mrb[0].mxu0
        %v5972 = vadd.f32 0.0, %v5971
        %v5973 = vpop.f32.mrb[0].mxu0
        %5974 = vmatprep.mubr.f32.mxu0 %v5658
        %5975 = vmatmul.mubr.f32.gmra.mrb[0].mxu0 %v5656
        %v5976 = vpop.f32.mrb[0].mxu0
        %v5977 = vadd.f32 0.0, %v5976
        %v5978 = vpop.f32.mrb[0].mxu0
        %5979 = vmatprep.mubr.f32.mxu0 %v5664
        %5980 = vmatmul.mubr.f32.gmra.mrb[0].mxu0 %v5661
        %v5981 = vpop.f32.mrb[0].mxu0
        %v5982 = vadd.f32 0.0, %v5981
        %v5983 = vpop.f32.mrb[0].mxu0
        %5984 = vmatprep.mubr.f32.mxu0 %v5668
        %5985 = vmatmul.mubr.f32.gmra.mrb[0].mxu0 %v5666
        %v5986 = vpop.f32.mrb[0].mxu0
        %v5987 = vadd.f32 0.0, %v5986
        %v5988 = vpop.f32.mrb[0].mxu0
        %5989 = vmatprep.mubr.f32.mxu0 %v5674
        %5990 = vmatmul.mubr.f32.gmra.mrb[0].mxu0 %v5671
        %v5991 = vpop.f32.mrb[0].mxu0
        %v5992 = vadd.f32 0.0, %v5991
        %v5993 = vpop.f32.mrb[0].mxu0
        %5994 = vmatprep.mubr.f32.mxu0 %v5678
        %5995 = vmatmul.mubr.f32.gmra.mrb[0].mxu0 %v5676
        %v5996 = vpop.f32.mrb[0].mxu0
        %v5997 = vadd.f32 0.0, %v5996
        %v5998 = vpop.f32.mrb[0].mxu0
        %5999 = vdwg.mxu0
        %v6000 = vadd.f32 %v5359, %v5842
        %v6001 = vadd.f32 %v5360, %v5847
        %v6002 = vadd.f32 %v5361, %v5852
        %v6003 = vadd.f32 %v5362, %v5857
        %v6004 = vadd.f32 %v5363, %v5862
        %v6005 = vadd.f32 %v5364, %v5867
        %v6006 = vadd.f32 %v5365, %v5872
        %v6007 = vadd.f32 %v5366, %v5877
        %v6008 = vadd.f32 %v5367, %v5882
        %v6009 = vadd.f32 %v5368, %v5887
        %v6010 = vadd.f32 %v5369, %v5892
        %v6011 = vadd.f32 %v5370, %v5897
        %v6012 = vadd.f32 %v5371, %v5902
        %v6013 = vadd.f32 %v5372, %v5907
        %v6014 = vadd.f32 %v5373, %v5912
        %v6015 = vadd.f32 %v5374, %v5917
        %v6016 = vadd.f32 %v5375, %v5922
        %v6017 = vadd.f32 %v5376, %v5927
        %v6018 = vadd.f32 %v5377, %v5932
        %v6019 = vadd.f32 %v5378, %v5937
        %v6020 = vadd.f32 %v5379, %v5942
        %v6021 = vadd.f32 %v5380, %v5947
        %v6022 = vadd.f32 %v5381, %v5952
        %v6023 = vadd.f32 %v5382, %v5957
        %v6024 = vadd.f32 %v5383, %v5962
        %v6025 = vadd.f32 %v5384, %v5967
        %v6026 = vadd.f32 %v5385, %v5972
        %v6027 = vadd.f32 %v5386, %v5977
        %v6028 = vadd.f32 %v5387, %v5982
        %v6029 = vadd.f32 %v5388, %v5987
        %v6030 = vadd.f32 %v5389, %v5992
        %v6031 = vadd.f32 %v5390, %v5997
        %v6032 = vld [vmem:[#allocation10] sm:$0x1]
        %v6034 = vlaneseq
        %v6035 = vshrl.u32 %v6034, 7
        %v6036 = vsub.s32 0, %v6035
        %v6037 = vrot.slane %v6032, %v6036
        %v6039 = vmul.f32 %v6000, %v6037
        %v6040 = vmul.f32 %v6001, %v6037
        %v6041 = vmul.f32 %v6002, %v6037
        %v6042 = vmul.f32 %v6003, %v6037
        %v6043 = vmul.f32 %v6004, %v6037
        %v6044 = vmul.f32 %v6005, %v6037
        %v6045 = vmul.f32 %v6006, %v6037
        %v6046 = vmul.f32 %v6007, %v6037
        %v6047 = vmul.f32 %v6008, %v6037
        %v6048 = vmul.f32 %v6009, %v6037
        %v6049 = vmul.f32 %v6010, %v6037
        %v6050 = vmul.f32 %v6011, %v6037
        %v6051 = vmul.f32 %v6012, %v6037
        %v6052 = vmul.f32 %v6013, %v6037
        %v6053 = vmul.f32 %v6014, %v6037
        %v6054 = vmul.f32 %v6015, %v6037
        %v6055 = vmul.f32 %v6016, %v6037
        %v6056 = vmul.f32 %v6017, %v6037
        %v6057 = vmul.f32 %v6018, %v6037
        %v6058 = vmul.f32 %v6019, %v6037
        %v6059 = vmul.f32 %v6020, %v6037
        %v6060 = vmul.f32 %v6021, %v6037
        %v6061 = vmul.f32 %v6022, %v6037
        %v6062 = vmul.f32 %v6023, %v6037
        %v6063 = vmul.f32 %v6024, %v6037
        %v6064 = vmul.f32 %v6025, %v6037
        %v6065 = vmul.f32 %v6026, %v6037
        %v6066 = vmul.f32 %v6027, %v6037
        %v6067 = vmul.f32 %v6028, %v6037
        %v6068 = vmul.f32 %v6029, %v6037
        %v6069 = vmul.f32 %v6030, %v6037
        %v6070 = vmul.f32 %v6031, %v6037
        %v6071 = vld [vmem:[#allocation12] sm:$0x1]
        %v6073 = vlaneseq
        %v6074 = vshrl.u32 %v6073, 7
        %v6075 = vsub.s32 0, %v6074
        %v6076 = vrot.slane %v6071, %v6075
        %v6078 = vadd.f32 %v6039, %v6076
        %v6079 = vadd.f32 %v6040, %v6076
        %v6080 = vadd.f32 %v6041, %v6076
        %v6081 = vadd.f32 %v6042, %v6076
        %v6082 = vadd.f32 %v6043, %v6076
        %v6083 = vadd.f32 %v6044, %v6076
        %v6084 = vadd.f32 %v6045, %v6076
        %v6085 = vadd.f32 %v6046, %v6076
        %v6086 = vadd.f32 %v6047, %v6076
        %v6087 = vadd.f32 %v6048, %v6076
        %v6088 = vadd.f32 %v6049, %v6076
        %v6089 = vadd.f32 %v6050, %v6076
        %v6090 = vadd.f32 %v6051, %v6076
        %v6091 = vadd.f32 %v6052, %v6076
        %v6092 = vadd.f32 %v6053, %v6076
        %v6093 = vadd.f32 %v6054, %v6076
        %v6094 = vadd.f32 %v6055, %v6076
        %v6095 = vadd.f32 %v6056, %v6076
        %v6096 = vadd.f32 %v6057, %v6076
        %v6097 = vadd.f32 %v6058, %v6076
        %v6098 = vadd.f32 %v6059, %v6076
        %v6099 = vadd.f32 %v6060, %v6076
        %v6100 = vadd.f32 %v6061, %v6076
        %v6101 = vadd.f32 %v6062, %v6076
        %v6102 = vadd.f32 %v6063, %v6076
        %v6103 = vadd.f32 %v6064, %v6076
        %v6104 = vadd.f32 %v6065, %v6076
        %v6105 = vadd.f32 %v6066, %v6076
        %v6106 = vadd.f32 %v6067, %v6076
        %v6107 = vadd.f32 %v6068, %v6076
        %v6108 = vadd.f32 %v6069, %v6076
        %v6109 = vadd.f32 %v6070, %v6076
        %v6110 = vmax.f32 %v6078, 0.0
        %v6111 = vmax.f32 %v6079, 0.0
        %v6112 = vmax.f32 %v6080, 0.0
        %v6113 = vmax.f32 %v6081, 0.0
        %v6114 = vmax.f32 %v6082, 0.0
        %v6115 = vmax.f32 %v6083, 0.0
        %v6116 = vmax.f32 %v6084, 0.0
        %v6117 = vmax.f32 %v6085, 0.0
        %v6118 = vmax.f32 %v6086, 0.0
        %v6119 = vmax.f32 %v6087, 0.0
        %v6120 = vmax.f32 %v6088, 0.0
        %v6121 = vmax.f32 %v6089, 0.0
        %v6122 = vmax.f32 %v6090, 0.0
        %v6123 = vmax.f32 %v6091, 0.0
        %v6124 = vmax.f32 %v6092, 0.0
        %v6125 = vmax.f32 %v6093, 0.0
        %v6126 = vmax.f32 %v6094, 0.0
        %v6127 = vmax.f32 %v6095, 0.0
        %v6128 = vmax.f32 %v6096, 0.0
        %v6129 = vmax.f32 %v6097, 0.0
        %v6130 = vmax.f32 %v6098, 0.0
        %v6131 = vmax.f32 %v6099, 0.0
        %v6132 = vmax.f32 %v6100, 0.0
        %v6133 = vmax.f32 %v6101, 0.0
        %v6134 = vmax.f32 %v6102, 0.0
        %v6135 = vmax.f32 %v6103, 0.0
        %v6136 = vmax.f32 %v6104, 0.0
        %v6137 = vmax.f32 %v6105, 0.0
        %v6138 = vmax.f32 %v6106, 0.0
        %v6139 = vmax.f32 %v6107, 0.0
        %v6140 = vmax.f32 %v6108, 0.0
        %v6141 = vmax.f32 %v6109, 0.0
        %s6142 = scalar_lea.vmem [#allocation3], 24
        %6143 = vst [vmem:[%s6142 + $0x1] sm:$0xff] %v6110
        %6144 = vst [vmem:[%s6142 + $0x9] sm:$0xff] %v6111
        %6145 = vst [vmem:[%s6142 + $0x19] sm:$0xff] %v6112
        %6146 = vst [vmem:[%s6142 + $0x21] sm:$0xff] %v6113
        %6147 = vst [vmem:[%s6142 + $0x31] sm:$0xff] %v6114
        %6148 = vst [vmem:[%s6142 + $0x39] sm:$0xff] %v6115
        %6149 = vst [vmem:[%s6142 + $0x49] sm:$0xff] %v6116
        %6150 = vst [vmem:[%s6142 + $0x51] sm:$0xff] %v6117
        %6151 = vst [vmem:[%s6142 + $0x61] sm:$0xff] %v6118
        %6152 = vst [vmem:[%s6142 + $0x69] sm:$0xff] %v6119
        %6153 = vst [vmem:[%s6142 + $0x79] sm:$0xff] %v6120
        %6154 = vst [vmem:[%s6142 + $0x81] sm:$0xff] %v6121
        %6155 = vst [vmem:[%s6142 + $0x91] sm:$0xff] %v6122
        %6156 = vst [vmem:[%s6142 + $0x99] sm:$0xff] %v6123
        %6157 = vst [vmem:[%s6142 + $0xa9] sm:$0xff] %v6124
        %6158 = vst [vmem:[%s6142 + $0xb1] sm:$0xff] %v6125
        %6159 = vst [vmem:[%s6142 + $0xc1] sm:$0xff] %v6126
        %6160 = vst [vmem:[%s6142 + $0xc9] sm:$0xff] %v6127
        %6161 = vst [vmem:[%s6142 + $0xd9] sm:$0xff] %v6128
        %6162 = vst [vmem:[%s6142 + $0xe1] sm:$0xff] %v6129
        %6163 = vst [vmem:[%s6142 + $0xf1] sm:$0xff] %v6130
        %6164 = vst [vmem:[%s6142 + $0xf9] sm:$0xff] %v6131
        %6165 = vst [vmem:[%s6142 + $0x109] sm:$0xff] %v6132
        %6166 = vst [vmem:[%s6142 + $0x111] sm:$0xff] %v6133
        %6167 = vst [vmem:[%s6142 + $0x121] sm:$0xff] %v6134
        %6168 = vst [vmem:[%s6142 + $0x129] sm:$0xff] %v6135
        %6169 = vst [vmem:[%s6142 + $0x139] sm:$0xff] %v6136
        %6170 = vst [vmem:[%s6142 + $0x141] sm:$0xff] %v6137
        %6171 = vst [vmem:[%s6142 + $0x151] sm:$0xff] %v6138
        %6172 = vst [vmem:[%s6142 + $0x159] sm:$0xff] %v6139
        %6173 = vst [vmem:[%s6142 + $0x169] sm:$0xff] %v6140
        %6174 = vst [vmem:[%s6142 + $0x171] sm:$0xff] %v6141
        %v6175 = vld [vmem:[#allocation3] sm:$0xff]
        %v6176 = vld [vmem:[#allocation3 + $0x8] sm:$0xff]
        %v6177 = vld [vmem:[#allocation3 + $0x18] sm:$0xff]
        %v6178 = vld [vmem:[#allocation3 + $0x20] sm:$0xff]
        %v6179 = vld [vmem:[#allocation3 + $0x30] sm:$0xff]
        %v6180 = vld [vmem:[#allocation3 + $0x38] sm:$0xff]
        %v6181 = vld [vmem:[#allocation3 + $0x48] sm:$0xff]
        %v6182 = vld [vmem:[#allocation3 + $0x50] sm:$0xff]
        %v6183 = vld [vmem:[#allocation3 + $0x60] sm:$0xff]
        %v6184 = vld [vmem:[#allocation3 + $0x68] sm:$0xff]
        %v6185 = vld [vmem:[#allocation3 + $0x78] sm:$0xff]
        %v6186 = vld [vmem:[#allocation3 + $0x80] sm:$0xff]
        %v6187 = vld [vmem:[#allocation3 + $0x90] sm:$0xff]
        %v6188 = vld [vmem:[#allocation3 + $0x98] sm:$0xff]
        %v6189 = vld [vmem:[#allocation3 + $0xa8] sm:$0xff]
        %v6190 = vld [vmem:[#allocation3 + $0xb0] sm:$0xff]
        %v6191 = vld [vmem:[#allocation3 + $0xc0] sm:$0xff]
        %v6192 = vld [vmem:[#allocation3 + $0xc8] sm:$0xff]
        %v6193 = vld [vmem:[#allocation3 + $0xd8] sm:$0xff]
        %v6194 = vld [vmem:[#allocation3 + $0xe0] sm:$0xff]
        %v6195 = vld [vmem:[#allocation3 + $0xf0] sm:$0xff]
        %v6196 = vld [vmem:[#allocation3 + $0xf8] sm:$0xff]
        %v6197 = vld [vmem:[#allocation3 + $0x108] sm:$0xff]
        %v6198 = vld [vmem:[#allocation3 + $0x110] sm:$0xff]
        %v6199 = vld [vmem:[#allocation3 + $0x120] sm:$0xff]
        %v6200 = vld [vmem:[#allocation3 + $0x128] sm:$0xff]
        %v6201 = vld [vmem:[#allocation3 + $0x138] sm:$0xff]
        %v6202 = vld [vmem:[#allocation3 + $0x140] sm:$0xff]
        %v6203 = vld [vmem:[#allocation3 + $0x150] sm:$0xff]
        %v6204 = vld [vmem:[#allocation3 + $0x158] sm:$0xff]
        %v6205 = vld [vmem:[#allocation3 + $0x168] sm:$0xff]
        %v6206 = vld [vmem:[#allocation3 + $0x170] sm:$0xff]
        %v6207 = vld [vmem:[#allocation13] sm:$0xff]
        %v6208 = vld [vmem:[#allocation13 + $0x8] sm:$0xff]
        %v6209 = vld [vmem:[#allocation13 + $0x10] sm:$0xff]
        %v6210 = vld [vmem:[#allocation13 + $0x18] sm:$0xff]
        %v6211 = vld [vmem:[#allocation13 + $0x20] sm:$0xff]
        %v6212 = vld [vmem:[#allocation13 + $0x28] sm:$0xff]
        %v6213 = vld [vmem:[#allocation13 + $0x30] sm:$0xff]
        %v6214 = vld [vmem:[#allocation13 + $0x38] sm:$0xff]
        %v6215 = vld [vmem:[#allocation13 + $0x40] sm:$0xff]
        %v6216 = vld [vmem:[#allocation13 + $0x48] sm:$0xff]
        %v6217 = vld [vmem:[#allocation13 + $0x50] sm:$0xff]
        %v6218 = vld [vmem:[#allocation13 + $0x58] sm:$0xff]
        %v6219 = vld [vmem:[#allocation13 + $0x60] sm:$0xff]
        %v6220 = vld [vmem:[#allocation13 + $0x68] sm:$0xff]
        %v6221 = vld [vmem:[#allocation13 + $0x70] sm:$0xff]
        %v6222 = vld [vmem:[#allocation13 + $0x78] sm:$0xff]
        %v6223 = vld [vmem:[#allocation3 + $0x1] sm:$0xff]
        %v6224 = vld [vmem:[#allocation3 + $0x9] sm:$0xff]
        %v6225 = vld [vmem:[#allocation3 + $0x19] sm:$0xff]
        %v6226 = vld [vmem:[#allocation3 + $0x21] sm:$0xff]
        %v6227 = vld [vmem:[#allocation3 + $0x31] sm:$0xff]
        %v6228 = vld [vmem:[#allocation3 + $0x39] sm:$0xff]
        %v6229 = vld [vmem:[#allocation3 + $0x49] sm:$0xff]
        %v6230 = vld [vmem:[#allocation3 + $0x51] sm:$0xff]
        %v6231 = vld [vmem:[#allocation3 + $0x61] sm:$0xff]
        %v6232 = vld [vmem:[#allocation3 + $0x69] sm:$0xff]
        %v6233 = vld [vmem:[#allocation3 + $0x79] sm:$0xff]
        %v6234 = vld [vmem:[#allocation3 + $0x81] sm:$0xff]
        %v6235 = vld [vmem:[#allocation3 + $0x91] sm:$0xff]
        %v6236 = vld [vmem:[#allocation3 + $0x99] sm:$0xff]
        %v6237 = vld [vmem:[#allocation3 + $0xa9] sm:$0xff]
        %v6238 = vld [vmem:[#allocation3 + $0xb1] sm:$0xff]
        %v6239 = vld [vmem:[#allocation3 + $0xc1] sm:$0xff]
        %v6240 = vld [vmem:[#allocation3 + $0xc9] sm:$0xff]
        %v6241 = vld [vmem:[#allocation3 + $0xd9] sm:$0xff]
        %v6242 = vld [vmem:[#allocation3 + $0xe1] sm:$0xff]
        %v6243 = vld [vmem:[#allocation3 + $0xf1] sm:$0xff]
        %v6244 = vld [vmem:[#allocation3 + $0xf9] sm:$0xff]
        %v6245 = vld [vmem:[#allocation3 + $0x109] sm:$0xff]
        %v6246 = vld [vmem:[#allocation3 + $0x111] sm:$0xff]
        %v6247 = vld [vmem:[#allocation3 + $0x121] sm:$0xff]
        %v6248 = vld [vmem:[#allocation3 + $0x129] sm:$0xff]
        %v6249 = vld [vmem:[#allocation3 + $0x139] sm:$0xff]
        %v6250 = vld [vmem:[#allocation3 + $0x141] sm:$0xff]
        %v6251 = vld [vmem:[#allocation3 + $0x151] sm:$0xff]
        %v6252 = vld [vmem:[#allocation3 + $0x159] sm:$0xff]
        %v6253 = vld [vmem:[#allocation3 + $0x169] sm:$0xff]
        %v6254 = vld [vmem:[#allocation3 + $0x171] sm:$0xff]
        %v6255 = vld [vmem:[#allocation13 + $0x80] sm:$0xff]
        %v6256 = vld [vmem:[#allocation13 + $0x88] sm:$0xff]
        %v6257 = vld [vmem:[#allocation13 + $0x90] sm:$0xff]
        %v6258 = vld [vmem:[#allocation13 + $0x98] sm:$0xff]
        %v6259 = vld [vmem:[#allocation13 + $0xa0] sm:$0xff]
        %v6260 = vld [vmem:[#allocation13 + $0xa8] sm:$0xff]
        %v6261 = vld [vmem:[#allocation13 + $0xb0] sm:$0xff]
        %v6262 = vld [vmem:[#allocation13 + $0xb8] sm:$0xff]
        %v6263 = vld [vmem:[#allocation13 + $0xc0] sm:$0xff]
        %v6264 = vld [vmem:[#allocation13 + $0xc8] sm:$0xff]
        %v6265 = vld [vmem:[#allocation13 + $0xd0] sm:$0xff]
        %v6266 = vld [vmem:[#allocation13 + $0xd8] sm:$0xff]
        %v6267 = vld [vmem:[#allocation13 + $0xe0] sm:$0xff]
        %v6268 = vld [vmem:[#allocation13 + $0xe8] sm:$0xff]
        %v6269 = vld [vmem:[#allocation13 + $0xf0] sm:$0xff]
        %v6270 = vld [vmem:[#allocation13 + $0xf8] sm:$0xff]
        %6271 = vmatprep.subr.mxu0 0.0
        %6272 = vmatpush1.msra.mxu0 %v6255
        %6273 = vmatprep.subr.mxu0 0.0
        %6274 = vmatpush1.msra.mxu0 %v6256
        %6275 = vmatprep.subr.mxu0 0.0
        %6276 = vmatpush1.msra.mxu0 %v6257
        %6277 = vmatprep.subr.mxu0 0.0
        %6278 = vmatpush1.msra.mxu0 %v6258
        %6279 = vmatprep.subr.mxu0 0.0
        %6280 = vmatpush1.msra.mxu0 %v6259
        %6281 = vmatprep.subr.mxu0 0.0
        %6282 = vmatpush1.msra.mxu0 %v6260
        %6283 = vmatprep.subr.mxu0 0.0
        %6284 = vmatpush1.msra.mxu0 %v6261
        %6285 = vmatprep.subr.mxu0 0.0
        %6286 = vmatpush1.msra.mxu0 %v6262
        %6287 = vmatprep.subr.mxu0 0.0
        %6288 = vmatpush1.msra.mxu0 %v6263
        %6289 = vmatprep.subr.mxu0 0.0
        %6290 = vmatpush1.msra.mxu0 %v6264
        %6291 = vmatprep.subr.mxu0 0.0
        %6292 = vmatpush1.msra.mxu0 %v6265
        %6293 = vmatprep.subr.mxu0 0.0
        %6294 = vmatpush1.msra.mxu0 %v6266
        %6295 = vmatprep.subr.mxu0 0.0
        %6296 = vmatpush1.msra.mxu0 %v6267
        %6297 = vmatprep.subr.mxu0 0.0
        %6298 = vmatpush1.msra.mxu0 %v6268
        %6299 = vmatprep.subr.mxu0 0.0
        %6300 = vmatpush1.msra.mxu0 %v6269
        %6301 = vmatprep.subr.mxu0 0.0
        %6302 = vmatpush1.msra.mxu0 %v6270
        %6303 = vmatprep.subr.mxu0 0.0
        %6304 = vmatpush1.msra.mxu0 0.0
        %6305 = vmatprep.subr.mxu0 0.0
        %6306 = vmatpush1.msra.mxu0 0.0
        %6307 = vmatprep.subr.mxu0 0.0
        %6308 = vmatpush1.msra.mxu0 0.0
        %6309 = vmatprep.subr.mxu0 0.0
        %6310 = vmatpush1.msra.mxu0 0.0
        %6311 = vmatprep.subr.mxu0 0.0
        %6312 = vmatpush1.msra.mxu0 0.0
        %6313 = vmatprep.subr.mxu0 0.0
        %6314 = vmatpush1.msra.mxu0 0.0
        %6315 = vmatprep.subr.mxu0 0.0
        %6316 = vmatpush1.msra.mxu0 0.0
        %6317 = vmatprep.subr.mxu0 0.0
        %6318 = vmatpush1.msra.mxu0 0.0
        %6319 = vmatprep.subr.mxu0 0.0
        %6320 = vmatpush1.msra.mxu0 0.0
        %6321 = vmatprep.subr.mxu0 0.0
        %6322 = vmatpush1.msra.mxu0 0.0
        %6323 = vmatprep.subr.mxu0 0.0
        %6324 = vmatpush1.msra.mxu0 0.0
        %6325 = vmatprep.subr.mxu0 0.0
        %6326 = vmatpush1.msra.mxu0 0.0
        %6327 = vmatprep.subr.mxu0 0.0
        %6328 = vmatpush1.msra.mxu0 0.0
        %6329 = vmatprep.subr.mxu0 0.0
        %6330 = vmatpush1.msra.mxu0 0.0
        %6331 = vmatprep.subr.mxu0 0.0
        %6332 = vmatpush1.msra.mxu0 0.0
        %6333 = vmatprep.subr.mxu0 0.0
        %6334 = vmatpush1.msra.mxu0 0.0
        %6335 = vmatprep.mubr.f32.mxu0 0.0
        %6336 = vmatmul.mubr.f32.gmra.mrb[0].mxu0 %v6223
        %v6337 = vpop.f32.mrb[0].mxu0
        %v6338 = vadd.f32 0.0, %v6337
        %v6339 = vpop.f32.mrb[0].mxu0
        %6340 = vmatprep.mubr.f32.mxu0 0.0
        %6341 = vmatmul.mubr.f32.gmra.mrb[0].mxu0 %v6224
        %v6342 = vpop.f32.mrb[0].mxu0
        %v6343 = vadd.f32 0.0, %v6342
        %v6344 = vpop.f32.mrb[0].mxu0
        %6345 = vmatprep.mubr.f32.mxu0 0.0
        %6346 = vmatmul.mubr.f32.gmra.mrb[0].mxu0 %v6225
        %v6347 = vpop.f32.mrb[0].mxu0
        %v6348 = vadd.f32 0.0, %v6347
        %v6349 = vpop.f32.mrb[0].mxu0
        %6350 = vmatprep.mubr.f32.mxu0 0.0
        %6351 = vmatmul.mubr.f32.gmra.mrb[0].mxu0 %v6226
        %v6352 = vpop.f32.mrb[0].mxu0
        %v6353 = vadd.f32 0.0, %v6352
        %v6354 = vpop.f32.mrb[0].mxu0
        %6355 = vmatprep.mubr.f32.mxu0 0.0
        %6356 = vmatmul.mubr.f32.gmra.mrb[0].mxu0 %v6227
        %v6357 = vpop.f32.mrb[0].mxu0
        %v6358 = vadd.f32 0.0, %v6357
        %v6359 = vpop.f32.mrb[0].mxu0
        %6360 = vmatprep.mubr.f32.mxu0 0.0
        %6361 = vmatmul.mubr.f32.gmra.mrb[0].mxu0 %v6228
        %v6362 = vpop.f32.mrb[0].mxu0
        %v6363 = vadd.f32 0.0, %v6362
        %v6364 = vpop.f32.mrb[0].mxu0
        %6365 = vmatprep.mubr.f32.mxu0 0.0
        %6366 = vmatmul.mubr.f32.gmra.mrb[0].mxu0 %v6229
        %v6367 = vpop.f32.mrb[0].mxu0
        %v6368 = vadd.f32 0.0, %v6367
        %v6369 = vpop.f32.mrb[0].mxu0
        %6370 = vmatprep.mubr.f32.mxu0 0.0
        %6371 = vmatmul.mubr.f32.gmra.mrb[0].mxu0 %v6230
        %v6372 = vpop.f32.mrb[0].mxu0
        %v6373 = vadd.f32 0.0, %v6372
        %v6374 = vpop.f32.mrb[0].mxu0
        %6375 = vmatprep.mubr.f32.mxu0 0.0
        %6376 = vmatmul.mubr.f32.gmra.mrb[0].mxu0 %v6231
        %v6377 = vpop.f32.mrb[0].mxu0
        %v6378 = vadd.f32 0.0, %v6377
        %v6379 = vpop.f32.mrb[0].mxu0
        %6380 = vmatprep.mubr.f32.mxu0 0.0
        %6381 = vmatmul.mubr.f32.gmra.mrb[0].mxu0 %v6232
        %v6382 = vpop.f32.mrb[0].mxu0
        %v6383 = vadd.f32 0.0, %v6382
        %v6384 = vpop.f32.mrb[0].mxu0
        %6385 = vmatprep.mubr.f32.mxu0 0.0
        %6386 = vmatmul.mubr.f32.gmra.mrb[0].mxu0 %v6233
        %v6387 = vpop.f32.mrb[0].mxu0
        %v6388 = vadd.f32 0.0, %v6387
        %v6389 = vpop.f32.mrb[0].mxu0
        %6390 = vmatprep.mubr.f32.mxu0 0.0
        %6391 = vmatmul.mubr.f32.gmra.mrb[0].mxu0 %v6234
        %v6392 = vpop.f32.mrb[0].mxu0
        %v6393 = vadd.f32 0.0, %v6392
        %v6394 = vpop.f32.mrb[0].mxu0
        %6395 = vmatprep.mubr.f32.mxu0 0.0
        %6396 = vmatmul.mubr.f32.gmra.mrb[0].mxu0 %v6235
        %v6397 = vpop.f32.mrb[0].mxu0
        %v6398 = vadd.f32 0.0, %v6397
        %v6399 = vpop.f32.mrb[0].mxu0
        %6400 = vmatprep.mubr.f32.mxu0 0.0
        %6401 = vmatmul.mubr.f32.gmra.mrb[0].mxu0 %v6236
        %v6402 = vpop.f32.mrb[0].mxu0
        %v6403 = vadd.f32 0.0, %v6402
        %v6404 = vpop.f32.mrb[0].mxu0
        %6405 = vmatprep.mubr.f32.mxu0 0.0
        %6406 = vmatmul.mubr.f32.gmra.mrb[0].mxu0 %v6237
        %v6407 = vpop.f32.mrb[0].mxu0
        %v6408 = vadd.f32 0.0, %v6407
        %v6409 = vpop.f32.mrb[0].mxu0
        %6410 = vmatprep.mubr.f32.mxu0 0.0
        %6411 = vmatmul.mubr.f32.gmra.mrb[0].mxu0 %v6238
        %v6412 = vpop.f32.mrb[0].mxu0
        %v6413 = vadd.f32 0.0, %v6412
        %v6414 = vpop.f32.mrb[0].mxu0
        %6415 = vmatprep.mubr.f32.mxu0 0.0
        %6416 = vmatmul.mubr.f32.gmra.mrb[0].mxu0 %v6239
        %v6417 = vpop.f32.mrb[0].mxu0
        %v6418 = vadd.f32 0.0, %v6417
        %v6419 = vpop.f32.mrb[0].mxu0
        %6420 = vmatprep.mubr.f32.mxu0 0.0
        %6421 = vmatmul.mubr.f32.gmra.mrb[0].mxu0 %v6240
        %v6422 = vpop.f32.mrb[0].mxu0
        %v6423 = vadd.f32 0.0, %v6422
        %v6424 = vpop.f32.mrb[0].mxu0
        %6425 = vmatprep.mubr.f32.mxu0 0.0
        %6426 = vmatmul.mubr.f32.gmra.mrb[0].mxu0 %v6241
        %v6427 = vpop.f32.mrb[0].mxu0
        %v6428 = vadd.f32 0.0, %v6427
        %v6429 = vpop.f32.mrb[0].mxu0
        %6430 = vmatprep.mubr.f32.mxu0 0.0
        %6431 = vmatmul.mubr.f32.gmra.mrb[0].mxu0 %v6242
        %v6432 = vpop.f32.mrb[0].mxu0
        %v6433 = vadd.f32 0.0, %v6432
        %v6434 = vpop.f32.mrb[0].mxu0
        %6435 = vmatprep.mubr.f32.mxu0 0.0
        %6436 = vmatmul.mubr.f32.gmra.mrb[0].mxu0 %v6243
        %v6437 = vpop.f32.mrb[0].mxu0
        %v6438 = vadd.f32 0.0, %v6437
        %v6439 = vpop.f32.mrb[0].mxu0
        %6440 = vmatprep.mubr.f32.mxu0 0.0
        %6441 = vmatmul.mubr.f32.gmra.mrb[0].mxu0 %v6244
        %v6442 = vpop.f32.mrb[0].mxu0
        %v6443 = vadd.f32 0.0, %v6442
        %v6444 = vpop.f32.mrb[0].mxu0
        %6445 = vmatprep.mubr.f32.mxu0 0.0
        %6446 = vmatmul.mubr.f32.gmra.mrb[0].mxu0 %v6245
        %v6447 = vpop.f32.mrb[0].mxu0
        %v6448 = vadd.f32 0.0, %v6447
        %v6449 = vpop.f32.mrb[0].mxu0
        %6450 = vmatprep.mubr.f32.mxu0 0.0
        %6451 = vmatmul.mubr.f32.gmra.mrb[0].mxu0 %v6246
        %v6452 = vpop.f32.mrb[0].mxu0
        %v6453 = vadd.f32 0.0, %v6452
        %v6454 = vpop.f32.mrb[0].mxu0
        %6455 = vmatprep.mubr.f32.mxu0 0.0
        %6456 = vmatmul.mubr.f32.gmra.mrb[0].mxu0 %v6247
        %v6457 = vpop.f32.mrb[0].mxu0
        %v6458 = vadd.f32 0.0, %v6457
        %v6459 = vpop.f32.mrb[0].mxu0
        %6460 = vmatprep.mubr.f32.mxu0 0.0
        %6461 = vmatmul.mubr.f32.gmra.mrb[0].mxu0 %v6248
        %v6462 = vpop.f32.mrb[0].mxu0
        %v6463 = vadd.f32 0.0, %v6462
        %v6464 = vpop.f32.mrb[0].mxu0
        %6465 = vmatprep.mubr.f32.mxu0 0.0
        %6466 = vmatmul.mubr.f32.gmra.mrb[0].mxu0 %v6249
        %v6467 = vpop.f32.mrb[0].mxu0
        %v6468 = vadd.f32 0.0, %v6467
        %v6469 = vpop.f32.mrb[0].mxu0
        %6470 = vmatprep.mubr.f32.mxu0 0.0
        %6471 = vmatmul.mubr.f32.gmra.mrb[0].mxu0 %v6250
        %v6472 = vpop.f32.mrb[0].mxu0
        %v6473 = vadd.f32 0.0, %v6472
        %v6474 = vpop.f32.mrb[0].mxu0
        %6475 = vmatprep.mubr.f32.mxu0 0.0
        %6476 = vmatmul.mubr.f32.gmra.mrb[0].mxu0 %v6251
        %v6477 = vpop.f32.mrb[0].mxu0
        %v6478 = vadd.f32 0.0, %v6477
        %v6479 = vpop.f32.mrb[0].mxu0
        %6480 = vmatprep.mubr.f32.mxu0 0.0
        %6481 = vmatmul.mubr.f32.gmra.mrb[0].mxu0 %v6252
        %v6482 = vpop.f32.mrb[0].mxu0
        %v6483 = vadd.f32 0.0, %v6482
        %v6484 = vpop.f32.mrb[0].mxu0
        %6485 = vmatprep.mubr.f32.mxu0 0.0
        %6486 = vmatmul.mubr.f32.gmra.mrb[0].mxu0 %v6253
        %v6487 = vpop.f32.mrb[0].mxu0
        %v6488 = vadd.f32 0.0, %v6487
        %v6489 = vpop.f32.mrb[0].mxu0
        %6490 = vmatprep.mubr.f32.mxu0 0.0
        %6491 = vmatmul.mubr.f32.gmra.mrb[0].mxu0 %v6254
        %v6492 = vpop.f32.mrb[0].mxu0
        %v6493 = vadd.f32 0.0, %v6492
        %v6494 = vpop.f32.mrb[0].mxu0
        %6495 = vdwg.mxu0
        %6496 = vmatprep.subr.mxu0 0.0
        %6497 = vmatpush1.msra.mxu0 %v6207
        %6498 = vmatprep.subr.mxu0 0.0
        %6499 = vmatpush1.msra.mxu0 %v6208
        %6500 = vmatprep.subr.mxu0 0.0
        %6501 = vmatpush1.msra.mxu0 %v6209
        %6502 = vmatprep.subr.mxu0 0.0
        %6503 = vmatpush1.msra.mxu0 %v6210
        %6504 = vmatprep.subr.mxu0 0.0
        %6505 = vmatpush1.msra.mxu0 %v6211
        %6506 = vmatprep.subr.mxu0 0.0
        %6507 = vmatpush1.msra.mxu0 %v6212
        %6508 = vmatprep.subr.mxu0 0.0
        %6509 = vmatpush1.msra.mxu0 %v6213
        %6510 = vmatprep.subr.mxu0 0.0
        %6511 = vmatpush1.msra.mxu0 %v6214
        %6512 = vmatprep.subr.mxu0 0.0
        %6513 = vmatpush1.msra.mxu0 %v6215
        %6514 = vmatprep.subr.mxu0 0.0
        %6515 = vmatpush1.msra.mxu0 %v6216
        %6516 = vmatprep.subr.mxu0 0.0
        %6517 = vmatpush1.msra.mxu0 %v6217
        %6518 = vmatprep.subr.mxu0 0.0
        %6519 = vmatpush1.msra.mxu0 %v6218
        %6520 = vmatprep.subr.mxu0 0.0
        %6521 = vmatpush1.msra.mxu0 %v6219
        %6522 = vmatprep.subr.mxu0 0.0
        %6523 = vmatpush1.msra.mxu0 %v6220
        %6524 = vmatprep.subr.mxu0 0.0
        %6525 = vmatpush1.msra.mxu0 %v6221
        %6526 = vmatprep.subr.mxu0 0.0
        %6527 = vmatpush1.msra.mxu0 %v6222
        %6528 = vmatprep.subr.mxu0 0.0
        %6529 = vmatpush1.msra.mxu0 0.0
        %6530 = vmatprep.subr.mxu0 0.0
        %6531 = vmatpush1.msra.mxu0 0.0
        %6532 = vmatprep.subr.mxu0 0.0
        %6533 = vmatpush1.msra.mxu0 0.0
        %6534 = vmatprep.subr.mxu0 0.0
        %6535 = vmatpush1.msra.mxu0 0.0
        %6536 = vmatprep.subr.mxu0 0.0
        %6537 = vmatpush1.msra.mxu0 0.0
        %6538 = vmatprep.subr.mxu0 0.0
        %6539 = vmatpush1.msra.mxu0 0.0
        %6540 = vmatprep.subr.mxu0 0.0
        %6541 = vmatpush1.msra.mxu0 0.0
        %6542 = vmatprep.subr.mxu0 0.0
        %6543 = vmatpush1.msra.mxu0 0.0
        %6544 = vmatprep.subr.mxu0 0.0
        %6545 = vmatpush1.msra.mxu0 0.0
        %6546 = vmatprep.subr.mxu0 0.0
        %6547 = vmatpush1.msra.mxu0 0.0
        %6548 = vmatprep.subr.mxu0 0.0
        %6549 = vmatpush1.msra.mxu0 0.0
        %6550 = vmatprep.subr.mxu0 0.0
        %6551 = vmatpush1.msra.mxu0 0.0
        %6552 = vmatprep.subr.mxu0 0.0
        %6553 = vmatpush1.msra.mxu0 0.0
        %6554 = vmatprep.subr.mxu0 0.0
        %6555 = vmatpush1.msra.mxu0 0.0
        %6556 = vmatprep.subr.mxu0 0.0
        %6557 = vmatpush1.msra.mxu0 0.0
        %6558 = vmatprep.subr.mxu0 0.0
        %6559 = vmatpush1.msra.mxu0 0.0
        %6560 = vmatprep.mubr.f32.mxu0 0.0
        %6561 = vmatmul.mubr.f32.gmra.mrb[0].mxu0 %v6175
        %v6562 = vpop.f32.mrb[0].mxu0
        %v6563 = vadd.f32 %v6338, %v6562
        %v6564 = vpop.f32.mrb[0].mxu0
        %6565 = vmatprep.mubr.f32.mxu0 0.0
        %6566 = vmatmul.mubr.f32.gmra.mrb[0].mxu0 %v6176
        %v6567 = vpop.f32.mrb[0].mxu0
        %v6568 = vadd.f32 %v6343, %v6567
        %v6569 = vpop.f32.mrb[0].mxu0
        %6570 = vmatprep.mubr.f32.mxu0 0.0
        %6571 = vmatmul.mubr.f32.gmra.mrb[0].mxu0 %v6177
        %v6572 = vpop.f32.mrb[0].mxu0
        %v6573 = vadd.f32 %v6348, %v6572
        %v6574 = vpop.f32.mrb[0].mxu0
        %6575 = vmatprep.mubr.f32.mxu0 0.0
        %6576 = vmatmul.mubr.f32.gmra.mrb[0].mxu0 %v6178
        %v6577 = vpop.f32.mrb[0].mxu0
        %v6578 = vadd.f32 %v6353, %v6577
        %v6579 = vpop.f32.mrb[0].mxu0
        %6580 = vmatprep.mubr.f32.mxu0 0.0
        %6581 = vmatmul.mubr.f32.gmra.mrb[0].mxu0 %v6179
        %v6582 = vpop.f32.mrb[0].mxu0
        %v6583 = vadd.f32 %v6358, %v6582
        %v6584 = vpop.f32.mrb[0].mxu0
        %6585 = vmatprep.mubr.f32.mxu0 0.0
        %6586 = vmatmul.mubr.f32.gmra.mrb[0].mxu0 %v6180
        %v6587 = vpop.f32.mrb[0].mxu0
        %v6588 = vadd.f32 %v6363, %v6587
        %v6589 = vpop.f32.mrb[0].mxu0
        %6590 = vmatprep.mubr.f32.mxu0 0.0
        %6591 = vmatmul.mubr.f32.gmra.mrb[0].mxu0 %v6181
        %v6592 = vpop.f32.mrb[0].mxu0
        %v6593 = vadd.f32 %v6368, %v6592
        %v6594 = vpop.f32.mrb[0].mxu0
        %6595 = vmatprep.mubr.f32.mxu0 0.0
        %6596 = vmatmul.mubr.f32.gmra.mrb[0].mxu0 %v6182
        %v6597 = vpop.f32.mrb[0].mxu0
        %v6598 = vadd.f32 %v6373, %v6597
        %v6599 = vpop.f32.mrb[0].mxu0
        %6600 = vmatprep.mubr.f32.mxu0 0.0
        %6601 = vmatmul.mubr.f32.gmra.mrb[0].mxu0 %v6183
        %v6602 = vpop.f32.mrb[0].mxu0
        %v6603 = vadd.f32 %v6378, %v6602
        %v6604 = vpop.f32.mrb[0].mxu0
        %6605 = vmatprep.mubr.f32.mxu0 0.0
        %6606 = vmatmul.mubr.f32.gmra.mrb[0].mxu0 %v6184
        %v6607 = vpop.f32.mrb[0].mxu0
        %v6608 = vadd.f32 %v6383, %v6607
        %v6609 = vpop.f32.mrb[0].mxu0
        %6610 = vmatprep.mubr.f32.mxu0 0.0
        %6611 = vmatmul.mubr.f32.gmra.mrb[0].mxu0 %v6185
        %v6612 = vpop.f32.mrb[0].mxu0
        %v6613 = vadd.f32 %v6388, %v6612
        %v6614 = vpop.f32.mrb[0].mxu0
        %6615 = vmatprep.mubr.f32.mxu0 0.0
        %6616 = vmatmul.mubr.f32.gmra.mrb[0].mxu0 %v6186
        %v6617 = vpop.f32.mrb[0].mxu0
        %v6618 = vadd.f32 %v6393, %v6617
        %v6619 = vpop.f32.mrb[0].mxu0
        %6620 = vmatprep.mubr.f32.mxu0 0.0
        %6621 = vmatmul.mubr.f32.gmra.mrb[0].mxu0 %v6187
        %v6622 = vpop.f32.mrb[0].mxu0
        %v6623 = vadd.f32 %v6398, %v6622
        %v6624 = vpop.f32.mrb[0].mxu0
        %6625 = vmatprep.mubr.f32.mxu0 0.0
        %6626 = vmatmul.mubr.f32.gmra.mrb[0].mxu0 %v6188
        %v6627 = vpop.f32.mrb[0].mxu0
        %v6628 = vadd.f32 %v6403, %v6627
        %v6629 = vpop.f32.mrb[0].mxu0
        %6630 = vmatprep.mubr.f32.mxu0 0.0
        %6631 = vmatmul.mubr.f32.gmra.mrb[0].mxu0 %v6189
        %v6632 = vpop.f32.mrb[0].mxu0
        %v6633 = vadd.f32 %v6408, %v6632
        %v6634 = vpop.f32.mrb[0].mxu0
        %6635 = vmatprep.mubr.f32.mxu0 0.0
        %6636 = vmatmul.mubr.f32.gmra.mrb[0].mxu0 %v6190
        %v6637 = vpop.f32.mrb[0].mxu0
        %v6638 = vadd.f32 %v6413, %v6637
        %v6639 = vpop.f32.mrb[0].mxu0
        %6640 = vmatprep.mubr.f32.mxu0 0.0
        %6641 = vmatmul.mubr.f32.gmra.mrb[0].mxu0 %v6191
        %v6642 = vpop.f32.mrb[0].mxu0
        %v6643 = vadd.f32 %v6418, %v6642
        %v6644 = vpop.f32.mrb[0].mxu0
        %6645 = vmatprep.mubr.f32.mxu0 0.0
        %6646 = vmatmul.mubr.f32.gmra.mrb[0].mxu0 %v6192
        %v6647 = vpop.f32.mrb[0].mxu0
        %v6648 = vadd.f32 %v6423, %v6647
        %v6649 = vpop.f32.mrb[0].mxu0
        %6650 = vmatprep.mubr.f32.mxu0 0.0
        %6651 = vmatmul.mubr.f32.gmra.mrb[0].mxu0 %v6193
        %v6652 = vpop.f32.mrb[0].mxu0
        %v6653 = vadd.f32 %v6428, %v6652
        %v6654 = vpop.f32.mrb[0].mxu0
        %6655 = vmatprep.mubr.f32.mxu0 0.0
        %6656 = vmatmul.mubr.f32.gmra.mrb[0].mxu0 %v6194
        %v6657 = vpop.f32.mrb[0].mxu0
        %v6658 = vadd.f32 %v6433, %v6657
        %v6659 = vpop.f32.mrb[0].mxu0
        %6660 = vmatprep.mubr.f32.mxu0 0.0
        %6661 = vmatmul.mubr.f32.gmra.mrb[0].mxu0 %v6195
        %v6662 = vpop.f32.mrb[0].mxu0
        %v6663 = vadd.f32 %v6438, %v6662
        %v6664 = vpop.f32.mrb[0].mxu0
        %6665 = vmatprep.mubr.f32.mxu0 0.0
        %6666 = vmatmul.mubr.f32.gmra.mrb[0].mxu0 %v6196
        %v6667 = vpop.f32.mrb[0].mxu0
        %v6668 = vadd.f32 %v6443, %v6667
        %v6669 = vpop.f32.mrb[0].mxu0
        %6670 = vmatprep.mubr.f32.mxu0 0.0
        %6671 = vmatmul.mubr.f32.gmra.mrb[0].mxu0 %v6197
        %v6672 = vpop.f32.mrb[0].mxu0
        %v6673 = vadd.f32 %v6448, %v6672
        %v6674 = vpop.f32.mrb[0].mxu0
        %6675 = vmatprep.mubr.f32.mxu0 0.0
        %6676 = vmatmul.mubr.f32.gmra.mrb[0].mxu0 %v6198
        %v6677 = vpop.f32.mrb[0].mxu0
        %v6678 = vadd.f32 %v6453, %v6677
        %v6679 = vpop.f32.mrb[0].mxu0
        %6680 = vmatprep.mubr.f32.mxu0 0.0
        %6681 = vmatmul.mubr.f32.gmra.mrb[0].mxu0 %v6199
        %v6682 = vpop.f32.mrb[0].mxu0
        %v6683 = vadd.f32 %v6458, %v6682
        %v6684 = vpop.f32.mrb[0].mxu0
        %6685 = vmatprep.mubr.f32.mxu0 0.0
        %6686 = vmatmul.mubr.f32.gmra.mrb[0].mxu0 %v6200
        %v6687 = vpop.f32.mrb[0].mxu0
        %v6688 = vadd.f32 %v6463, %v6687
        %v6689 = vpop.f32.mrb[0].mxu0
        %6690 = vmatprep.mubr.f32.mxu0 0.0
        %6691 = vmatmul.mubr.f32.gmra.mrb[0].mxu0 %v6201
        %v6692 = vpop.f32.mrb[0].mxu0
        %v6693 = vadd.f32 %v6468, %v6692
        %v6694 = vpop.f32.mrb[0].mxu0
        %6695 = vmatprep.mubr.f32.mxu0 0.0
        %6696 = vmatmul.mubr.f32.gmra.mrb[0].mxu0 %v6202
        %v6697 = vpop.f32.mrb[0].mxu0
        %v6698 = vadd.f32 %v6473, %v6697
        %v6699 = vpop.f32.mrb[0].mxu0
        %6700 = vmatprep.mubr.f32.mxu0 0.0
        %6701 = vmatmul.mubr.f32.gmra.mrb[0].mxu0 %v6203
        %v6702 = vpop.f32.mrb[0].mxu0
        %v6703 = vadd.f32 %v6478, %v6702
        %v6704 = vpop.f32.mrb[0].mxu0
        %6705 = vmatprep.mubr.f32.mxu0 0.0
        %6706 = vmatmul.mubr.f32.gmra.mrb[0].mxu0 %v6204
        %v6707 = vpop.f32.mrb[0].mxu0
        %v6708 = vadd.f32 %v6483, %v6707
        %v6709 = vpop.f32.mrb[0].mxu0
        %6710 = vmatprep.mubr.f32.mxu0 0.0
        %6711 = vmatmul.mubr.f32.gmra.mrb[0].mxu0 %v6205
        %v6712 = vpop.f32.mrb[0].mxu0
        %v6713 = vadd.f32 %v6488, %v6712
        %v6714 = vpop.f32.mrb[0].mxu0
        %6715 = vmatprep.mubr.f32.mxu0 0.0
        %6716 = vmatmul.mubr.f32.gmra.mrb[0].mxu0 %v6206
        %v6717 = vpop.f32.mrb[0].mxu0
        %v6718 = vadd.f32 %v6493, %v6717
        %v6719 = vpop.f32.mrb[0].mxu0
        %6720 = vdwg.mxu0
        %v6721 = vld [vmem:[#allocation3 + $0x2] sm:$0xff]
        %v6722 = vld [vmem:[#allocation3 + $0xa] sm:$0xff]
        %v6723 = vld [vmem:[#allocation3 + $0x1a] sm:$0xff]
        %v6724 = vld [vmem:[#allocation3 + $0x22] sm:$0xff]
        %v6725 = vld [vmem:[#allocation3 + $0x32] sm:$0xff]
        %v6726 = vld [vmem:[#allocation3 + $0x3a] sm:$0xff]
        %v6727 = vld [vmem:[#allocation3 + $0x4a] sm:$0xff]
        %v6728 = vld [vmem:[#allocation3 + $0x52] sm:$0xff]
        %v6729 = vld [vmem:[#allocation3 + $0x62] sm:$0xff]
        %v6730 = vld [vmem:[#allocation3 + $0x6a] sm:$0xff]
        %v6731 = vld [vmem:[#allocation3 + $0x7a] sm:$0xff]
        %v6732 = vld [vmem:[#allocation3 + $0x82] sm:$0xff]
        %v6733 = vld [vmem:[#allocation3 + $0x92] sm:$0xff]
        %v6734 = vld [vmem:[#allocation3 + $0x9a] sm:$0xff]
        %v6735 = vld [vmem:[#allocation3 + $0xaa] sm:$0xff]
        %v6736 = vld [vmem:[#allocation3 + $0xb2] sm:$0xff]
        %v6737 = vld [vmem:[#allocation3 + $0xc2] sm:$0xff]
        %v6738 = vld [vmem:[#allocation3 + $0xca] sm:$0xff]
        %v6739 = vld [vmem:[#allocation3 + $0xda] sm:$0xff]
        %v6740 = vld [vmem:[#allocation3 + $0xe2] sm:$0xff]
        %v6741 = vld [vmem:[#allocation3 + $0xf2] sm:$0xff]
        %v6742 = vld [vmem:[#allocation3 + $0xfa] sm:$0xff]
        %v6743 = vld [vmem:[#allocation3 + $0x10a] sm:$0xff]
        %v6744 = vld [vmem:[#allocation3 + $0x112] sm:$0xff]
        %v6745 = vld [vmem:[#allocation3 + $0x122] sm:$0xff]
        %v6746 = vld [vmem:[#allocation3 + $0x12a] sm:$0xff]
        %v6747 = vld [vmem:[#allocation3 + $0x13a] sm:$0xff]
        %v6748 = vld [vmem:[#allocation3 + $0x142] sm:$0xff]
        %v6749 = vld [vmem:[#allocation3 + $0x152] sm:$0xff]
        %v6750 = vld [vmem:[#allocation3 + $0x15a] sm:$0xff]
        %v6751 = vld [vmem:[#allocation3 + $0x16a] sm:$0xff]
        %v6752 = vld [vmem:[#allocation3 + $0x172] sm:$0xff]
        %v6753 = vld [vmem:[#allocation13 + $0x100] sm:$0xff]
        %v6754 = vld [vmem:[#allocation13 + $0x108] sm:$0xff]
        %v6755 = vld [vmem:[#allocation13 + $0x110] sm:$0xff]
        %v6756 = vld [vmem:[#allocation13 + $0x118] sm:$0xff]
        %v6757 = vld [vmem:[#allocation13 + $0x120] sm:$0xff]
        %v6758 = vld [vmem:[#allocation13 + $0x128] sm:$0xff]
        %v6759 = vld [vmem:[#allocation13 + $0x130] sm:$0xff]
        %v6760 = vld [vmem:[#allocation13 + $0x138] sm:$0xff]
        %v6761 = vld [vmem:[#allocation13 + $0x140] sm:$0xff]
        %v6762 = vld [vmem:[#allocation13 + $0x148] sm:$0xff]
        %v6763 = vld [vmem:[#allocation13 + $0x150] sm:$0xff]
        %v6764 = vld [vmem:[#allocation13 + $0x158] sm:$0xff]
        %v6765 = vld [vmem:[#allocation13 + $0x160] sm:$0xff]
        %v6766 = vld [vmem:[#allocation13 + $0x168] sm:$0xff]
        %v6767 = vld [vmem:[#allocation13 + $0x170] sm:$0xff]
        %v6768 = vld [vmem:[#allocation13 + $0x178] sm:$0xff]
        %6769 = vmatprep.subr.mxu0 0.0
        %6770 = vmatpush1.msra.mxu0 %v6753
        %6771 = vmatprep.subr.mxu0 0.0
        %6772 = vmatpush1.msra.mxu0 %v6754
        %6773 = vmatprep.subr.mxu0 0.0
        %6774 = vmatpush1.msra.mxu0 %v6755
        %6775 = vmatprep.subr.mxu0 0.0
        %6776 = vmatpush1.msra.mxu0 %v6756
        %6777 = vmatprep.subr.mxu0 0.0
        %6778 = vmatpush1.msra.mxu0 %v6757
        %6779 = vmatprep.subr.mxu0 0.0
        %6780 = vmatpush1.msra.mxu0 %v6758
        %6781 = vmatprep.subr.mxu0 0.0
        %6782 = vmatpush1.msra.mxu0 %v6759
        %6783 = vmatprep.subr.mxu0 0.0
        %6784 = vmatpush1.msra.mxu0 %v6760
        %6785 = vmatprep.subr.mxu0 0.0
        %6786 = vmatpush1.msra.mxu0 %v6761
        %6787 = vmatprep.subr.mxu0 0.0
        %6788 = vmatpush1.msra.mxu0 %v6762
        %6789 = vmatprep.subr.mxu0 0.0
        %6790 = vmatpush1.msra.mxu0 %v6763
        %6791 = vmatprep.subr.mxu0 0.0
        %6792 = vmatpush1.msra.mxu0 %v6764
        %6793 = vmatprep.subr.mxu0 0.0
        %6794 = vmatpush1.msra.mxu0 %v6765
        %6795 = vmatprep.subr.mxu0 0.0
        %6796 = vmatpush1.msra.mxu0 %v6766
        %6797 = vmatprep.subr.mxu0 0.0
        %6798 = vmatpush1.msra.mxu0 %v6767
        %6799 = vmatprep.subr.mxu0 0.0
        %6800 = vmatpush1.msra.mxu0 %v6768
        %6801 = vmatprep.subr.mxu0 0.0
        %6802 = vmatpush1.msra.mxu0 0.0
        %6803 = vmatprep.subr.mxu0 0.0
        %6804 = vmatpush1.msra.mxu0 0.0
        %6805 = vmatprep.subr.mxu0 0.0
        %6806 = vmatpush1.msra.mxu0 0.0
        %6807 = vmatprep.subr.mxu0 0.0
        %6808 = vmatpush1.msra.mxu0 0.0
        %6809 = vmatprep.subr.mxu0 0.0
        %6810 = vmatpush1.msra.mxu0 0.0
        %6811 = vmatprep.subr.mxu0 0.0
        %6812 = vmatpush1.msra.mxu0 0.0
        %6813 = vmatprep.subr.mxu0 0.0
        %6814 = vmatpush1.msra.mxu0 0.0
        %6815 = vmatprep.subr.mxu0 0.0
        %6816 = vmatpush1.msra.mxu0 0.0
        %6817 = vmatprep.subr.mxu0 0.0
        %6818 = vmatpush1.msra.mxu0 0.0
        %6819 = vmatprep.subr.mxu0 0.0
        %6820 = vmatpush1.msra.mxu0 0.0
        %6821 = vmatprep.subr.mxu0 0.0
        %6822 = vmatpush1.msra.mxu0 0.0
        %6823 = vmatprep.subr.mxu0 0.0
        %6824 = vmatpush1.msra.mxu0 0.0
        %6825 = vmatprep.subr.mxu0 0.0
        %6826 = vmatpush1.msra.mxu0 0.0
        %6827 = vmatprep.subr.mxu0 0.0
        %6828 = vmatpush1.msra.mxu0 0.0
        %6829 = vmatprep.subr.mxu0 0.0
        %6830 = vmatpush1.msra.mxu0 0.0
        %6831 = vmatprep.subr.mxu0 0.0
        %6832 = vmatpush1.msra.mxu0 0.0
        %6833 = vmatprep.mubr.f32.mxu0 0.0
        %6834 = vmatmul.mubr.f32.gmra.mrb[0].mxu0 %v6721
        %v6835 = vpop.f32.mrb[0].mxu0
        %v6836 = vadd.f32 0.0, %v6835
        %v6837 = vpop.f32.mrb[0].mxu0
        %6838 = vmatprep.mubr.f32.mxu0 0.0
        %6839 = vmatmul.mubr.f32.gmra.mrb[0].mxu0 %v6722
        %v6840 = vpop.f32.mrb[0].mxu0
        %v6841 = vadd.f32 0.0, %v6840
        %v6842 = vpop.f32.mrb[0].mxu0
        %6843 = vmatprep.mubr.f32.mxu0 0.0
        %6844 = vmatmul.mubr.f32.gmra.mrb[0].mxu0 %v6723
        %v6845 = vpop.f32.mrb[0].mxu0
        %v6846 = vadd.f32 0.0, %v6845
        %v6847 = vpop.f32.mrb[0].mxu0
        %6848 = vmatprep.mubr.f32.mxu0 0.0
        %6849 = vmatmul.mubr.f32.gmra.mrb[0].mxu0 %v6724
        %v6850 = vpop.f32.mrb[0].mxu0
        %v6851 = vadd.f32 0.0, %v6850
        %v6852 = vpop.f32.mrb[0].mxu0
        %6853 = vmatprep.mubr.f32.mxu0 0.0
        %6854 = vmatmul.mubr.f32.gmra.mrb[0].mxu0 %v6725
        %v6855 = vpop.f32.mrb[0].mxu0
        %v6856 = vadd.f32 0.0, %v6855
        %v6857 = vpop.f32.mrb[0].mxu0
        %6858 = vmatprep.mubr.f32.mxu0 0.0
        %6859 = vmatmul.mubr.f32.gmra.mrb[0].mxu0 %v6726
        %v6860 = vpop.f32.mrb[0].mxu0
        %v6861 = vadd.f32 0.0, %v6860
        %v6862 = vpop.f32.mrb[0].mxu0
        %6863 = vmatprep.mubr.f32.mxu0 0.0
        %6864 = vmatmul.mubr.f32.gmra.mrb[0].mxu0 %v6727
        %v6865 = vpop.f32.mrb[0].mxu0
        %v6866 = vadd.f32 0.0, %v6865
        %v6867 = vpop.f32.mrb[0].mxu0
        %6868 = vmatprep.mubr.f32.mxu0 0.0
        %6869 = vmatmul.mubr.f32.gmra.mrb[0].mxu0 %v6728
        %v6870 = vpop.f32.mrb[0].mxu0
        %v6871 = vadd.f32 0.0, %v6870
        %v6872 = vpop.f32.mrb[0].mxu0
        %6873 = vmatprep.mubr.f32.mxu0 0.0
        %6874 = vmatmul.mubr.f32.gmra.mrb[0].mxu0 %v6729
        %v6875 = vpop.f32.mrb[0].mxu0
        %v6876 = vadd.f32 0.0, %v6875
        %v6877 = vpop.f32.mrb[0].mxu0
        %6878 = vmatprep.mubr.f32.mxu0 0.0
        %6879 = vmatmul.mubr.f32.gmra.mrb[0].mxu0 %v6730
        %v6880 = vpop.f32.mrb[0].mxu0
        %v6881 = vadd.f32 0.0, %v6880
        %v6882 = vpop.f32.mrb[0].mxu0
        %6883 = vmatprep.mubr.f32.mxu0 0.0
        %6884 = vmatmul.mubr.f32.gmra.mrb[0].mxu0 %v6731
        %v6885 = vpop.f32.mrb[0].mxu0
        %v6886 = vadd.f32 0.0, %v6885
        %v6887 = vpop.f32.mrb[0].mxu0
        %6888 = vmatprep.mubr.f32.mxu0 0.0
        %6889 = vmatmul.mubr.f32.gmra.mrb[0].mxu0 %v6732
        %v6890 = vpop.f32.mrb[0].mxu0
        %v6891 = vadd.f32 0.0, %v6890
        %v6892 = vpop.f32.mrb[0].mxu0
        %6893 = vmatprep.mubr.f32.mxu0 0.0
        %6894 = vmatmul.mubr.f32.gmra.mrb[0].mxu0 %v6733
        %v6895 = vpop.f32.mrb[0].mxu0
        %v6896 = vadd.f32 0.0, %v6895
        %v6897 = vpop.f32.mrb[0].mxu0
        %6898 = vmatprep.mubr.f32.mxu0 0.0
        %6899 = vmatmul.mubr.f32.gmra.mrb[0].mxu0 %v6734
        %v6900 = vpop.f32.mrb[0].mxu0
        %v6901 = vadd.f32 0.0, %v6900
        %v6902 = vpop.f32.mrb[0].mxu0
        %6903 = vmatprep.mubr.f32.mxu0 0.0
        %6904 = vmatmul.mubr.f32.gmra.mrb[0].mxu0 %v6735
        %v6905 = vpop.f32.mrb[0].mxu0
        %v6906 = vadd.f32 0.0, %v6905
        %v6907 = vpop.f32.mrb[0].mxu0
        %6908 = vmatprep.mubr.f32.mxu0 0.0
        %6909 = vmatmul.mubr.f32.gmra.mrb[0].mxu0 %v6736
        %v6910 = vpop.f32.mrb[0].mxu0
        %v6911 = vadd.f32 0.0, %v6910
        %v6912 = vpop.f32.mrb[0].mxu0
        %6913 = vmatprep.mubr.f32.mxu0 0.0
        %6914 = vmatmul.mubr.f32.gmra.mrb[0].mxu0 %v6737
        %v6915 = vpop.f32.mrb[0].mxu0
        %v6916 = vadd.f32 0.0, %v6915
        %v6917 = vpop.f32.mrb[0].mxu0
        %6918 = vmatprep.mubr.f32.mxu0 0.0
        %6919 = vmatmul.mubr.f32.gmra.mrb[0].mxu0 %v6738
        %v6920 = vpop.f32.mrb[0].mxu0
        %v6921 = vadd.f32 0.0, %v6920
        %v6922 = vpop.f32.mrb[0].mxu0
        %6923 = vmatprep.mubr.f32.mxu0 0.0
        %6924 = vmatmul.mubr.f32.gmra.mrb[0].mxu0 %v6739
        %v6925 = vpop.f32.mrb[0].mxu0
        %v6926 = vadd.f32 0.0, %v6925
        %v6927 = vpop.f32.mrb[0].mxu0
        %6928 = vmatprep.mubr.f32.mxu0 0.0
        %6929 = vmatmul.mubr.f32.gmra.mrb[0].mxu0 %v6740
        %v6930 = vpop.f32.mrb[0].mxu0
        %v6931 = vadd.f32 0.0, %v6930
        %v6932 = vpop.f32.mrb[0].mxu0
        %6933 = vmatprep.mubr.f32.mxu0 0.0
        %6934 = vmatmul.mubr.f32.gmra.mrb[0].mxu0 %v6741
        %v6935 = vpop.f32.mrb[0].mxu0
        %v6936 = vadd.f32 0.0, %v6935
        %v6937 = vpop.f32.mrb[0].mxu0
        %6938 = vmatprep.mubr.f32.mxu0 0.0
        %6939 = vmatmul.mubr.f32.gmra.mrb[0].mxu0 %v6742
        %v6940 = vpop.f32.mrb[0].mxu0
        %v6941 = vadd.f32 0.0, %v6940
        %v6942 = vpop.f32.mrb[0].mxu0
        %6943 = vmatprep.mubr.f32.mxu0 0.0
        %6944 = vmatmul.mubr.f32.gmra.mrb[0].mxu0 %v6743
        %v6945 = vpop.f32.mrb[0].mxu0
        %v6946 = vadd.f32 0.0, %v6945
        %v6947 = vpop.f32.mrb[0].mxu0
        %6948 = vmatprep.mubr.f32.mxu0 0.0
        %6949 = vmatmul.mubr.f32.gmra.mrb[0].mxu0 %v6744
        %v6950 = vpop.f32.mrb[0].mxu0
        %v6951 = vadd.f32 0.0, %v6950
        %v6952 = vpop.f32.mrb[0].mxu0
        %6953 = vmatprep.mubr.f32.mxu0 0.0
        %6954 = vmatmul.mubr.f32.gmra.mrb[0].mxu0 %v6745
        %v6955 = vpop.f32.mrb[0].mxu0
        %v6956 = vadd.f32 0.0, %v6955
        %v6957 = vpop.f32.mrb[0].mxu0
        %6958 = vmatprep.mubr.f32.mxu0 0.0
        %6959 = vmatmul.mubr.f32.gmra.mrb[0].mxu0 %v6746
        %v6960 = vpop.f32.mrb[0].mxu0
        %v6961 = vadd.f32 0.0, %v6960
        %v6962 = vpop.f32.mrb[0].mxu0
        %6963 = vmatprep.mubr.f32.mxu0 0.0
        %6964 = vmatmul.mubr.f32.gmra.mrb[0].mxu0 %v6747
        %v6965 = vpop.f32.mrb[0].mxu0
        %v6966 = vadd.f32 0.0, %v6965
        %v6967 = vpop.f32.mrb[0].mxu0
        %6968 = vmatprep.mubr.f32.mxu0 0.0
        %6969 = vmatmul.mubr.f32.gmra.mrb[0].mxu0 %v6748
        %v6970 = vpop.f32.mrb[0].mxu0
        %v6971 = vadd.f32 0.0, %v6970
        %v6972 = vpop.f32.mrb[0].mxu0
        %6973 = vmatprep.mubr.f32.mxu0 0.0
        %6974 = vmatmul.mubr.f32.gmra.mrb[0].mxu0 %v6749
        %v6975 = vpop.f32.mrb[0].mxu0
        %v6976 = vadd.f32 0.0, %v6975
        %v6977 = vpop.f32.mrb[0].mxu0
        %6978 = vmatprep.mubr.f32.mxu0 0.0
        %6979 = vmatmul.mubr.f32.gmra.mrb[0].mxu0 %v6750
        %v6980 = vpop.f32.mrb[0].mxu0
        %v6981 = vadd.f32 0.0, %v6980
        %v6982 = vpop.f32.mrb[0].mxu0
        %6983 = vmatprep.mubr.f32.mxu0 0.0
        %6984 = vmatmul.mubr.f32.gmra.mrb[0].mxu0 %v6751
        %v6985 = vpop.f32.mrb[0].mxu0
        %v6986 = vadd.f32 0.0, %v6985
        %v6987 = vpop.f32.mrb[0].mxu0
        %6988 = vmatprep.mubr.f32.mxu0 0.0
        %6989 = vmatmul.mubr.f32.gmra.mrb[0].mxu0 %v6752
        %v6990 = vpop.f32.mrb[0].mxu0
        %v6991 = vadd.f32 0.0, %v6990
        %v6992 = vpop.f32.mrb[0].mxu0
        %6993 = vdwg.mxu0
        %v6994 = vadd.f32 %v6563, %v6836
        %v6995 = vadd.f32 %v6568, %v6841
        %v6996 = vadd.f32 %v6573, %v6846
        %v6997 = vadd.f32 %v6578, %v6851
        %v6998 = vadd.f32 %v6583, %v6856
        %v6999 = vadd.f32 %v6588, %v6861
        %v7000 = vadd.f32 %v6593, %v6866
        %v7001 = vadd.f32 %v6598, %v6871
        %v7002 = vadd.f32 %v6603, %v6876
        %v7003 = vadd.f32 %v6608, %v6881
        %v7004 = vadd.f32 %v6613, %v6886
        %v7005 = vadd.f32 %v6618, %v6891
        %v7006 = vadd.f32 %v6623, %v6896
        %v7007 = vadd.f32 %v6628, %v6901
        %v7008 = vadd.f32 %v6633, %v6906
        %v7009 = vadd.f32 %v6638, %v6911
        %v7010 = vadd.f32 %v6643, %v6916
        %v7011 = vadd.f32 %v6648, %v6921
        %v7012 = vadd.f32 %v6653, %v6926
        %v7013 = vadd.f32 %v6658, %v6931
        %v7014 = vadd.f32 %v6663, %v6936
        %v7015 = vadd.f32 %v6668, %v6941
        %v7016 = vadd.f32 %v6673, %v6946
        %v7017 = vadd.f32 %v6678, %v6951
        %v7018 = vadd.f32 %v6683, %v6956
        %v7019 = vadd.f32 %v6688, %v6961
        %v7020 = vadd.f32 %v6693, %v6966
        %v7021 = vadd.f32 %v6698, %v6971
        %v7022 = vadd.f32 %v6703, %v6976
        %v7023 = vadd.f32 %v6708, %v6981
        %v7024 = vadd.f32 %v6713, %v6986
        %v7025 = vadd.f32 %v6718, %v6991
        %v7026 = vld [vmem:[%s6142] sm:$0xff]
        %v7027 = vld [vmem:[%s6142 + $0x8] sm:$0xff]
        %v7028 = vld [vmem:[%s6142 + $0x18] sm:$0xff]
        %v7029 = vld [vmem:[%s6142 + $0x20] sm:$0xff]
        %v7030 = vld [vmem:[%s6142 + $0x30] sm:$0xff]
        %v7031 = vld [vmem:[%s6142 + $0x38] sm:$0xff]
        %v7032 = vld [vmem:[%s6142 + $0x48] sm:$0xff]
        %v7033 = vld [vmem:[%s6142 + $0x50] sm:$0xff]
        %v7034 = vld [vmem:[%s6142 + $0x60] sm:$0xff]
        %v7035 = vld [vmem:[%s6142 + $0x68] sm:$0xff]
        %v7036 = vld [vmem:[%s6142 + $0x78] sm:$0xff]
        %v7037 = vld [vmem:[%s6142 + $0x80] sm:$0xff]
        %v7038 = vld [vmem:[%s6142 + $0x90] sm:$0xff]
        %v7039 = vld [vmem:[%s6142 + $0x98] sm:$0xff]
        %v7040 = vld [vmem:[%s6142 + $0xa8] sm:$0xff]
        %v7041 = vld [vmem:[%s6142 + $0xb0] sm:$0xff]
        %v7042 = vld [vmem:[%s6142 + $0xc0] sm:$0xff]
        %v7043 = vld [vmem:[%s6142 + $0xc8] sm:$0xff]
        %v7044 = vld [vmem:[%s6142 + $0xd8] sm:$0xff]
        %v7045 = vld [vmem:[%s6142 + $0xe0] sm:$0xff]
        %v7046 = vld [vmem:[%s6142 + $0xf0] sm:$0xff]
        %v7047 = vld [vmem:[%s6142 + $0xf8] sm:$0xff]
        %v7048 = vld [vmem:[%s6142 + $0x108] sm:$0xff]
        %v7049 = vld [vmem:[%s6142 + $0x110] sm:$0xff]
        %v7050 = vld [vmem:[%s6142 + $0x120] sm:$0xff]
        %v7051 = vld [vmem:[%s6142 + $0x128] sm:$0xff]
        %v7052 = vld [vmem:[%s6142 + $0x138] sm:$0xff]
        %v7053 = vld [vmem:[%s6142 + $0x140] sm:$0xff]
        %v7054 = vld [vmem:[%s6142 + $0x150] sm:$0xff]
        %v7055 = vld [vmem:[%s6142 + $0x158] sm:$0xff]
        %v7056 = vld [vmem:[%s6142 + $0x168] sm:$0xff]
        %v7057 = vld [vmem:[%s6142 + $0x170] sm:$0xff]
        %v7058 = vld [vmem:[#allocation13 + $0x180] sm:$0xff]
        %v7059 = vld [vmem:[#allocation13 + $0x188] sm:$0xff]
        %v7060 = vld [vmem:[#allocation13 + $0x190] sm:$0xff]
        %v7061 = vld [vmem:[#allocation13 + $0x198] sm:$0xff]
        %v7062 = vld [vmem:[#allocation13 + $0x1a0] sm:$0xff]
        %v7063 = vld [vmem:[#allocation13 + $0x1a8] sm:$0xff]
        %v7064 = vld [vmem:[#allocation13 + $0x1b0] sm:$0xff]
        %v7065 = vld [vmem:[#allocation13 + $0x1b8] sm:$0xff]
        %v7066 = vld [vmem:[#allocation13 + $0x1c0] sm:$0xff]
        %v7067 = vld [vmem:[#allocation13 + $0x1c8] sm:$0xff]
        %v7068 = vld [vmem:[#allocation13 + $0x1d0] sm:$0xff]
        %v7069 = vld [vmem:[#allocation13 + $0x1d8] sm:$0xff]
        %v7070 = vld [vmem:[#allocation13 + $0x1e0] sm:$0xff]
        %v7071 = vld [vmem:[#allocation13 + $0x1e8] sm:$0xff]
        %v7072 = vld [vmem:[#allocation13 + $0x1f0] sm:$0xff]
        %v7073 = vld [vmem:[#allocation13 + $0x1f8] sm:$0xff]
        %7074 = vmatprep.subr.mxu0 0.0
        %7075 = vmatpush1.msra.mxu0 %v7058
        %7076 = vmatprep.subr.mxu0 0.0
        %7077 = vmatpush1.msra.mxu0 %v7059
        %7078 = vmatprep.subr.mxu0 0.0
        %7079 = vmatpush1.msra.mxu0 %v7060
        %7080 = vmatprep.subr.mxu0 0.0
        %7081 = vmatpush1.msra.mxu0 %v7061
        %7082 = vmatprep.subr.mxu0 0.0
        %7083 = vmatpush1.msra.mxu0 %v7062
        %7084 = vmatprep.subr.mxu0 0.0
        %7085 = vmatpush1.msra.mxu0 %v7063
        %7086 = vmatprep.subr.mxu0 0.0
        %7087 = vmatpush1.msra.mxu0 %v7064
        %7088 = vmatprep.subr.mxu0 0.0
        %7089 = vmatpush1.msra.mxu0 %v7065
        %7090 = vmatprep.subr.mxu0 0.0
        %7091 = vmatpush1.msra.mxu0 %v7066
        %7092 = vmatprep.subr.mxu0 0.0
        %7093 = vmatpush1.msra.mxu0 %v7067
        %7094 = vmatprep.subr.mxu0 0.0
        %7095 = vmatpush1.msra.mxu0 %v7068
        %7096 = vmatprep.subr.mxu0 0.0
        %7097 = vmatpush1.msra.mxu0 %v7069
        %7098 = vmatprep.subr.mxu0 0.0
        %7099 = vmatpush1.msra.mxu0 %v7070
        %7100 = vmatprep.subr.mxu0 0.0
        %7101 = vmatpush1.msra.mxu0 %v7071
        %7102 = vmatprep.subr.mxu0 0.0
        %7103 = vmatpush1.msra.mxu0 %v7072
        %7104 = vmatprep.subr.mxu0 0.0
        %7105 = vmatpush1.msra.mxu0 %v7073
        %7106 = vmatprep.subr.mxu0 0.0
        %7107 = vmatpush1.msra.mxu0 0.0
        %7108 = vmatprep.subr.mxu0 0.0
        %7109 = vmatpush1.msra.mxu0 0.0
        %7110 = vmatprep.subr.mxu0 0.0
        %7111 = vmatpush1.msra.mxu0 0.0
        %7112 = vmatprep.subr.mxu0 0.0
        %7113 = vmatpush1.msra.mxu0 0.0
        %7114 = vmatprep.subr.mxu0 0.0
        %7115 = vmatpush1.msra.mxu0 0.0
        %7116 = vmatprep.subr.mxu0 0.0
        %7117 = vmatpush1.msra.mxu0 0.0
        %7118 = vmatprep.subr.mxu0 0.0
        %7119 = vmatpush1.msra.mxu0 0.0
        %7120 = vmatprep.subr.mxu0 0.0
        %7121 = vmatpush1.msra.mxu0 0.0
        %7122 = vmatprep.subr.mxu0 0.0
        %7123 = vmatpush1.msra.mxu0 0.0
        %7124 = vmatprep.subr.mxu0 0.0
        %7125 = vmatpush1.msra.mxu0 0.0
        %7126 = vmatprep.subr.mxu0 0.0
        %7127 = vmatpush1.msra.mxu0 0.0
        %7128 = vmatprep.subr.mxu0 0.0
        %7129 = vmatpush1.msra.mxu0 0.0
        %7130 = vmatprep.subr.mxu0 0.0
        %7131 = vmatpush1.msra.mxu0 0.0
        %7132 = vmatprep.subr.mxu0 0.0
        %7133 = vmatpush1.msra.mxu0 0.0
        %7134 = vmatprep.subr.mxu0 0.0
        %7135 = vmatpush1.msra.mxu0 0.0
        %7136 = vmatprep.subr.mxu0 0.0
        %7137 = vmatpush1.msra.mxu0 0.0
        %7138 = vmatprep.mubr.f32.mxu0 0.0
        %7139 = vmatmul.mubr.f32.gmra.mrb[0].mxu0 %v7026
        %v7140 = vpop.f32.mrb[0].mxu0
        %v7141 = vadd.f32 0.0, %v7140
        %v7142 = vpop.f32.mrb[0].mxu0
        %7143 = vmatprep.mubr.f32.mxu0 0.0
        %7144 = vmatmul.mubr.f32.gmra.mrb[0].mxu0 %v7027
        %v7145 = vpop.f32.mrb[0].mxu0
        %v7146 = vadd.f32 0.0, %v7145
        %v7147 = vpop.f32.mrb[0].mxu0
        %7148 = vmatprep.mubr.f32.mxu0 0.0
        %7149 = vmatmul.mubr.f32.gmra.mrb[0].mxu0 %v7028
        %v7150 = vpop.f32.mrb[0].mxu0
        %v7151 = vadd.f32 0.0, %v7150
        %v7152 = vpop.f32.mrb[0].mxu0
        %7153 = vmatprep.mubr.f32.mxu0 0.0
        %7154 = vmatmul.mubr.f32.gmra.mrb[0].mxu0 %v7029
        %v7155 = vpop.f32.mrb[0].mxu0
        %v7156 = vadd.f32 0.0, %v7155
        %v7157 = vpop.f32.mrb[0].mxu0
        %7158 = vmatprep.mubr.f32.mxu0 0.0
        %7159 = vmatmul.mubr.f32.gmra.mrb[0].mxu0 %v7030
        %v7160 = vpop.f32.mrb[0].mxu0
        %v7161 = vadd.f32 0.0, %v7160
        %v7162 = vpop.f32.mrb[0].mxu0
        %7163 = vmatprep.mubr.f32.mxu0 0.0
        %7164 = vmatmul.mubr.f32.gmra.mrb[0].mxu0 %v7031
        %v7165 = vpop.f32.mrb[0].mxu0
        %v7166 = vadd.f32 0.0, %v7165
        %v7167 = vpop.f32.mrb[0].mxu0
        %7168 = vmatprep.mubr.f32.mxu0 0.0
        %7169 = vmatmul.mubr.f32.gmra.mrb[0].mxu0 %v7032
        %v7170 = vpop.f32.mrb[0].mxu0
        %v7171 = vadd.f32 0.0, %v7170
        %v7172 = vpop.f32.mrb[0].mxu0
        %7173 = vmatprep.mubr.f32.mxu0 0.0
        %7174 = vmatmul.mubr.f32.gmra.mrb[0].mxu0 %v7033
        %v7175 = vpop.f32.mrb[0].mxu0
        %v7176 = vadd.f32 0.0, %v7175
        %v7177 = vpop.f32.mrb[0].mxu0
        %7178 = vmatprep.mubr.f32.mxu0 0.0
        %7179 = vmatmul.mubr.f32.gmra.mrb[0].mxu0 %v7034
        %v7180 = vpop.f32.mrb[0].mxu0
        %v7181 = vadd.f32 0.0, %v7180
        %v7182 = vpop.f32.mrb[0].mxu0
        %7183 = vmatprep.mubr.f32.mxu0 0.0
        %7184 = vmatmul.mubr.f32.gmra.mrb[0].mxu0 %v7035
        %v7185 = vpop.f32.mrb[0].mxu0
        %v7186 = vadd.f32 0.0, %v7185
        %v7187 = vpop.f32.mrb[0].mxu0
        %7188 = vmatprep.mubr.f32.mxu0 0.0
        %7189 = vmatmul.mubr.f32.gmra.mrb[0].mxu0 %v7036
        %v7190 = vpop.f32.mrb[0].mxu0
        %v7191 = vadd.f32 0.0, %v7190
        %v7192 = vpop.f32.mrb[0].mxu0
        %7193 = vmatprep.mubr.f32.mxu0 0.0
        %7194 = vmatmul.mubr.f32.gmra.mrb[0].mxu0 %v7037
        %v7195 = vpop.f32.mrb[0].mxu0
        %v7196 = vadd.f32 0.0, %v7195
        %v7197 = vpop.f32.mrb[0].mxu0
        %7198 = vmatprep.mubr.f32.mxu0 0.0
        %7199 = vmatmul.mubr.f32.gmra.mrb[0].mxu0 %v7038
        %v7200 = vpop.f32.mrb[0].mxu0
        %v7201 = vadd.f32 0.0, %v7200
        %v7202 = vpop.f32.mrb[0].mxu0
        %7203 = vmatprep.mubr.f32.mxu0 0.0
        %7204 = vmatmul.mubr.f32.gmra.mrb[0].mxu0 %v7039
        %v7205 = vpop.f32.mrb[0].mxu0
        %v7206 = vadd.f32 0.0, %v7205
        %v7207 = vpop.f32.mrb[0].mxu0
        %7208 = vmatprep.mubr.f32.mxu0 0.0
        %7209 = vmatmul.mubr.f32.gmra.mrb[0].mxu0 %v7040
        %v7210 = vpop.f32.mrb[0].mxu0
        %v7211 = vadd.f32 0.0, %v7210
        %v7212 = vpop.f32.mrb[0].mxu0
        %7213 = vmatprep.mubr.f32.mxu0 0.0
        %7214 = vmatmul.mubr.f32.gmra.mrb[0].mxu0 %v7041
        %v7215 = vpop.f32.mrb[0].mxu0
        %v7216 = vadd.f32 0.0, %v7215
        %v7217 = vpop.f32.mrb[0].mxu0
        %7218 = vmatprep.mubr.f32.mxu0 0.0
        %7219 = vmatmul.mubr.f32.gmra.mrb[0].mxu0 %v7042
        %v7220 = vpop.f32.mrb[0].mxu0
        %v7221 = vadd.f32 0.0, %v7220
        %v7222 = vpop.f32.mrb[0].mxu0
        %7223 = vmatprep.mubr.f32.mxu0 0.0
        %7224 = vmatmul.mubr.f32.gmra.mrb[0].mxu0 %v7043
        %v7225 = vpop.f32.mrb[0].mxu0
        %v7226 = vadd.f32 0.0, %v7225
        %v7227 = vpop.f32.mrb[0].mxu0
        %7228 = vmatprep.mubr.f32.mxu0 0.0
        %7229 = vmatmul.mubr.f32.gmra.mrb[0].mxu0 %v7044
        %v7230 = vpop.f32.mrb[0].mxu0
        %v7231 = vadd.f32 0.0, %v7230
        %v7232 = vpop.f32.mrb[0].mxu0
        %7233 = vmatprep.mubr.f32.mxu0 0.0
        %7234 = vmatmul.mubr.f32.gmra.mrb[0].mxu0 %v7045
        %v7235 = vpop.f32.mrb[0].mxu0
        %v7236 = vadd.f32 0.0, %v7235
        %v7237 = vpop.f32.mrb[0].mxu0
        %7238 = vmatprep.mubr.f32.mxu0 0.0
        %7239 = vmatmul.mubr.f32.gmra.mrb[0].mxu0 %v7046
        %v7240 = vpop.f32.mrb[0].mxu0
        %v7241 = vadd.f32 0.0, %v7240
        %v7242 = vpop.f32.mrb[0].mxu0
        %7243 = vmatprep.mubr.f32.mxu0 0.0
        %7244 = vmatmul.mubr.f32.gmra.mrb[0].mxu0 %v7047
        %v7245 = vpop.f32.mrb[0].mxu0
        %v7246 = vadd.f32 0.0, %v7245
        %v7247 = vpop.f32.mrb[0].mxu0
        %7248 = vmatprep.mubr.f32.mxu0 0.0
        %7249 = vmatmul.mubr.f32.gmra.mrb[0].mxu0 %v7048
        %v7250 = vpop.f32.mrb[0].mxu0
        %v7251 = vadd.f32 0.0, %v7250
        %v7252 = vpop.f32.mrb[0].mxu0
        %7253 = vmatprep.mubr.f32.mxu0 0.0
        %7254 = vmatmul.mubr.f32.gmra.mrb[0].mxu0 %v7049
        %v7255 = vpop.f32.mrb[0].mxu0
        %v7256 = vadd.f32 0.0, %v7255
        %v7257 = vpop.f32.mrb[0].mxu0
        %7258 = vmatprep.mubr.f32.mxu0 0.0
        %7259 = vmatmul.mubr.f32.gmra.mrb[0].mxu0 %v7050
        %v7260 = vpop.f32.mrb[0].mxu0
        %v7261 = vadd.f32 0.0, %v7260
        %v7262 = vpop.f32.mrb[0].mxu0
        %7263 = vmatprep.mubr.f32.mxu0 0.0
        %7264 = vmatmul.mubr.f32.gmra.mrb[0].mxu0 %v7051
        %v7265 = vpop.f32.mrb[0].mxu0
        %v7266 = vadd.f32 0.0, %v7265
        %v7267 = vpop.f32.mrb[0].mxu0
        %7268 = vmatprep.mubr.f32.mxu0 0.0
        %7269 = vmatmul.mubr.f32.gmra.mrb[0].mxu0 %v7052
        %v7270 = vpop.f32.mrb[0].mxu0
        %v7271 = vadd.f32 0.0, %v7270
        %v7272 = vpop.f32.mrb[0].mxu0
        %7273 = vmatprep.mubr.f32.mxu0 0.0
        %7274 = vmatmul.mubr.f32.gmra.mrb[0].mxu0 %v7053
        %v7275 = vpop.f32.mrb[0].mxu0
        %v7276 = vadd.f32 0.0, %v7275
        %v7277 = vpop.f32.mrb[0].mxu0
        %7278 = vmatprep.mubr.f32.mxu0 0.0
        %7279 = vmatmul.mubr.f32.gmra.mrb[0].mxu0 %v7054
        %v7280 = vpop.f32.mrb[0].mxu0
        %v7281 = vadd.f32 0.0, %v7280
        %v7282 = vpop.f32.mrb[0].mxu0
        %7283 = vmatprep.mubr.f32.mxu0 0.0
        %7284 = vmatmul.mubr.f32.gmra.mrb[0].mxu0 %v7055
        %v7285 = vpop.f32.mrb[0].mxu0
        %v7286 = vadd.f32 0.0, %v7285
        %v7287 = vpop.f32.mrb[0].mxu0
        %7288 = vmatprep.mubr.f32.mxu0 0.0
        %7289 = vmatmul.mubr.f32.gmra.mrb[0].mxu0 %v7056
        %v7290 = vpop.f32.mrb[0].mxu0
        %v7291 = vadd.f32 0.0, %v7290
        %v7292 = vpop.f32.mrb[0].mxu0
        %7293 = vmatprep.mubr.f32.mxu0 0.0
        %7294 = vmatmul.mubr.f32.gmra.mrb[0].mxu0 %v7057
        %v7295 = vpop.f32.mrb[0].mxu0
        %v7296 = vadd.f32 0.0, %v7295
        %v7297 = vpop.f32.mrb[0].mxu0
        %7298 = vdwg.mxu0
        %v7299 = vadd.f32 %v6994, %v7141
        %v7300 = vadd.f32 %v6995, %v7146
        %v7301 = vadd.f32 %v6996, %v7151
        %v7302 = vadd.f32 %v6997, %v7156
        %v7303 = vadd.f32 %v6998, %v7161
        %v7304 = vadd.f32 %v6999, %v7166
        %v7305 = vadd.f32 %v7000, %v7171
        %v7306 = vadd.f32 %v7001, %v7176
        %v7307 = vadd.f32 %v7002, %v7181
        %v7308 = vadd.f32 %v7003, %v7186
        %v7309 = vadd.f32 %v7004, %v7191
        %v7310 = vadd.f32 %v7005, %v7196
        %v7311 = vadd.f32 %v7006, %v7201
        %v7312 = vadd.f32 %v7007, %v7206
        %v7313 = vadd.f32 %v7008, %v7211
        %v7314 = vadd.f32 %v7009, %v7216
        %v7315 = vadd.f32 %v7010, %v7221
        %v7316 = vadd.f32 %v7011, %v7226
        %v7317 = vadd.f32 %v7012, %v7231
        %v7318 = vadd.f32 %v7013, %v7236
        %v7319 = vadd.f32 %v7014, %v7241
        %v7320 = vadd.f32 %v7015, %v7246
        %v7321 = vadd.f32 %v7016, %v7251
        %v7322 = vadd.f32 %v7017, %v7256
        %v7323 = vadd.f32 %v7018, %v7261
        %v7324 = vadd.f32 %v7019, %v7266
        %v7325 = vadd.f32 %v7020, %v7271
        %v7326 = vadd.f32 %v7021, %v7276
        %v7327 = vadd.f32 %v7022, %v7281
        %v7328 = vadd.f32 %v7023, %v7286
        %v7329 = vadd.f32 %v7024, %v7291
        %v7330 = vadd.f32 %v7025, %v7296
        %v7331 = vld [vmem:[%s6142 + $0x1] sm:$0xff]
        %v7332 = vld [vmem:[%s6142 + $0x9] sm:$0xff]
        %v7333 = vld [vmem:[%s6142 + $0x19] sm:$0xff]
        %v7334 = vld [vmem:[%s6142 + $0x21] sm:$0xff]
        %v7335 = vld [vmem:[%s6142 + $0x31] sm:$0xff]
        %v7336 = vld [vmem:[%s6142 + $0x39] sm:$0xff]
        %v7337 = vld [vmem:[%s6142 + $0x49] sm:$0xff]
        %v7338 = vld [vmem:[%s6142 + $0x51] sm:$0xff]
        %v7339 = vld [vmem:[%s6142 + $0x61] sm:$0xff]
        %v7340 = vld [vmem:[%s6142 + $0x69] sm:$0xff]
        %v7341 = vld [vmem:[%s6142 + $0x79] sm:$0xff]
        %v7342 = vld [vmem:[%s6142 + $0x81] sm:$0xff]
        %v7343 = vld [vmem:[%s6142 + $0x91] sm:$0xff]
        %v7344 = vld [vmem:[%s6142 + $0x99] sm:$0xff]
        %v7345 = vld [vmem:[%s6142 + $0xa9] sm:$0xff]
        %v7346 = vld [vmem:[%s6142 + $0xb1] sm:$0xff]
        %v7347 = vld [vmem:[%s6142 + $0xc1] sm:$0xff]
        %v7348 = vld [vmem:[%s6142 + $0xc9] sm:$0xff]
        %v7349 = vld [vmem:[%s6142 + $0xd9] sm:$0xff]
        %v7350 = vld [vmem:[%s6142 + $0xe1] sm:$0xff]
        %v7351 = vld [vmem:[%s6142 + $0xf1] sm:$0xff]
        %v7352 = vld [vmem:[%s6142 + $0xf9] sm:$0xff]
        %v7353 = vld [vmem:[%s6142 + $0x109] sm:$0xff]
        %v7354 = vld [vmem:[%s6142 + $0x111] sm:$0xff]
        %v7355 = vld [vmem:[%s6142 + $0x121] sm:$0xff]
        %v7356 = vld [vmem:[%s6142 + $0x129] sm:$0xff]
        %v7357 = vld [vmem:[%s6142 + $0x139] sm:$0xff]
        %v7358 = vld [vmem:[%s6142 + $0x141] sm:$0xff]
        %v7359 = vld [vmem:[%s6142 + $0x151] sm:$0xff]
        %v7360 = vld [vmem:[%s6142 + $0x159] sm:$0xff]
        %v7361 = vld [vmem:[%s6142 + $0x169] sm:$0xff]
        %v7362 = vld [vmem:[%s6142 + $0x171] sm:$0xff]
        %v7363 = vld [vmem:[#allocation13 + $0x200] sm:$0xff]
        %v7364 = vld [vmem:[#allocation13 + $0x208] sm:$0xff]
        %v7365 = vld [vmem:[#allocation13 + $0x210] sm:$0xff]
        %v7366 = vld [vmem:[#allocation13 + $0x218] sm:$0xff]
        %v7367 = vld [vmem:[#allocation13 + $0x220] sm:$0xff]
        %v7368 = vld [vmem:[#allocation13 + $0x228] sm:$0xff]
        %v7369 = vld [vmem:[#allocation13 + $0x230] sm:$0xff]
        %v7370 = vld [vmem:[#allocation13 + $0x238] sm:$0xff]
        %v7371 = vld [vmem:[#allocation13 + $0x240] sm:$0xff]
        %v7372 = vld [vmem:[#allocation13 + $0x248] sm:$0xff]
        %v7373 = vld [vmem:[#allocation13 + $0x250] sm:$0xff]
        %v7374 = vld [vmem:[#allocation13 + $0x258] sm:$0xff]
        %v7375 = vld [vmem:[#allocation13 + $0x260] sm:$0xff]
        %v7376 = vld [vmem:[#allocation13 + $0x268] sm:$0xff]
        %v7377 = vld [vmem:[#allocation13 + $0x270] sm:$0xff]
        %v7378 = vld [vmem:[#allocation13 + $0x278] sm:$0xff]
        %7379 = vmatprep.subr.mxu0 0.0
        %7380 = vmatpush1.msra.mxu0 %v7363
        %7381 = vmatprep.subr.mxu0 0.0
        %7382 = vmatpush1.msra.mxu0 %v7364
        %7383 = vmatprep.subr.mxu0 0.0
        %7384 = vmatpush1.msra.mxu0 %v7365
        %7385 = vmatprep.subr.mxu0 0.0
        %7386 = vmatpush1.msra.mxu0 %v7366
        %7387 = vmatprep.subr.mxu0 0.0
        %7388 = vmatpush1.msra.mxu0 %v7367
        %7389 = vmatprep.subr.mxu0 0.0
        %7390 = vmatpush1.msra.mxu0 %v7368
        %7391 = vmatprep.subr.mxu0 0.0
        %7392 = vmatpush1.msra.mxu0 %v7369
        %7393 = vmatprep.subr.mxu0 0.0
        %7394 = vmatpush1.msra.mxu0 %v7370
        %7395 = vmatprep.subr.mxu0 0.0
        %7396 = vmatpush1.msra.mxu0 %v7371
        %7397 = vmatprep.subr.mxu0 0.0
        %7398 = vmatpush1.msra.mxu0 %v7372
        %7399 = vmatprep.subr.mxu0 0.0
        %7400 = vmatpush1.msra.mxu0 %v7373
        %7401 = vmatprep.subr.mxu0 0.0
        %7402 = vmatpush1.msra.mxu0 %v7374
        %7403 = vmatprep.subr.mxu0 0.0
        %7404 = vmatpush1.msra.mxu0 %v7375
        %7405 = vmatprep.subr.mxu0 0.0
        %7406 = vmatpush1.msra.mxu0 %v7376
        %7407 = vmatprep.subr.mxu0 0.0
        %7408 = vmatpush1.msra.mxu0 %v7377
        %7409 = vmatprep.subr.mxu0 0.0
        %7410 = vmatpush1.msra.mxu0 %v7378
        %7411 = vmatprep.subr.mxu0 0.0
        %7412 = vmatpush1.msra.mxu0 0.0
        %7413 = vmatprep.subr.mxu0 0.0
        %7414 = vmatpush1.msra.mxu0 0.0
        %7415 = vmatprep.subr.mxu0 0.0
        %7416 = vmatpush1.msra.mxu0 0.0
        %7417 = vmatprep.subr.mxu0 0.0
        %7418 = vmatpush1.msra.mxu0 0.0
        %7419 = vmatprep.subr.mxu0 0.0
        %7420 = vmatpush1.msra.mxu0 0.0
        %7421 = vmatprep.subr.mxu0 0.0
        %7422 = vmatpush1.msra.mxu0 0.0
        %7423 = vmatprep.subr.mxu0 0.0
        %7424 = vmatpush1.msra.mxu0 0.0
        %7425 = vmatprep.subr.mxu0 0.0
        %7426 = vmatpush1.msra.mxu0 0.0
        %7427 = vmatprep.subr.mxu0 0.0
        %7428 = vmatpush1.msra.mxu0 0.0
        %7429 = vmatprep.subr.mxu0 0.0
        %7430 = vmatpush1.msra.mxu0 0.0
        %7431 = vmatprep.subr.mxu0 0.0
        %7432 = vmatpush1.msra.mxu0 0.0
        %7433 = vmatprep.subr.mxu0 0.0
        %7434 = vmatpush1.msra.mxu0 0.0
        %7435 = vmatprep.subr.mxu0 0.0
        %7436 = vmatpush1.msra.mxu0 0.0
        %7437 = vmatprep.subr.mxu0 0.0
        %7438 = vmatpush1.msra.mxu0 0.0
        %7439 = vmatprep.subr.mxu0 0.0
        %7440 = vmatpush1.msra.mxu0 0.0
        %7441 = vmatprep.subr.mxu0 0.0
        %7442 = vmatpush1.msra.mxu0 0.0
        %7443 = vmatprep.mubr.f32.mxu0 0.0
        %7444 = vmatmul.mubr.f32.gmra.mrb[0].mxu0 %v7331
        %v7445 = vpop.f32.mrb[0].mxu0
        %v7446 = vadd.f32 0.0, %v7445
        %v7447 = vpop.f32.mrb[0].mxu0
        %7448 = vmatprep.mubr.f32.mxu0 0.0
        %7449 = vmatmul.mubr.f32.gmra.mrb[0].mxu0 %v7332
        %v7450 = vpop.f32.mrb[0].mxu0
        %v7451 = vadd.f32 0.0, %v7450
        %v7452 = vpop.f32.mrb[0].mxu0
        %7453 = vmatprep.mubr.f32.mxu0 0.0
        %7454 = vmatmul.mubr.f32.gmra.mrb[0].mxu0 %v7333
        %v7455 = vpop.f32.mrb[0].mxu0
        %v7456 = vadd.f32 0.0, %v7455
        %v7457 = vpop.f32.mrb[0].mxu0
        %7458 = vmatprep.mubr.f32.mxu0 0.0
        %7459 = vmatmul.mubr.f32.gmra.mrb[0].mxu0 %v7334
        %v7460 = vpop.f32.mrb[0].mxu0
        %v7461 = vadd.f32 0.0, %v7460
        %v7462 = vpop.f32.mrb[0].mxu0
        %7463 = vmatprep.mubr.f32.mxu0 0.0
        %7464 = vmatmul.mubr.f32.gmra.mrb[0].mxu0 %v7335
        %v7465 = vpop.f32.mrb[0].mxu0
        %v7466 = vadd.f32 0.0, %v7465
        %v7467 = vpop.f32.mrb[0].mxu0
        %7468 = vmatprep.mubr.f32.mxu0 0.0
        %7469 = vmatmul.mubr.f32.gmra.mrb[0].mxu0 %v7336
        %v7470 = vpop.f32.mrb[0].mxu0
        %v7471 = vadd.f32 0.0, %v7470
        %v7472 = vpop.f32.mrb[0].mxu0
        %7473 = vmatprep.mubr.f32.mxu0 0.0
        %7474 = vmatmul.mubr.f32.gmra.mrb[0].mxu0 %v7337
        %v7475 = vpop.f32.mrb[0].mxu0
        %v7476 = vadd.f32 0.0, %v7475
        %v7477 = vpop.f32.mrb[0].mxu0
        %7478 = vmatprep.mubr.f32.mxu0 0.0
        %7479 = vmatmul.mubr.f32.gmra.mrb[0].mxu0 %v7338
        %v7480 = vpop.f32.mrb[0].mxu0
        %v7481 = vadd.f32 0.0, %v7480
        %v7482 = vpop.f32.mrb[0].mxu0
        %7483 = vmatprep.mubr.f32.mxu0 0.0
        %7484 = vmatmul.mubr.f32.gmra.mrb[0].mxu0 %v7339
        %v7485 = vpop.f32.mrb[0].mxu0
        %v7486 = vadd.f32 0.0, %v7485
        %v7487 = vpop.f32.mrb[0].mxu0
        %7488 = vmatprep.mubr.f32.mxu0 0.0
        %7489 = vmatmul.mubr.f32.gmra.mrb[0].mxu0 %v7340
        %v7490 = vpop.f32.mrb[0].mxu0
        %v7491 = vadd.f32 0.0, %v7490
        %v7492 = vpop.f32.mrb[0].mxu0
        %7493 = vmatprep.mubr.f32.mxu0 0.0
        %7494 = vmatmul.mubr.f32.gmra.mrb[0].mxu0 %v7341
        %v7495 = vpop.f32.mrb[0].mxu0
        %v7496 = vadd.f32 0.0, %v7495
        %v7497 = vpop.f32.mrb[0].mxu0
        %7498 = vmatprep.mubr.f32.mxu0 0.0
        %7499 = vmatmul.mubr.f32.gmra.mrb[0].mxu0 %v7342
        %v7500 = vpop.f32.mrb[0].mxu0
        %v7501 = vadd.f32 0.0, %v7500
        %v7502 = vpop.f32.mrb[0].mxu0
        %7503 = vmatprep.mubr.f32.mxu0 0.0
        %7504 = vmatmul.mubr.f32.gmra.mrb[0].mxu0 %v7343
        %v7505 = vpop.f32.mrb[0].mxu0
        %v7506 = vadd.f32 0.0, %v7505
        %v7507 = vpop.f32.mrb[0].mxu0
        %7508 = vmatprep.mubr.f32.mxu0 0.0
        %7509 = vmatmul.mubr.f32.gmra.mrb[0].mxu0 %v7344
        %v7510 = vpop.f32.mrb[0].mxu0
        %v7511 = vadd.f32 0.0, %v7510
        %v7512 = vpop.f32.mrb[0].mxu0
        %7513 = vmatprep.mubr.f32.mxu0 0.0
        %7514 = vmatmul.mubr.f32.gmra.mrb[0].mxu0 %v7345
        %v7515 = vpop.f32.mrb[0].mxu0
        %v7516 = vadd.f32 0.0, %v7515
        %v7517 = vpop.f32.mrb[0].mxu0
        %7518 = vmatprep.mubr.f32.mxu0 0.0
        %7519 = vmatmul.mubr.f32.gmra.mrb[0].mxu0 %v7346
        %v7520 = vpop.f32.mrb[0].mxu0
        %v7521 = vadd.f32 0.0, %v7520
        %v7522 = vpop.f32.mrb[0].mxu0
        %7523 = vmatprep.mubr.f32.mxu0 0.0
        %7524 = vmatmul.mubr.f32.gmra.mrb[0].mxu0 %v7347
        %v7525 = vpop.f32.mrb[0].mxu0
        %v7526 = vadd.f32 0.0, %v7525
        %v7527 = vpop.f32.mrb[0].mxu0
        %7528 = vmatprep.mubr.f32.mxu0 0.0
        %7529 = vmatmul.mubr.f32.gmra.mrb[0].mxu0 %v7348
        %v7530 = vpop.f32.mrb[0].mxu0
        %v7531 = vadd.f32 0.0, %v7530
        %v7532 = vpop.f32.mrb[0].mxu0
        %7533 = vmatprep.mubr.f32.mxu0 0.0
        %7534 = vmatmul.mubr.f32.gmra.mrb[0].mxu0 %v7349
        %v7535 = vpop.f32.mrb[0].mxu0
        %v7536 = vadd.f32 0.0, %v7535
        %v7537 = vpop.f32.mrb[0].mxu0
        %7538 = vmatprep.mubr.f32.mxu0 0.0
        %7539 = vmatmul.mubr.f32.gmra.mrb[0].mxu0 %v7350
        %v7540 = vpop.f32.mrb[0].mxu0
        %v7541 = vadd.f32 0.0, %v7540
        %v7542 = vpop.f32.mrb[0].mxu0
        %7543 = vmatprep.mubr.f32.mxu0 0.0
        %7544 = vmatmul.mubr.f32.gmra.mrb[0].mxu0 %v7351
        %v7545 = vpop.f32.mrb[0].mxu0
        %v7546 = vadd.f32 0.0, %v7545
        %v7547 = vpop.f32.mrb[0].mxu0
        %7548 = vmatprep.mubr.f32.mxu0 0.0
        %7549 = vmatmul.mubr.f32.gmra.mrb[0].mxu0 %v7352
        %v7550 = vpop.f32.mrb[0].mxu0
        %v7551 = vadd.f32 0.0, %v7550
        %v7552 = vpop.f32.mrb[0].mxu0
        %7553 = vmatprep.mubr.f32.mxu0 0.0
        %7554 = vmatmul.mubr.f32.gmra.mrb[0].mxu0 %v7353
        %v7555 = vpop.f32.mrb[0].mxu0
        %v7556 = vadd.f32 0.0, %v7555
        %v7557 = vpop.f32.mrb[0].mxu0
        %7558 = vmatprep.mubr.f32.mxu0 0.0
        %7559 = vmatmul.mubr.f32.gmra.mrb[0].mxu0 %v7354
        %v7560 = vpop.f32.mrb[0].mxu0
        %v7561 = vadd.f32 0.0, %v7560
        %v7562 = vpop.f32.mrb[0].mxu0
        %7563 = vmatprep.mubr.f32.mxu0 0.0
        %7564 = vmatmul.mubr.f32.gmra.mrb[0].mxu0 %v7355
        %v7565 = vpop.f32.mrb[0].mxu0
        %v7566 = vadd.f32 0.0, %v7565
        %v7567 = vpop.f32.mrb[0].mxu0
        %7568 = vmatprep.mubr.f32.mxu0 0.0
        %7569 = vmatmul.mubr.f32.gmra.mrb[0].mxu0 %v7356
        %v7570 = vpop.f32.mrb[0].mxu0
        %v7571 = vadd.f32 0.0, %v7570
        %v7572 = vpop.f32.mrb[0].mxu0
        %7573 = vmatprep.mubr.f32.mxu0 0.0
        %7574 = vmatmul.mubr.f32.gmra.mrb[0].mxu0 %v7357
        %v7575 = vpop.f32.mrb[0].mxu0
        %v7576 = vadd.f32 0.0, %v7575
        %v7577 = vpop.f32.mrb[0].mxu0
        %7578 = vmatprep.mubr.f32.mxu0 0.0
        %7579 = vmatmul.mubr.f32.gmra.mrb[0].mxu0 %v7358
        %v7580 = vpop.f32.mrb[0].mxu0
        %v7581 = vadd.f32 0.0, %v7580
        %v7582 = vpop.f32.mrb[0].mxu0
        %7583 = vmatprep.mubr.f32.mxu0 0.0
        %7584 = vmatmul.mubr.f32.gmra.mrb[0].mxu0 %v7359
        %v7585 = vpop.f32.mrb[0].mxu0
        %v7586 = vadd.f32 0.0, %v7585
        %v7587 = vpop.f32.mrb[0].mxu0
        %7588 = vmatprep.mubr.f32.mxu0 0.0
        %7589 = vmatmul.mubr.f32.gmra.mrb[0].mxu0 %v7360
        %v7590 = vpop.f32.mrb[0].mxu0
        %v7591 = vadd.f32 0.0, %v7590
        %v7592 = vpop.f32.mrb[0].mxu0
        %7593 = vmatprep.mubr.f32.mxu0 0.0
        %7594 = vmatmul.mubr.f32.gmra.mrb[0].mxu0 %v7361
        %v7595 = vpop.f32.mrb[0].mxu0
        %v7596 = vadd.f32 0.0, %v7595
        %v7597 = vpop.f32.mrb[0].mxu0
        %7598 = vmatprep.mubr.f32.mxu0 0.0
        %7599 = vmatmul.mubr.f32.gmra.mrb[0].mxu0 %v7362
        %v7600 = vpop.f32.mrb[0].mxu0
        %v7601 = vadd.f32 0.0, %v7600
        %v7602 = vpop.f32.mrb[0].mxu0
        %7603 = vdwg.mxu0
        %v7604 = vadd.f32 %v7299, %v7446
        %v7605 = vadd.f32 %v7300, %v7451
        %v7606 = vadd.f32 %v7301, %v7456
        %v7607 = vadd.f32 %v7302, %v7461
        %v7608 = vadd.f32 %v7303, %v7466
        %v7609 = vadd.f32 %v7304, %v7471
        %v7610 = vadd.f32 %v7305, %v7476
        %v7611 = vadd.f32 %v7306, %v7481
        %v7612 = vadd.f32 %v7307, %v7486
        %v7613 = vadd.f32 %v7308, %v7491
        %v7614 = vadd.f32 %v7309, %v7496
        %v7615 = vadd.f32 %v7310, %v7501
        %v7616 = vadd.f32 %v7311, %v7506
        %v7617 = vadd.f32 %v7312, %v7511
        %v7618 = vadd.f32 %v7313, %v7516
        %v7619 = vadd.f32 %v7314, %v7521
        %v7620 = vadd.f32 %v7315, %v7526
        %v7621 = vadd.f32 %v7316, %v7531
        %v7622 = vadd.f32 %v7317, %v7536
        %v7623 = vadd.f32 %v7318, %v7541
        %v7624 = vadd.f32 %v7319, %v7546
        %v7625 = vadd.f32 %v7320, %v7551
        %v7626 = vadd.f32 %v7321, %v7556
        %v7627 = vadd.f32 %v7322, %v7561
        %v7628 = vadd.f32 %v7323, %v7566
        %v7629 = vadd.f32 %v7324, %v7571
        %v7630 = vadd.f32 %v7325, %v7576
        %v7631 = vadd.f32 %v7326, %v7581
        %v7632 = vadd.f32 %v7327, %v7586
        %v7633 = vadd.f32 %v7328, %v7591
        %v7634 = vadd.f32 %v7329, %v7596
        %v7635 = vadd.f32 %v7330, %v7601
        %v7636 = vld [vmem:[%s6142 + $0x2] sm:$0xff]
        %v7637 = vld [vmem:[%s6142 + $0xa] sm:$0xff]
        %v7638 = vld [vmem:[%s6142 + $0x1a] sm:$0xff]
        %v7639 = vld [vmem:[%s6142 + $0x22] sm:$0xff]
        %v7640 = vld [vmem:[%s6142 + $0x32] sm:$0xff]
        %v7641 = vld [vmem:[%s6142 + $0x3a] sm:$0xff]
        %v7642 = vld [vmem:[%s6142 + $0x4a] sm:$0xff]
        %v7643 = vld [vmem:[%s6142 + $0x52] sm:$0xff]
        %v7644 = vld [vmem:[%s6142 + $0x62] sm:$0xff]
        %v7645 = vld [vmem:[%s6142 + $0x6a] sm:$0xff]
        %v7646 = vld [vmem:[%s6142 + $0x7a] sm:$0xff]
        %v7647 = vld [vmem:[%s6142 + $0x82] sm:$0xff]
        %v7648 = vld [vmem:[%s6142 + $0x92] sm:$0xff]
        %v7649 = vld [vmem:[%s6142 + $0x9a] sm:$0xff]
        %v7650 = vld [vmem:[%s6142 + $0xaa] sm:$0xff]
        %v7651 = vld [vmem:[%s6142 + $0xb2] sm:$0xff]
        %v7652 = vld [vmem:[%s6142 + $0xc2] sm:$0xff]
        %v7653 = vld [vmem:[%s6142 + $0xca] sm:$0xff]
        %v7654 = vld [vmem:[%s6142 + $0xda] sm:$0xff]
        %v7655 = vld [vmem:[%s6142 + $0xe2] sm:$0xff]
        %v7656 = vld [vmem:[%s6142 + $0xf2] sm:$0xff]
        %v7657 = vld [vmem:[%s6142 + $0xfa] sm:$0xff]
        %v7658 = vld [vmem:[%s6142 + $0x10a] sm:$0xff]
        %v7659 = vld [vmem:[%s6142 + $0x112] sm:$0xff]
        %v7660 = vld [vmem:[%s6142 + $0x122] sm:$0xff]
        %v7661 = vld [vmem:[%s6142 + $0x12a] sm:$0xff]
        %v7662 = vld [vmem:[%s6142 + $0x13a] sm:$0xff]
        %v7663 = vld [vmem:[%s6142 + $0x142] sm:$0xff]
        %v7664 = vld [vmem:[%s6142 + $0x152] sm:$0xff]
        %v7665 = vld [vmem:[%s6142 + $0x15a] sm:$0xff]
        %v7666 = vld [vmem:[%s6142 + $0x16a] sm:$0xff]
        %v7667 = vld [vmem:[%s6142 + $0x172] sm:$0xff]
        %v7668 = vld [vmem:[#allocation13 + $0x280] sm:$0xff]
        %v7669 = vld [vmem:[#allocation13 + $0x288] sm:$0xff]
        %v7670 = vld [vmem:[#allocation13 + $0x290] sm:$0xff]
        %v7671 = vld [vmem:[#allocation13 + $0x298] sm:$0xff]
        %v7672 = vld [vmem:[#allocation13 + $0x2a0] sm:$0xff]
        %v7673 = vld [vmem:[#allocation13 + $0x2a8] sm:$0xff]
        %v7674 = vld [vmem:[#allocation13 + $0x2b0] sm:$0xff]
        %v7675 = vld [vmem:[#allocation13 + $0x2b8] sm:$0xff]
        %v7676 = vld [vmem:[#allocation13 + $0x2c0] sm:$0xff]
        %v7677 = vld [vmem:[#allocation13 + $0x2c8] sm:$0xff]
        %v7678 = vld [vmem:[#allocation13 + $0x2d0] sm:$0xff]
        %v7679 = vld [vmem:[#allocation13 + $0x2d8] sm:$0xff]
        %v7680 = vld [vmem:[#allocation13 + $0x2e0] sm:$0xff]
        %v7681 = vld [vmem:[#allocation13 + $0x2e8] sm:$0xff]
        %v7682 = vld [vmem:[#allocation13 + $0x2f0] sm:$0xff]
        %v7683 = vld [vmem:[#allocation13 + $0x2f8] sm:$0xff]
        %7684 = vmatprep.subr.mxu0 0.0
        %7685 = vmatpush1.msra.mxu0 %v7668
        %7686 = vmatprep.subr.mxu0 0.0
        %7687 = vmatpush1.msra.mxu0 %v7669
        %7688 = vmatprep.subr.mxu0 0.0
        %7689 = vmatpush1.msra.mxu0 %v7670
        %7690 = vmatprep.subr.mxu0 0.0
        %7691 = vmatpush1.msra.mxu0 %v7671
        %7692 = vmatprep.subr.mxu0 0.0
        %7693 = vmatpush1.msra.mxu0 %v7672
        %7694 = vmatprep.subr.mxu0 0.0
        %7695 = vmatpush1.msra.mxu0 %v7673
        %7696 = vmatprep.subr.mxu0 0.0
        %7697 = vmatpush1.msra.mxu0 %v7674
        %7698 = vmatprep.subr.mxu0 0.0
        %7699 = vmatpush1.msra.mxu0 %v7675
        %7700 = vmatprep.subr.mxu0 0.0
        %7701 = vmatpush1.msra.mxu0 %v7676
        %7702 = vmatprep.subr.mxu0 0.0
        %7703 = vmatpush1.msra.mxu0 %v7677
        %7704 = vmatprep.subr.mxu0 0.0
        %7705 = vmatpush1.msra.mxu0 %v7678
        %7706 = vmatprep.subr.mxu0 0.0
        %7707 = vmatpush1.msra.mxu0 %v7679
        %7708 = vmatprep.subr.mxu0 0.0
        %7709 = vmatpush1.msra.mxu0 %v7680
        %7710 = vmatprep.subr.mxu0 0.0
        %7711 = vmatpush1.msra.mxu0 %v7681
        %7712 = vmatprep.subr.mxu0 0.0
        %7713 = vmatpush1.msra.mxu0 %v7682
        %7714 = vmatprep.subr.mxu0 0.0
        %7715 = vmatpush1.msra.mxu0 %v7683
        %7716 = vmatprep.subr.mxu0 0.0
        %7717 = vmatpush1.msra.mxu0 0.0
        %7718 = vmatprep.subr.mxu0 0.0
        %7719 = vmatpush1.msra.mxu0 0.0
        %7720 = vmatprep.subr.mxu0 0.0
        %7721 = vmatpush1.msra.mxu0 0.0
        %7722 = vmatprep.subr.mxu0 0.0
        %7723 = vmatpush1.msra.mxu0 0.0
        %7724 = vmatprep.subr.mxu0 0.0
        %7725 = vmatpush1.msra.mxu0 0.0
        %7726 = vmatprep.subr.mxu0 0.0
        %7727 = vmatpush1.msra.mxu0 0.0
        %7728 = vmatprep.subr.mxu0 0.0
        %7729 = vmatpush1.msra.mxu0 0.0
        %7730 = vmatprep.subr.mxu0 0.0
        %7731 = vmatpush1.msra.mxu0 0.0
        %7732 = vmatprep.subr.mxu0 0.0
        %7733 = vmatpush1.msra.mxu0 0.0
        %7734 = vmatprep.subr.mxu0 0.0
        %7735 = vmatpush1.msra.mxu0 0.0
        %7736 = vmatprep.subr.mxu0 0.0
        %7737 = vmatpush1.msra.mxu0 0.0
        %7738 = vmatprep.subr.mxu0 0.0
        %7739 = vmatpush1.msra.mxu0 0.0
        %7740 = vmatprep.subr.mxu0 0.0
        %7741 = vmatpush1.msra.mxu0 0.0
        %7742 = vmatprep.subr.mxu0 0.0
        %7743 = vmatpush1.msra.mxu0 0.0
        %7744 = vmatprep.subr.mxu0 0.0
        %7745 = vmatpush1.msra.mxu0 0.0
        %7746 = vmatprep.subr.mxu0 0.0
        %7747 = vmatpush1.msra.mxu0 0.0
        %7748 = vmatprep.mubr.f32.mxu0 0.0
        %7749 = vmatmul.mubr.f32.gmra.mrb[0].mxu0 %v7636
        %v7750 = vpop.f32.mrb[0].mxu0
        %v7751 = vadd.f32 0.0, %v7750
        %v7752 = vpop.f32.mrb[0].mxu0
        %7753 = vmatprep.mubr.f32.mxu0 0.0
        %7754 = vmatmul.mubr.f32.gmra.mrb[0].mxu0 %v7637
        %v7755 = vpop.f32.mrb[0].mxu0
        %v7756 = vadd.f32 0.0, %v7755
        %v7757 = vpop.f32.mrb[0].mxu0
        %7758 = vmatprep.mubr.f32.mxu0 0.0
        %7759 = vmatmul.mubr.f32.gmra.mrb[0].mxu0 %v7638
        %v7760 = vpop.f32.mrb[0].mxu0
        %v7761 = vadd.f32 0.0, %v7760
        %v7762 = vpop.f32.mrb[0].mxu0
        %7763 = vmatprep.mubr.f32.mxu0 0.0
        %7764 = vmatmul.mubr.f32.gmra.mrb[0].mxu0 %v7639
        %v7765 = vpop.f32.mrb[0].mxu0
        %v7766 = vadd.f32 0.0, %v7765
        %v7767 = vpop.f32.mrb[0].mxu0
        %7768 = vmatprep.mubr.f32.mxu0 0.0
        %7769 = vmatmul.mubr.f32.gmra.mrb[0].mxu0 %v7640
        %v7770 = vpop.f32.mrb[0].mxu0
        %v7771 = vadd.f32 0.0, %v7770
        %v7772 = vpop.f32.mrb[0].mxu0
        %7773 = vmatprep.mubr.f32.mxu0 0.0
        %7774 = vmatmul.mubr.f32.gmra.mrb[0].mxu0 %v7641
        %v7775 = vpop.f32.mrb[0].mxu0
        %v7776 = vadd.f32 0.0, %v7775
        %v7777 = vpop.f32.mrb[0].mxu0
        %7778 = vmatprep.mubr.f32.mxu0 0.0
        %7779 = vmatmul.mubr.f32.gmra.mrb[0].mxu0 %v7642
        %v7780 = vpop.f32.mrb[0].mxu0
        %v7781 = vadd.f32 0.0, %v7780
        %v7782 = vpop.f32.mrb[0].mxu0
        %7783 = vmatprep.mubr.f32.mxu0 0.0
        %7784 = vmatmul.mubr.f32.gmra.mrb[0].mxu0 %v7643
        %v7785 = vpop.f32.mrb[0].mxu0
        %v7786 = vadd.f32 0.0, %v7785
        %v7787 = vpop.f32.mrb[0].mxu0
        %7788 = vmatprep.mubr.f32.mxu0 0.0
        %7789 = vmatmul.mubr.f32.gmra.mrb[0].mxu0 %v7644
        %v7790 = vpop.f32.mrb[0].mxu0
        %v7791 = vadd.f32 0.0, %v7790
        %v7792 = vpop.f32.mrb[0].mxu0
        %7793 = vmatprep.mubr.f32.mxu0 0.0
        %7794 = vmatmul.mubr.f32.gmra.mrb[0].mxu0 %v7645
        %v7795 = vpop.f32.mrb[0].mxu0
        %v7796 = vadd.f32 0.0, %v7795
        %v7797 = vpop.f32.mrb[0].mxu0
        %7798 = vmatprep.mubr.f32.mxu0 0.0
        %7799 = vmatmul.mubr.f32.gmra.mrb[0].mxu0 %v7646
        %v7800 = vpop.f32.mrb[0].mxu0
        %v7801 = vadd.f32 0.0, %v7800
        %v7802 = vpop.f32.mrb[0].mxu0
        %7803 = vmatprep.mubr.f32.mxu0 0.0
        %7804 = vmatmul.mubr.f32.gmra.mrb[0].mxu0 %v7647
        %v7805 = vpop.f32.mrb[0].mxu0
        %v7806 = vadd.f32 0.0, %v7805
        %v7807 = vpop.f32.mrb[0].mxu0
        %7808 = vmatprep.mubr.f32.mxu0 0.0
        %7809 = vmatmul.mubr.f32.gmra.mrb[0].mxu0 %v7648
        %v7810 = vpop.f32.mrb[0].mxu0
        %v7811 = vadd.f32 0.0, %v7810
        %v7812 = vpop.f32.mrb[0].mxu0
        %7813 = vmatprep.mubr.f32.mxu0 0.0
        %7814 = vmatmul.mubr.f32.gmra.mrb[0].mxu0 %v7649
        %v7815 = vpop.f32.mrb[0].mxu0
        %v7816 = vadd.f32 0.0, %v7815
        %v7817 = vpop.f32.mrb[0].mxu0
        %7818 = vmatprep.mubr.f32.mxu0 0.0
        %7819 = vmatmul.mubr.f32.gmra.mrb[0].mxu0 %v7650
        %v7820 = vpop.f32.mrb[0].mxu0
        %v7821 = vadd.f32 0.0, %v7820
        %v7822 = vpop.f32.mrb[0].mxu0
        %7823 = vmatprep.mubr.f32.mxu0 0.0
        %7824 = vmatmul.mubr.f32.gmra.mrb[0].mxu0 %v7651
        %v7825 = vpop.f32.mrb[0].mxu0
        %v7826 = vadd.f32 0.0, %v7825
        %v7827 = vpop.f32.mrb[0].mxu0
        %7828 = vmatprep.mubr.f32.mxu0 0.0
        %7829 = vmatmul.mubr.f32.gmra.mrb[0].mxu0 %v7652
        %v7830 = vpop.f32.mrb[0].mxu0
        %v7831 = vadd.f32 0.0, %v7830
        %v7832 = vpop.f32.mrb[0].mxu0
        %7833 = vmatprep.mubr.f32.mxu0 0.0
        %7834 = vmatmul.mubr.f32.gmra.mrb[0].mxu0 %v7653
        %v7835 = vpop.f32.mrb[0].mxu0
        %v7836 = vadd.f32 0.0, %v7835
        %v7837 = vpop.f32.mrb[0].mxu0
        %7838 = vmatprep.mubr.f32.mxu0 0.0
        %7839 = vmatmul.mubr.f32.gmra.mrb[0].mxu0 %v7654
        %v7840 = vpop.f32.mrb[0].mxu0
        %v7841 = vadd.f32 0.0, %v7840
        %v7842 = vpop.f32.mrb[0].mxu0
        %7843 = vmatprep.mubr.f32.mxu0 0.0
        %7844 = vmatmul.mubr.f32.gmra.mrb[0].mxu0 %v7655
        %v7845 = vpop.f32.mrb[0].mxu0
        %v7846 = vadd.f32 0.0, %v7845
        %v7847 = vpop.f32.mrb[0].mxu0
        %7848 = vmatprep.mubr.f32.mxu0 0.0
        %7849 = vmatmul.mubr.f32.gmra.mrb[0].mxu0 %v7656
        %v7850 = vpop.f32.mrb[0].mxu0
        %v7851 = vadd.f32 0.0, %v7850
        %v7852 = vpop.f32.mrb[0].mxu0
        %7853 = vmatprep.mubr.f32.mxu0 0.0
        %7854 = vmatmul.mubr.f32.gmra.mrb[0].mxu0 %v7657
        %v7855 = vpop.f32.mrb[0].mxu0
        %v7856 = vadd.f32 0.0, %v7855
        %v7857 = vpop.f32.mrb[0].mxu0
        %7858 = vmatprep.mubr.f32.mxu0 0.0
        %7859 = vmatmul.mubr.f32.gmra.mrb[0].mxu0 %v7658
        %v7860 = vpop.f32.mrb[0].mxu0
        %v7861 = vadd.f32 0.0, %v7860
        %v7862 = vpop.f32.mrb[0].mxu0
        %7863 = vmatprep.mubr.f32.mxu0 0.0
        %7864 = vmatmul.mubr.f32.gmra.mrb[0].mxu0 %v7659
        %v7865 = vpop.f32.mrb[0].mxu0
        %v7866 = vadd.f32 0.0, %v7865
        %v7867 = vpop.f32.mrb[0].mxu0
        %7868 = vmatprep.mubr.f32.mxu0 0.0
        %7869 = vmatmul.mubr.f32.gmra.mrb[0].mxu0 %v7660
        %v7870 = vpop.f32.mrb[0].mxu0
        %v7871 = vadd.f32 0.0, %v7870
        %v7872 = vpop.f32.mrb[0].mxu0
        %7873 = vmatprep.mubr.f32.mxu0 0.0
        %7874 = vmatmul.mubr.f32.gmra.mrb[0].mxu0 %v7661
        %v7875 = vpop.f32.mrb[0].mxu0
        %v7876 = vadd.f32 0.0, %v7875
        %v7877 = vpop.f32.mrb[0].mxu0
        %7878 = vmatprep.mubr.f32.mxu0 0.0
        %7879 = vmatmul.mubr.f32.gmra.mrb[0].mxu0 %v7662
        %v7880 = vpop.f32.mrb[0].mxu0
        %v7881 = vadd.f32 0.0, %v7880
        %v7882 = vpop.f32.mrb[0].mxu0
        %7883 = vmatprep.mubr.f32.mxu0 0.0
        %7884 = vmatmul.mubr.f32.gmra.mrb[0].mxu0 %v7663
        %v7885 = vpop.f32.mrb[0].mxu0
        %v7886 = vadd.f32 0.0, %v7885
        %v7887 = vpop.f32.mrb[0].mxu0
        %7888 = vmatprep.mubr.f32.mxu0 0.0
        %7889 = vmatmul.mubr.f32.gmra.mrb[0].mxu0 %v7664
        %v7890 = vpop.f32.mrb[0].mxu0
        %v7891 = vadd.f32 0.0, %v7890
        %v7892 = vpop.f32.mrb[0].mxu0
        %7893 = vmatprep.mubr.f32.mxu0 0.0
        %7894 = vmatmul.mubr.f32.gmra.mrb[0].mxu0 %v7665
        %v7895 = vpop.f32.mrb[0].mxu0
        %v7896 = vadd.f32 0.0, %v7895
        %v7897 = vpop.f32.mrb[0].mxu0
        %7898 = vmatprep.mubr.f32.mxu0 0.0
        %7899 = vmatmul.mubr.f32.gmra.mrb[0].mxu0 %v7666
        %v7900 = vpop.f32.mrb[0].mxu0
        %v7901 = vadd.f32 0.0, %v7900
        %v7902 = vpop.f32.mrb[0].mxu0
        %7903 = vmatprep.mubr.f32.mxu0 0.0
        %7904 = vmatmul.mubr.f32.gmra.mrb[0].mxu0 %v7667
        %v7905 = vpop.f32.mrb[0].mxu0
        %v7906 = vadd.f32 0.0, %v7905
        %v7907 = vpop.f32.mrb[0].mxu0
        %7908 = vdwg.mxu0
        %v7909 = vadd.f32 %v7604, %v7751
        %v7910 = vadd.f32 %v7605, %v7756
        %v7911 = vadd.f32 %v7606, %v7761
        %v7912 = vadd.f32 %v7607, %v7766
        %v7913 = vadd.f32 %v7608, %v7771
        %v7914 = vadd.f32 %v7609, %v7776
        %v7915 = vadd.f32 %v7610, %v7781
        %v7916 = vadd.f32 %v7611, %v7786
        %v7917 = vadd.f32 %v7612, %v7791
        %v7918 = vadd.f32 %v7613, %v7796
        %v7919 = vadd.f32 %v7614, %v7801
        %v7920 = vadd.f32 %v7615, %v7806
        %v7921 = vadd.f32 %v7616, %v7811
        %v7922 = vadd.f32 %v7617, %v7816
        %v7923 = vadd.f32 %v7618, %v7821
        %v7924 = vadd.f32 %v7619, %v7826
        %v7925 = vadd.f32 %v7620, %v7831
        %v7926 = vadd.f32 %v7621, %v7836
        %v7927 = vadd.f32 %v7622, %v7841
        %v7928 = vadd.f32 %v7623, %v7846
        %v7929 = vadd.f32 %v7624, %v7851
        %v7930 = vadd.f32 %v7625, %v7856
        %v7931 = vadd.f32 %v7626, %v7861
        %v7932 = vadd.f32 %v7627, %v7866
        %v7933 = vadd.f32 %v7628, %v7871
        %v7934 = vadd.f32 %v7629, %v7876
        %v7935 = vadd.f32 %v7630, %v7881
        %v7936 = vadd.f32 %v7631, %v7886
        %v7937 = vadd.f32 %v7632, %v7891
        %v7938 = vadd.f32 %v7633, %v7896
        %v7939 = vadd.f32 %v7634, %v7901
        %v7940 = vadd.f32 %v7635, %v7906
        %s7941 = scalar_lea.vmem [#allocation3], 48
        %v7942 = vld [vmem:[%s7941] sm:$0xff]
        %v7943 = vld [vmem:[%s7941 + $0x8] sm:$0xff]
        %v7944 = vld [vmem:[%s7941 + $0x18] sm:$0xff]
        %v7945 = vld [vmem:[%s7941 + $0x20] sm:$0xff]
        %v7946 = vld [vmem:[%s7941 + $0x30] sm:$0xff]
        %v7947 = vld [vmem:[%s7941 + $0x38] sm:$0xff]
        %v7948 = vld [vmem:[%s7941 + $0x48] sm:$0xff]
        %v7949 = vld [vmem:[%s7941 + $0x50] sm:$0xff]
        %v7950 = vld [vmem:[%s7941 + $0x60] sm:$0xff]
        %v7951 = vld [vmem:[%s7941 + $0x68] sm:$0xff]
        %v7952 = vld [vmem:[%s7941 + $0x78] sm:$0xff]
        %v7953 = vld [vmem:[%s7941 + $0x80] sm:$0xff]
        %v7954 = vld [vmem:[%s7941 + $0x90] sm:$0xff]
        %v7955 = vld [vmem:[%s7941 + $0x98] sm:$0xff]
        %v7956 = vld [vmem:[%s7941 + $0xa8] sm:$0xff]
        %v7957 = vld [vmem:[%s7941 + $0xb0] sm:$0xff]
        %v7958 = vld [vmem:[%s7941 + $0xc0] sm:$0xff]
        %v7959 = vld [vmem:[%s7941 + $0xc8] sm:$0xff]
        %v7960 = vld [vmem:[%s7941 + $0xd8] sm:$0xff]
        %v7961 = vld [vmem:[%s7941 + $0xe0] sm:$0xff]
        %v7962 = vld [vmem:[%s7941 + $0xf0] sm:$0xff]
        %v7963 = vld [vmem:[%s7941 + $0xf8] sm:$0xff]
        %v7964 = vld [vmem:[%s7941 + $0x108] sm:$0xff]
        %v7965 = vld [vmem:[%s7941 + $0x110] sm:$0xff]
        %v7966 = vld [vmem:[%s7941 + $0x120] sm:$0xff]
        %v7967 = vld [vmem:[%s7941 + $0x128] sm:$0xff]
        %v7968 = vld [vmem:[%s7941 + $0x138] sm:$0xff]
        %v7969 = vld [vmem:[%s7941 + $0x140] sm:$0xff]
        %v7970 = vld [vmem:[%s7941 + $0x150] sm:$0xff]
        %v7971 = vld [vmem:[%s7941 + $0x158] sm:$0xff]
        %v7972 = vld [vmem:[%s7941 + $0x168] sm:$0xff]
        %v7973 = vld [vmem:[%s7941 + $0x170] sm:$0xff]
        %v7974 = vld [vmem:[#allocation13 + $0x300] sm:$0xff]
        %v7975 = vld [vmem:[#allocation13 + $0x308] sm:$0xff]
        %v7976 = vld [vmem:[#allocation13 + $0x310] sm:$0xff]
        %v7977 = vld [vmem:[#allocation13 + $0x318] sm:$0xff]
        %v7978 = vld [vmem:[#allocation13 + $0x320] sm:$0xff]
        %v7979 = vld [vmem:[#allocation13 + $0x328] sm:$0xff]
        %v7980 = vld [vmem:[#allocation13 + $0x330] sm:$0xff]
        %v7981 = vld [vmem:[#allocation13 + $0x338] sm:$0xff]
        %v7982 = vld [vmem:[#allocation13 + $0x340] sm:$0xff]
        %v7983 = vld [vmem:[#allocation13 + $0x348] sm:$0xff]
        %v7984 = vld [vmem:[#allocation13 + $0x350] sm:$0xff]
        %v7985 = vld [vmem:[#allocation13 + $0x358] sm:$0xff]
        %v7986 = vld [vmem:[#allocation13 + $0x360] sm:$0xff]
        %v7987 = vld [vmem:[#allocation13 + $0x368] sm:$0xff]
        %v7988 = vld [vmem:[#allocation13 + $0x370] sm:$0xff]
        %v7989 = vld [vmem:[#allocation13 + $0x378] sm:$0xff]
        %7990 = vmatprep.subr.mxu0 0.0
        %7991 = vmatpush1.msra.mxu0 %v7974
        %7992 = vmatprep.subr.mxu0 0.0
        %7993 = vmatpush1.msra.mxu0 %v7975
        %7994 = vmatprep.subr.mxu0 0.0
        %7995 = vmatpush1.msra.mxu0 %v7976
        %7996 = vmatprep.subr.mxu0 0.0
        %7997 = vmatpush1.msra.mxu0 %v7977
        %7998 = vmatprep.subr.mxu0 0.0
        %7999 = vmatpush1.msra.mxu0 %v7978
        %8000 = vmatprep.subr.mxu0 0.0
        %8001 = vmatpush1.msra.mxu0 %v7979
        %8002 = vmatprep.subr.mxu0 0.0
        %8003 = vmatpush1.msra.mxu0 %v7980
        %8004 = vmatprep.subr.mxu0 0.0
        %8005 = vmatpush1.msra.mxu0 %v7981
        %8006 = vmatprep.subr.mxu0 0.0
        %8007 = vmatpush1.msra.mxu0 %v7982
        %8008 = vmatprep.subr.mxu0 0.0
        %8009 = vmatpush1.msra.mxu0 %v7983
        %8010 = vmatprep.subr.mxu0 0.0
        %8011 = vmatpush1.msra.mxu0 %v7984
        %8012 = vmatprep.subr.mxu0 0.0
        %8013 = vmatpush1.msra.mxu0 %v7985
        %8014 = vmatprep.subr.mxu0 0.0
        %8015 = vmatpush1.msra.mxu0 %v7986
        %8016 = vmatprep.subr.mxu0 0.0
        %8017 = vmatpush1.msra.mxu0 %v7987
        %8018 = vmatprep.subr.mxu0 0.0
        %8019 = vmatpush1.msra.mxu0 %v7988
        %8020 = vmatprep.subr.mxu0 0.0
        %8021 = vmatpush1.msra.mxu0 %v7989
        %8022 = vmatprep.subr.mxu0 0.0
        %8023 = vmatpush1.msra.mxu0 0.0
        %8024 = vmatprep.subr.mxu0 0.0
        %8025 = vmatpush1.msra.mxu0 0.0
        %8026 = vmatprep.subr.mxu0 0.0
        %8027 = vmatpush1.msra.mxu0 0.0
        %8028 = vmatprep.subr.mxu0 0.0
        %8029 = vmatpush1.msra.mxu0 0.0
        %8030 = vmatprep.subr.mxu0 0.0
        %8031 = vmatpush1.msra.mxu0 0.0
        %8032 = vmatprep.subr.mxu0 0.0
        %8033 = vmatpush1.msra.mxu0 0.0
        %8034 = vmatprep.subr.mxu0 0.0
        %8035 = vmatpush1.msra.mxu0 0.0
        %8036 = vmatprep.subr.mxu0 0.0
        %8037 = vmatpush1.msra.mxu0 0.0
        %8038 = vmatprep.subr.mxu0 0.0
        %8039 = vmatpush1.msra.mxu0 0.0
        %8040 = vmatprep.subr.mxu0 0.0
        %8041 = vmatpush1.msra.mxu0 0.0
        %8042 = vmatprep.subr.mxu0 0.0
        %8043 = vmatpush1.msra.mxu0 0.0
        %8044 = vmatprep.subr.mxu0 0.0
        %8045 = vmatpush1.msra.mxu0 0.0
        %8046 = vmatprep.subr.mxu0 0.0
        %8047 = vmatpush1.msra.mxu0 0.0
        %8048 = vmatprep.subr.mxu0 0.0
        %8049 = vmatpush1.msra.mxu0 0.0
        %8050 = vmatprep.subr.mxu0 0.0
        %8051 = vmatpush1.msra.mxu0 0.0
        %8052 = vmatprep.subr.mxu0 0.0
        %8053 = vmatpush1.msra.mxu0 0.0
        %8054 = vmatprep.mubr.f32.mxu0 0.0
        %8055 = vmatmul.mubr.f32.gmra.mrb[0].mxu0 %v7942
        %v8056 = vpop.f32.mrb[0].mxu0
        %v8057 = vadd.f32 0.0, %v8056
        %v8058 = vpop.f32.mrb[0].mxu0
        %8059 = vmatprep.mubr.f32.mxu0 0.0
        %8060 = vmatmul.mubr.f32.gmra.mrb[0].mxu0 %v7943
        %v8061 = vpop.f32.mrb[0].mxu0
        %v8062 = vadd.f32 0.0, %v8061
        %v8063 = vpop.f32.mrb[0].mxu0
        %8064 = vmatprep.mubr.f32.mxu0 0.0
        %8065 = vmatmul.mubr.f32.gmra.mrb[0].mxu0 %v7944
        %v8066 = vpop.f32.mrb[0].mxu0
        %v8067 = vadd.f32 0.0, %v8066
        %v8068 = vpop.f32.mrb[0].mxu0
        %8069 = vmatprep.mubr.f32.mxu0 0.0
        %8070 = vmatmul.mubr.f32.gmra.mrb[0].mxu0 %v7945
        %v8071 = vpop.f32.mrb[0].mxu0
        %v8072 = vadd.f32 0.0, %v8071
        %v8073 = vpop.f32.mrb[0].mxu0
        %8074 = vmatprep.mubr.f32.mxu0 0.0
        %8075 = vmatmul.mubr.f32.gmra.mrb[0].mxu0 %v7946
        %v8076 = vpop.f32.mrb[0].mxu0
        %v8077 = vadd.f32 0.0, %v8076
        %v8078 = vpop.f32.mrb[0].mxu0
        %8079 = vmatprep.mubr.f32.mxu0 0.0
        %8080 = vmatmul.mubr.f32.gmra.mrb[0].mxu0 %v7947
        %v8081 = vpop.f32.mrb[0].mxu0
        %v8082 = vadd.f32 0.0, %v8081
        %v8083 = vpop.f32.mrb[0].mxu0
        %8084 = vmatprep.mubr.f32.mxu0 0.0
        %8085 = vmatmul.mubr.f32.gmra.mrb[0].mxu0 %v7948
        %v8086 = vpop.f32.mrb[0].mxu0
        %v8087 = vadd.f32 0.0, %v8086
        %v8088 = vpop.f32.mrb[0].mxu0
        %8089 = vmatprep.mubr.f32.mxu0 0.0
        %8090 = vmatmul.mubr.f32.gmra.mrb[0].mxu0 %v7949
        %v8091 = vpop.f32.mrb[0].mxu0
        %v8092 = vadd.f32 0.0, %v8091
        %v8093 = vpop.f32.mrb[0].mxu0
        %8094 = vmatprep.mubr.f32.mxu0 0.0
        %8095 = vmatmul.mubr.f32.gmra.mrb[0].mxu0 %v7950
        %v8096 = vpop.f32.mrb[0].mxu0
        %v8097 = vadd.f32 0.0, %v8096
        %v8098 = vpop.f32.mrb[0].mxu0
        %8099 = vmatprep.mubr.f32.mxu0 0.0
        %8100 = vmatmul.mubr.f32.gmra.mrb[0].mxu0 %v7951
        %v8101 = vpop.f32.mrb[0].mxu0
        %v8102 = vadd.f32 0.0, %v8101
        %v8103 = vpop.f32.mrb[0].mxu0
        %8104 = vmatprep.mubr.f32.mxu0 0.0
        %8105 = vmatmul.mubr.f32.gmra.mrb[0].mxu0 %v7952
        %v8106 = vpop.f32.mrb[0].mxu0
        %v8107 = vadd.f32 0.0, %v8106
        %v8108 = vpop.f32.mrb[0].mxu0
        %8109 = vmatprep.mubr.f32.mxu0 0.0
        %8110 = vmatmul.mubr.f32.gmra.mrb[0].mxu0 %v7953
        %v8111 = vpop.f32.mrb[0].mxu0
        %v8112 = vadd.f32 0.0, %v8111
        %v8113 = vpop.f32.mrb[0].mxu0
        %8114 = vmatprep.mubr.f32.mxu0 0.0
        %8115 = vmatmul.mubr.f32.gmra.mrb[0].mxu0 %v7954
        %v8116 = vpop.f32.mrb[0].mxu0
        %v8117 = vadd.f32 0.0, %v8116
        %v8118 = vpop.f32.mrb[0].mxu0
        %8119 = vmatprep.mubr.f32.mxu0 0.0
        %8120 = vmatmul.mubr.f32.gmra.mrb[0].mxu0 %v7955
        %v8121 = vpop.f32.mrb[0].mxu0
        %v8122 = vadd.f32 0.0, %v8121
        %v8123 = vpop.f32.mrb[0].mxu0
        %8124 = vmatprep.mubr.f32.mxu0 0.0
        %8125 = vmatmul.mubr.f32.gmra.mrb[0].mxu0 %v7956
        %v8126 = vpop.f32.mrb[0].mxu0
        %v8127 = vadd.f32 0.0, %v8126
        %v8128 = vpop.f32.mrb[0].mxu0
        %8129 = vmatprep.mubr.f32.mxu0 0.0
        %8130 = vmatmul.mubr.f32.gmra.mrb[0].mxu0 %v7957
        %v8131 = vpop.f32.mrb[0].mxu0
        %v8132 = vadd.f32 0.0, %v8131
        %v8133 = vpop.f32.mrb[0].mxu0
        %8134 = vmatprep.mubr.f32.mxu0 0.0
        %8135 = vmatmul.mubr.f32.gmra.mrb[0].mxu0 %v7958
        %v8136 = vpop.f32.mrb[0].mxu0
        %v8137 = vadd.f32 0.0, %v8136
        %v8138 = vpop.f32.mrb[0].mxu0
        %8139 = vmatprep.mubr.f32.mxu0 0.0
        %8140 = vmatmul.mubr.f32.gmra.mrb[0].mxu0 %v7959
        %v8141 = vpop.f32.mrb[0].mxu0
        %v8142 = vadd.f32 0.0, %v8141
        %v8143 = vpop.f32.mrb[0].mxu0
        %8144 = vmatprep.mubr.f32.mxu0 0.0
        %8145 = vmatmul.mubr.f32.gmra.mrb[0].mxu0 %v7960
        %v8146 = vpop.f32.mrb[0].mxu0
        %v8147 = vadd.f32 0.0, %v8146
        %v8148 = vpop.f32.mrb[0].mxu0
        %8149 = vmatprep.mubr.f32.mxu0 0.0
        %8150 = vmatmul.mubr.f32.gmra.mrb[0].mxu0 %v7961
        %v8151 = vpop.f32.mrb[0].mxu0
        %v8152 = vadd.f32 0.0, %v8151
        %v8153 = vpop.f32.mrb[0].mxu0
        %8154 = vmatprep.mubr.f32.mxu0 0.0
        %8155 = vmatmul.mubr.f32.gmra.mrb[0].mxu0 %v7962
        %v8156 = vpop.f32.mrb[0].mxu0
        %v8157 = vadd.f32 0.0, %v8156
        %v8158 = vpop.f32.mrb[0].mxu0
        %8159 = vmatprep.mubr.f32.mxu0 0.0
        %8160 = vmatmul.mubr.f32.gmra.mrb[0].mxu0 %v7963
        %v8161 = vpop.f32.mrb[0].mxu0
        %v8162 = vadd.f32 0.0, %v8161
        %v8163 = vpop.f32.mrb[0].mxu0
        %8164 = vmatprep.mubr.f32.mxu0 0.0
        %8165 = vmatmul.mubr.f32.gmra.mrb[0].mxu0 %v7964
        %v8166 = vpop.f32.mrb[0].mxu0
        %v8167 = vadd.f32 0.0, %v8166
        %v8168 = vpop.f32.mrb[0].mxu0
        %8169 = vmatprep.mubr.f32.mxu0 0.0
        %8170 = vmatmul.mubr.f32.gmra.mrb[0].mxu0 %v7965
        %v8171 = vpop.f32.mrb[0].mxu0
        %v8172 = vadd.f32 0.0, %v8171
        %v8173 = vpop.f32.mrb[0].mxu0
        %8174 = vmatprep.mubr.f32.mxu0 0.0
        %8175 = vmatmul.mubr.f32.gmra.mrb[0].mxu0 %v7966
        %v8176 = vpop.f32.mrb[0].mxu0
        %v8177 = vadd.f32 0.0, %v8176
        %v8178 = vpop.f32.mrb[0].mxu0
        %8179 = vmatprep.mubr.f32.mxu0 0.0
        %8180 = vmatmul.mubr.f32.gmra.mrb[0].mxu0 %v7967
        %v8181 = vpop.f32.mrb[0].mxu0
        %v8182 = vadd.f32 0.0, %v8181
        %v8183 = vpop.f32.mrb[0].mxu0
        %8184 = vmatprep.mubr.f32.mxu0 0.0
        %8185 = vmatmul.mubr.f32.gmra.mrb[0].mxu0 %v7968
        %v8186 = vpop.f32.mrb[0].mxu0
        %v8187 = vadd.f32 0.0, %v8186
        %v8188 = vpop.f32.mrb[0].mxu0
        %8189 = vmatprep.mubr.f32.mxu0 0.0
        %8190 = vmatmul.mubr.f32.gmra.mrb[0].mxu0 %v7969
        %v8191 = vpop.f32.mrb[0].mxu0
        %v8192 = vadd.f32 0.0, %v8191
        %v8193 = vpop.f32.mrb[0].mxu0
        %8194 = vmatprep.mubr.f32.mxu0 0.0
        %8195 = vmatmul.mubr.f32.gmra.mrb[0].mxu0 %v7970
        %v8196 = vpop.f32.mrb[0].mxu0
        %v8197 = vadd.f32 0.0, %v8196
        %v8198 = vpop.f32.mrb[0].mxu0
        %8199 = vmatprep.mubr.f32.mxu0 0.0
        %8200 = vmatmul.mubr.f32.gmra.mrb[0].mxu0 %v7971
        %v8201 = vpop.f32.mrb[0].mxu0
        %v8202 = vadd.f32 0.0, %v8201
        %v8203 = vpop.f32.mrb[0].mxu0
        %8204 = vmatprep.mubr.f32.mxu0 0.0
        %8205 = vmatmul.mubr.f32.gmra.mrb[0].mxu0 %v7972
        %v8206 = vpop.f32.mrb[0].mxu0
        %v8207 = vadd.f32 0.0, %v8206
        %v8208 = vpop.f32.mrb[0].mxu0
        %8209 = vmatprep.mubr.f32.mxu0 0.0
        %8210 = vmatmul.mubr.f32.gmra.mrb[0].mxu0 %v7973
        %v8211 = vpop.f32.mrb[0].mxu0
        %v8212 = vadd.f32 0.0, %v8211
        %v8213 = vpop.f32.mrb[0].mxu0
        %8214 = vdwg.mxu0
        %v8215 = vadd.f32 %v7909, %v8057
        %v8216 = vadd.f32 %v7910, %v8062
        %v8217 = vadd.f32 %v7911, %v8067
        %v8218 = vadd.f32 %v7912, %v8072
        %v8219 = vadd.f32 %v7913, %v8077
        %v8220 = vadd.f32 %v7914, %v8082
        %v8221 = vadd.f32 %v7915, %v8087
        %v8222 = vadd.f32 %v7916, %v8092
        %v8223 = vadd.f32 %v7917, %v8097
        %v8224 = vadd.f32 %v7918, %v8102
        %v8225 = vadd.f32 %v7919, %v8107
        %v8226 = vadd.f32 %v7920, %v8112
        %v8227 = vadd.f32 %v7921, %v8117
        %v8228 = vadd.f32 %v7922, %v8122
        %v8229 = vadd.f32 %v7923, %v8127
        %v8230 = vadd.f32 %v7924, %v8132
        %v8231 = vadd.f32 %v7925, %v8137
        %v8232 = vadd.f32 %v7926, %v8142
        %v8233 = vadd.f32 %v7927, %v8147
        %v8234 = vadd.f32 %v7928, %v8152
        %v8235 = vadd.f32 %v7929, %v8157
        %v8236 = vadd.f32 %v7930, %v8162
        %v8237 = vadd.f32 %v7931, %v8167
        %v8238 = vadd.f32 %v7932, %v8172
        %v8239 = vadd.f32 %v7933, %v8177
        %v8240 = vadd.f32 %v7934, %v8182
        %v8241 = vadd.f32 %v7935, %v8187
        %v8242 = vadd.f32 %v7936, %v8192
        %v8243 = vadd.f32 %v7937, %v8197
        %v8244 = vadd.f32 %v7938, %v8202
        %v8245 = vadd.f32 %v7939, %v8207
        %v8246 = vadd.f32 %v7940, %v8212
        %v8247 = vld [vmem:[%s7941 + $0x1] sm:$0xff]
        %v8248 = vld [vmem:[%s7941 + $0x9] sm:$0xff]
        %v8249 = vld [vmem:[%s7941 + $0x19] sm:$0xff]
        %v8250 = vld [vmem:[%s7941 + $0x21] sm:$0xff]
        %v8251 = vld [vmem:[%s7941 + $0x31] sm:$0xff]
        %v8252 = vld [vmem:[%s7941 + $0x39] sm:$0xff]
        %v8253 = vld [vmem:[%s7941 + $0x49] sm:$0xff]
        %v8254 = vld [vmem:[%s7941 + $0x51] sm:$0xff]
        %v8255 = vld [vmem:[%s7941 + $0x61] sm:$0xff]
        %v8256 = vld [vmem:[%s7941 + $0x69] sm:$0xff]
        %v8257 = vld [vmem:[%s7941 + $0x79] sm:$0xff]
        %v8258 = vld [vmem:[%s7941 + $0x81] sm:$0xff]
        %v8259 = vld [vmem:[%s7941 + $0x91] sm:$0xff]
        %v8260 = vld [vmem:[%s7941 + $0x99] sm:$0xff]
        %v8261 = vld [vmem:[%s7941 + $0xa9] sm:$0xff]
        %v8262 = vld [vmem:[%s7941 + $0xb1] sm:$0xff]
        %v8263 = vld [vmem:[%s7941 + $0xc1] sm:$0xff]
        %v8264 = vld [vmem:[%s7941 + $0xc9] sm:$0xff]
        %v8265 = vld [vmem:[%s7941 + $0xd9] sm:$0xff]
        %v8266 = vld [vmem:[%s7941 + $0xe1] sm:$0xff]
        %v8267 = vld [vmem:[%s7941 + $0xf1] sm:$0xff]
        %v8268 = vld [vmem:[%s7941 + $0xf9] sm:$0xff]
        %v8269 = vld [vmem:[%s7941 + $0x109] sm:$0xff]
        %v8270 = vld [vmem:[%s7941 + $0x111] sm:$0xff]
        %v8271 = vld [vmem:[%s7941 + $0x121] sm:$0xff]
        %v8272 = vld [vmem:[%s7941 + $0x129] sm:$0xff]
        %v8273 = vld [vmem:[%s7941 + $0x139] sm:$0xff]
        %v8274 = vld [vmem:[%s7941 + $0x141] sm:$0xff]
        %v8275 = vld [vmem:[%s7941 + $0x151] sm:$0xff]
        %v8276 = vld [vmem:[%s7941 + $0x159] sm:$0xff]
        %v8277 = vld [vmem:[%s7941 + $0x169] sm:$0xff]
        %v8278 = vld [vmem:[%s7941 + $0x171] sm:$0xff]
        %v8279 = vld [vmem:[#allocation13 + $0x380] sm:$0xff]
        %v8280 = vld [vmem:[#allocation13 + $0x388] sm:$0xff]
        %v8281 = vld [vmem:[#allocation13 + $0x390] sm:$0xff]
        %v8282 = vld [vmem:[#allocation13 + $0x398] sm:$0xff]
        %v8283 = vld [vmem:[#allocation13 + $0x3a0] sm:$0xff]
        %v8284 = vld [vmem:[#allocation13 + $0x3a8] sm:$0xff]
        %v8285 = vld [vmem:[#allocation13 + $0x3b0] sm:$0xff]
        %v8286 = vld [vmem:[#allocation13 + $0x3b8] sm:$0xff]
        %v8287 = vld [vmem:[#allocation13 + $0x3c0] sm:$0xff]
        %v8288 = vld [vmem:[#allocation13 + $0x3c8] sm:$0xff]
        %v8289 = vld [vmem:[#allocation13 + $0x3d0] sm:$0xff]
        %v8290 = vld [vmem:[#allocation13 + $0x3d8] sm:$0xff]
        %v8291 = vld [vmem:[#allocation13 + $0x3e0] sm:$0xff]
        %v8292 = vld [vmem:[#allocation13 + $0x3e8] sm:$0xff]
        %v8293 = vld [vmem:[#allocation13 + $0x3f0] sm:$0xff]
        %v8294 = vld [vmem:[#allocation13 + $0x3f8] sm:$0xff]
        %8295 = vmatprep.subr.mxu0 0.0
        %8296 = vmatpush1.msra.mxu0 %v8279
        %8297 = vmatprep.subr.mxu0 0.0
        %8298 = vmatpush1.msra.mxu0 %v8280
        %8299 = vmatprep.subr.mxu0 0.0
        %8300 = vmatpush1.msra.mxu0 %v8281
        %8301 = vmatprep.subr.mxu0 0.0
        %8302 = vmatpush1.msra.mxu0 %v8282
        %8303 = vmatprep.subr.mxu0 0.0
        %8304 = vmatpush1.msra.mxu0 %v8283
        %8305 = vmatprep.subr.mxu0 0.0
        %8306 = vmatpush1.msra.mxu0 %v8284
        %8307 = vmatprep.subr.mxu0 0.0
        %8308 = vmatpush1.msra.mxu0 %v8285
        %8309 = vmatprep.subr.mxu0 0.0
        %8310 = vmatpush1.msra.mxu0 %v8286
        %8311 = vmatprep.subr.mxu0 0.0
        %8312 = vmatpush1.msra.mxu0 %v8287
        %8313 = vmatprep.subr.mxu0 0.0
        %8314 = vmatpush1.msra.mxu0 %v8288
        %8315 = vmatprep.subr.mxu0 0.0
        %8316 = vmatpush1.msra.mxu0 %v8289
        %8317 = vmatprep.subr.mxu0 0.0
        %8318 = vmatpush1.msra.mxu0 %v8290
        %8319 = vmatprep.subr.mxu0 0.0
        %8320 = vmatpush1.msra.mxu0 %v8291
        %8321 = vmatprep.subr.mxu0 0.0
        %8322 = vmatpush1.msra.mxu0 %v8292
        %8323 = vmatprep.subr.mxu0 0.0
        %8324 = vmatpush1.msra.mxu0 %v8293
        %8325 = vmatprep.subr.mxu0 0.0
        %8326 = vmatpush1.msra.mxu0 %v8294
        %8327 = vmatprep.subr.mxu0 0.0
        %8328 = vmatpush1.msra.mxu0 0.0
        %8329 = vmatprep.subr.mxu0 0.0
        %8330 = vmatpush1.msra.mxu0 0.0
        %8331 = vmatprep.subr.mxu0 0.0
        %8332 = vmatpush1.msra.mxu0 0.0
        %8333 = vmatprep.subr.mxu0 0.0
        %8334 = vmatpush1.msra.mxu0 0.0
        %8335 = vmatprep.subr.mxu0 0.0
        %8336 = vmatpush1.msra.mxu0 0.0
        %8337 = vmatprep.subr.mxu0 0.0
        %8338 = vmatpush1.msra.mxu0 0.0
        %8339 = vmatprep.subr.mxu0 0.0
        %8340 = vmatpush1.msra.mxu0 0.0
        %8341 = vmatprep.subr.mxu0 0.0
        %8342 = vmatpush1.msra.mxu0 0.0
        %8343 = vmatprep.subr.mxu0 0.0
        %8344 = vmatpush1.msra.mxu0 0.0
        %8345 = vmatprep.subr.mxu0 0.0
        %8346 = vmatpush1.msra.mxu0 0.0
        %8347 = vmatprep.subr.mxu0 0.0
        %8348 = vmatpush1.msra.mxu0 0.0
        %8349 = vmatprep.subr.mxu0 0.0
        %8350 = vmatpush1.msra.mxu0 0.0
        %8351 = vmatprep.subr.mxu0 0.0
        %8352 = vmatpush1.msra.mxu0 0.0
        %8353 = vmatprep.subr.mxu0 0.0
        %8354 = vmatpush1.msra.mxu0 0.0
        %8355 = vmatprep.subr.mxu0 0.0
        %8356 = vmatpush1.msra.mxu0 0.0
        %8357 = vmatprep.subr.mxu0 0.0
        %8358 = vmatpush1.msra.mxu0 0.0
        %8359 = vmatprep.mubr.f32.mxu0 0.0
        %8360 = vmatmul.mubr.f32.gmra.mrb[0].mxu0 %v8247
        %v8361 = vpop.f32.mrb[0].mxu0
        %v8362 = vadd.f32 0.0, %v8361
        %v8363 = vpop.f32.mrb[0].mxu0
        %8364 = vmatprep.mubr.f32.mxu0 0.0
        %8365 = vmatmul.mubr.f32.gmra.mrb[0].mxu0 %v8248
        %v8366 = vpop.f32.mrb[0].mxu0
        %v8367 = vadd.f32 0.0, %v8366
        %v8368 = vpop.f32.mrb[0].mxu0
        %8369 = vmatprep.mubr.f32.mxu0 0.0
        %8370 = vmatmul.mubr.f32.gmra.mrb[0].mxu0 %v8249
        %v8371 = vpop.f32.mrb[0].mxu0
        %v8372 = vadd.f32 0.0, %v8371
        %v8373 = vpop.f32.mrb[0].mxu0
        %8374 = vmatprep.mubr.f32.mxu0 0.0
        %8375 = vmatmul.mubr.f32.gmra.mrb[0].mxu0 %v8250
        %v8376 = vpop.f32.mrb[0].mxu0
        %v8377 = vadd.f32 0.0, %v8376
        %v8378 = vpop.f32.mrb[0].mxu0
        %8379 = vmatprep.mubr.f32.mxu0 0.0
        %8380 = vmatmul.mubr.f32.gmra.mrb[0].mxu0 %v8251
        %v8381 = vpop.f32.mrb[0].mxu0
        %v8382 = vadd.f32 0.0, %v8381
        %v8383 = vpop.f32.mrb[0].mxu0
        %8384 = vmatprep.mubr.f32.mxu0 0.0
        %8385 = vmatmul.mubr.f32.gmra.mrb[0].mxu0 %v8252
        %v8386 = vpop.f32.mrb[0].mxu0
        %v8387 = vadd.f32 0.0, %v8386
        %v8388 = vpop.f32.mrb[0].mxu0
        %8389 = vmatprep.mubr.f32.mxu0 0.0
        %8390 = vmatmul.mubr.f32.gmra.mrb[0].mxu0 %v8253
        %v8391 = vpop.f32.mrb[0].mxu0
        %v8392 = vadd.f32 0.0, %v8391
        %v8393 = vpop.f32.mrb[0].mxu0
        %8394 = vmatprep.mubr.f32.mxu0 0.0
        %8395 = vmatmul.mubr.f32.gmra.mrb[0].mxu0 %v8254
        %v8396 = vpop.f32.mrb[0].mxu0
        %v8397 = vadd.f32 0.0, %v8396
        %v8398 = vpop.f32.mrb[0].mxu0
        %8399 = vmatprep.mubr.f32.mxu0 0.0
        %8400 = vmatmul.mubr.f32.gmra.mrb[0].mxu0 %v8255
        %v8401 = vpop.f32.mrb[0].mxu0
        %v8402 = vadd.f32 0.0, %v8401
        %v8403 = vpop.f32.mrb[0].mxu0
        %8404 = vmatprep.mubr.f32.mxu0 0.0
        %8405 = vmatmul.mubr.f32.gmra.mrb[0].mxu0 %v8256
        %v8406 = vpop.f32.mrb[0].mxu0
        %v8407 = vadd.f32 0.0, %v8406
        %v8408 = vpop.f32.mrb[0].mxu0
        %8409 = vmatprep.mubr.f32.mxu0 0.0
        %8410 = vmatmul.mubr.f32.gmra.mrb[0].mxu0 %v8257
        %v8411 = vpop.f32.mrb[0].mxu0
        %v8412 = vadd.f32 0.0, %v8411
        %v8413 = vpop.f32.mrb[0].mxu0
        %8414 = vmatprep.mubr.f32.mxu0 0.0
        %8415 = vmatmul.mubr.f32.gmra.mrb[0].mxu0 %v8258
        %v8416 = vpop.f32.mrb[0].mxu0
        %v8417 = vadd.f32 0.0, %v8416
        %v8418 = vpop.f32.mrb[0].mxu0
        %8419 = vmatprep.mubr.f32.mxu0 0.0
        %8420 = vmatmul.mubr.f32.gmra.mrb[0].mxu0 %v8259
        %v8421 = vpop.f32.mrb[0].mxu0
        %v8422 = vadd.f32 0.0, %v8421
        %v8423 = vpop.f32.mrb[0].mxu0
        %8424 = vmatprep.mubr.f32.mxu0 0.0
        %8425 = vmatmul.mubr.f32.gmra.mrb[0].mxu0 %v8260
        %v8426 = vpop.f32.mrb[0].mxu0
        %v8427 = vadd.f32 0.0, %v8426
        %v8428 = vpop.f32.mrb[0].mxu0
        %8429 = vmatprep.mubr.f32.mxu0 0.0
        %8430 = vmatmul.mubr.f32.gmra.mrb[0].mxu0 %v8261
        %v8431 = vpop.f32.mrb[0].mxu0
        %v8432 = vadd.f32 0.0, %v8431
        %v8433 = vpop.f32.mrb[0].mxu0
        %8434 = vmatprep.mubr.f32.mxu0 0.0
        %8435 = vmatmul.mubr.f32.gmra.mrb[0].mxu0 %v8262
        %v8436 = vpop.f32.mrb[0].mxu0
        %v8437 = vadd.f32 0.0, %v8436
        %v8438 = vpop.f32.mrb[0].mxu0
        %8439 = vmatprep.mubr.f32.mxu0 0.0
        %8440 = vmatmul.mubr.f32.gmra.mrb[0].mxu0 %v8263
        %v8441 = vpop.f32.mrb[0].mxu0
        %v8442 = vadd.f32 0.0, %v8441
        %v8443 = vpop.f32.mrb[0].mxu0
        %8444 = vmatprep.mubr.f32.mxu0 0.0
        %8445 = vmatmul.mubr.f32.gmra.mrb[0].mxu0 %v8264
        %v8446 = vpop.f32.mrb[0].mxu0
        %v8447 = vadd.f32 0.0, %v8446
        %v8448 = vpop.f32.mrb[0].mxu0
        %8449 = vmatprep.mubr.f32.mxu0 0.0
        %8450 = vmatmul.mubr.f32.gmra.mrb[0].mxu0 %v8265
        %v8451 = vpop.f32.mrb[0].mxu0
        %v8452 = vadd.f32 0.0, %v8451
        %v8453 = vpop.f32.mrb[0].mxu0
        %8454 = vmatprep.mubr.f32.mxu0 0.0
        %8455 = vmatmul.mubr.f32.gmra.mrb[0].mxu0 %v8266
        %v8456 = vpop.f32.mrb[0].mxu0
        %v8457 = vadd.f32 0.0, %v8456
        %v8458 = vpop.f32.mrb[0].mxu0
        %8459 = vmatprep.mubr.f32.mxu0 0.0
        %8460 = vmatmul.mubr.f32.gmra.mrb[0].mxu0 %v8267
        %v8461 = vpop.f32.mrb[0].mxu0
        %v8462 = vadd.f32 0.0, %v8461
        %v8463 = vpop.f32.mrb[0].mxu0
        %8464 = vmatprep.mubr.f32.mxu0 0.0
        %8465 = vmatmul.mubr.f32.gmra.mrb[0].mxu0 %v8268
        %v8466 = vpop.f32.mrb[0].mxu0
        %v8467 = vadd.f32 0.0, %v8466
        %v8468 = vpop.f32.mrb[0].mxu0
        %8469 = vmatprep.mubr.f32.mxu0 0.0
        %8470 = vmatmul.mubr.f32.gmra.mrb[0].mxu0 %v8269
        %v8471 = vpop.f32.mrb[0].mxu0
        %v8472 = vadd.f32 0.0, %v8471
        %v8473 = vpop.f32.mrb[0].mxu0
        %8474 = vmatprep.mubr.f32.mxu0 0.0
        %8475 = vmatmul.mubr.f32.gmra.mrb[0].mxu0 %v8270
        %v8476 = vpop.f32.mrb[0].mxu0
        %v8477 = vadd.f32 0.0, %v8476
        %v8478 = vpop.f32.mrb[0].mxu0
        %8479 = vmatprep.mubr.f32.mxu0 0.0
        %8480 = vmatmul.mubr.f32.gmra.mrb[0].mxu0 %v8271
        %v8481 = vpop.f32.mrb[0].mxu0
        %v8482 = vadd.f32 0.0, %v8481
        %v8483 = vpop.f32.mrb[0].mxu0
        %8484 = vmatprep.mubr.f32.mxu0 0.0
        %8485 = vmatmul.mubr.f32.gmra.mrb[0].mxu0 %v8272
        %v8486 = vpop.f32.mrb[0].mxu0
        %v8487 = vadd.f32 0.0, %v8486
        %v8488 = vpop.f32.mrb[0].mxu0
        %8489 = vmatprep.mubr.f32.mxu0 0.0
        %8490 = vmatmul.mubr.f32.gmra.mrb[0].mxu0 %v8273
        %v8491 = vpop.f32.mrb[0].mxu0
        %v8492 = vadd.f32 0.0, %v8491
        %v8493 = vpop.f32.mrb[0].mxu0
        %8494 = vmatprep.mubr.f32.mxu0 0.0
        %8495 = vmatmul.mubr.f32.gmra.mrb[0].mxu0 %v8274
        %v8496 = vpop.f32.mrb[0].mxu0
        %v8497 = vadd.f32 0.0, %v8496
        %v8498 = vpop.f32.mrb[0].mxu0
        %8499 = vmatprep.mubr.f32.mxu0 0.0
        %8500 = vmatmul.mubr.f32.gmra.mrb[0].mxu0 %v8275
        %v8501 = vpop.f32.mrb[0].mxu0
        %v8502 = vadd.f32 0.0, %v8501
        %v8503 = vpop.f32.mrb[0].mxu0
        %8504 = vmatprep.mubr.f32.mxu0 0.0
        %8505 = vmatmul.mubr.f32.gmra.mrb[0].mxu0 %v8276
        %v8506 = vpop.f32.mrb[0].mxu0
        %v8507 = vadd.f32 0.0, %v8506
        %v8508 = vpop.f32.mrb[0].mxu0
        %8509 = vmatprep.mubr.f32.mxu0 0.0
        %8510 = vmatmul.mubr.f32.gmra.mrb[0].mxu0 %v8277
        %v8511 = vpop.f32.mrb[0].mxu0
        %v8512 = vadd.f32 0.0, %v8511
        %v8513 = vpop.f32.mrb[0].mxu0
        %8514 = vmatprep.mubr.f32.mxu0 0.0
        %8515 = vmatmul.mubr.f32.gmra.mrb[0].mxu0 %v8278
        %v8516 = vpop.f32.mrb[0].mxu0
        %v8517 = vadd.f32 0.0, %v8516
        %v8518 = vpop.f32.mrb[0].mxu0
        %8519 = vdwg.mxu0
        %v8520 = vadd.f32 %v8215, %v8362
        %v8521 = vadd.f32 %v8216, %v8367
        %v8522 = vadd.f32 %v8217, %v8372
        %v8523 = vadd.f32 %v8218, %v8377
        %v8524 = vadd.f32 %v8219, %v8382
        %v8525 = vadd.f32 %v8220, %v8387
        %v8526 = vadd.f32 %v8221, %v8392
        %v8527 = vadd.f32 %v8222, %v8397
        %v8528 = vadd.f32 %v8223, %v8402
        %v8529 = vadd.f32 %v8224, %v8407
        %v8530 = vadd.f32 %v8225, %v8412
        %v8531 = vadd.f32 %v8226, %v8417
        %v8532 = vadd.f32 %v8227, %v8422
        %v8533 = vadd.f32 %v8228, %v8427
        %v8534 = vadd.f32 %v8229, %v8432
        %v8535 = vadd.f32 %v8230, %v8437
        %v8536 = vadd.f32 %v8231, %v8442
        %v8537 = vadd.f32 %v8232, %v8447
        %v8538 = vadd.f32 %v8233, %v8452
        %v8539 = vadd.f32 %v8234, %v8457
        %v8540 = vadd.f32 %v8235, %v8462
        %v8541 = vadd.f32 %v8236, %v8467
        %v8542 = vadd.f32 %v8237, %v8472
        %v8543 = vadd.f32 %v8238, %v8477
        %v8544 = vadd.f32 %v8239, %v8482
        %v8545 = vadd.f32 %v8240, %v8487
        %v8546 = vadd.f32 %v8241, %v8492
        %v8547 = vadd.f32 %v8242, %v8497
        %v8548 = vadd.f32 %v8243, %v8502
        %v8549 = vadd.f32 %v8244, %v8507
        %v8550 = vadd.f32 %v8245, %v8512
        %v8551 = vadd.f32 %v8246, %v8517
        %v8552 = vld [vmem:[%s7941 + $0x2] sm:$0xff]
        %v8553 = vld [vmem:[%s7941 + $0xa] sm:$0xff]
        %v8554 = vld [vmem:[%s7941 + $0x1a] sm:$0xff]
        %v8555 = vld [vmem:[%s7941 + $0x22] sm:$0xff]
        %v8556 = vld [vmem:[%s7941 + $0x32] sm:$0xff]
        %v8557 = vld [vmem:[%s7941 + $0x3a] sm:$0xff]
        %v8558 = vld [vmem:[%s7941 + $0x4a] sm:$0xff]
        %v8559 = vld [vmem:[%s7941 + $0x52] sm:$0xff]
        %v8560 = vld [vmem:[%s7941 + $0x62] sm:$0xff]
        %v8561 = vld [vmem:[%s7941 + $0x6a] sm:$0xff]
        %v8562 = vld [vmem:[%s7941 + $0x7a] sm:$0xff]
        %v8563 = vld [vmem:[%s7941 + $0x82] sm:$0xff]
        %v8564 = vld [vmem:[%s7941 + $0x92] sm:$0xff]
        %v8565 = vld [vmem:[%s7941 + $0x9a] sm:$0xff]
        %v8566 = vld [vmem:[%s7941 + $0xaa] sm:$0xff]
        %v8567 = vld [vmem:[%s7941 + $0xb2] sm:$0xff]
        %v8568 = vld [vmem:[%s7941 + $0xc2] sm:$0xff]
        %v8569 = vld [vmem:[%s7941 + $0xca] sm:$0xff]
        %v8570 = vld [vmem:[%s7941 + $0xda] sm:$0xff]
        %v8571 = vld [vmem:[%s7941 + $0xe2] sm:$0xff]
        %v8572 = vld [vmem:[%s7941 + $0xf2] sm:$0xff]
        %v8573 = vld [vmem:[%s7941 + $0xfa] sm:$0xff]
        %v8574 = vld [vmem:[%s7941 + $0x10a] sm:$0xff]
        %v8575 = vld [vmem:[%s7941 + $0x112] sm:$0xff]
        %v8576 = vld [vmem:[%s7941 + $0x122] sm:$0xff]
        %v8577 = vld [vmem:[%s7941 + $0x12a] sm:$0xff]
        %v8578 = vld [vmem:[%s7941 + $0x13a] sm:$0xff]
        %v8579 = vld [vmem:[%s7941 + $0x142] sm:$0xff]
        %v8580 = vld [vmem:[%s7941 + $0x152] sm:$0xff]
        %v8581 = vld [vmem:[%s7941 + $0x15a] sm:$0xff]
        %v8582 = vld [vmem:[%s7941 + $0x16a] sm:$0xff]
        %v8583 = vld [vmem:[%s7941 + $0x172] sm:$0xff]
        %v8584 = vld [vmem:[#allocation13 + $0x400] sm:$0xff]
        %v8585 = vld [vmem:[#allocation13 + $0x408] sm:$0xff]
        %v8586 = vld [vmem:[#allocation13 + $0x410] sm:$0xff]
        %v8587 = vld [vmem:[#allocation13 + $0x418] sm:$0xff]
        %v8588 = vld [vmem:[#allocation13 + $0x420] sm:$0xff]
        %v8589 = vld [vmem:[#allocation13 + $0x428] sm:$0xff]
        %v8590 = vld [vmem:[#allocation13 + $0x430] sm:$0xff]
        %v8591 = vld [vmem:[#allocation13 + $0x438] sm:$0xff]
        %v8592 = vld [vmem:[#allocation13 + $0x440] sm:$0xff]
        %v8593 = vld [vmem:[#allocation13 + $0x448] sm:$0xff]
        %v8594 = vld [vmem:[#allocation13 + $0x450] sm:$0xff]
        %v8595 = vld [vmem:[#allocation13 + $0x458] sm:$0xff]
        %v8596 = vld [vmem:[#allocation13 + $0x460] sm:$0xff]
        %v8597 = vld [vmem:[#allocation13 + $0x468] sm:$0xff]
        %v8598 = vld [vmem:[#allocation13 + $0x470] sm:$0xff]
        %v8599 = vld [vmem:[#allocation13 + $0x478] sm:$0xff]
        %8600 = vmatprep.subr.mxu0 0.0
        %8601 = vmatpush1.msra.mxu0 %v8584
        %8602 = vmatprep.subr.mxu0 0.0
        %8603 = vmatpush1.msra.mxu0 %v8585
        %8604 = vmatprep.subr.mxu0 0.0
        %8605 = vmatpush1.msra.mxu0 %v8586
        %8606 = vmatprep.subr.mxu0 0.0
        %8607 = vmatpush1.msra.mxu0 %v8587
        %8608 = vmatprep.subr.mxu0 0.0
        %8609 = vmatpush1.msra.mxu0 %v8588
        %8610 = vmatprep.subr.mxu0 0.0
        %8611 = vmatpush1.msra.mxu0 %v8589
        %8612 = vmatprep.subr.mxu0 0.0
        %8613 = vmatpush1.msra.mxu0 %v8590
        %8614 = vmatprep.subr.mxu0 0.0
        %8615 = vmatpush1.msra.mxu0 %v8591
        %8616 = vmatprep.subr.mxu0 0.0
        %8617 = vmatpush1.msra.mxu0 %v8592
        %8618 = vmatprep.subr.mxu0 0.0
        %8619 = vmatpush1.msra.mxu0 %v8593
        %8620 = vmatprep.subr.mxu0 0.0
        %8621 = vmatpush1.msra.mxu0 %v8594
        %8622 = vmatprep.subr.mxu0 0.0
        %8623 = vmatpush1.msra.mxu0 %v8595
        %8624 = vmatprep.subr.mxu0 0.0
        %8625 = vmatpush1.msra.mxu0 %v8596
        %8626 = vmatprep.subr.mxu0 0.0
        %8627 = vmatpush1.msra.mxu0 %v8597
        %8628 = vmatprep.subr.mxu0 0.0
        %8629 = vmatpush1.msra.mxu0 %v8598
        %8630 = vmatprep.subr.mxu0 0.0
        %8631 = vmatpush1.msra.mxu0 %v8599
        %8632 = vmatprep.subr.mxu0 0.0
        %8633 = vmatpush1.msra.mxu0 0.0
        %8634 = vmatprep.subr.mxu0 0.0
        %8635 = vmatpush1.msra.mxu0 0.0
        %8636 = vmatprep.subr.mxu0 0.0
        %8637 = vmatpush1.msra.mxu0 0.0
        %8638 = vmatprep.subr.mxu0 0.0
        %8639 = vmatpush1.msra.mxu0 0.0
        %8640 = vmatprep.subr.mxu0 0.0
        %8641 = vmatpush1.msra.mxu0 0.0
        %8642 = vmatprep.subr.mxu0 0.0
        %8643 = vmatpush1.msra.mxu0 0.0
        %8644 = vmatprep.subr.mxu0 0.0
        %8645 = vmatpush1.msra.mxu0 0.0
        %8646 = vmatprep.subr.mxu0 0.0
        %8647 = vmatpush1.msra.mxu0 0.0
        %8648 = vmatprep.subr.mxu0 0.0
        %8649 = vmatpush1.msra.mxu0 0.0
        %8650 = vmatprep.subr.mxu0 0.0
        %8651 = vmatpush1.msra.mxu0 0.0
        %8652 = vmatprep.subr.mxu0 0.0
        %8653 = vmatpush1.msra.mxu0 0.0
        %8654 = vmatprep.subr.mxu0 0.0
        %8655 = vmatpush1.msra.mxu0 0.0
        %8656 = vmatprep.subr.mxu0 0.0
        %8657 = vmatpush1.msra.mxu0 0.0
        %8658 = vmatprep.subr.mxu0 0.0
        %8659 = vmatpush1.msra.mxu0 0.0
        %8660 = vmatprep.subr.mxu0 0.0
        %8661 = vmatpush1.msra.mxu0 0.0
        %8662 = vmatprep.subr.mxu0 0.0
        %8663 = vmatpush1.msra.mxu0 0.0
        %8664 = vmatprep.mubr.f32.mxu0 0.0
        %8665 = vmatmul.mubr.f32.gmra.mrb[0].mxu0 %v8552
        %v8666 = vpop.f32.mrb[0].mxu0
        %v8667 = vadd.f32 0.0, %v8666
        %v8668 = vpop.f32.mrb[0].mxu0
        %8669 = vmatprep.mubr.f32.mxu0 0.0
        %8670 = vmatmul.mubr.f32.gmra.mrb[0].mxu0 %v8553
        %v8671 = vpop.f32.mrb[0].mxu0
        %v8672 = vadd.f32 0.0, %v8671
        %v8673 = vpop.f32.mrb[0].mxu0
        %8674 = vmatprep.mubr.f32.mxu0 0.0
        %8675 = vmatmul.mubr.f32.gmra.mrb[0].mxu0 %v8554
        %v8676 = vpop.f32.mrb[0].mxu0
        %v8677 = vadd.f32 0.0, %v8676
        %v8678 = vpop.f32.mrb[0].mxu0
        %8679 = vmatprep.mubr.f32.mxu0 0.0
        %8680 = vmatmul.mubr.f32.gmra.mrb[0].mxu0 %v8555
        %v8681 = vpop.f32.mrb[0].mxu0
        %v8682 = vadd.f32 0.0, %v8681
        %v8683 = vpop.f32.mrb[0].mxu0
        %8684 = vmatprep.mubr.f32.mxu0 0.0
        %8685 = vmatmul.mubr.f32.gmra.mrb[0].mxu0 %v8556
        %v8686 = vpop.f32.mrb[0].mxu0
        %v8687 = vadd.f32 0.0, %v8686
        %v8688 = vpop.f32.mrb[0].mxu0
        %8689 = vmatprep.mubr.f32.mxu0 0.0
        %8690 = vmatmul.mubr.f32.gmra.mrb[0].mxu0 %v8557
        %v8691 = vpop.f32.mrb[0].mxu0
        %v8692 = vadd.f32 0.0, %v8691
        %v8693 = vpop.f32.mrb[0].mxu0
        %8694 = vmatprep.mubr.f32.mxu0 0.0
        %8695 = vmatmul.mubr.f32.gmra.mrb[0].mxu0 %v8558
        %v8696 = vpop.f32.mrb[0].mxu0
        %v8697 = vadd.f32 0.0, %v8696
        %v8698 = vpop.f32.mrb[0].mxu0
        %8699 = vmatprep.mubr.f32.mxu0 0.0
        %8700 = vmatmul.mubr.f32.gmra.mrb[0].mxu0 %v8559
        %v8701 = vpop.f32.mrb[0].mxu0
        %v8702 = vadd.f32 0.0, %v8701
        %v8703 = vpop.f32.mrb[0].mxu0
        %8704 = vmatprep.mubr.f32.mxu0 0.0
        %8705 = vmatmul.mubr.f32.gmra.mrb[0].mxu0 %v8560
        %v8706 = vpop.f32.mrb[0].mxu0
        %v8707 = vadd.f32 0.0, %v8706
        %v8708 = vpop.f32.mrb[0].mxu0
        %8709 = vmatprep.mubr.f32.mxu0 0.0
        %8710 = vmatmul.mubr.f32.gmra.mrb[0].mxu0 %v8561
        %v8711 = vpop.f32.mrb[0].mxu0
        %v8712 = vadd.f32 0.0, %v8711
        %v8713 = vpop.f32.mrb[0].mxu0
        %8714 = vmatprep.mubr.f32.mxu0 0.0
        %8715 = vmatmul.mubr.f32.gmra.mrb[0].mxu0 %v8562
        %v8716 = vpop.f32.mrb[0].mxu0
        %v8717 = vadd.f32 0.0, %v8716
        %v8718 = vpop.f32.mrb[0].mxu0
        %8719 = vmatprep.mubr.f32.mxu0 0.0
        %8720 = vmatmul.mubr.f32.gmra.mrb[0].mxu0 %v8563
        %v8721 = vpop.f32.mrb[0].mxu0
        %v8722 = vadd.f32 0.0, %v8721
        %v8723 = vpop.f32.mrb[0].mxu0
        %8724 = vmatprep.mubr.f32.mxu0 0.0
        %8725 = vmatmul.mubr.f32.gmra.mrb[0].mxu0 %v8564
        %v8726 = vpop.f32.mrb[0].mxu0
        %v8727 = vadd.f32 0.0, %v8726
        %v8728 = vpop.f32.mrb[0].mxu0
        %8729 = vmatprep.mubr.f32.mxu0 0.0
        %8730 = vmatmul.mubr.f32.gmra.mrb[0].mxu0 %v8565
        %v8731 = vpop.f32.mrb[0].mxu0
        %v8732 = vadd.f32 0.0, %v8731
        %v8733 = vpop.f32.mrb[0].mxu0
        %8734 = vmatprep.mubr.f32.mxu0 0.0
        %8735 = vmatmul.mubr.f32.gmra.mrb[0].mxu0 %v8566
        %v8736 = vpop.f32.mrb[0].mxu0
        %v8737 = vadd.f32 0.0, %v8736
        %v8738 = vpop.f32.mrb[0].mxu0
        %8739 = vmatprep.mubr.f32.mxu0 0.0
        %8740 = vmatmul.mubr.f32.gmra.mrb[0].mxu0 %v8567
        %v8741 = vpop.f32.mrb[0].mxu0
        %v8742 = vadd.f32 0.0, %v8741
        %v8743 = vpop.f32.mrb[0].mxu0
        %8744 = vmatprep.mubr.f32.mxu0 0.0
        %8745 = vmatmul.mubr.f32.gmra.mrb[0].mxu0 %v8568
        %v8746 = vpop.f32.mrb[0].mxu0
        %v8747 = vadd.f32 0.0, %v8746
        %v8748 = vpop.f32.mrb[0].mxu0
        %8749 = vmatprep.mubr.f32.mxu0 0.0
        %8750 = vmatmul.mubr.f32.gmra.mrb[0].mxu0 %v8569
        %v8751 = vpop.f32.mrb[0].mxu0
        %v8752 = vadd.f32 0.0, %v8751
        %v8753 = vpop.f32.mrb[0].mxu0
        %8754 = vmatprep.mubr.f32.mxu0 0.0
        %8755 = vmatmul.mubr.f32.gmra.mrb[0].mxu0 %v8570
        %v8756 = vpop.f32.mrb[0].mxu0
        %v8757 = vadd.f32 0.0, %v8756
        %v8758 = vpop.f32.mrb[0].mxu0
        %8759 = vmatprep.mubr.f32.mxu0 0.0
        %8760 = vmatmul.mubr.f32.gmra.mrb[0].mxu0 %v8571
        %v8761 = vpop.f32.mrb[0].mxu0
        %v8762 = vadd.f32 0.0, %v8761
        %v8763 = vpop.f32.mrb[0].mxu0
        %8764 = vmatprep.mubr.f32.mxu0 0.0
        %8765 = vmatmul.mubr.f32.gmra.mrb[0].mxu0 %v8572
        %v8766 = vpop.f32.mrb[0].mxu0
        %v8767 = vadd.f32 0.0, %v8766
        %v8768 = vpop.f32.mrb[0].mxu0
        %8769 = vmatprep.mubr.f32.mxu0 0.0
        %8770 = vmatmul.mubr.f32.gmra.mrb[0].mxu0 %v8573
        %v8771 = vpop.f32.mrb[0].mxu0
        %v8772 = vadd.f32 0.0, %v8771
        %v8773 = vpop.f32.mrb[0].mxu0
        %8774 = vmatprep.mubr.f32.mxu0 0.0
        %8775 = vmatmul.mubr.f32.gmra.mrb[0].mxu0 %v8574
        %v8776 = vpop.f32.mrb[0].mxu0
        %v8777 = vadd.f32 0.0, %v8776
        %v8778 = vpop.f32.mrb[0].mxu0
        %8779 = vmatprep.mubr.f32.mxu0 0.0
        %8780 = vmatmul.mubr.f32.gmra.mrb[0].mxu0 %v8575
        %v8781 = vpop.f32.mrb[0].mxu0
        %v8782 = vadd.f32 0.0, %v8781
        %v8783 = vpop.f32.mrb[0].mxu0
        %8784 = vmatprep.mubr.f32.mxu0 0.0
        %8785 = vmatmul.mubr.f32.gmra.mrb[0].mxu0 %v8576
        %v8786 = vpop.f32.mrb[0].mxu0
        %v8787 = vadd.f32 0.0, %v8786
        %v8788 = vpop.f32.mrb[0].mxu0
        %8789 = vmatprep.mubr.f32.mxu0 0.0
        %8790 = vmatmul.mubr.f32.gmra.mrb[0].mxu0 %v8577
        %v8791 = vpop.f32.mrb[0].mxu0
        %v8792 = vadd.f32 0.0, %v8791
        %v8793 = vpop.f32.mrb[0].mxu0
        %8794 = vmatprep.mubr.f32.mxu0 0.0
        %8795 = vmatmul.mubr.f32.gmra.mrb[0].mxu0 %v8578
        %v8796 = vpop.f32.mrb[0].mxu0
        %v8797 = vadd.f32 0.0, %v8796
        %v8798 = vpop.f32.mrb[0].mxu0
        %8799 = vmatprep.mubr.f32.mxu0 0.0
        %8800 = vmatmul.mubr.f32.gmra.mrb[0].mxu0 %v8579
        %v8801 = vpop.f32.mrb[0].mxu0
        %v8802 = vadd.f32 0.0, %v8801
        %v8803 = vpop.f32.mrb[0].mxu0
        %8804 = vmatprep.mubr.f32.mxu0 0.0
        %8805 = vmatmul.mubr.f32.gmra.mrb[0].mxu0 %v8580
        %v8806 = vpop.f32.mrb[0].mxu0
        %v8807 = vadd.f32 0.0, %v8806
        %v8808 = vpop.f32.mrb[0].mxu0
        %8809 = vmatprep.mubr.f32.mxu0 0.0
        %8810 = vmatmul.mubr.f32.gmra.mrb[0].mxu0 %v8581
        %v8811 = vpop.f32.mrb[0].mxu0
        %v8812 = vadd.f32 0.0, %v8811
        %v8813 = vpop.f32.mrb[0].mxu0
        %8814 = vmatprep.mubr.f32.mxu0 0.0
        %8815 = vmatmul.mubr.f32.gmra.mrb[0].mxu0 %v8582
        %v8816 = vpop.f32.mrb[0].mxu0
        %v8817 = vadd.f32 0.0, %v8816
        %v8818 = vpop.f32.mrb[0].mxu0
        %8819 = vmatprep.mubr.f32.mxu0 0.0
        %8820 = vmatmul.mubr.f32.gmra.mrb[0].mxu0 %v8583
        %v8821 = vpop.f32.mrb[0].mxu0
        %v8822 = vadd.f32 0.0, %v8821
        %v8823 = vpop.f32.mrb[0].mxu0
        %8824 = vdwg.mxu0
        %v8825 = vadd.f32 %v8520, %v8667
        %v8826 = vadd.f32 %v8521, %v8672
        %v8827 = vadd.f32 %v8522, %v8677
        %v8828 = vadd.f32 %v8523, %v8682
        %v8829 = vadd.f32 %v8524, %v8687
        %v8830 = vadd.f32 %v8525, %v8692
        %v8831 = vadd.f32 %v8526, %v8697
        %v8832 = vadd.f32 %v8527, %v8702
        %v8833 = vadd.f32 %v8528, %v8707
        %v8834 = vadd.f32 %v8529, %v8712
        %v8835 = vadd.f32 %v8530, %v8717
        %v8836 = vadd.f32 %v8531, %v8722
        %v8837 = vadd.f32 %v8532, %v8727
        %v8838 = vadd.f32 %v8533, %v8732
        %v8839 = vadd.f32 %v8534, %v8737
        %v8840 = vadd.f32 %v8535, %v8742
        %v8841 = vadd.f32 %v8536, %v8747
        %v8842 = vadd.f32 %v8537, %v8752
        %v8843 = vadd.f32 %v8538, %v8757
        %v8844 = vadd.f32 %v8539, %v8762
        %v8845 = vadd.f32 %v8540, %v8767
        %v8846 = vadd.f32 %v8541, %v8772
        %v8847 = vadd.f32 %v8542, %v8777
        %v8848 = vadd.f32 %v8543, %v8782
        %v8849 = vadd.f32 %v8544, %v8787
        %v8850 = vadd.f32 %v8545, %v8792
        %v8851 = vadd.f32 %v8546, %v8797
        %v8852 = vadd.f32 %v8547, %v8802
        %v8853 = vadd.f32 %v8548, %v8807
        %v8854 = vadd.f32 %v8549, %v8812
        %v8855 = vadd.f32 %v8550, %v8817
        %v8856 = vadd.f32 %v8551, %v8822
        %v8857 = vld [vmem:[#allocation15] sm:$0x1]
        %v8859 = vlaneseq
        %v8860 = vshrl.u32 %v8859, 7
        %v8861 = vsub.s32 0, %v8860
        %v8862 = vrot.slane %v8857, %v8861
        %v8864 = vmul.f32 %v8825, %v8862
        %v8865 = vmul.f32 %v8826, %v8862
        %v8866 = vmul.f32 %v8827, %v8862
        %v8867 = vmul.f32 %v8828, %v8862
        %v8868 = vmul.f32 %v8829, %v8862
        %v8869 = vmul.f32 %v8830, %v8862
        %v8870 = vmul.f32 %v8831, %v8862
        %v8871 = vmul.f32 %v8832, %v8862
        %v8872 = vmul.f32 %v8833, %v8862
        %v8873 = vmul.f32 %v8834, %v8862
        %v8874 = vmul.f32 %v8835, %v8862
        %v8875 = vmul.f32 %v8836, %v8862
        %v8876 = vmul.f32 %v8837, %v8862
        %v8877 = vmul.f32 %v8838, %v8862
        %v8878 = vmul.f32 %v8839, %v8862
        %v8879 = vmul.f32 %v8840, %v8862
        %v8880 = vmul.f32 %v8841, %v8862
        %v8881 = vmul.f32 %v8842, %v8862
        %v8882 = vmul.f32 %v8843, %v8862
        %v8883 = vmul.f32 %v8844, %v8862
        %v8884 = vmul.f32 %v8845, %v8862
        %v8885 = vmul.f32 %v8846, %v8862
        %v8886 = vmul.f32 %v8847, %v8862
        %v8887 = vmul.f32 %v8848, %v8862
        %v8888 = vmul.f32 %v8849, %v8862
        %v8889 = vmul.f32 %v8850, %v8862
        %v8890 = vmul.f32 %v8851, %v8862
        %v8891 = vmul.f32 %v8852, %v8862
        %v8892 = vmul.f32 %v8853, %v8862
        %v8893 = vmul.f32 %v8854, %v8862
        %v8894 = vmul.f32 %v8855, %v8862
        %v8895 = vmul.f32 %v8856, %v8862
        %v8896 = vld [vmem:[#allocation16] sm:$0x1]
        %v8898 = vlaneseq
        %v8899 = vshrl.u32 %v8898, 7
        %v8900 = vsub.s32 0, %v8899
        %v8901 = vrot.slane %v8896, %v8900
        %v8903 = vadd.f32 %v8864, %v8901
        %v8904 = vadd.f32 %v8865, %v8901
        %v8905 = vadd.f32 %v8866, %v8901
        %v8906 = vadd.f32 %v8867, %v8901
        %v8907 = vadd.f32 %v8868, %v8901
        %v8908 = vadd.f32 %v8869, %v8901
        %v8909 = vadd.f32 %v8870, %v8901
        %v8910 = vadd.f32 %v8871, %v8901
        %v8911 = vadd.f32 %v8872, %v8901
        %v8912 = vadd.f32 %v8873, %v8901
        %v8913 = vadd.f32 %v8874, %v8901
        %v8914 = vadd.f32 %v8875, %v8901
        %v8915 = vadd.f32 %v8876, %v8901
        %v8916 = vadd.f32 %v8877, %v8901
        %v8917 = vadd.f32 %v8878, %v8901
        %v8918 = vadd.f32 %v8879, %v8901
        %v8919 = vadd.f32 %v8880, %v8901
        %v8920 = vadd.f32 %v8881, %v8901
        %v8921 = vadd.f32 %v8882, %v8901
        %v8922 = vadd.f32 %v8883, %v8901
        %v8923 = vadd.f32 %v8884, %v8901
        %v8924 = vadd.f32 %v8885, %v8901
        %v8925 = vadd.f32 %v8886, %v8901
        %v8926 = vadd.f32 %v8887, %v8901
        %v8927 = vadd.f32 %v8888, %v8901
        %v8928 = vadd.f32 %v8889, %v8901
        %v8929 = vadd.f32 %v8890, %v8901
        %v8930 = vadd.f32 %v8891, %v8901
        %v8931 = vadd.f32 %v8892, %v8901
        %v8932 = vadd.f32 %v8893, %v8901
        %v8933 = vadd.f32 %v8894, %v8901
        %v8934 = vadd.f32 %v8895, %v8901
        %v8935 = vmax.f32 %v8903, 0.0
        %v8936 = vmax.f32 %v8904, 0.0
        %v8937 = vmax.f32 %v8905, 0.0
        %v8938 = vmax.f32 %v8906, 0.0
        %v8939 = vmax.f32 %v8907, 0.0
        %v8940 = vmax.f32 %v8908, 0.0
        %v8941 = vmax.f32 %v8909, 0.0
        %v8942 = vmax.f32 %v8910, 0.0
        %v8943 = vmax.f32 %v8911, 0.0
        %v8944 = vmax.f32 %v8912, 0.0
        %v8945 = vmax.f32 %v8913, 0.0
        %v8946 = vmax.f32 %v8914, 0.0
        %v8947 = vmax.f32 %v8915, 0.0
        %v8948 = vmax.f32 %v8916, 0.0
        %v8949 = vmax.f32 %v8917, 0.0
        %v8950 = vmax.f32 %v8918, 0.0
        %v8951 = vmax.f32 %v8919, 0.0
        %v8952 = vmax.f32 %v8920, 0.0
        %v8953 = vmax.f32 %v8921, 0.0
        %v8954 = vmax.f32 %v8922, 0.0
        %v8955 = vmax.f32 %v8923, 0.0
        %v8956 = vmax.f32 %v8924, 0.0
        %v8957 = vmax.f32 %v8925, 0.0
        %v8958 = vmax.f32 %v8926, 0.0
        %v8959 = vmax.f32 %v8927, 0.0
        %v8960 = vmax.f32 %v8928, 0.0
        %v8961 = vmax.f32 %v8929, 0.0
        %v8962 = vmax.f32 %v8930, 0.0
        %v8963 = vmax.f32 %v8931, 0.0
        %v8964 = vmax.f32 %v8932, 0.0
        %v8965 = vmax.f32 %v8933, 0.0
        %v8966 = vmax.f32 %v8934, 0.0
        %8967 = vst [vmem:[%s442] sm:$0xff] %v8935
        %8968 = vst [vmem:[%s442 + $0x8] sm:$0xff] %v8936
        %8969 = vst [vmem:[%s442 + $0x10] sm:$0xff] %v8937
        %8970 = vst [vmem:[%s442 + $0x18] sm:$0xff] %v8938
        %8971 = vst [vmem:[%s442 + $0x20] sm:$0xff] %v8939
        %8972 = vst [vmem:[%s442 + $0x28] sm:$0xff] %v8940
        %8973 = vst [vmem:[%s442 + $0x30] sm:$0xff] %v8941
        %8974 = vst [vmem:[%s442 + $0x38] sm:$0xff] %v8942
        %8975 = vst [vmem:[%s442 + $0x40] sm:$0xff] %v8943
        %8976 = vst [vmem:[%s442 + $0x48] sm:$0xff] %v8944
        %8977 = vst [vmem:[%s442 + $0x50] sm:$0xff] %v8945
        %8978 = vst [vmem:[%s442 + $0x58] sm:$0xff] %v8946
        %8979 = vst [vmem:[%s442 + $0x60] sm:$0xff] %v8947
        %8980 = vst [vmem:[%s442 + $0x68] sm:$0xff] %v8948
        %8981 = vst [vmem:[%s442 + $0x70] sm:$0xff] %v8949
        %8982 = vst [vmem:[%s442 + $0x78] sm:$0xff] %v8950
        %8983 = vst [vmem:[%s442 + $0x80] sm:$0xff] %v8951
        %8984 = vst [vmem:[%s442 + $0x88] sm:$0xff] %v8952
        %8985 = vst [vmem:[%s442 + $0x90] sm:$0xff] %v8953
        %8986 = vst [vmem:[%s442 + $0x98] sm:$0xff] %v8954
        %8987 = vst [vmem:[%s442 + $0xa0] sm:$0xff] %v8955
        %8988 = vst [vmem:[%s442 + $0xa8] sm:$0xff] %v8956
        %8989 = vst [vmem:[%s442 + $0xb0] sm:$0xff] %v8957
        %8990 = vst [vmem:[%s442 + $0xb8] sm:$0xff] %v8958
        %8991 = vst [vmem:[%s442 + $0xc0] sm:$0xff] %v8959
        %8992 = vst [vmem:[%s442 + $0xc8] sm:$0xff] %v8960
        %8993 = vst [vmem:[%s442 + $0xd0] sm:$0xff] %v8961
        %8994 = vst [vmem:[%s442 + $0xd8] sm:$0xff] %v8962
        %8995 = vst [vmem:[%s442 + $0xe0] sm:$0xff] %v8963
        %8996 = vst [vmem:[%s442 + $0xe8] sm:$0xff] %v8964
        %8997 = vst [vmem:[%s442 + $0xf0] sm:$0xff] %v8965
        %8998 = vst [vmem:[%s442 + $0xf8] sm:$0xff] %v8966
        %s8999 = sand.u32 %s217, 1
        %s9000 = scalar_lea.sflag [#allocation6], %s8999
        %s9001 = sand.u32 %s217, 1
        %s9002 = smul.addr %s9001, 256
        %s9003 = scalar_lea.vmem [#allocation18], %s9002
        // Predicated region
        $region85: #{up_block_forward.3} parent=51 // pred_check
          %p9004 = pneg %p227
        $region86: #{up_block_forward.3} parent=51 // pred_check_branch
          %9006 = sbr.rel (%p9004) target = $region88
        $region87: #{up_block_forward.3} parent=51 // pred_region
          %s9008 = ssub.s32 4096, 4096
          %9009 = vsyncadd %s9000, %s9008
          %s9010 = smul.addr %s31, 32
          %s9011 = smul.addr %s9010, 128
          %s9012 = scalar_lea.hbm %s8, %s9011
          %s9013 = sshll.u32 %s9003, 4
          %s9014 = int_to_ptr.vmem [resolvable:$true] %s9013
          %9019 = dma.vmem_to_hbm [thread:$0]  %s9014, 4096, %s9012, %s9000, 128, 128, 8
        $region88: #{up_block_forward.3} parent=51 // pred_fallthru
          _
      $region52: #{up_block_forward.3} parent=5 // pred_fallthru
        _
      %p9020 = scmp.le.s32.totalorder 2, %s26
      // Predicated region
      $region89: #{up_block_forward.3} parent=5 // pred_check
        %p9021 = pneg %p9020
      $region90: #{up_block_forward.3} parent=5 // pred_check_branch
        %9023 = sbr.rel (%p9021) target = $region92
      $region91: #{up_block_forward.3} parent=5 // pred_region
        %s9024 = ssub.s32 %s26, 2
        // Predicated region
        $region93: #{up_block_forward.3} parent=91 // pred_check
          %p9025 = pneg %p233
        $region94: #{up_block_forward.3} parent=91 // pred_check_branch
          %9027 = sbr.rel (%p9025) target = $region96
        $region95: #{up_block_forward.3} parent=91 // pred_region
          %s9028 = sand.u32 %s218, 1
          %s9029 = scalar_lea.sflag [#allocation6], %s9028
          %s9030 = sand.u32 %s218, 1
          %s9031 = smul.addr %s9030, 256
          %s9032 = scalar_lea.vmem [#allocation18], %s9031
          %9033 = dma.done %s9029, 4096
        $region96: #{up_block_forward.3} parent=91 // pred_fallthru
          _
      $region92: #{up_block_forward.3} parent=5 // pred_fallthru
        _
    $region6: #{up_block_forward.3} parent=1 // loop_footer
      %s30 = sadd.s32 1, %s26
    $region7: #{up_block_forward.3} parent=1 // loop_footer_branch
      %25 = sbr.rel target = $region3
    $region8: #{up_block_forward.3} parent=1 // loop_exit
      _
    %9034 = vsyncpa [#allocation5], 1
    %s9035 = scalar_lea.sflag [#allocation5], 1
    %9036 = vsyncpa %s9035, 1
    %9037 = vsyncpa [#allocation8], 1
    %s9038 = scalar_lea.sflag [#allocation8], 1
    %9039 = vsyncpa %s9038, 1
    %9040 = vsyncpa [#allocation11], 1
    %9041 = vsyncpa [#allocation14], 1
    %9042 = vsyncpa [#allocation17], 1
    %9043 = vsyncpa [#allocation6], 1
    %s9044 = scalar_lea.sflag [#allocation6], 1
    %9045 = vsyncpa %s9044, 1

</llo_original>
